<compile_context>
chip_gen: v7x
topology: tpu7x:2x2x1
jax: 0.10.0
libtpu: 0.0.40
codegen_flags: <defaults>
</compile_context>

<pallas_src>
import jax
import jax.numpy as jnp
from jax.experimental import pallas as pl
from jax.experimental.pallas import tpu as pltpu

# Keep f32-accurate matmuls so the kernel matches the f32 reference tightly.
# (For large-scale deployment on v6e/v7x one would cast to bf16 with f32
#  accumulation instead -- secondary at these tiny, overhead-bound sizes.)
jax.config.update("jax_default_matmul_precision", "highest")

# Small synthetic sizes consistent with the module's forward.
N, C_IN, C_OUT, T, V = 2, 16, 16, 16, 16
K = 3                       # max_graph_distance + 1 (kernel_size[1] = 2)
TWS = 9                     # temporal window size (kernel_size[0])
PAD = (TWS - 1) // 2
EPS = 1e-5


def _resgcn_fused_kernel(x_ref, aet_ref, wgbd_ref, b1_ref, q2_ref, b2_ref, o_ref):
    """Fused scn + tcn for one sample; everything in the lane-dense (V, T*C) layout."""
    x = x_ref[0]                                            # (V, T*C_in) = (16, 256)

    # --- spatial graph conv (scn); BN1 + graph-propagated conv bias folded in ---
    s = b1_ref[...]                                         # (V, T*C_out)
    for k in range(K):                                      # K = 3, unrolled
        # graph contraction over source nodes v: (V,V) @ (V, T*C) lane-dense
        z = jnp.dot(aet_ref[k], x, preferred_element_type=jnp.float32)
        # 1x1-conv channel mix i->c as block-diagonal (T*C, T*C) right-multiply
        s = s + jnp.dot(z, wgbd_ref[k], preferred_element_type=jnp.float32)
    h = jnp.maximum(s, 0.0)                                 # ReLU (block residual = 0)

    # --- temporal (9,1) conv (tcn) as ONE banded block-Toeplitz matmul over t ---
    # Q2[t'*C+i, t*C+c] = Wt[t'-t+PAD, i, c] * s2[c] (zero outside the 9-tap band),
    # so the zero padding of the conv is implicit and BN2 + conv bias are folded.
    y = jnp.dot(h, q2_ref[...], preferred_element_type=jnp.float32) + b2_ref[...]
    y = y + x                                               # module residual (identity)
    o_ref[0] = jnp.maximum(y, 0.0)                          # final ReLU


def resgcn_module_forward(x_nchw, A, params):
    n = x_nchw.shape[0]
    # The identity residual and layout reuse require in_channels == out_channels.
    assert C_IN == C_OUT, "Basic block with identity residual needs C_IN == C_OUT"
    f32 = jnp.float32

    # NCHW (N, C, T, V) -> lane-dense (N, V, T*C): [n, w, t*C + i] = x[n, i, t, w]
    x_vt = jnp.transpose(x_nchw, (0, 3, 2, 1)).reshape(n, V, T * C_IN).astype(f32)

    # ---- parameter-only precomputation (hoisted out of the kernel) ----
    Ae = (A * params["edge"]).astype(f32)                   # A * self.edge, (K, V, V)
    AeT = jnp.swapaxes(Ae, 1, 2)                            # [k, w, v]

    # Fold BatchNorm running stats (inference) into per-channel scale/shift.
    s1 = params["gamma1"] / jnp.sqrt(params["var1"] + EPS)
    t1 = params["beta1"] - params["mean1"] * s1
    s2 = params["gamma2"] / jnp.sqrt(params["var2"] + EPS)
    t2 = params["beta2"] - params["mean2"] * s2

    # Spatial channel mix Wg[k] (with BN1 scale folded) as kron(I_T, Wg[k]*s1).
    eye_t = jnp.eye(T, dtype=f32)
    WgBD = jnp.stack([jnp.kron(eye_t, params["Wg"][k] * s1[None, :])
                      for k in range(K)])                   # (K, T*C_in, T*C_out)

    # 1x1-conv bias propagated through the graph contraction, plus BN1 shift.
    colsum = jnp.sum(Ae, axis=1)                            # (K, V): sum_v Ae[k, v, w]
    bias_wc = jnp.einsum("kw,kc->wc", colsum, params["bg"]) # (V, C_out)
    B1 = bias_wc * s1[None, :] + t1[None, :]                # (V, C_out)
    B1 = jnp.tile(B1[:, None, :], (1, T, 1)).reshape(V, T * C_OUT)

    # Temporal (9,1) conv as a banded block-Toeplitz matrix over time (BN2 folded).
    tt = jnp.arange(T)
    dt = tt[:, None] - tt[None, :] + PAD                    # (t_src, t_out)
    valid = (dt >= 0) & (dt < TWS)
    blocks = jnp.where(valid[:, :, None, None],
                       params["Wt"][jnp.clip(dt, 0, TWS - 1)], 0.0)   # (T,T,C_in,C_out)
    Q2 = (blocks * s2[None, None, None, :]).transpose(0, 2, 1, 3)
    Q2 = Q2.reshape(T * C_OUT, T * C_OUT)
    b2 = jnp.tile(params["bt"] * s2 + t2, T).reshape(1, T * C_OUT)

    # Constant-indexed blocks are fetched once (block index never changes).
    out_vt = pl.pallas_call(
        _resgcn_fused_kernel,
        out_shape=jax.ShapeDtypeStruct((n, V, T * C_OUT), f32),
        grid=(n,),
        in_specs=[
            pl.BlockSpec((1, V, T * C_IN), lambda i: (i, 0, 0)),
            pl.BlockSpec((K, V, V), lambda i: (0, 0, 0)),
            pl.BlockSpec((K, T * C_IN, T * C_OUT), lambda i: (0, 0, 0)),
            pl.BlockSpec((V, T * C_OUT), lambda i: (0, 0)),
            pl.BlockSpec((T * C_OUT, T * C_OUT), lambda i: (0, 0)),
            pl.BlockSpec((1, T * C_OUT), lambda i: (0, 0)),
        ],
        out_specs=pl.BlockSpec((1, V, T * C_OUT), lambda i: (i, 0, 0)),
        compiler_params=pltpu.CompilerParams(dimension_semantics=("parallel",)),
    )(x_vt, AeT, WgBD, B1, Q2, b2)

    # (N, V, T*C) -> (N, V, T, C) -> NCHW (N, C, T, V)
    return jnp.transpose(out_vt.reshape(n, V, T, C_OUT), (0, 3, 2, 1))


def init_params(key):
    ks = jax.random.split(key, 13)
    p = {}
    # self.edge = nn.Parameter(torch.ones_like(A)) -- perturbed deterministically so
    # the A * edge multiply is exercised (module init would be exactly ones).
    p["edge"] = 1.0 + 0.05 * jax.random.normal(ks[0], (K, V, V), jnp.float32)
    # Spatial graph conv: nn.Conv2d(C_IN, K*C_OUT, 1) -> Wg[k, ci, co], bg[k, co]
    p["Wg"] = 0.1 * jax.random.normal(ks[1], (K, C_IN, C_OUT), jnp.float32)
    p["bg"] = 0.1 * jax.random.normal(ks[2], (K, C_OUT), jnp.float32)
    # BatchNorm2d(C_OUT) after the spatial conv.
    p["gamma1"] = 1.0 + 0.1 * jax.random.normal(ks[3], (C_OUT,), jnp.float32)
    p["beta1"] = 0.1 * jax.random.normal(ks[4], (C_OUT,), jnp.float32)
    p["mean1"] = 0.1 * jax.random.normal(ks[5], (C_OUT,), jnp.float32)
    p["var1"] = 1.0 + 0.2 * jax.random.uniform(ks[6], (C_OUT,), jnp.float32)
    # Temporal conv: nn.Conv2d(C_OUT, C_OUT, (TWS,1), (1,1), (PAD,0)) -> Wt[dt, ci, co]
    p["Wt"] = 0.1 * jax.random.normal(ks[7], (TWS, C_OUT, C_OUT), jnp.float32)
    p["bt"] = 0.1 * jax.random.normal(ks[8], (C_OUT,), jnp.float32)
    # BatchNorm2d(C_OUT) after the temporal conv.
    p["gamma2"] = 1.0 + 0.1 * jax.random.normal(ks[9], (C_OUT,), jnp.float32)
    p["beta2"] = 0.1 * jax.random.normal(ks[10], (C_OUT,), jnp.float32)
    p["mean2"] = 0.1 * jax.random.normal(ks[11], (C_OUT,), jnp.float32)
    p["var2"] = 1.0 + 0.2 * jax.random.uniform(ks[12], (C_OUT,), jnp.float32)
    return p


def reference_forward(x_nchw, A, p):
    """Pure-JAX reference mirroring the PyTorch forward (NCHW)."""
    Ae = A * p["edge"]
    s1 = p["gamma1"] / jnp.sqrt(p["var1"] + EPS); t1 = p["beta1"] - p["mean1"] * s1
    s2 = p["gamma2"] / jnp.sqrt(p["var2"] + EPS); t2 = p["beta2"] - p["mean2"] * s2
    # scn: 1x1 conv -> einsum('nkctv,kvw->nctw') -> BN -> ReLU (block residual = 0)
    xg = jnp.einsum("nitv,kic->nkctv", x_nchw, p["Wg"]) + p["bg"][None, :, :, None, None]
    s = jnp.einsum("nkctv,kvw->nctw", xg, Ae)
    h = jax.nn.relu(s * s1[None, :, None, None] + t1[None, :, None, None])
    # tcn: (TWS,1) conv, stride 1, pad (PAD,0) -> BN -> + identity residual -> ReLU
    hp = jnp.pad(h, ((0, 0), (0, 0), (PAD, PAD), (0, 0)))
    y = jnp.zeros_like(h)
    for dt in range(TWS):
        y = y + jnp.einsum("nitv,ic->nctv", hp[:, :, dt:dt + T, :], p["Wt"][dt])
    y = y + p["bt"][None, :, None, None]
    y = y * s2[None, :, None, None] + t2[None, :, None, None]
    return jax.nn.relu(y + x_nchw)


if __name__ == "__main__":
    key = jax.random.PRNGKey(0)
    kx, ka, kp = jax.random.split(key, 3)
    x = jax.random.normal(kx, (N, C_IN, T, V), jnp.float32)   # PyTorch NCHW: (N, C, T, V)
    A = jax.random.uniform(ka, (K, V, V), jnp.float32)
    params = init_params(kp)

    out = jax.block_until_ready(resgcn_module_forward(x, A, params))
    ref = jax.block_until_ready(reference_forward(x, A, params))

    assert out.shape == (N, C_OUT, T, V), out.shape
    max_err = float(jnp.max(jnp.abs(out - ref)))
    if not bool(jnp.allclose(out, ref, atol=1e-3, rtol=1e-3)):
        raise AssertionError(f"kernel/reference mismatch, max abs err = {max_err}")
    print("KERNEL_OK")
</pallas_src>

<mosaic_0001>
module attributes {stable_mosaic.version = 11 : i64} {
  func.func @_resgcn_fused_kernel(%arg0: i32, %arg1: memref<1x16x256xf32, #tpu.memory_space<vmem>>, %arg2: memref<3x16x16xf32, #tpu.memory_space<vmem>>, %arg3: memref<3x256x256xf32, #tpu.memory_space<vmem>>, %arg4: memref<16x256xf32, #tpu.memory_space<vmem>>, %arg5: memref<256x256xf32, #tpu.memory_space<vmem>>, %arg6: memref<1x256xf32, #tpu.memory_space<vmem>>, %arg7: memref<1x16x256xf32, #tpu.memory_space<vmem>>) attributes {dimension_semantics = [#tpu.dimension_semantics<parallel>], iteration_bounds = array<i64: 2>, scalar_prefetch = 0 : i64, scratch_operands = 0 : i64, tpu.core_type = #tpu.core_type<tc>, window_params = [{transform_indices = @transform_0, window_bounds = array<i64: 1, 16, 256>}, {pipeline_mode = #tpu.pipeline_mode<synchronous>, transform_indices = @transform_1, window_bounds = array<i64: 3, 16, 16>}, {pipeline_mode = #tpu.pipeline_mode<synchronous>, transform_indices = @transform_2, window_bounds = array<i64: 3, 256, 256>}, {pipeline_mode = #tpu.pipeline_mode<synchronous>, transform_indices = @transform_3, window_bounds = array<i64: 16, 256>}, {pipeline_mode = #tpu.pipeline_mode<synchronous>, transform_indices = @transform_4, window_bounds = array<i64: 256, 256>}, {pipeline_mode = #tpu.pipeline_mode<synchronous>, transform_indices = @transform_5, window_bounds = array<i64: 1, 256>}, {transform_indices = @transform_6, window_bounds = array<i64: 1, 16, 256>}]} {
    %c0 = arith.constant 0 : index
    %c0_0 = arith.constant 0 : index
    %c0_1 = arith.constant 0 : index
    %0 = vector.load %arg1[%c0, %c0_0, %c0_1] : memref<1x16x256xf32, #tpu.memory_space<vmem>>, vector<1x16x256xf32>
    %1 = vector.shape_cast %0 : vector<1x16x256xf32> to vector<16x256xf32>
    %c0_2 = arith.constant 0 : index
    %c0_3 = arith.constant 0 : index
    %2 = vector.load %arg4[%c0_2, %c0_3] : memref<16x256xf32, #tpu.memory_space<vmem>>, vector<16x256xf32>
    %c0_4 = arith.constant 0 : index
    %c0_5 = arith.constant 0 : index
    %c0_6 = arith.constant 0 : index
    %3 = vector.load %arg2[%c0_4, %c0_5, %c0_6] : memref<3x16x16xf32, #tpu.memory_space<vmem>>, vector<1x16x16xf32>
    %4 = vector.shape_cast %3 : vector<1x16x16xf32> to vector<16x16xf32>
    %cst = arith.constant dense<0.000000e+00> : vector<16x256xf32>
    %5 = tpu.matmul %4, %1, %cst {dimension_numbers = #tpu.dot_dimension_numbers<[1], [0], [0], [1], [0, 0, 1, 1], [], []>, precision = #tpu.contract_precision<fp32>} : vector<16x16xf32>, vector<16x256xf32>, vector<16x256xf32> -> vector<16x256xf32>
    %c0_7 = arith.constant 0 : index
    %c0_8 = arith.constant 0 : index
    %c0_9 = arith.constant 0 : index
    %6 = vector.load %arg3[%c0_7, %c0_8, %c0_9] : memref<3x256x256xf32, #tpu.memory_space<vmem>>, vector<1x256x256xf32>
    %7 = vector.shape_cast %6 : vector<1x256x256xf32> to vector<256x256xf32>
    %cst_10 = arith.constant dense<0.000000e+00> : vector<16x256xf32>
    %8 = tpu.matmul %5, %7, %cst_10 {dimension_numbers = #tpu.dot_dimension_numbers<[1], [0], [0], [1], [0, 0, 1, 1], [], []>, precision = #tpu.contract_precision<fp32>} : vector<16x256xf32>, vector<256x256xf32>, vector<16x256xf32> -> vector<16x256xf32>
    %9 = arith.addf %2, %8 : vector<16x256xf32>
    %c1 = arith.constant 1 : index
    %c0_11 = arith.constant 0 : index
    %c0_12 = arith.constant 0 : index
    %10 = vector.load %arg2[%c1, %c0_11, %c0_12] : memref<3x16x16xf32, #tpu.memory_space<vmem>>, vector<1x16x16xf32>
    %11 = vector.shape_cast %10 : vector<1x16x16xf32> to vector<16x16xf32>
    %cst_13 = arith.constant dense<0.000000e+00> : vector<16x256xf32>
    %12 = tpu.matmul %11, %1, %cst_13 {dimension_numbers = #tpu.dot_dimension_numbers<[1], [0], [0], [1], [0, 0, 1, 1], [], []>, precision = #tpu.contract_precision<fp32>} : vector<16x16xf32>, vector<16x256xf32>, vector<16x256xf32> -> vector<16x256xf32>
    %c1_14 = arith.constant 1 : index
    %c0_15 = arith.constant 0 : index
    %c0_16 = arith.constant 0 : index
    %13 = vector.load %arg3[%c1_14, %c0_15, %c0_16] : memref<3x256x256xf32, #tpu.memory_space<vmem>>, vector<1x256x256xf32>
    %14 = vector.shape_cast %13 : vector<1x256x256xf32> to vector<256x256xf32>
    %cst_17 = arith.constant dense<0.000000e+00> : vector<16x256xf32>
    %15 = tpu.matmul %12, %14, %cst_17 {dimension_numbers = #tpu.dot_dimension_numbers<[1], [0], [0], [1], [0, 0, 1, 1], [], []>, precision = #tpu.contract_precision<fp32>} : vector<16x256xf32>, vector<256x256xf32>, vector<16x256xf32> -> vector<16x256xf32>
    %16 = arith.addf %9, %15 : vector<16x256xf32>
    %c2 = arith.constant 2 : index
    %c0_18 = arith.constant 0 : index
    %c0_19 = arith.constant 0 : index
    %17 = vector.load %arg2[%c2, %c0_18, %c0_19] : memref<3x16x16xf32, #tpu.memory_space<vmem>>, vector<1x16x16xf32>
    %18 = vector.shape_cast %17 : vector<1x16x16xf32> to vector<16x16xf32>
    %cst_20 = arith.constant dense<0.000000e+00> : vector<16x256xf32>
    %19 = tpu.matmul %18, %1, %cst_20 {dimension_numbers = #tpu.dot_dimension_numbers<[1], [0], [0], [1], [0, 0, 1, 1], [], []>, precision = #tpu.contract_precision<fp32>} : vector<16x16xf32>, vector<16x256xf32>, vector<16x256xf32> -> vector<16x256xf32>
    %c2_21 = arith.constant 2 : index
    %c0_22 = arith.constant 0 : index
    %c0_23 = arith.constant 0 : index
    %20 = vector.load %arg3[%c2_21, %c0_22, %c0_23] : memref<3x256x256xf32, #tpu.memory_space<vmem>>, vector<1x256x256xf32>
    %21 = vector.shape_cast %20 : vector<1x256x256xf32> to vector<256x256xf32>
    %cst_24 = arith.constant dense<0.000000e+00> : vector<16x256xf32>
    %22 = tpu.matmul %19, %21, %cst_24 {dimension_numbers = #tpu.dot_dimension_numbers<[1], [0], [0], [1], [0, 0, 1, 1], [], []>, precision = #tpu.contract_precision<fp32>} : vector<16x256xf32>, vector<256x256xf32>, vector<16x256xf32> -> vector<16x256xf32>
    %23 = arith.addf %16, %22 : vector<16x256xf32>
    %cst_25 = arith.constant 0.000000e+00 : f32
    %24 = vector.broadcast %cst_25 : f32 to vector<16x256xf32>
    %25 = arith.maximumf %23, %24 : vector<16x256xf32>
    %c0_26 = arith.constant 0 : index
    %c0_27 = arith.constant 0 : index
    %26 = vector.load %arg5[%c0_26, %c0_27] : memref<256x256xf32, #tpu.memory_space<vmem>>, vector<256x256xf32>
    %cst_28 = arith.constant dense<0.000000e+00> : vector<16x256xf32>
    %27 = tpu.matmul %25, %26, %cst_28 {dimension_numbers = #tpu.dot_dimension_numbers<[1], [0], [0], [1], [0, 0, 1, 1], [], []>, precision = #tpu.contract_precision<fp32>} : vector<16x256xf32>, vector<256x256xf32>, vector<16x256xf32> -> vector<16x256xf32>
    %c0_29 = arith.constant 0 : index
    %c0_30 = arith.constant 0 : index
    %28 = vector.load %arg6[%c0_29, %c0_30] : memref<1x256xf32, #tpu.memory_space<vmem>>, vector<1x256xf32>
    %29 = vector.broadcast %28 : vector<1x256xf32> to vector<16x256xf32>
    %30 = arith.addf %27, %29 : vector<16x256xf32>
    %31 = arith.addf %30, %1 : vector<16x256xf32>
    %cst_31 = arith.constant 0.000000e+00 : f32
    %32 = vector.broadcast %cst_31 : f32 to vector<16x256xf32>
    %33 = arith.maximumf %31, %32 : vector<16x256xf32>
    %c0_32 = arith.constant 0 : index
    %c0_33 = arith.constant 0 : index
    %c0_34 = arith.constant 0 : index
    %34 = vector.load %arg7[%c0_32, %c0_33, %c0_34] : memref<1x16x256xf32, #tpu.memory_space<vmem>>, vector<1x16x256xf32>
    %35 = vector.shape_cast %34 : vector<1x16x256xf32> to vector<16x256xf32>
    %36 = vector.shape_cast %33 : vector<16x256xf32> to vector<1x16x256xf32>
    tpu.vector_store %arg7[%c0_32, %c0_33, %c0_34], %36 {strides = array<i32>} : memref<1x16x256xf32, #tpu.memory_space<vmem>>, vector<1x16x256xf32>,
    return
  }
  func.func @transform_0(%arg0: i32) -> (i32, i32, i32) {
    %c0_i32 = arith.constant 0 : i32
    %c0_i32_0 = arith.constant 0 : i32
    %c0_i32_1 = arith.constant 0 : i32
    return %arg0, %c0_i32, %c0_i32_0 : i32, i32, i32
  }
  func.func @transform_1(%arg0: i32) -> (i32, i32, i32) {
    %c0_i32 = arith.constant 0 : i32
    %c0_i32_0 = arith.constant 0 : i32
    %c0_i32_1 = arith.constant 0 : i32
    %c0_i32_2 = arith.constant 0 : i32
    return %c0_i32, %c0_i32_0, %c0_i32_1 : i32, i32, i32
  }
  func.func @transform_2(%arg0: i32) -> (i32, i32, i32) {
    %c0_i32 = arith.constant 0 : i32
    %c0_i32_0 = arith.constant 0 : i32
    %c0_i32_1 = arith.constant 0 : i32
    %c0_i32_2 = arith.constant 0 : i32
    return %c0_i32, %c0_i32_0, %c0_i32_1 : i32, i32, i32
  }
  func.func @transform_3(%arg0: i32) -> (i32, i32) {
    %c0_i32 = arith.constant 0 : i32
    %c0_i32_0 = arith.constant 0 : i32
    %c0_i32_1 = arith.constant 0 : i32
    return %c0_i32, %c0_i32_0 : i32, i32
  }
  func.func @transform_4(%arg0: i32) -> (i32, i32) {
    %c0_i32 = arith.constant 0 : i32
    %c0_i32_0 = arith.constant 0 : i32
    %c0_i32_1 = arith.constant 0 : i32
    return %c0_i32, %c0_i32_0 : i32, i32
  }
  func.func @transform_5(%arg0: i32) -> (i32, i32) {
    %c0_i32 = arith.constant 0 : i32
    %c0_i32_0 = arith.constant 0 : i32
    %c0_i32_1 = arith.constant 0 : i32
    return %c0_i32, %c0_i32_0 : i32, i32
  }
  func.func @transform_6(%arg0: i32) -> (i32, i32, i32) {
    %c0_i32 = arith.constant 0 : i32
    %c0_i32_0 = arith.constant 0 : i32
    %c0_i32_1 = arith.constant 0 : i32
    return %arg0, %c0_i32, %c0_i32_0 : i32, i32, i32
  }
}

</mosaic_0001>

<llo_original>
// kernel: tpu_custom_call.1
$region0: #{tpu_custom_call.1}
  #allocation0 [shape = 'u32[]', space=smem, size = 0x4, offset = 0x4, fixed_abs, tag = 'smem constant byte address 0x4 - core index']
  #allocation1 [shape = 'u32[144,128]{1,0:T(1,128)}', space=vmem, size = 0x12000, scoped, tag = 'internal scratch']
  %s0 = inlined_call_operand.hbm [shape: f32[2,16,256], index: 0, kind: input, shape index: {}]
  %s1 = inlined_call_operand.hbm [shape: f32[3,16,16], index: 1, kind: input, shape index: {}]
  %s2 = inlined_call_operand.hbm [shape: f32[3,256,256], index: 2, kind: input, shape index: {}]
  %s3 = inlined_call_operand.hbm [shape: f32[16,256], index: 3, kind: input, shape index: {}]
  %s4 = inlined_call_operand.hbm [shape: f32[256,256], index: 4, kind: input, shape index: {}]
  %s5 = inlined_call_operand.vmem [shape: f32[1,256], index: 5, kind: input, shape index: {}]
  %s6 = inlined_call_operand.hbm [shape: f32[2,16,256], index: 6, kind: output, shape index: {}]
  %s7 = sld [smem:[#allocation0]]
  $region77: #{tpu_custom_call.1} parent=0
    _
  %s9 = ssub.s32 1, %s7
  %s10 = scalar_select 0, %s9, %s7
  $region1: #{tpu_custom_call.1} parent=0
    #allocation2 [shape = 'u8[32768]{0}', space=vmem, size = 0x8000, scoped, tag = 'input window, operand 0']
    #allocation3 [shape = 's32[2]{0}', space=sflag, size = 0x8, scoped, tag = 'scoped memory for tpu_custom_call.1']
    #allocation4 [shape = 's32[2]{0}', space=sflag, size = 0x8, scoped, tag = 'scoped memory for tpu_custom_call.1']
    #allocation5 [shape = 'u8[24576]{0}', space=vmem, size = 0x6000, scoped, tag = 'input window, operand 1, single buffered']
    #allocation6 [shape = 's32[1]{0}', space=sflag, size = 0x4, scoped, tag = 'scoped memory for tpu_custom_call.1']
    #allocation7 [shape = 'u8[786432]{0}', space=vmem, size = 0xc0000, scoped, tag = 'input window, operand 2, single buffered']
    #allocation8 [shape = 'u8[16384]{0}', space=vmem, size = 0x4000, scoped, tag = 'input window, operand 3, single buffered']
    #allocation9 [shape = 's32[1]{0}', space=sflag, size = 0x4, scoped, tag = 'scoped memory for tpu_custom_call.1']
    #allocation10 [shape = 'u8[262144]{0}', space=vmem, size = 0x40000, scoped, tag = 'input window, operand 4, single buffered']
    #allocation11 [shape = 'u8[32768]{0}', space=vmem, size = 0x8000, scoped, tag = 'output window, operand 0']
    %11 = vsyncpa [#allocation3], 0
    %s12 = scalar_lea.sflag [#allocation3], 1
    %13 = vsyncpa %s12, 0
    %14 = vsyncpa [#allocation6], 0
    %15 = vsyncpa [#allocation9], 0
    %16 = vsyncpa [#allocation4], 0
    %s17 = scalar_lea.sflag [#allocation4], 1
    %18 = vsyncpa %s17, 0
    loop: start=0, step=1, limit=4
    $region2: #{tpu_custom_call.1} parent=1 // loop_pre_header
      _
    $region3: #{tpu_custom_call.1} parent=1 // loop_header
      %s20 = sphi 0, %s24
      %p21 = scmp.ge.s32.totalorder %s20, 4
      %s30 = sphi 0, %s32
      %s33 = sphi 0, %s30
      %s34 = sphi 0, %s33
      %s50 = sphi 0, %s34
      %s54 = sphi 0, %s54
      %s56 = sphi 0, %s54
      %s57 = sphi 0, %s56
      %s71 = sphi 0, %s57
      %s75 = sphi 0, %s75
      %s77 = sphi 0, %s75
      %s78 = sphi 0, %s77
      %s92 = sphi 0, %s78
      %s96 = sphi 0, %s96
      %s98 = sphi 0, %s96
      %s99 = sphi 0, %s98
      %s113 = sphi 0, %s99
      %s117 = sphi 0, %s117
      %s119 = sphi 0, %s117
      %s120 = sphi 0, %s119
      %s134 = sphi 0, %s120
      %s138 = sphi 0, %s138
      %s140 = sphi 0, %s138
      %s141 = sphi 0, %s140
      %s155 = sphi 0, %s141
      %s161 = sphi 0, %s163
      %s164 = sphi 0, %s161
      %s165 = sphi 0, %s164
      %s181 = sphi 0, %s165
    $region4: #{tpu_custom_call.1} parent=1 // loop_header_branch
      %23 = sbr.rel (%p21) target = $region8
    $region5: #{tpu_custom_call.1} parent=1 // loop_body
      %s25 = ssub.s32 %s20, 1
      %s26 = ssub.s32 %s20, 2
      %s27 = sadd.s32 %s20, 1
      %s28 = ssub.s32 %s20, %s27
      %p29 = scmp.eq.s32.totalorder %s28, 0
      %s31 = sadd.s32 %s30, 1
      %s32 = scalar_select %p29, %s30, %s31
      %p35 = pneg %p29
      %p36 = scmp.eq.s32.totalorder %s20, 1
      %p37 = por %p35, %p36
      %p38 = scmp.ne.s32.totalorder %s30, %s33
      %p39 = scmp.eq.s32.totalorder %s20, 0
      %p40 = por %p38, %p39
      %p41 = scmp.ne.s32.totalorder %s30, %s33
      %p42 = scmp.eq.s32.totalorder %s25, 1
      %p43 = por %p41, %p42
      %p44 = scmp.ne.s32.totalorder %s33, %s34
      %p45 = scmp.eq.s32.totalorder %s25, 0
      %p46 = por %p44, %p45
      %p47 = scmp.ne.s32.totalorder %s33, %s34
      %p48 = scmp.eq.s32.totalorder %s26, 1
      %p49 = por %p47, %p48
      %p51 = scmp.ne.s32.totalorder %s34, %s50
      %p52 = scmp.eq.s32.totalorder %s26, 0
      %p53 = por %p51, %p52
      %s55 = sadd.s32 %s54, 1
      %p58 = scmp.eq.s32.totalorder %s20, 1
      %p59 = scmp.ne.s32.totalorder %s54, %s56
      %p60 = scmp.eq.s32.totalorder %s20, 0
      %p61 = por %p59, %p60
      %p62 = scmp.ne.s32.totalorder %s54, %s56
      %p63 = scmp.eq.s32.totalorder %s25, 1
      %p64 = por %p62, %p63
      %p65 = scmp.ne.s32.totalorder %s56, %s57
      %p66 = scmp.eq.s32.totalorder %s25, 0
      %p67 = por %p65, %p66
      %p68 = scmp.ne.s32.totalorder %s56, %s57
      %p69 = scmp.eq.s32.totalorder %s26, 1
      %p70 = por %p68, %p69
      %p72 = scmp.ne.s32.totalorder %s57, %s71
      %p73 = scmp.eq.s32.totalorder %s26, 0
      %p74 = por %p72, %p73
      %s76 = sadd.s32 %s75, 1
      %p79 = scmp.eq.s32.totalorder %s20, 1
      %p80 = scmp.ne.s32.totalorder %s75, %s77
      %p81 = scmp.eq.s32.totalorder %s20, 0
      %p82 = por %p80, %p81
      %p83 = scmp.ne.s32.totalorder %s75, %s77
      %p84 = scmp.eq.s32.totalorder %s25, 1
      %p85 = por %p83, %p84
      %p86 = scmp.ne.s32.totalorder %s77, %s78
      %p87 = scmp.eq.s32.totalorder %s25, 0
      %p88 = por %p86, %p87
      %p89 = scmp.ne.s32.totalorder %s77, %s78
      %p90 = scmp.eq.s32.totalorder %s26, 1
      %p91 = por %p89, %p90
      %p93 = scmp.ne.s32.totalorder %s78, %s92
      %p94 = scmp.eq.s32.totalorder %s26, 0
      %p95 = por %p93, %p94
      %s97 = sadd.s32 %s96, 1
      %p100 = scmp.eq.s32.totalorder %s20, 1
      %p101 = scmp.ne.s32.totalorder %s96, %s98
      %p102 = scmp.eq.s32.totalorder %s20, 0
      %p103 = por %p101, %p102
      %p104 = scmp.ne.s32.totalorder %s96, %s98
      %p105 = scmp.eq.s32.totalorder %s25, 1
      %p106 = por %p104, %p105
      %p107 = scmp.ne.s32.totalorder %s98, %s99
      %p108 = scmp.eq.s32.totalorder %s25, 0
      %p109 = por %p107, %p108
      %p110 = scmp.ne.s32.totalorder %s98, %s99
      %p111 = scmp.eq.s32.totalorder %s26, 1
      %p112 = por %p110, %p111
      %p114 = scmp.ne.s32.totalorder %s99, %s113
      %p115 = scmp.eq.s32.totalorder %s26, 0
      %p116 = por %p114, %p115
      %s118 = sadd.s32 %s117, 1
      %p121 = scmp.eq.s32.totalorder %s20, 1
      %p122 = scmp.ne.s32.totalorder %s117, %s119
      %p123 = scmp.eq.s32.totalorder %s20, 0
      %p124 = por %p122, %p123
      %p125 = scmp.ne.s32.totalorder %s117, %s119
      %p126 = scmp.eq.s32.totalorder %s25, 1
      %p127 = por %p125, %p126
      %p128 = scmp.ne.s32.totalorder %s119, %s120
      %p129 = scmp.eq.s32.totalorder %s25, 0
      %p130 = por %p128, %p129
      %p131 = scmp.ne.s32.totalorder %s119, %s120
      %p132 = scmp.eq.s32.totalorder %s26, 1
      %p133 = por %p131, %p132
      %p135 = scmp.ne.s32.totalorder %s120, %s134
      %p136 = scmp.eq.s32.totalorder %s26, 0
      %p137 = por %p135, %p136
      %s139 = sadd.s32 %s138, 1
      %p142 = scmp.eq.s32.totalorder %s20, 1
      %p143 = scmp.ne.s32.totalorder %s138, %s140
      %p144 = scmp.eq.s32.totalorder %s20, 0
      %p145 = por %p143, %p144
      %p146 = scmp.ne.s32.totalorder %s138, %s140
      %p147 = scmp.eq.s32.totalorder %s25, 1
      %p148 = por %p146, %p147
      %p149 = scmp.ne.s32.totalorder %s140, %s141
      %p150 = scmp.eq.s32.totalorder %s25, 0
      %p151 = por %p149, %p150
      %p152 = scmp.ne.s32.totalorder %s140, %s141
      %p153 = scmp.eq.s32.totalorder %s26, 1
      %p154 = por %p152, %p153
      %p156 = scmp.ne.s32.totalorder %s141, %s155
      %p157 = scmp.eq.s32.totalorder %s26, 0
      %p158 = por %p156, %p157
      %s159 = ssub.s32 %s20, %s27
      %p160 = scmp.eq.s32.totalorder %s159, 0
      %s162 = sadd.s32 %s161, 1
      %s163 = scalar_select %p160, %s161, %s162
      %p166 = pneg %p160
      %p167 = scmp.eq.s32.totalorder %s20, 1
      %p168 = por %p166, %p167
      %p169 = scmp.ne.s32.totalorder %s161, %s164
      %p170 = scmp.eq.s32.totalorder %s20, 0
      %p171 = por %p169, %p170
      %p172 = scmp.ne.s32.totalorder %s161, %s164
      %p173 = scmp.eq.s32.totalorder %s25, 1
      %p174 = por %p172, %p173
      %p175 = scmp.ne.s32.totalorder %s164, %s165
      %p176 = scmp.eq.s32.totalorder %s25, 0
      %p177 = por %p175, %p176
      %p178 = scmp.ne.s32.totalorder %s164, %s165
      %p179 = scmp.eq.s32.totalorder %s26, 1
      %p180 = por %p178, %p179
      %p182 = scmp.ne.s32.totalorder %s165, %s181
      %p183 = scmp.eq.s32.totalorder %s26, 0
      %p184 = por %p182, %p183
      %p185 = scmp.le.s32.totalorder 1, %s20
      %p186 = scmp.lt.s32.totalorder %s20, 3
      %p187 = pnand %p185, %p186
      %p188 = pneg %p187
      // Predicated region
      $region9: #{tpu_custom_call.1} parent=5 // pred_check
        _
      $region10: #{tpu_custom_call.1} parent=5 // pred_check_branch
        %190 = sbr.rel (%p187) target = $region12
      $region11: #{tpu_custom_call.1} parent=5 // pred_region
        %s191 = ssub.s32 %s20, 1
        // Predicated region
        $region13: #{tpu_custom_call.1} parent=11 // pred_check
          %p192 = pneg %p67
        $region14: #{tpu_custom_call.1} parent=11 // pred_check_branch
          %194 = sbr.rel (%p192) target = $region16
        $region15: #{tpu_custom_call.1} parent=11 // pred_region
          %s196 = ssub.s32 768, 768
          %197 = vsyncadd [#allocation6], %s196
          %s198 = sshll.u32 [#allocation5], 4
          %s199 = int_to_ptr.vmem [resolvable:$true] %s198
          %204 = dma.hbm_to_vmem [thread:$0]  %s1, 768, %s199, [#allocation6], 128, 128, 8
        $region16: #{tpu_custom_call.1} parent=11 // pred_fallthru
          _
        // Predicated region
        $region17: #{tpu_custom_call.1} parent=11 // pred_check
          %p205 = pneg %p88
        $region18: #{tpu_custom_call.1} parent=11 // pred_check_branch
          %207 = sbr.rel (%p205) target = $region20
        $region19: #{tpu_custom_call.1} parent=11 // pred_region
          %s209 = ssub.s32 24576, 24576
          %210 = vsyncadd [#allocation6], %s209
          %s211 = sshll.u32 [#allocation7], 4
          %s212 = int_to_ptr.vmem [resolvable:$true] %s211
          %217 = dma.hbm_to_vmem [thread:$0]  %s2, 24576, %s212, [#allocation6], 256, 256, 16
        $region20: #{tpu_custom_call.1} parent=11 // pred_fallthru
          _
        // Predicated region
        $region21: #{tpu_custom_call.1} parent=11 // pred_check
          %p218 = pneg %p109
        $region22: #{tpu_custom_call.1} parent=11 // pred_check_branch
          %220 = sbr.rel (%p218) target = $region24
        $region23: #{tpu_custom_call.1} parent=11 // pred_region
          %s222 = ssub.s32 512, 512
          %223 = vsyncadd [#allocation9], %s222
          %s224 = sshll.u32 [#allocation8], 4
          %s225 = int_to_ptr.vmem [resolvable:$true] %s224
          %230 = dma.hbm_to_vmem [thread:$0]  %s3, 512, %s225, [#allocation9], 256, 256, 16
        $region24: #{tpu_custom_call.1} parent=11 // pred_fallthru
          _
        // Predicated region
        $region25: #{tpu_custom_call.1} parent=11 // pred_check
          %p231 = pneg %p130
        $region26: #{tpu_custom_call.1} parent=11 // pred_check_branch
          %233 = sbr.rel (%p231) target = $region28
        $region27: #{tpu_custom_call.1} parent=11 // pred_region
          %s235 = ssub.s32 8192, 8192
          %236 = vsyncadd [#allocation9], %s235
          %s237 = sshll.u32 [#allocation10], 4
          %s238 = int_to_ptr.vmem [resolvable:$true] %s237
          %243 = dma.hbm_to_vmem [thread:$0]  %s4, 8192, %s238, [#allocation9], 256, 256, 16
        $region28: #{tpu_custom_call.1} parent=11 // pred_fallthru
          _
        // Predicated region
        $region29: #{tpu_custom_call.1} parent=11 // pred_check
          %p244 = pneg %p151
        $region30: #{tpu_custom_call.1} parent=11 // pred_check_branch
          %246 = sbr.rel (%p244) target = $region32
        $region31: #{tpu_custom_call.1} parent=11 // pred_region
          _
        $region32: #{tpu_custom_call.1} parent=11 // pred_fallthru
          _
      $region12: #{tpu_custom_call.1} parent=5 // pred_fallthru
        _
      %p247 = scmp.lt.s32.totalorder %s20, 2
      // Predicated region
      $region33: #{tpu_custom_call.1} parent=5 // pred_check
        %p248 = pneg %p247
      $region34: #{tpu_custom_call.1} parent=5 // pred_check_branch
        %250 = sbr.rel (%p248) target = $region36
      $region35: #{tpu_custom_call.1} parent=5 // pred_region
        // Predicated region
        $region37: #{tpu_custom_call.1} parent=35 // pred_check
          %p251 = pneg %p40
        $region38: #{tpu_custom_call.1} parent=35 // pred_check_branch
          %253 = sbr.rel (%p251) target = $region40
        $region39: #{tpu_custom_call.1} parent=35 // pred_region
          %s254 = sand.u32 %s30, 1
          %s255 = scalar_lea.sflag [#allocation3], %s254
          %s256 = sand.u32 %s30, 1
          %s257 = smul.addr %s256, 32
          %s258 = scalar_lea.vmem [#allocation2], %s257
          %s260 = ssub.s32 512, 512
          %261 = vsyncadd %s255, %s260
          %s262 = smul.addr %s20, 4
          %s263 = smul.addr %s262, 128
          %s264 = scalar_lea.hbm %s0, %s263
          %s265 = sshll.u32 %s258, 4
          %s266 = int_to_ptr.vmem [resolvable:$true] %s265
          %271 = dma.hbm_to_vmem [thread:$0]  %s264, 512, %s266, %s255, 256, 256, 16
        $region40: #{tpu_custom_call.1} parent=35 // pred_fallthru
          _
      $region36: #{tpu_custom_call.1} parent=5 // pred_fallthru
        _
      %p272 = scmp.le.s32.totalorder 1, %s20
      %p273 = scmp.lt.s32.totalorder %s20, 3
      %p274 = pnand %p272, %p273
      %p275 = pneg %p274
      // Predicated region
      $region41: #{tpu_custom_call.1} parent=5 // pred_check
        _
      $region42: #{tpu_custom_call.1} parent=5 // pred_check_branch
        %277 = sbr.rel (%p274) target = $region44
      $region43: #{tpu_custom_call.1} parent=5 // pred_region
        %s278 = ssub.s32 %s20, 1
        %s279 = sand.u32 %s33, 1
        %s280 = scalar_lea.sflag [#allocation3], %s279
        %s281 = sand.u32 %s33, 1
        %s282 = smul.addr %s281, 32
        %s283 = scalar_lea.vmem [#allocation2], %s282
        // Predicated region
        $region45: #{tpu_custom_call.1} parent=43 // pred_check
          %p284 = pneg %p46
        $region46: #{tpu_custom_call.1} parent=43 // pred_check_branch
          %286 = sbr.rel (%p284) target = $region48
        $region47: #{tpu_custom_call.1} parent=43 // pred_region
          %287 = dma.done %s280, 512
        $region48: #{tpu_custom_call.1} parent=43 // pred_fallthru
          _
        // Predicated region
        $region49: #{tpu_custom_call.1} parent=43 // pred_check
          %p288 = pneg %p67
        $region50: #{tpu_custom_call.1} parent=43 // pred_check_branch
          %290 = sbr.rel (%p288) target = $region52
        $region51: #{tpu_custom_call.1} parent=43 // pred_region
          %291 = dma.done [#allocation6], 768
        $region52: #{tpu_custom_call.1} parent=43 // pred_fallthru
          _
        // Predicated region
        $region53: #{tpu_custom_call.1} parent=43 // pred_check
          %p292 = pneg %p88
        $region54: #{tpu_custom_call.1} parent=43 // pred_check_branch
          %294 = sbr.rel (%p292) target = $region56
        $region55: #{tpu_custom_call.1} parent=43 // pred_region
          %295 = dma.done [#allocation6], 24576
        $region56: #{tpu_custom_call.1} parent=43 // pred_fallthru
          _
        // Predicated region
        $region57: #{tpu_custom_call.1} parent=43 // pred_check
          %p296 = pneg %p109
        $region58: #{tpu_custom_call.1} parent=43 // pred_check_branch
          %298 = sbr.rel (%p296) target = $region60
        $region59: #{tpu_custom_call.1} parent=43 // pred_region
          %299 = dma.done [#allocation9], 512
        $region60: #{tpu_custom_call.1} parent=43 // pred_fallthru
          _
        // Predicated region
        $region61: #{tpu_custom_call.1} parent=43 // pred_check
          %p300 = pneg %p130
        $region62: #{tpu_custom_call.1} parent=43 // pred_check_branch
          %302 = sbr.rel (%p300) target = $region64
        $region63: #{tpu_custom_call.1} parent=43 // pred_region
          %303 = dma.done [#allocation9], 8192
        $region64: #{tpu_custom_call.1} parent=43 // pred_fallthru
          _
        %s304 = sand.u32 %s33, 1
        %s305 = scalar_lea.sflag [#allocation3], %s304
        %s306 = sand.u32 %s33, 1
        %s307 = smul.addr %s306, 32
        %s308 = scalar_lea.vmem [#allocation2], %s307
        %p309 = pneg %p46
        %p310 = pneg %p43
        %p311 = pneg %p67
        %p312 = pneg %p64
        %p313 = pneg %p88
        %p314 = pneg %p85
        %p315 = pneg %p109
        %p316 = pneg %p106
        %p317 = pneg %p130
        %p318 = pneg %p127
        %p319 = pneg %p151
        %p320 = pneg %p148
        %p321 = pneg %p177
        %p322 = pneg %p174
        %s323 = sand.u32 %s164, 1
        %s324 = scalar_lea.sflag [#allocation4], %s323
        %s325 = sand.u32 %s164, 1
        %s326 = smul.addr %s325, 32
        %s327 = scalar_lea.vmem [#allocation11], %s326
        %v328 = vld [vmem:[%s283] sm:$0xff]
        %v329 = vld [vmem:[%s283 + $0x8] sm:$0xff]
        %v330 = vld [vmem:[%s283 + $0x10] sm:$0xff]
        %v331 = vld [vmem:[%s283 + $0x18] sm:$0xff]
        %v332 = vld [vmem:[#allocation8] sm:$0xff]
        %v333 = vld [vmem:[#allocation8 + $0x8] sm:$0xff]
        %v334 = vld [vmem:[#allocation8 + $0x10] sm:$0xff]
        %v335 = vld [vmem:[#allocation8 + $0x18] sm:$0xff]
        %v336 = vld [vmem:[#allocation5] sm:$0xff]
        %v337 = vld [vmem:[#allocation5 + $0x8] sm:$0xff]
        %vm338 = vcmask 130048
        %v340 = vsel %vm338, %v336, 0
        %v343 = vsel %vm338, %v337, 0
        %v345 = vand.u32 %v329, 4294901760
        %346 = vmatprep.subr.mxu0 %v345
        %v347 = vand.u32 %v328, 4294901760
        %348 = vmatpush1.msra.mxu0 %v347
        %v349 = vand.u32 %v331, 4294901760
        %350 = vmatprep.subr.mxu0 %v349
        %v351 = vand.u32 %v330, 4294901760
        %352 = vmatpush1.msra.mxu0 %v351
        %353 = vmatprep.subr.mxu0 0.0
        %354 = vmatpush1.msra.mxu0 0.0
        %355 = vmatprep.subr.mxu0 0.0
        %356 = vmatpush1.msra.mxu0 0.0
        %357 = vmatprep.subr.mxu0 0.0
        %358 = vmatpush1.msra.mxu0 0.0
        %359 = vmatprep.subr.mxu0 0.0
        %360 = vmatpush1.msra.mxu0 0.0
        %361 = vmatprep.subr.mxu0 0.0
        %362 = vmatpush1.msra.mxu0 0.0
        %363 = vmatprep.subr.mxu0 0.0
        %364 = vmatpush1.msra.mxu0 0.0
        %365 = vmatprep.subr.mxu0 0.0
        %366 = vmatpush1.msra.mxu0 0.0
        %367 = vmatprep.subr.mxu0 0.0
        %368 = vmatpush1.msra.mxu0 0.0
        %369 = vmatprep.subr.mxu0 0.0
        %370 = vmatpush1.msra.mxu0 0.0
        %371 = vmatprep.subr.mxu0 0.0
        %372 = vmatpush1.msra.mxu0 0.0
        %373 = vmatprep.subr.mxu0 0.0
        %374 = vmatpush1.msra.mxu0 0.0
        %375 = vmatprep.subr.mxu0 0.0
        %376 = vmatpush1.msra.mxu0 0.0
        %377 = vmatprep.subr.mxu0 0.0
        %378 = vmatpush1.msra.mxu0 0.0
        %379 = vmatprep.subr.mxu0 0.0
        %380 = vmatpush1.msra.mxu0 0.0
        %381 = vmatprep.subr.mxu0 0.0
        %382 = vmatpush1.msra.mxu0 0.0
        %383 = vmatprep.subr.mxu0 0.0
        %384 = vmatpush1.msra.mxu0 0.0
        %385 = vmatprep.subr.mxu0 0.0
        %386 = vmatpush1.msra.mxu0 0.0
        %387 = vmatprep.subr.mxu0 0.0
        %388 = vmatpush1.msra.mxu0 0.0
        %389 = vmatprep.subr.mxu0 0.0
        %390 = vmatpush1.msra.mxu0 0.0
        %391 = vmatprep.subr.mxu0 0.0
        %392 = vmatpush1.msra.mxu0 0.0
        %393 = vmatprep.subr.mxu0 0.0
        %394 = vmatpush1.msra.mxu0 0.0
        %395 = vmatprep.subr.mxu0 0.0
        %396 = vmatpush1.msra.mxu0 0.0
        %397 = vmatprep.subr.mxu0 0.0
        %398 = vmatpush1.msra.mxu0 0.0
        %399 = vmatprep.subr.mxu0 0.0
        %400 = vmatpush1.msra.mxu0 0.0
        %401 = vmatprep.subr.mxu0 0.0
        %402 = vmatpush1.msra.mxu0 0.0
        %403 = vmatprep.subr.mxu0 0.0
        %404 = vmatpush1.msra.mxu0 0.0
        %405 = vmatprep.subr.mxu0 0.0
        %406 = vmatpush1.msra.mxu0 0.0
        %407 = vmatprep.subr.mxu0 0.0
        %408 = vmatpush1.msra.mxu0 0.0
        %409 = vmatprep.subr.mxu0 0.0
        %410 = vmatpush1.msra.mxu0 0.0
        %411 = vmatprep.subr.mxu0 0.0
        %412 = vmatpush1.msra.mxu0 0.0
        %413 = vmatprep.mubr.f32.mxu0 0.0
        %v414 = vand.u32 %v340, 4294901760
        %v415 = vsub.f32 %v340, %v414
        %v416 = vand.u32 %v415, 4294901760
        %v417 = vsub.f32 %v415, %v416
        %v418 = vand.u32 %v417, 4294901760
        %419 = vmatmul.mubr.f32.gmra.mrb[0].mxu0 %v418
        %v420 = vpop.f32.mrb[0].mxu0
        %v421 = vadd.f32 0.0, %v420
        %v422 = vpop.f32.mrb[0].mxu0
        %v423 = vadd.f32 0.0, %v422
        %424 = vmatprep.mubr.f32.mxu0 0.0
        %v425 = vand.u32 %v343, 4294901760
        %v426 = vsub.f32 %v343, %v425
        %v427 = vand.u32 %v426, 4294901760
        %v428 = vsub.f32 %v426, %v427
        %v429 = vand.u32 %v428, 4294901760
        %430 = vmatmul.mubr.f32.gmra.mrb[0].mxu0 %v429
        %v431 = vpop.f32.mrb[0].mxu0
        %v432 = vadd.f32 0.0, %v431
        %v433 = vpop.f32.mrb[0].mxu0
        %v434 = vadd.f32 0.0, %v433
        %435 = vdwg.mxu0
        %v436 = vand.u32 %v329, 4294901760
        %v437 = vsub.f32 %v329, %v436
        %v438 = vand.u32 %v437, 4294901760
        %v439 = vsub.f32 %v437, %v438
        %v440 = vand.u32 %v439, 4294901760
        %441 = vmatprep.subr.mxu0 %v440
        %v442 = vand.u32 %v328, 4294901760
        %v443 = vsub.f32 %v328, %v442
        %v444 = vand.u32 %v443, 4294901760
        %v445 = vsub.f32 %v443, %v444
        %v446 = vand.u32 %v445, 4294901760
        %447 = vmatpush1.msra.mxu0 %v446
        %v448 = vand.u32 %v331, 4294901760
        %v449 = vsub.f32 %v331, %v448
        %v450 = vand.u32 %v449, 4294901760
        %v451 = vsub.f32 %v449, %v450
        %v452 = vand.u32 %v451, 4294901760
        %453 = vmatprep.subr.mxu0 %v452
        %v454 = vand.u32 %v330, 4294901760
        %v455 = vsub.f32 %v330, %v454
        %v456 = vand.u32 %v455, 4294901760
        %v457 = vsub.f32 %v455, %v456
        %v458 = vand.u32 %v457, 4294901760
        %459 = vmatpush1.msra.mxu0 %v458
        %460 = vmatprep.subr.mxu0 0.0
        %461 = vmatpush1.msra.mxu0 0.0
        %462 = vmatprep.subr.mxu0 0.0
        %463 = vmatpush1.msra.mxu0 0.0
        %464 = vmatprep.subr.mxu0 0.0
        %465 = vmatpush1.msra.mxu0 0.0
        %466 = vmatprep.subr.mxu0 0.0
        %467 = vmatpush1.msra.mxu0 0.0
        %468 = vmatprep.subr.mxu0 0.0
        %469 = vmatpush1.msra.mxu0 0.0
        %470 = vmatprep.subr.mxu0 0.0
        %471 = vmatpush1.msra.mxu0 0.0
        %472 = vmatprep.subr.mxu0 0.0
        %473 = vmatpush1.msra.mxu0 0.0
        %474 = vmatprep.subr.mxu0 0.0
        %475 = vmatpush1.msra.mxu0 0.0
        %476 = vmatprep.subr.mxu0 0.0
        %477 = vmatpush1.msra.mxu0 0.0
        %478 = vmatprep.subr.mxu0 0.0
        %479 = vmatpush1.msra.mxu0 0.0
        %480 = vmatprep.subr.mxu0 0.0
        %481 = vmatpush1.msra.mxu0 0.0
        %482 = vmatprep.subr.mxu0 0.0
        %483 = vmatpush1.msra.mxu0 0.0
        %484 = vmatprep.subr.mxu0 0.0
        %485 = vmatpush1.msra.mxu0 0.0
        %486 = vmatprep.subr.mxu0 0.0
        %487 = vmatpush1.msra.mxu0 0.0
        %488 = vmatprep.subr.mxu0 0.0
        %489 = vmatpush1.msra.mxu0 0.0
        %490 = vmatprep.subr.mxu0 0.0
        %491 = vmatpush1.msra.mxu0 0.0
        %492 = vmatprep.subr.mxu0 0.0
        %493 = vmatpush1.msra.mxu0 0.0
        %494 = vmatprep.subr.mxu0 0.0
        %495 = vmatpush1.msra.mxu0 0.0
        %496 = vmatprep.subr.mxu0 0.0
        %497 = vmatpush1.msra.mxu0 0.0
        %498 = vmatprep.subr.mxu0 0.0
        %499 = vmatpush1.msra.mxu0 0.0
        %500 = vmatprep.subr.mxu0 0.0
        %501 = vmatpush1.msra.mxu0 0.0
        %502 = vmatprep.subr.mxu0 0.0
        %503 = vmatpush1.msra.mxu0 0.0
        %504 = vmatprep.subr.mxu0 0.0
        %505 = vmatpush1.msra.mxu0 0.0
        %506 = vmatprep.subr.mxu0 0.0
        %507 = vmatpush1.msra.mxu0 0.0
        %508 = vmatprep.subr.mxu0 0.0
        %509 = vmatpush1.msra.mxu0 0.0
        %510 = vmatprep.subr.mxu0 0.0
        %511 = vmatpush1.msra.mxu0 0.0
        %512 = vmatprep.subr.mxu0 0.0
        %513 = vmatpush1.msra.mxu0 0.0
        %514 = vmatprep.subr.mxu0 0.0
        %515 = vmatpush1.msra.mxu0 0.0
        %516 = vmatprep.subr.mxu0 0.0
        %517 = vmatpush1.msra.mxu0 0.0
        %518 = vmatprep.subr.mxu0 0.0
        %519 = vmatpush1.msra.mxu0 0.0
        %520 = vmatprep.mubr.f32.mxu0 0.0
        %v521 = vand.u32 %v340, 4294901760
        %522 = vmatmul.mubr.f32.gmra.mrb[0].mxu0 %v521
        %v523 = vpop.f32.mrb[0].mxu0
        %v524 = vadd.f32 %v421, %v523
        %v525 = vpop.f32.mrb[0].mxu0
        %v526 = vadd.f32 %v423, %v525
        %527 = vmatprep.mubr.f32.mxu0 0.0
        %v528 = vand.u32 %v343, 4294901760
        %529 = vmatmul.mubr.f32.gmra.mrb[0].mxu0 %v528
        %v530 = vpop.f32.mrb[0].mxu0
        %v531 = vadd.f32 %v432, %v530
        %v532 = vpop.f32.mrb[0].mxu0
        %v533 = vadd.f32 %v434, %v532
        %534 = vdwg.mxu0
        %v535 = vand.u32 %v329, 4294901760
        %v536 = vsub.f32 %v329, %v535
        %537 = vmatprep.subr.mxu0 %v536
        %v538 = vand.u32 %v328, 4294901760
        %v539 = vsub.f32 %v328, %v538
        %540 = vmatpush1.msra.mxu0 %v539
        %v541 = vand.u32 %v331, 4294901760
        %v542 = vsub.f32 %v331, %v541
        %543 = vmatprep.subr.mxu0 %v542
        %v544 = vand.u32 %v330, 4294901760
        %v545 = vsub.f32 %v330, %v544
        %546 = vmatpush1.msra.mxu0 %v545
        %547 = vmatprep.subr.mxu0 0.0
        %548 = vmatpush1.msra.mxu0 0.0
        %549 = vmatprep.subr.mxu0 0.0
        %550 = vmatpush1.msra.mxu0 0.0
        %551 = vmatprep.subr.mxu0 0.0
        %552 = vmatpush1.msra.mxu0 0.0
        %553 = vmatprep.subr.mxu0 0.0
        %554 = vmatpush1.msra.mxu0 0.0
        %555 = vmatprep.subr.mxu0 0.0
        %556 = vmatpush1.msra.mxu0 0.0
        %557 = vmatprep.subr.mxu0 0.0
        %558 = vmatpush1.msra.mxu0 0.0
        %559 = vmatprep.subr.mxu0 0.0
        %560 = vmatpush1.msra.mxu0 0.0
        %561 = vmatprep.subr.mxu0 0.0
        %562 = vmatpush1.msra.mxu0 0.0
        %563 = vmatprep.subr.mxu0 0.0
        %564 = vmatpush1.msra.mxu0 0.0
        %565 = vmatprep.subr.mxu0 0.0
        %566 = vmatpush1.msra.mxu0 0.0
        %567 = vmatprep.subr.mxu0 0.0
        %568 = vmatpush1.msra.mxu0 0.0
        %569 = vmatprep.subr.mxu0 0.0
        %570 = vmatpush1.msra.mxu0 0.0
        %571 = vmatprep.subr.mxu0 0.0
        %572 = vmatpush1.msra.mxu0 0.0
        %573 = vmatprep.subr.mxu0 0.0
        %574 = vmatpush1.msra.mxu0 0.0
        %575 = vmatprep.subr.mxu0 0.0
        %576 = vmatpush1.msra.mxu0 0.0
        %577 = vmatprep.subr.mxu0 0.0
        %578 = vmatpush1.msra.mxu0 0.0
        %579 = vmatprep.subr.mxu0 0.0
        %580 = vmatpush1.msra.mxu0 0.0
        %581 = vmatprep.subr.mxu0 0.0
        %582 = vmatpush1.msra.mxu0 0.0
        %583 = vmatprep.subr.mxu0 0.0
        %584 = vmatpush1.msra.mxu0 0.0
        %585 = vmatprep.subr.mxu0 0.0
        %586 = vmatpush1.msra.mxu0 0.0
        %587 = vmatprep.subr.mxu0 0.0
        %588 = vmatpush1.msra.mxu0 0.0
        %589 = vmatprep.subr.mxu0 0.0
        %590 = vmatpush1.msra.mxu0 0.0
        %591 = vmatprep.subr.mxu0 0.0
        %592 = vmatpush1.msra.mxu0 0.0
        %593 = vmatprep.subr.mxu0 0.0
        %594 = vmatpush1.msra.mxu0 0.0
        %595 = vmatprep.subr.mxu0 0.0
        %596 = vmatpush1.msra.mxu0 0.0
        %597 = vmatprep.subr.mxu0 0.0
        %598 = vmatpush1.msra.mxu0 0.0
        %599 = vmatprep.subr.mxu0 0.0
        %600 = vmatpush1.msra.mxu0 0.0
        %601 = vmatprep.subr.mxu0 0.0
        %602 = vmatpush1.msra.mxu0 0.0
        %603 = vmatprep.subr.mxu0 0.0
        %604 = vmatpush1.msra.mxu0 0.0
        %605 = vmatprep.subr.mxu0 0.0
        %606 = vmatpush1.msra.mxu0 0.0
        %607 = vmatprep.mubr.f32.mxu0 0.0
        %v608 = vand.u32 %v340, 4294901760
        %v609 = vsub.f32 %v340, %v608
        %610 = vmatmul.mubr.f32.gmra.mrb[0].mxu0 %v609
        %v611 = vpop.f32.mrb[0].mxu0
        %v612 = vadd.f32 %v524, %v611
        %v613 = vpop.f32.mrb[0].mxu0
        %v614 = vadd.f32 %v526, %v613
        %615 = vmatprep.mubr.f32.mxu0 0.0
        %v616 = vand.u32 %v343, 4294901760
        %v617 = vsub.f32 %v343, %v616
        %618 = vmatmul.mubr.f32.gmra.mrb[0].mxu0 %v617
        %v619 = vpop.f32.mrb[0].mxu0
        %v620 = vadd.f32 %v531, %v619
        %v621 = vpop.f32.mrb[0].mxu0
        %v622 = vadd.f32 %v533, %v621
        %623 = vdwg.mxu0
        %v624 = vand.u32 %v329, 4294901760
        %625 = vmatprep.subr.mxu0 %v624
        %v626 = vand.u32 %v328, 4294901760
        %627 = vmatpush1.msra.mxu0 %v626
        %v628 = vand.u32 %v331, 4294901760
        %629 = vmatprep.subr.mxu0 %v628
        %v630 = vand.u32 %v330, 4294901760
        %631 = vmatpush1.msra.mxu0 %v630
        %632 = vmatprep.subr.mxu0 0.0
        %633 = vmatpush1.msra.mxu0 0.0
        %634 = vmatprep.subr.mxu0 0.0
        %635 = vmatpush1.msra.mxu0 0.0
        %636 = vmatprep.subr.mxu0 0.0
        %637 = vmatpush1.msra.mxu0 0.0
        %638 = vmatprep.subr.mxu0 0.0
        %639 = vmatpush1.msra.mxu0 0.0
        %640 = vmatprep.subr.mxu0 0.0
        %641 = vmatpush1.msra.mxu0 0.0
        %642 = vmatprep.subr.mxu0 0.0
        %643 = vmatpush1.msra.mxu0 0.0
        %644 = vmatprep.subr.mxu0 0.0
        %645 = vmatpush1.msra.mxu0 0.0
        %646 = vmatprep.subr.mxu0 0.0
        %647 = vmatpush1.msra.mxu0 0.0
        %648 = vmatprep.subr.mxu0 0.0
        %649 = vmatpush1.msra.mxu0 0.0
        %650 = vmatprep.subr.mxu0 0.0
        %651 = vmatpush1.msra.mxu0 0.0
        %652 = vmatprep.subr.mxu0 0.0
        %653 = vmatpush1.msra.mxu0 0.0
        %654 = vmatprep.subr.mxu0 0.0
        %655 = vmatpush1.msra.mxu0 0.0
        %656 = vmatprep.subr.mxu0 0.0
        %657 = vmatpush1.msra.mxu0 0.0
        %658 = vmatprep.subr.mxu0 0.0
        %659 = vmatpush1.msra.mxu0 0.0
        %660 = vmatprep.subr.mxu0 0.0
        %661 = vmatpush1.msra.mxu0 0.0
        %662 = vmatprep.subr.mxu0 0.0
        %663 = vmatpush1.msra.mxu0 0.0
        %664 = vmatprep.subr.mxu0 0.0
        %665 = vmatpush1.msra.mxu0 0.0
        %666 = vmatprep.subr.mxu0 0.0
        %667 = vmatpush1.msra.mxu0 0.0
        %668 = vmatprep.subr.mxu0 0.0
        %669 = vmatpush1.msra.mxu0 0.0
        %670 = vmatprep.subr.mxu0 0.0
        %671 = vmatpush1.msra.mxu0 0.0
        %672 = vmatprep.subr.mxu0 0.0
        %673 = vmatpush1.msra.mxu0 0.0
        %674 = vmatprep.subr.mxu0 0.0
        %675 = vmatpush1.msra.mxu0 0.0
        %676 = vmatprep.subr.mxu0 0.0
        %677 = vmatpush1.msra.mxu0 0.0
        %678 = vmatprep.subr.mxu0 0.0
        %679 = vmatpush1.msra.mxu0 0.0
        %680 = vmatprep.subr.mxu0 0.0
        %681 = vmatpush1.msra.mxu0 0.0
        %682 = vmatprep.subr.mxu0 0.0
        %683 = vmatpush1.msra.mxu0 0.0
        %684 = vmatprep.subr.mxu0 0.0
        %685 = vmatpush1.msra.mxu0 0.0
        %686 = vmatprep.subr.mxu0 0.0
        %687 = vmatpush1.msra.mxu0 0.0
        %688 = vmatprep.subr.mxu0 0.0
        %689 = vmatpush1.msra.mxu0 0.0
        %690 = vmatprep.subr.mxu0 0.0
        %691 = vmatpush1.msra.mxu0 0.0
        %692 = vmatprep.mubr.f32.mxu0 0.0
        %v693 = vand.u32 %v340, 4294901760
        %v694 = vsub.f32 %v340, %v693
        %v695 = vand.u32 %v694, 4294901760
        %696 = vmatmul.mubr.f32.gmra.mrb[0].mxu0 %v695
        %v697 = vpop.f32.mrb[0].mxu0
        %v698 = vadd.f32 %v612, %v697
        %v699 = vpop.f32.mrb[0].mxu0
        %v700 = vadd.f32 %v614, %v699
        %701 = vmatprep.mubr.f32.mxu0 0.0
        %v702 = vand.u32 %v343, 4294901760
        %v703 = vsub.f32 %v343, %v702
        %v704 = vand.u32 %v703, 4294901760
        %705 = vmatmul.mubr.f32.gmra.mrb[0].mxu0 %v704
        %v706 = vpop.f32.mrb[0].mxu0
        %v707 = vadd.f32 %v620, %v706
        %v708 = vpop.f32.mrb[0].mxu0
        %v709 = vadd.f32 %v622, %v708
        %710 = vdwg.mxu0
        %v711 = vand.u32 %v329, 4294901760
        %v712 = vsub.f32 %v329, %v711
        %v713 = vand.u32 %v712, 4294901760
        %714 = vmatprep.subr.mxu0 %v713
        %v715 = vand.u32 %v328, 4294901760
        %v716 = vsub.f32 %v328, %v715
        %v717 = vand.u32 %v716, 4294901760
        %718 = vmatpush1.msra.mxu0 %v717
        %v719 = vand.u32 %v331, 4294901760
        %v720 = vsub.f32 %v331, %v719
        %v721 = vand.u32 %v720, 4294901760
        %722 = vmatprep.subr.mxu0 %v721
        %v723 = vand.u32 %v330, 4294901760
        %v724 = vsub.f32 %v330, %v723
        %v725 = vand.u32 %v724, 4294901760
        %726 = vmatpush1.msra.mxu0 %v725
        %727 = vmatprep.subr.mxu0 0.0
        %728 = vmatpush1.msra.mxu0 0.0
        %729 = vmatprep.subr.mxu0 0.0
        %730 = vmatpush1.msra.mxu0 0.0
        %731 = vmatprep.subr.mxu0 0.0
        %732 = vmatpush1.msra.mxu0 0.0
        %733 = vmatprep.subr.mxu0 0.0
        %734 = vmatpush1.msra.mxu0 0.0
        %735 = vmatprep.subr.mxu0 0.0
        %736 = vmatpush1.msra.mxu0 0.0
        %737 = vmatprep.subr.mxu0 0.0
        %738 = vmatpush1.msra.mxu0 0.0
        %739 = vmatprep.subr.mxu0 0.0
        %740 = vmatpush1.msra.mxu0 0.0
        %741 = vmatprep.subr.mxu0 0.0
        %742 = vmatpush1.msra.mxu0 0.0
        %743 = vmatprep.subr.mxu0 0.0
        %744 = vmatpush1.msra.mxu0 0.0
        %745 = vmatprep.subr.mxu0 0.0
        %746 = vmatpush1.msra.mxu0 0.0
        %747 = vmatprep.subr.mxu0 0.0
        %748 = vmatpush1.msra.mxu0 0.0
        %749 = vmatprep.subr.mxu0 0.0
        %750 = vmatpush1.msra.mxu0 0.0
        %751 = vmatprep.subr.mxu0 0.0
        %752 = vmatpush1.msra.mxu0 0.0
        %753 = vmatprep.subr.mxu0 0.0
        %754 = vmatpush1.msra.mxu0 0.0
        %755 = vmatprep.subr.mxu0 0.0
        %756 = vmatpush1.msra.mxu0 0.0
        %757 = vmatprep.subr.mxu0 0.0
        %758 = vmatpush1.msra.mxu0 0.0
        %759 = vmatprep.subr.mxu0 0.0
        %760 = vmatpush1.msra.mxu0 0.0
        %761 = vmatprep.subr.mxu0 0.0
        %762 = vmatpush1.msra.mxu0 0.0
        %763 = vmatprep.subr.mxu0 0.0
        %764 = vmatpush1.msra.mxu0 0.0
        %765 = vmatprep.subr.mxu0 0.0
        %766 = vmatpush1.msra.mxu0 0.0
        %767 = vmatprep.subr.mxu0 0.0
        %768 = vmatpush1.msra.mxu0 0.0
        %769 = vmatprep.subr.mxu0 0.0
        %770 = vmatpush1.msra.mxu0 0.0
        %771 = vmatprep.subr.mxu0 0.0
        %772 = vmatpush1.msra.mxu0 0.0
        %773 = vmatprep.subr.mxu0 0.0
        %774 = vmatpush1.msra.mxu0 0.0
        %775 = vmatprep.subr.mxu0 0.0
        %776 = vmatpush1.msra.mxu0 0.0
        %777 = vmatprep.subr.mxu0 0.0
        %778 = vmatpush1.msra.mxu0 0.0
        %779 = vmatprep.subr.mxu0 0.0
        %780 = vmatpush1.msra.mxu0 0.0
        %781 = vmatprep.subr.mxu0 0.0
        %782 = vmatpush1.msra.mxu0 0.0
        %783 = vmatprep.subr.mxu0 0.0
        %784 = vmatpush1.msra.mxu0 0.0
        %785 = vmatprep.subr.mxu0 0.0
        %786 = vmatpush1.msra.mxu0 0.0
        %787 = vmatprep.mubr.f32.mxu0 0.0
        %v788 = vand.u32 %v340, 4294901760
        %789 = vmatmul.mubr.f32.gmra.mrb[0].mxu0 %v788
        %v790 = vpop.f32.mrb[0].mxu0
        %v791 = vadd.f32 %v698, %v790
        %v792 = vpop.f32.mrb[0].mxu0
        %v793 = vadd.f32 %v700, %v792
        %794 = vmatprep.mubr.f32.mxu0 0.0
        %v795 = vand.u32 %v343, 4294901760
        %796 = vmatmul.mubr.f32.gmra.mrb[0].mxu0 %v795
        %v797 = vpop.f32.mrb[0].mxu0
        %v798 = vadd.f32 %v707, %v797
        %v799 = vpop.f32.mrb[0].mxu0
        %v800 = vadd.f32 %v709, %v799
        %801 = vdwg.mxu0
        %v802 = vand.u32 %v329, 4294901760
        %803 = vmatprep.subr.mxu0 %v802
        %v804 = vand.u32 %v328, 4294901760
        %805 = vmatpush1.msra.mxu0 %v804
        %v806 = vand.u32 %v331, 4294901760
        %807 = vmatprep.subr.mxu0 %v806
        %v808 = vand.u32 %v330, 4294901760
        %809 = vmatpush1.msra.mxu0 %v808
        %810 = vmatprep.subr.mxu0 0.0
        %811 = vmatpush1.msra.mxu0 0.0
        %812 = vmatprep.subr.mxu0 0.0
        %813 = vmatpush1.msra.mxu0 0.0
        %814 = vmatprep.subr.mxu0 0.0
        %815 = vmatpush1.msra.mxu0 0.0
        %816 = vmatprep.subr.mxu0 0.0
        %817 = vmatpush1.msra.mxu0 0.0
        %818 = vmatprep.subr.mxu0 0.0
        %819 = vmatpush1.msra.mxu0 0.0
        %820 = vmatprep.subr.mxu0 0.0
        %821 = vmatpush1.msra.mxu0 0.0
        %822 = vmatprep.subr.mxu0 0.0
        %823 = vmatpush1.msra.mxu0 0.0
        %824 = vmatprep.subr.mxu0 0.0
        %825 = vmatpush1.msra.mxu0 0.0
        %826 = vmatprep.subr.mxu0 0.0
        %827 = vmatpush1.msra.mxu0 0.0
        %828 = vmatprep.subr.mxu0 0.0
        %829 = vmatpush1.msra.mxu0 0.0
        %830 = vmatprep.subr.mxu0 0.0
        %831 = vmatpush1.msra.mxu0 0.0
        %832 = vmatprep.subr.mxu0 0.0
        %833 = vmatpush1.msra.mxu0 0.0
        %834 = vmatprep.subr.mxu0 0.0
        %835 = vmatpush1.msra.mxu0 0.0
        %836 = vmatprep.subr.mxu0 0.0
        %837 = vmatpush1.msra.mxu0 0.0
        %838 = vmatprep.subr.mxu0 0.0
        %839 = vmatpush1.msra.mxu0 0.0
        %840 = vmatprep.subr.mxu0 0.0
        %841 = vmatpush1.msra.mxu0 0.0
        %842 = vmatprep.subr.mxu0 0.0
        %843 = vmatpush1.msra.mxu0 0.0
        %844 = vmatprep.subr.mxu0 0.0
        %845 = vmatpush1.msra.mxu0 0.0
        %846 = vmatprep.subr.mxu0 0.0
        %847 = vmatpush1.msra.mxu0 0.0
        %848 = vmatprep.subr.mxu0 0.0
        %849 = vmatpush1.msra.mxu0 0.0
        %850 = vmatprep.subr.mxu0 0.0
        %851 = vmatpush1.msra.mxu0 0.0
        %852 = vmatprep.subr.mxu0 0.0
        %853 = vmatpush1.msra.mxu0 0.0
        %854 = vmatprep.subr.mxu0 0.0
        %855 = vmatpush1.msra.mxu0 0.0
        %856 = vmatprep.subr.mxu0 0.0
        %857 = vmatpush1.msra.mxu0 0.0
        %858 = vmatprep.subr.mxu0 0.0
        %859 = vmatpush1.msra.mxu0 0.0
        %860 = vmatprep.subr.mxu0 0.0
        %861 = vmatpush1.msra.mxu0 0.0
        %862 = vmatprep.subr.mxu0 0.0
        %863 = vmatpush1.msra.mxu0 0.0
        %864 = vmatprep.subr.mxu0 0.0
        %865 = vmatpush1.msra.mxu0 0.0
        %866 = vmatprep.subr.mxu0 0.0
        %867 = vmatpush1.msra.mxu0 0.0
        %868 = vmatprep.subr.mxu0 0.0
        %869 = vmatpush1.msra.mxu0 0.0
        %870 = vmatprep.mubr.f32.mxu0 0.0
        %v871 = vand.u32 %v340, 4294901760
        %872 = vmatmul.mubr.f32.gmra.mrb[0].mxu0 %v871
        %v873 = vpop.f32.mrb[0].mxu0
        %v874 = vadd.f32 %v791, %v873
        %v875 = vpop.f32.mrb[0].mxu0
        %v876 = vadd.f32 %v793, %v875
        %877 = vmatprep.mubr.f32.mxu0 0.0
        %v878 = vand.u32 %v343, 4294901760
        %879 = vmatmul.mubr.f32.gmra.mrb[0].mxu0 %v878
        %v880 = vpop.f32.mrb[0].mxu0
        %v881 = vadd.f32 %v798, %v880
        %v882 = vpop.f32.mrb[0].mxu0
        %v883 = vadd.f32 %v800, %v882
        %884 = vdwg.mxu0
        %v885 = vld [vmem:[#allocation7] sm:$0xff]
        %v886 = vld [vmem:[#allocation7 + $0x8] sm:$0xff]
        %v887 = vld [vmem:[#allocation7 + $0x10] sm:$0xff]
        %v888 = vld [vmem:[#allocation7 + $0x18] sm:$0xff]
        %v889 = vld [vmem:[#allocation7 + $0x20] sm:$0xff]
        %v890 = vld [vmem:[#allocation7 + $0x28] sm:$0xff]
        %v891 = vld [vmem:[#allocation7 + $0x30] sm:$0xff]
        %v892 = vld [vmem:[#allocation7 + $0x38] sm:$0xff]
        %v893 = vld [vmem:[#allocation7 + $0x40] sm:$0xff]
        %v894 = vld [vmem:[#allocation7 + $0x48] sm:$0xff]
        %v895 = vld [vmem:[#allocation7 + $0x50] sm:$0xff]
        %v896 = vld [vmem:[#allocation7 + $0x58] sm:$0xff]
        %v897 = vld [vmem:[#allocation7 + $0x60] sm:$0xff]
        %v898 = vld [vmem:[#allocation7 + $0x68] sm:$0xff]
        %v899 = vld [vmem:[#allocation7 + $0x70] sm:$0xff]
        %v900 = vld [vmem:[#allocation7 + $0x78] sm:$0xff]
        %v901 = vld [vmem:[#allocation7 + $0x80] sm:$0xff]
        %v902 = vld [vmem:[#allocation7 + $0x88] sm:$0xff]
        %v903 = vld [vmem:[#allocation7 + $0x90] sm:$0xff]
        %v904 = vld [vmem:[#allocation7 + $0x98] sm:$0xff]
        %v905 = vld [vmem:[#allocation7 + $0xa0] sm:$0xff]
        %v906 = vld [vmem:[#allocation7 + $0xa8] sm:$0xff]
        %v907 = vld [vmem:[#allocation7 + $0xb0] sm:$0xff]
        %v908 = vld [vmem:[#allocation7 + $0xb8] sm:$0xff]
        %v909 = vld [vmem:[#allocation7 + $0xc0] sm:$0xff]
        %v910 = vld [vmem:[#allocation7 + $0xc8] sm:$0xff]
        %v911 = vld [vmem:[#allocation7 + $0xd0] sm:$0xff]
        %v912 = vld [vmem:[#allocation7 + $0xd8] sm:$0xff]
        %v913 = vld [vmem:[#allocation7 + $0xe0] sm:$0xff]
        %v914 = vld [vmem:[#allocation7 + $0xe8] sm:$0xff]
        %v915 = vld [vmem:[#allocation7 + $0xf0] sm:$0xff]
        %v916 = vld [vmem:[#allocation7 + $0xf8] sm:$0xff]
        %v917 = vld [vmem:[#allocation7 + $0x100] sm:$0xff]
        %v918 = vld [vmem:[#allocation7 + $0x108] sm:$0xff]
        %v919 = vld [vmem:[#allocation7 + $0x110] sm:$0xff]
        %v920 = vld [vmem:[#allocation7 + $0x118] sm:$0xff]
        %v921 = vld [vmem:[#allocation7 + $0x120] sm:$0xff]
        %v922 = vld [vmem:[#allocation7 + $0x128] sm:$0xff]
        %v923 = vld [vmem:[#allocation7 + $0x130] sm:$0xff]
        %v924 = vld [vmem:[#allocation7 + $0x138] sm:$0xff]
        %v925 = vld [vmem:[#allocation7 + $0x140] sm:$0xff]
        %v926 = vld [vmem:[#allocation7 + $0x148] sm:$0xff]
        %v927 = vld [vmem:[#allocation7 + $0x150] sm:$0xff]
        %v928 = vld [vmem:[#allocation7 + $0x158] sm:$0xff]
        %v929 = vld [vmem:[#allocation7 + $0x160] sm:$0xff]
        %v930 = vld [vmem:[#allocation7 + $0x168] sm:$0xff]
        %v931 = vld [vmem:[#allocation7 + $0x170] sm:$0xff]
        %v932 = vld [vmem:[#allocation7 + $0x178] sm:$0xff]
        %v933 = vld [vmem:[#allocation7 + $0x180] sm:$0xff]
        %v934 = vld [vmem:[#allocation7 + $0x188] sm:$0xff]
        %v935 = vld [vmem:[#allocation7 + $0x190] sm:$0xff]
        %v936 = vld [vmem:[#allocation7 + $0x198] sm:$0xff]
        %v937 = vld [vmem:[#allocation7 + $0x1a0] sm:$0xff]
        %v938 = vld [vmem:[#allocation7 + $0x1a8] sm:$0xff]
        %v939 = vld [vmem:[#allocation7 + $0x1b0] sm:$0xff]
        %v940 = vld [vmem:[#allocation7 + $0x1b8] sm:$0xff]
        %v941 = vld [vmem:[#allocation7 + $0x1c0] sm:$0xff]
        %v942 = vld [vmem:[#allocation7 + $0x1c8] sm:$0xff]
        %v943 = vld [vmem:[#allocation7 + $0x1d0] sm:$0xff]
        %v944 = vld [vmem:[#allocation7 + $0x1d8] sm:$0xff]
        %v945 = vld [vmem:[#allocation7 + $0x1e0] sm:$0xff]
        %v946 = vld [vmem:[#allocation7 + $0x1e8] sm:$0xff]
        %v947 = vld [vmem:[#allocation7 + $0x1f0] sm:$0xff]
        %v948 = vld [vmem:[#allocation7 + $0x1f8] sm:$0xff]
        %v949 = vand.u32 %v886, 4294901760
        %950 = vmatprep.subr.mxu0 %v949
        %v951 = vand.u32 %v885, 4294901760
        %952 = vmatpush1.msra.mxu0 %v951
        %v953 = vand.u32 %v888, 4294901760
        %954 = vmatprep.subr.mxu0 %v953
        %v955 = vand.u32 %v887, 4294901760
        %956 = vmatpush1.msra.mxu0 %v955
        %v957 = vand.u32 %v890, 4294901760
        %958 = vmatprep.subr.mxu0 %v957
        %v959 = vand.u32 %v889, 4294901760
        %960 = vmatpush1.msra.mxu0 %v959
        %v961 = vand.u32 %v892, 4294901760
        %962 = vmatprep.subr.mxu0 %v961
        %v963 = vand.u32 %v891, 4294901760
        %964 = vmatpush1.msra.mxu0 %v963
        %v965 = vand.u32 %v894, 4294901760
        %966 = vmatprep.subr.mxu0 %v965
        %v967 = vand.u32 %v893, 4294901760
        %968 = vmatpush1.msra.mxu0 %v967
        %v969 = vand.u32 %v896, 4294901760
        %970 = vmatprep.subr.mxu0 %v969
        %v971 = vand.u32 %v895, 4294901760
        %972 = vmatpush1.msra.mxu0 %v971
        %v973 = vand.u32 %v898, 4294901760
        %974 = vmatprep.subr.mxu0 %v973
        %v975 = vand.u32 %v897, 4294901760
        %976 = vmatpush1.msra.mxu0 %v975
        %v977 = vand.u32 %v900, 4294901760
        %978 = vmatprep.subr.mxu0 %v977
        %v979 = vand.u32 %v899, 4294901760
        %980 = vmatpush1.msra.mxu0 %v979
        %v981 = vand.u32 %v902, 4294901760
        %982 = vmatprep.subr.mxu0 %v981
        %v983 = vand.u32 %v901, 4294901760
        %984 = vmatpush1.msra.mxu0 %v983
        %v985 = vand.u32 %v904, 4294901760
        %986 = vmatprep.subr.mxu0 %v985
        %v987 = vand.u32 %v903, 4294901760
        %988 = vmatpush1.msra.mxu0 %v987
        %v989 = vand.u32 %v906, 4294901760
        %990 = vmatprep.subr.mxu0 %v989
        %v991 = vand.u32 %v905, 4294901760
        %992 = vmatpush1.msra.mxu0 %v991
        %v993 = vand.u32 %v908, 4294901760
        %994 = vmatprep.subr.mxu0 %v993
        %v995 = vand.u32 %v907, 4294901760
        %996 = vmatpush1.msra.mxu0 %v995
        %v997 = vand.u32 %v910, 4294901760
        %998 = vmatprep.subr.mxu0 %v997
        %v999 = vand.u32 %v909, 4294901760
        %1000 = vmatpush1.msra.mxu0 %v999
        %v1001 = vand.u32 %v912, 4294901760
        %1002 = vmatprep.subr.mxu0 %v1001
        %v1003 = vand.u32 %v911, 4294901760
        %1004 = vmatpush1.msra.mxu0 %v1003
        %v1005 = vand.u32 %v914, 4294901760
        %1006 = vmatprep.subr.mxu0 %v1005
        %v1007 = vand.u32 %v913, 4294901760
        %1008 = vmatpush1.msra.mxu0 %v1007
        %v1009 = vand.u32 %v916, 4294901760
        %1010 = vmatprep.subr.mxu0 %v1009
        %v1011 = vand.u32 %v915, 4294901760
        %1012 = vmatpush1.msra.mxu0 %v1011
        %v1013 = vand.u32 %v918, 4294901760
        %1014 = vmatprep.subr.mxu0 %v1013
        %v1015 = vand.u32 %v917, 4294901760
        %1016 = vmatpush1.msra.mxu0 %v1015
        %v1017 = vand.u32 %v920, 4294901760
        %1018 = vmatprep.subr.mxu0 %v1017
        %v1019 = vand.u32 %v919, 4294901760
        %1020 = vmatpush1.msra.mxu0 %v1019
        %v1021 = vand.u32 %v922, 4294901760
        %1022 = vmatprep.subr.mxu0 %v1021
        %v1023 = vand.u32 %v921, 4294901760
        %1024 = vmatpush1.msra.mxu0 %v1023
        %v1025 = vand.u32 %v924, 4294901760
        %1026 = vmatprep.subr.mxu0 %v1025
        %v1027 = vand.u32 %v923, 4294901760
        %1028 = vmatpush1.msra.mxu0 %v1027
        %v1029 = vand.u32 %v926, 4294901760
        %1030 = vmatprep.subr.mxu0 %v1029
        %v1031 = vand.u32 %v925, 4294901760
        %1032 = vmatpush1.msra.mxu0 %v1031
        %v1033 = vand.u32 %v928, 4294901760
        %1034 = vmatprep.subr.mxu0 %v1033
        %v1035 = vand.u32 %v927, 4294901760
        %1036 = vmatpush1.msra.mxu0 %v1035
        %v1037 = vand.u32 %v930, 4294901760
        %1038 = vmatprep.subr.mxu0 %v1037
        %v1039 = vand.u32 %v929, 4294901760
        %1040 = vmatpush1.msra.mxu0 %v1039
        %v1041 = vand.u32 %v932, 4294901760
        %1042 = vmatprep.subr.mxu0 %v1041
        %v1043 = vand.u32 %v931, 4294901760
        %1044 = vmatpush1.msra.mxu0 %v1043
        %v1045 = vand.u32 %v934, 4294901760
        %1046 = vmatprep.subr.mxu0 %v1045
        %v1047 = vand.u32 %v933, 4294901760
        %1048 = vmatpush1.msra.mxu0 %v1047
        %v1049 = vand.u32 %v936, 4294901760
        %1050 = vmatprep.subr.mxu0 %v1049
        %v1051 = vand.u32 %v935, 4294901760
        %1052 = vmatpush1.msra.mxu0 %v1051
        %v1053 = vand.u32 %v938, 4294901760
        %1054 = vmatprep.subr.mxu0 %v1053
        %v1055 = vand.u32 %v937, 4294901760
        %1056 = vmatpush1.msra.mxu0 %v1055
        %v1057 = vand.u32 %v940, 4294901760
        %1058 = vmatprep.subr.mxu0 %v1057
        %v1059 = vand.u32 %v939, 4294901760
        %1060 = vmatpush1.msra.mxu0 %v1059
        %v1061 = vand.u32 %v942, 4294901760
        %1062 = vmatprep.subr.mxu0 %v1061
        %v1063 = vand.u32 %v941, 4294901760
        %1064 = vmatpush1.msra.mxu0 %v1063
        %v1065 = vand.u32 %v944, 4294901760
        %1066 = vmatprep.subr.mxu0 %v1065
        %v1067 = vand.u32 %v943, 4294901760
        %1068 = vmatpush1.msra.mxu0 %v1067
        %v1069 = vand.u32 %v946, 4294901760
        %1070 = vmatprep.subr.mxu0 %v1069
        %v1071 = vand.u32 %v945, 4294901760
        %1072 = vmatpush1.msra.mxu0 %v1071
        %v1073 = vand.u32 %v948, 4294901760
        %1074 = vmatprep.subr.mxu0 %v1073
        %v1075 = vand.u32 %v947, 4294901760
        %1076 = vmatpush1.msra.mxu0 %v1075
        %v1077 = vand.u32 %v876, 4294901760
        %v1078 = vsub.f32 %v876, %v1077
        %v1079 = vand.u32 %v1078, 4294901760
        %v1080 = vsub.f32 %v1078, %v1079
        %v1081 = vand.u32 %v1080, 4294901760
        %1082 = vmatprep.mubr.f32.mxu0 %v1081
        %v1083 = vand.u32 %v874, 4294901760
        %v1084 = vsub.f32 %v874, %v1083
        %v1085 = vand.u32 %v1084, 4294901760
        %v1086 = vsub.f32 %v1084, %v1085
        %v1087 = vand.u32 %v1086, 4294901760
        %1088 = vmatmul.mubr.f32.gmra.mrb[0].mxu0 %v1087
        %v1089 = vpop.f32.mrb[0].mxu0
        %v1090 = vadd.f32 0.0, %v1089
        %v1091 = vpop.f32.mrb[0].mxu0
        %v1092 = vadd.f32 0.0, %v1091
        %v1093 = vand.u32 %v883, 4294901760
        %v1094 = vsub.f32 %v883, %v1093
        %v1095 = vand.u32 %v1094, 4294901760
        %v1096 = vsub.f32 %v1094, %v1095
        %v1097 = vand.u32 %v1096, 4294901760
        %1098 = vmatprep.mubr.f32.mxu0 %v1097
        %v1099 = vand.u32 %v881, 4294901760
        %v1100 = vsub.f32 %v881, %v1099
        %v1101 = vand.u32 %v1100, 4294901760
        %v1102 = vsub.f32 %v1100, %v1101
        %v1103 = vand.u32 %v1102, 4294901760
        %1104 = vmatmul.mubr.f32.gmra.mrb[0].mxu0 %v1103
        %v1105 = vpop.f32.mrb[0].mxu0
        %v1106 = vadd.f32 0.0, %v1105
        %v1107 = vpop.f32.mrb[0].mxu0
        %v1108 = vadd.f32 0.0, %v1107
        %1109 = vdwg.mxu0
        %v1110 = vand.u32 %v886, 4294901760
        %v1111 = vsub.f32 %v886, %v1110
        %v1112 = vand.u32 %v1111, 4294901760
        %v1113 = vsub.f32 %v1111, %v1112
        %v1114 = vand.u32 %v1113, 4294901760
        %1115 = vmatprep.subr.mxu0 %v1114
        %v1116 = vand.u32 %v885, 4294901760
        %v1117 = vsub.f32 %v885, %v1116
        %v1118 = vand.u32 %v1117, 4294901760
        %v1119 = vsub.f32 %v1117, %v1118
        %v1120 = vand.u32 %v1119, 4294901760
        %1121 = vmatpush1.msra.mxu0 %v1120
        %v1122 = vand.u32 %v888, 4294901760
        %v1123 = vsub.f32 %v888, %v1122
        %v1124 = vand.u32 %v1123, 4294901760
        %v1125 = vsub.f32 %v1123, %v1124
        %v1126 = vand.u32 %v1125, 4294901760
        %1127 = vmatprep.subr.mxu0 %v1126
        %v1128 = vand.u32 %v887, 4294901760
        %v1129 = vsub.f32 %v887, %v1128
        %v1130 = vand.u32 %v1129, 4294901760
        %v1131 = vsub.f32 %v1129, %v1130
        %v1132 = vand.u32 %v1131, 4294901760
        %1133 = vmatpush1.msra.mxu0 %v1132
        %v1134 = vand.u32 %v890, 4294901760
        %v1135 = vsub.f32 %v890, %v1134
        %v1136 = vand.u32 %v1135, 4294901760
        %v1137 = vsub.f32 %v1135, %v1136
        %v1138 = vand.u32 %v1137, 4294901760
        %1139 = vmatprep.subr.mxu0 %v1138
        %v1140 = vand.u32 %v889, 4294901760
        %v1141 = vsub.f32 %v889, %v1140
        %v1142 = vand.u32 %v1141, 4294901760
        %v1143 = vsub.f32 %v1141, %v1142
        %v1144 = vand.u32 %v1143, 4294901760
        %1145 = vmatpush1.msra.mxu0 %v1144
        %v1146 = vand.u32 %v892, 4294901760
        %v1147 = vsub.f32 %v892, %v1146
        %v1148 = vand.u32 %v1147, 4294901760
        %v1149 = vsub.f32 %v1147, %v1148
        %v1150 = vand.u32 %v1149, 4294901760
        %1151 = vmatprep.subr.mxu0 %v1150
        %v1152 = vand.u32 %v891, 4294901760
        %v1153 = vsub.f32 %v891, %v1152
        %v1154 = vand.u32 %v1153, 4294901760
        %v1155 = vsub.f32 %v1153, %v1154
        %v1156 = vand.u32 %v1155, 4294901760
        %1157 = vmatpush1.msra.mxu0 %v1156
        %v1158 = vand.u32 %v894, 4294901760
        %v1159 = vsub.f32 %v894, %v1158
        %v1160 = vand.u32 %v1159, 4294901760
        %v1161 = vsub.f32 %v1159, %v1160
        %v1162 = vand.u32 %v1161, 4294901760
        %1163 = vmatprep.subr.mxu0 %v1162
        %v1164 = vand.u32 %v893, 4294901760
        %v1165 = vsub.f32 %v893, %v1164
        %v1166 = vand.u32 %v1165, 4294901760
        %v1167 = vsub.f32 %v1165, %v1166
        %v1168 = vand.u32 %v1167, 4294901760
        %1169 = vmatpush1.msra.mxu0 %v1168
        %v1170 = vand.u32 %v896, 4294901760
        %v1171 = vsub.f32 %v896, %v1170
        %v1172 = vand.u32 %v1171, 4294901760
        %v1173 = vsub.f32 %v1171, %v1172
        %v1174 = vand.u32 %v1173, 4294901760
        %1175 = vmatprep.subr.mxu0 %v1174
        %v1176 = vand.u32 %v895, 4294901760
        %v1177 = vsub.f32 %v895, %v1176
        %v1178 = vand.u32 %v1177, 4294901760
        %v1179 = vsub.f32 %v1177, %v1178
        %v1180 = vand.u32 %v1179, 4294901760
        %1181 = vmatpush1.msra.mxu0 %v1180
        %v1182 = vand.u32 %v898, 4294901760
        %v1183 = vsub.f32 %v898, %v1182
        %v1184 = vand.u32 %v1183, 4294901760
        %v1185 = vsub.f32 %v1183, %v1184
        %v1186 = vand.u32 %v1185, 4294901760
        %1187 = vmatprep.subr.mxu0 %v1186
        %v1188 = vand.u32 %v897, 4294901760
        %v1189 = vsub.f32 %v897, %v1188
        %v1190 = vand.u32 %v1189, 4294901760
        %v1191 = vsub.f32 %v1189, %v1190
        %v1192 = vand.u32 %v1191, 4294901760
        %1193 = vmatpush1.msra.mxu0 %v1192
        %v1194 = vand.u32 %v900, 4294901760
        %v1195 = vsub.f32 %v900, %v1194
        %v1196 = vand.u32 %v1195, 4294901760
        %v1197 = vsub.f32 %v1195, %v1196
        %v1198 = vand.u32 %v1197, 4294901760
        %1199 = vmatprep.subr.mxu0 %v1198
        %v1200 = vand.u32 %v899, 4294901760
        %v1201 = vsub.f32 %v899, %v1200
        %v1202 = vand.u32 %v1201, 4294901760
        %v1203 = vsub.f32 %v1201, %v1202
        %v1204 = vand.u32 %v1203, 4294901760
        %1205 = vmatpush1.msra.mxu0 %v1204
        %v1206 = vand.u32 %v902, 4294901760
        %v1207 = vsub.f32 %v902, %v1206
        %v1208 = vand.u32 %v1207, 4294901760
        %v1209 = vsub.f32 %v1207, %v1208
        %v1210 = vand.u32 %v1209, 4294901760
        %1211 = vmatprep.subr.mxu0 %v1210
        %v1212 = vand.u32 %v901, 4294901760
        %v1213 = vsub.f32 %v901, %v1212
        %v1214 = vand.u32 %v1213, 4294901760
        %v1215 = vsub.f32 %v1213, %v1214
        %v1216 = vand.u32 %v1215, 4294901760
        %1217 = vmatpush1.msra.mxu0 %v1216
        %v1218 = vand.u32 %v904, 4294901760
        %v1219 = vsub.f32 %v904, %v1218
        %v1220 = vand.u32 %v1219, 4294901760
        %v1221 = vsub.f32 %v1219, %v1220
        %v1222 = vand.u32 %v1221, 4294901760
        %1223 = vmatprep.subr.mxu0 %v1222
        %v1224 = vand.u32 %v903, 4294901760
        %v1225 = vsub.f32 %v903, %v1224
        %v1226 = vand.u32 %v1225, 4294901760
        %v1227 = vsub.f32 %v1225, %v1226
        %v1228 = vand.u32 %v1227, 4294901760
        %1229 = vmatpush1.msra.mxu0 %v1228
        %v1230 = vand.u32 %v906, 4294901760
        %v1231 = vsub.f32 %v906, %v1230
        %v1232 = vand.u32 %v1231, 4294901760
        %v1233 = vsub.f32 %v1231, %v1232
        %v1234 = vand.u32 %v1233, 4294901760
        %1235 = vmatprep.subr.mxu0 %v1234
        %v1236 = vand.u32 %v905, 4294901760
        %v1237 = vsub.f32 %v905, %v1236
        %v1238 = vand.u32 %v1237, 4294901760
        %v1239 = vsub.f32 %v1237, %v1238
        %v1240 = vand.u32 %v1239, 4294901760
        %1241 = vmatpush1.msra.mxu0 %v1240
        %v1242 = vand.u32 %v908, 4294901760
        %v1243 = vsub.f32 %v908, %v1242
        %v1244 = vand.u32 %v1243, 4294901760
        %v1245 = vsub.f32 %v1243, %v1244
        %v1246 = vand.u32 %v1245, 4294901760
        %1247 = vmatprep.subr.mxu0 %v1246
        %v1248 = vand.u32 %v907, 4294901760
        %v1249 = vsub.f32 %v907, %v1248
        %v1250 = vand.u32 %v1249, 4294901760
        %v1251 = vsub.f32 %v1249, %v1250
        %v1252 = vand.u32 %v1251, 4294901760
        %1253 = vmatpush1.msra.mxu0 %v1252
        %v1254 = vand.u32 %v910, 4294901760
        %v1255 = vsub.f32 %v910, %v1254
        %v1256 = vand.u32 %v1255, 4294901760
        %v1257 = vsub.f32 %v1255, %v1256
        %v1258 = vand.u32 %v1257, 4294901760
        %1259 = vmatprep.subr.mxu0 %v1258
        %v1260 = vand.u32 %v909, 4294901760
        %v1261 = vsub.f32 %v909, %v1260
        %v1262 = vand.u32 %v1261, 4294901760
        %v1263 = vsub.f32 %v1261, %v1262
        %v1264 = vand.u32 %v1263, 4294901760
        %1265 = vmatpush1.msra.mxu0 %v1264
        %v1266 = vand.u32 %v912, 4294901760
        %v1267 = vsub.f32 %v912, %v1266
        %v1268 = vand.u32 %v1267, 4294901760
        %v1269 = vsub.f32 %v1267, %v1268
        %v1270 = vand.u32 %v1269, 4294901760
        %1271 = vmatprep.subr.mxu0 %v1270
        %v1272 = vand.u32 %v911, 4294901760
        %v1273 = vsub.f32 %v911, %v1272
        %v1274 = vand.u32 %v1273, 4294901760
        %v1275 = vsub.f32 %v1273, %v1274
        %v1276 = vand.u32 %v1275, 4294901760
        %1277 = vmatpush1.msra.mxu0 %v1276
        %v1278 = vand.u32 %v914, 4294901760
        %v1279 = vsub.f32 %v914, %v1278
        %v1280 = vand.u32 %v1279, 4294901760
        %v1281 = vsub.f32 %v1279, %v1280
        %v1282 = vand.u32 %v1281, 4294901760
        %1283 = vmatprep.subr.mxu0 %v1282
        %v1284 = vand.u32 %v913, 4294901760
        %v1285 = vsub.f32 %v913, %v1284
        %v1286 = vand.u32 %v1285, 4294901760
        %v1287 = vsub.f32 %v1285, %v1286
        %v1288 = vand.u32 %v1287, 4294901760
        %1289 = vmatpush1.msra.mxu0 %v1288
        %v1290 = vand.u32 %v916, 4294901760
        %v1291 = vsub.f32 %v916, %v1290
        %v1292 = vand.u32 %v1291, 4294901760
        %v1293 = vsub.f32 %v1291, %v1292
        %v1294 = vand.u32 %v1293, 4294901760
        %1295 = vmatprep.subr.mxu0 %v1294
        %v1296 = vand.u32 %v915, 4294901760
        %v1297 = vsub.f32 %v915, %v1296
        %v1298 = vand.u32 %v1297, 4294901760
        %v1299 = vsub.f32 %v1297, %v1298
        %v1300 = vand.u32 %v1299, 4294901760
        %1301 = vmatpush1.msra.mxu0 %v1300
        %v1302 = vand.u32 %v918, 4294901760
        %v1303 = vsub.f32 %v918, %v1302
        %v1304 = vand.u32 %v1303, 4294901760
        %v1305 = vsub.f32 %v1303, %v1304
        %v1306 = vand.u32 %v1305, 4294901760
        %1307 = vmatprep.subr.mxu0 %v1306
        %v1308 = vand.u32 %v917, 4294901760
        %v1309 = vsub.f32 %v917, %v1308
        %v1310 = vand.u32 %v1309, 4294901760
        %v1311 = vsub.f32 %v1309, %v1310
        %v1312 = vand.u32 %v1311, 4294901760
        %1313 = vmatpush1.msra.mxu0 %v1312
        %v1314 = vand.u32 %v920, 4294901760
        %v1315 = vsub.f32 %v920, %v1314
        %v1316 = vand.u32 %v1315, 4294901760
        %v1317 = vsub.f32 %v1315, %v1316
        %v1318 = vand.u32 %v1317, 4294901760
        %1319 = vmatprep.subr.mxu0 %v1318
        %v1320 = vand.u32 %v919, 4294901760
        %v1321 = vsub.f32 %v919, %v1320
        %v1322 = vand.u32 %v1321, 4294901760
        %v1323 = vsub.f32 %v1321, %v1322
        %v1324 = vand.u32 %v1323, 4294901760
        %1325 = vmatpush1.msra.mxu0 %v1324
        %v1326 = vand.u32 %v922, 4294901760
        %v1327 = vsub.f32 %v922, %v1326
        %v1328 = vand.u32 %v1327, 4294901760
        %v1329 = vsub.f32 %v1327, %v1328
        %v1330 = vand.u32 %v1329, 4294901760
        %1331 = vmatprep.subr.mxu0 %v1330
        %v1332 = vand.u32 %v921, 4294901760
        %v1333 = vsub.f32 %v921, %v1332
        %v1334 = vand.u32 %v1333, 4294901760
        %v1335 = vsub.f32 %v1333, %v1334
        %v1336 = vand.u32 %v1335, 4294901760
        %1337 = vmatpush1.msra.mxu0 %v1336
        %v1338 = vand.u32 %v924, 4294901760
        %v1339 = vsub.f32 %v924, %v1338
        %v1340 = vand.u32 %v1339, 4294901760
        %v1341 = vsub.f32 %v1339, %v1340
        %v1342 = vand.u32 %v1341, 4294901760
        %1343 = vmatprep.subr.mxu0 %v1342
        %v1344 = vand.u32 %v923, 4294901760
        %v1345 = vsub.f32 %v923, %v1344
        %v1346 = vand.u32 %v1345, 4294901760
        %v1347 = vsub.f32 %v1345, %v1346
        %v1348 = vand.u32 %v1347, 4294901760
        %1349 = vmatpush1.msra.mxu0 %v1348
        %v1350 = vand.u32 %v926, 4294901760
        %v1351 = vsub.f32 %v926, %v1350
        %v1352 = vand.u32 %v1351, 4294901760
        %v1353 = vsub.f32 %v1351, %v1352
        %v1354 = vand.u32 %v1353, 4294901760
        %1355 = vmatprep.subr.mxu0 %v1354
        %v1356 = vand.u32 %v925, 4294901760
        %v1357 = vsub.f32 %v925, %v1356
        %v1358 = vand.u32 %v1357, 4294901760
        %v1359 = vsub.f32 %v1357, %v1358
        %v1360 = vand.u32 %v1359, 4294901760
        %1361 = vmatpush1.msra.mxu0 %v1360
        %v1362 = vand.u32 %v928, 4294901760
        %v1363 = vsub.f32 %v928, %v1362
        %v1364 = vand.u32 %v1363, 4294901760
        %v1365 = vsub.f32 %v1363, %v1364
        %v1366 = vand.u32 %v1365, 4294901760
        %1367 = vmatprep.subr.mxu0 %v1366
        %v1368 = vand.u32 %v927, 4294901760
        %v1369 = vsub.f32 %v927, %v1368
        %v1370 = vand.u32 %v1369, 4294901760
        %v1371 = vsub.f32 %v1369, %v1370
        %v1372 = vand.u32 %v1371, 4294901760
        %1373 = vmatpush1.msra.mxu0 %v1372
        %v1374 = vand.u32 %v930, 4294901760
        %v1375 = vsub.f32 %v930, %v1374
        %v1376 = vand.u32 %v1375, 4294901760
        %v1377 = vsub.f32 %v1375, %v1376
        %v1378 = vand.u32 %v1377, 4294901760
        %1379 = vmatprep.subr.mxu0 %v1378
        %v1380 = vand.u32 %v929, 4294901760
        %v1381 = vsub.f32 %v929, %v1380
        %v1382 = vand.u32 %v1381, 4294901760
        %v1383 = vsub.f32 %v1381, %v1382
        %v1384 = vand.u32 %v1383, 4294901760
        %1385 = vmatpush1.msra.mxu0 %v1384
        %v1386 = vand.u32 %v932, 4294901760
        %v1387 = vsub.f32 %v932, %v1386
        %v1388 = vand.u32 %v1387, 4294901760
        %v1389 = vsub.f32 %v1387, %v1388
        %v1390 = vand.u32 %v1389, 4294901760
        %1391 = vmatprep.subr.mxu0 %v1390
        %v1392 = vand.u32 %v931, 4294901760
        %v1393 = vsub.f32 %v931, %v1392
        %v1394 = vand.u32 %v1393, 4294901760
        %v1395 = vsub.f32 %v1393, %v1394
        %v1396 = vand.u32 %v1395, 4294901760
        %1397 = vmatpush1.msra.mxu0 %v1396
        %v1398 = vand.u32 %v934, 4294901760
        %v1399 = vsub.f32 %v934, %v1398
        %v1400 = vand.u32 %v1399, 4294901760
        %v1401 = vsub.f32 %v1399, %v1400
        %v1402 = vand.u32 %v1401, 4294901760
        %1403 = vmatprep.subr.mxu0 %v1402
        %v1404 = vand.u32 %v933, 4294901760
        %v1405 = vsub.f32 %v933, %v1404
        %v1406 = vand.u32 %v1405, 4294901760
        %v1407 = vsub.f32 %v1405, %v1406
        %v1408 = vand.u32 %v1407, 4294901760
        %1409 = vmatpush1.msra.mxu0 %v1408
        %v1410 = vand.u32 %v936, 4294901760
        %v1411 = vsub.f32 %v936, %v1410
        %v1412 = vand.u32 %v1411, 4294901760
        %v1413 = vsub.f32 %v1411, %v1412
        %v1414 = vand.u32 %v1413, 4294901760
        %1415 = vmatprep.subr.mxu0 %v1414
        %v1416 = vand.u32 %v935, 4294901760
        %v1417 = vsub.f32 %v935, %v1416
        %v1418 = vand.u32 %v1417, 4294901760
        %v1419 = vsub.f32 %v1417, %v1418
        %v1420 = vand.u32 %v1419, 4294901760
        %1421 = vmatpush1.msra.mxu0 %v1420
        %v1422 = vand.u32 %v938, 4294901760
        %v1423 = vsub.f32 %v938, %v1422
        %v1424 = vand.u32 %v1423, 4294901760
        %v1425 = vsub.f32 %v1423, %v1424
        %v1426 = vand.u32 %v1425, 4294901760
        %1427 = vmatprep.subr.mxu0 %v1426
        %v1428 = vand.u32 %v937, 4294901760
        %v1429 = vsub.f32 %v937, %v1428
        %v1430 = vand.u32 %v1429, 4294901760
        %v1431 = vsub.f32 %v1429, %v1430
        %v1432 = vand.u32 %v1431, 4294901760
        %1433 = vmatpush1.msra.mxu0 %v1432
        %v1434 = vand.u32 %v940, 4294901760
        %v1435 = vsub.f32 %v940, %v1434
        %v1436 = vand.u32 %v1435, 4294901760
        %v1437 = vsub.f32 %v1435, %v1436
        %v1438 = vand.u32 %v1437, 4294901760
        %1439 = vmatprep.subr.mxu0 %v1438
        %v1440 = vand.u32 %v939, 4294901760
        %v1441 = vsub.f32 %v939, %v1440
        %v1442 = vand.u32 %v1441, 4294901760
        %v1443 = vsub.f32 %v1441, %v1442
        %v1444 = vand.u32 %v1443, 4294901760
        %1445 = vmatpush1.msra.mxu0 %v1444
        %v1446 = vand.u32 %v942, 4294901760
        %v1447 = vsub.f32 %v942, %v1446
        %v1448 = vand.u32 %v1447, 4294901760
        %v1449 = vsub.f32 %v1447, %v1448
        %v1450 = vand.u32 %v1449, 4294901760
        %1451 = vmatprep.subr.mxu0 %v1450
        %v1452 = vand.u32 %v941, 4294901760
        %v1453 = vsub.f32 %v941, %v1452
        %v1454 = vand.u32 %v1453, 4294901760
        %v1455 = vsub.f32 %v1453, %v1454
        %v1456 = vand.u32 %v1455, 4294901760
        %1457 = vmatpush1.msra.mxu0 %v1456
        %v1458 = vand.u32 %v944, 4294901760
        %v1459 = vsub.f32 %v944, %v1458
        %v1460 = vand.u32 %v1459, 4294901760
        %v1461 = vsub.f32 %v1459, %v1460
        %v1462 = vand.u32 %v1461, 4294901760
        %1463 = vmatprep.subr.mxu0 %v1462
        %v1464 = vand.u32 %v943, 4294901760
        %v1465 = vsub.f32 %v943, %v1464
        %v1466 = vand.u32 %v1465, 4294901760
        %v1467 = vsub.f32 %v1465, %v1466
        %v1468 = vand.u32 %v1467, 4294901760
        %1469 = vmatpush1.msra.mxu0 %v1468
        %v1470 = vand.u32 %v946, 4294901760
        %v1471 = vsub.f32 %v946, %v1470
        %v1472 = vand.u32 %v1471, 4294901760
        %v1473 = vsub.f32 %v1471, %v1472
        %v1474 = vand.u32 %v1473, 4294901760
        %1475 = vmatprep.subr.mxu0 %v1474
        %v1476 = vand.u32 %v945, 4294901760
        %v1477 = vsub.f32 %v945, %v1476
        %v1478 = vand.u32 %v1477, 4294901760
        %v1479 = vsub.f32 %v1477, %v1478
        %v1480 = vand.u32 %v1479, 4294901760
        %1481 = vmatpush1.msra.mxu0 %v1480
        %v1482 = vand.u32 %v948, 4294901760
        %v1483 = vsub.f32 %v948, %v1482
        %v1484 = vand.u32 %v1483, 4294901760
        %v1485 = vsub.f32 %v1483, %v1484
        %v1486 = vand.u32 %v1485, 4294901760
        %1487 = vmatprep.subr.mxu0 %v1486
        %v1488 = vand.u32 %v947, 4294901760
        %v1489 = vsub.f32 %v947, %v1488
        %v1490 = vand.u32 %v1489, 4294901760
        %v1491 = vsub.f32 %v1489, %v1490
        %v1492 = vand.u32 %v1491, 4294901760
        %1493 = vmatpush1.msra.mxu0 %v1492
        %v1494 = vand.u32 %v876, 4294901760
        %1495 = vmatprep.mubr.f32.mxu0 %v1494
        %v1496 = vand.u32 %v874, 4294901760
        %1497 = vmatmul.mubr.f32.gmra.mrb[0].mxu0 %v1496
        %v1498 = vpop.f32.mrb[0].mxu0
        %v1499 = vadd.f32 %v1090, %v1498
        %v1500 = vpop.f32.mrb[0].mxu0
        %v1501 = vadd.f32 %v1092, %v1500
        %v1502 = vand.u32 %v883, 4294901760
        %1503 = vmatprep.mubr.f32.mxu0 %v1502
        %v1504 = vand.u32 %v881, 4294901760
        %1505 = vmatmul.mubr.f32.gmra.mrb[0].mxu0 %v1504
        %v1506 = vpop.f32.mrb[0].mxu0
        %v1507 = vadd.f32 %v1106, %v1506
        %v1508 = vpop.f32.mrb[0].mxu0
        %v1509 = vadd.f32 %v1108, %v1508
        %1510 = vdwg.mxu0
        %v1511 = vand.u32 %v886, 4294901760
        %v1512 = vsub.f32 %v886, %v1511
        %1513 = vmatprep.subr.mxu0 %v1512
        %v1514 = vand.u32 %v885, 4294901760
        %v1515 = vsub.f32 %v885, %v1514
        %1516 = vmatpush1.msra.mxu0 %v1515
        %v1517 = vand.u32 %v888, 4294901760
        %v1518 = vsub.f32 %v888, %v1517
        %1519 = vmatprep.subr.mxu0 %v1518
        %v1520 = vand.u32 %v887, 4294901760
        %v1521 = vsub.f32 %v887, %v1520
        %1522 = vmatpush1.msra.mxu0 %v1521
        %v1523 = vand.u32 %v890, 4294901760
        %v1524 = vsub.f32 %v890, %v1523
        %1525 = vmatprep.subr.mxu0 %v1524
        %v1526 = vand.u32 %v889, 4294901760
        %v1527 = vsub.f32 %v889, %v1526
        %1528 = vmatpush1.msra.mxu0 %v1527
        %v1529 = vand.u32 %v892, 4294901760
        %v1530 = vsub.f32 %v892, %v1529
        %1531 = vmatprep.subr.mxu0 %v1530
        %v1532 = vand.u32 %v891, 4294901760
        %v1533 = vsub.f32 %v891, %v1532
        %1534 = vmatpush1.msra.mxu0 %v1533
        %v1535 = vand.u32 %v894, 4294901760
        %v1536 = vsub.f32 %v894, %v1535
        %1537 = vmatprep.subr.mxu0 %v1536
        %v1538 = vand.u32 %v893, 4294901760
        %v1539 = vsub.f32 %v893, %v1538
        %1540 = vmatpush1.msra.mxu0 %v1539
        %v1541 = vand.u32 %v896, 4294901760
        %v1542 = vsub.f32 %v896, %v1541
        %1543 = vmatprep.subr.mxu0 %v1542
        %v1544 = vand.u32 %v895, 4294901760
        %v1545 = vsub.f32 %v895, %v1544
        %1546 = vmatpush1.msra.mxu0 %v1545
        %v1547 = vand.u32 %v898, 4294901760
        %v1548 = vsub.f32 %v898, %v1547
        %1549 = vmatprep.subr.mxu0 %v1548
        %v1550 = vand.u32 %v897, 4294901760
        %v1551 = vsub.f32 %v897, %v1550
        %1552 = vmatpush1.msra.mxu0 %v1551
        %v1553 = vand.u32 %v900, 4294901760
        %v1554 = vsub.f32 %v900, %v1553
        %1555 = vmatprep.subr.mxu0 %v1554
        %v1556 = vand.u32 %v899, 4294901760
        %v1557 = vsub.f32 %v899, %v1556
        %1558 = vmatpush1.msra.mxu0 %v1557
        %v1559 = vand.u32 %v902, 4294901760
        %v1560 = vsub.f32 %v902, %v1559
        %1561 = vmatprep.subr.mxu0 %v1560
        %v1562 = vand.u32 %v901, 4294901760
        %v1563 = vsub.f32 %v901, %v1562
        %1564 = vmatpush1.msra.mxu0 %v1563
        %v1565 = vand.u32 %v904, 4294901760
        %v1566 = vsub.f32 %v904, %v1565
        %1567 = vmatprep.subr.mxu0 %v1566
        %v1568 = vand.u32 %v903, 4294901760
        %v1569 = vsub.f32 %v903, %v1568
        %1570 = vmatpush1.msra.mxu0 %v1569
        %v1571 = vand.u32 %v906, 4294901760
        %v1572 = vsub.f32 %v906, %v1571
        %1573 = vmatprep.subr.mxu0 %v1572
        %v1574 = vand.u32 %v905, 4294901760
        %v1575 = vsub.f32 %v905, %v1574
        %1576 = vmatpush1.msra.mxu0 %v1575
        %v1577 = vand.u32 %v908, 4294901760
        %v1578 = vsub.f32 %v908, %v1577
        %1579 = vmatprep.subr.mxu0 %v1578
        %v1580 = vand.u32 %v907, 4294901760
        %v1581 = vsub.f32 %v907, %v1580
        %1582 = vmatpush1.msra.mxu0 %v1581
        %v1583 = vand.u32 %v910, 4294901760
        %v1584 = vsub.f32 %v910, %v1583
        %1585 = vmatprep.subr.mxu0 %v1584
        %v1586 = vand.u32 %v909, 4294901760
        %v1587 = vsub.f32 %v909, %v1586
        %1588 = vmatpush1.msra.mxu0 %v1587
        %v1589 = vand.u32 %v912, 4294901760
        %v1590 = vsub.f32 %v912, %v1589
        %1591 = vmatprep.subr.mxu0 %v1590
        %v1592 = vand.u32 %v911, 4294901760
        %v1593 = vsub.f32 %v911, %v1592
        %1594 = vmatpush1.msra.mxu0 %v1593
        %v1595 = vand.u32 %v914, 4294901760
        %v1596 = vsub.f32 %v914, %v1595
        %1597 = vmatprep.subr.mxu0 %v1596
        %v1598 = vand.u32 %v913, 4294901760
        %v1599 = vsub.f32 %v913, %v1598
        %1600 = vmatpush1.msra.mxu0 %v1599
        %v1601 = vand.u32 %v916, 4294901760
        %v1602 = vsub.f32 %v916, %v1601
        %1603 = vmatprep.subr.mxu0 %v1602
        %v1604 = vand.u32 %v915, 4294901760
        %v1605 = vsub.f32 %v915, %v1604
        %1606 = vmatpush1.msra.mxu0 %v1605
        %v1607 = vand.u32 %v918, 4294901760
        %v1608 = vsub.f32 %v918, %v1607
        %1609 = vmatprep.subr.mxu0 %v1608
        %v1610 = vand.u32 %v917, 4294901760
        %v1611 = vsub.f32 %v917, %v1610
        %1612 = vmatpush1.msra.mxu0 %v1611
        %v1613 = vand.u32 %v920, 4294901760
        %v1614 = vsub.f32 %v920, %v1613
        %1615 = vmatprep.subr.mxu0 %v1614
        %v1616 = vand.u32 %v919, 4294901760
        %v1617 = vsub.f32 %v919, %v1616
        %1618 = vmatpush1.msra.mxu0 %v1617
        %v1619 = vand.u32 %v922, 4294901760
        %v1620 = vsub.f32 %v922, %v1619
        %1621 = vmatprep.subr.mxu0 %v1620
        %v1622 = vand.u32 %v921, 4294901760
        %v1623 = vsub.f32 %v921, %v1622
        %1624 = vmatpush1.msra.mxu0 %v1623
        %v1625 = vand.u32 %v924, 4294901760
        %v1626 = vsub.f32 %v924, %v1625
        %1627 = vmatprep.subr.mxu0 %v1626
        %v1628 = vand.u32 %v923, 4294901760
        %v1629 = vsub.f32 %v923, %v1628
        %1630 = vmatpush1.msra.mxu0 %v1629
        %v1631 = vand.u32 %v926, 4294901760
        %v1632 = vsub.f32 %v926, %v1631
        %1633 = vmatprep.subr.mxu0 %v1632
        %v1634 = vand.u32 %v925, 4294901760
        %v1635 = vsub.f32 %v925, %v1634
        %1636 = vmatpush1.msra.mxu0 %v1635
        %v1637 = vand.u32 %v928, 4294901760
        %v1638 = vsub.f32 %v928, %v1637
        %1639 = vmatprep.subr.mxu0 %v1638
        %v1640 = vand.u32 %v927, 4294901760
        %v1641 = vsub.f32 %v927, %v1640
        %1642 = vmatpush1.msra.mxu0 %v1641
        %v1643 = vand.u32 %v930, 4294901760
        %v1644 = vsub.f32 %v930, %v1643
        %1645 = vmatprep.subr.mxu0 %v1644
        %v1646 = vand.u32 %v929, 4294901760
        %v1647 = vsub.f32 %v929, %v1646
        %1648 = vmatpush1.msra.mxu0 %v1647
        %v1649 = vand.u32 %v932, 4294901760
        %v1650 = vsub.f32 %v932, %v1649
        %1651 = vmatprep.subr.mxu0 %v1650
        %v1652 = vand.u32 %v931, 4294901760
        %v1653 = vsub.f32 %v931, %v1652
        %1654 = vmatpush1.msra.mxu0 %v1653
        %v1655 = vand.u32 %v934, 4294901760
        %v1656 = vsub.f32 %v934, %v1655
        %1657 = vmatprep.subr.mxu0 %v1656
        %v1658 = vand.u32 %v933, 4294901760
        %v1659 = vsub.f32 %v933, %v1658
        %1660 = vmatpush1.msra.mxu0 %v1659
        %v1661 = vand.u32 %v936, 4294901760
        %v1662 = vsub.f32 %v936, %v1661
        %1663 = vmatprep.subr.mxu0 %v1662
        %v1664 = vand.u32 %v935, 4294901760
        %v1665 = vsub.f32 %v935, %v1664
        %1666 = vmatpush1.msra.mxu0 %v1665
        %v1667 = vand.u32 %v938, 4294901760
        %v1668 = vsub.f32 %v938, %v1667
        %1669 = vmatprep.subr.mxu0 %v1668
        %v1670 = vand.u32 %v937, 4294901760
        %v1671 = vsub.f32 %v937, %v1670
        %1672 = vmatpush1.msra.mxu0 %v1671
        %v1673 = vand.u32 %v940, 4294901760
        %v1674 = vsub.f32 %v940, %v1673
        %1675 = vmatprep.subr.mxu0 %v1674
        %v1676 = vand.u32 %v939, 4294901760
        %v1677 = vsub.f32 %v939, %v1676
        %1678 = vmatpush1.msra.mxu0 %v1677
        %v1679 = vand.u32 %v942, 4294901760
        %v1680 = vsub.f32 %v942, %v1679
        %1681 = vmatprep.subr.mxu0 %v1680
        %v1682 = vand.u32 %v941, 4294901760
        %v1683 = vsub.f32 %v941, %v1682
        %1684 = vmatpush1.msra.mxu0 %v1683
        %v1685 = vand.u32 %v944, 4294901760
        %v1686 = vsub.f32 %v944, %v1685
        %1687 = vmatprep.subr.mxu0 %v1686
        %v1688 = vand.u32 %v943, 4294901760
        %v1689 = vsub.f32 %v943, %v1688
        %1690 = vmatpush1.msra.mxu0 %v1689
        %v1691 = vand.u32 %v946, 4294901760
        %v1692 = vsub.f32 %v946, %v1691
        %1693 = vmatprep.subr.mxu0 %v1692
        %v1694 = vand.u32 %v945, 4294901760
        %v1695 = vsub.f32 %v945, %v1694
        %1696 = vmatpush1.msra.mxu0 %v1695
        %v1697 = vand.u32 %v948, 4294901760
        %v1698 = vsub.f32 %v948, %v1697
        %1699 = vmatprep.subr.mxu0 %v1698
        %v1700 = vand.u32 %v947, 4294901760
        %v1701 = vsub.f32 %v947, %v1700
        %1702 = vmatpush1.msra.mxu0 %v1701
        %v1703 = vand.u32 %v876, 4294901760
        %v1704 = vsub.f32 %v876, %v1703
        %1705 = vmatprep.mubr.f32.mxu0 %v1704
        %v1706 = vand.u32 %v874, 4294901760
        %v1707 = vsub.f32 %v874, %v1706
        %1708 = vmatmul.mubr.f32.gmra.mrb[0].mxu0 %v1707
        %v1709 = vpop.f32.mrb[0].mxu0
        %v1710 = vadd.f32 %v1499, %v1709
        %v1711 = vpop.f32.mrb[0].mxu0
        %v1712 = vadd.f32 %v1501, %v1711
        %v1713 = vand.u32 %v883, 4294901760
        %v1714 = vsub.f32 %v883, %v1713
        %1715 = vmatprep.mubr.f32.mxu0 %v1714
        %v1716 = vand.u32 %v881, 4294901760
        %v1717 = vsub.f32 %v881, %v1716
        %1718 = vmatmul.mubr.f32.gmra.mrb[0].mxu0 %v1717
        %v1719 = vpop.f32.mrb[0].mxu0
        %v1720 = vadd.f32 %v1507, %v1719
        %v1721 = vpop.f32.mrb[0].mxu0
        %v1722 = vadd.f32 %v1509, %v1721
        %1723 = vdwg.mxu0
        %v1724 = vand.u32 %v886, 4294901760
        %1725 = vmatprep.subr.mxu0 %v1724
        %v1726 = vand.u32 %v885, 4294901760
        %1727 = vmatpush1.msra.mxu0 %v1726
        %v1728 = vand.u32 %v888, 4294901760
        %1729 = vmatprep.subr.mxu0 %v1728
        %v1730 = vand.u32 %v887, 4294901760
        %1731 = vmatpush1.msra.mxu0 %v1730
        %v1732 = vand.u32 %v890, 4294901760
        %1733 = vmatprep.subr.mxu0 %v1732
        %v1734 = vand.u32 %v889, 4294901760
        %1735 = vmatpush1.msra.mxu0 %v1734
        %v1736 = vand.u32 %v892, 4294901760
        %1737 = vmatprep.subr.mxu0 %v1736
        %v1738 = vand.u32 %v891, 4294901760
        %1739 = vmatpush1.msra.mxu0 %v1738
        %v1740 = vand.u32 %v894, 4294901760
        %1741 = vmatprep.subr.mxu0 %v1740
        %v1742 = vand.u32 %v893, 4294901760
        %1743 = vmatpush1.msra.mxu0 %v1742
        %v1744 = vand.u32 %v896, 4294901760
        %1745 = vmatprep.subr.mxu0 %v1744
        %v1746 = vand.u32 %v895, 4294901760
        %1747 = vmatpush1.msra.mxu0 %v1746
        %v1748 = vand.u32 %v898, 4294901760
        %1749 = vmatprep.subr.mxu0 %v1748
        %v1750 = vand.u32 %v897, 4294901760
        %1751 = vmatpush1.msra.mxu0 %v1750
        %v1752 = vand.u32 %v900, 4294901760
        %1753 = vmatprep.subr.mxu0 %v1752
        %v1754 = vand.u32 %v899, 4294901760
        %1755 = vmatpush1.msra.mxu0 %v1754
        %v1756 = vand.u32 %v902, 4294901760
        %1757 = vmatprep.subr.mxu0 %v1756
        %v1758 = vand.u32 %v901, 4294901760
        %1759 = vmatpush1.msra.mxu0 %v1758
        %v1760 = vand.u32 %v904, 4294901760
        %1761 = vmatprep.subr.mxu0 %v1760
        %v1762 = vand.u32 %v903, 4294901760
        %1763 = vmatpush1.msra.mxu0 %v1762
        %v1764 = vand.u32 %v906, 4294901760
        %1765 = vmatprep.subr.mxu0 %v1764
        %v1766 = vand.u32 %v905, 4294901760
        %1767 = vmatpush1.msra.mxu0 %v1766
        %v1768 = vand.u32 %v908, 4294901760
        %1769 = vmatprep.subr.mxu0 %v1768
        %v1770 = vand.u32 %v907, 4294901760
        %1771 = vmatpush1.msra.mxu0 %v1770
        %v1772 = vand.u32 %v910, 4294901760
        %1773 = vmatprep.subr.mxu0 %v1772
        %v1774 = vand.u32 %v909, 4294901760
        %1775 = vmatpush1.msra.mxu0 %v1774
        %v1776 = vand.u32 %v912, 4294901760
        %1777 = vmatprep.subr.mxu0 %v1776
        %v1778 = vand.u32 %v911, 4294901760
        %1779 = vmatpush1.msra.mxu0 %v1778
        %v1780 = vand.u32 %v914, 4294901760
        %1781 = vmatprep.subr.mxu0 %v1780
        %v1782 = vand.u32 %v913, 4294901760
        %1783 = vmatpush1.msra.mxu0 %v1782
        %v1784 = vand.u32 %v916, 4294901760
        %1785 = vmatprep.subr.mxu0 %v1784
        %v1786 = vand.u32 %v915, 4294901760
        %1787 = vmatpush1.msra.mxu0 %v1786
        %v1788 = vand.u32 %v918, 4294901760
        %1789 = vmatprep.subr.mxu0 %v1788
        %v1790 = vand.u32 %v917, 4294901760
        %1791 = vmatpush1.msra.mxu0 %v1790
        %v1792 = vand.u32 %v920, 4294901760
        %1793 = vmatprep.subr.mxu0 %v1792
        %v1794 = vand.u32 %v919, 4294901760
        %1795 = vmatpush1.msra.mxu0 %v1794
        %v1796 = vand.u32 %v922, 4294901760
        %1797 = vmatprep.subr.mxu0 %v1796
        %v1798 = vand.u32 %v921, 4294901760
        %1799 = vmatpush1.msra.mxu0 %v1798
        %v1800 = vand.u32 %v924, 4294901760
        %1801 = vmatprep.subr.mxu0 %v1800
        %v1802 = vand.u32 %v923, 4294901760
        %1803 = vmatpush1.msra.mxu0 %v1802
        %v1804 = vand.u32 %v926, 4294901760
        %1805 = vmatprep.subr.mxu0 %v1804
        %v1806 = vand.u32 %v925, 4294901760
        %1807 = vmatpush1.msra.mxu0 %v1806
        %v1808 = vand.u32 %v928, 4294901760
        %1809 = vmatprep.subr.mxu0 %v1808
        %v1810 = vand.u32 %v927, 4294901760
        %1811 = vmatpush1.msra.mxu0 %v1810
        %v1812 = vand.u32 %v930, 4294901760
        %1813 = vmatprep.subr.mxu0 %v1812
        %v1814 = vand.u32 %v929, 4294901760
        %1815 = vmatpush1.msra.mxu0 %v1814
        %v1816 = vand.u32 %v932, 4294901760
        %1817 = vmatprep.subr.mxu0 %v1816
        %v1818 = vand.u32 %v931, 4294901760
        %1819 = vmatpush1.msra.mxu0 %v1818
        %v1820 = vand.u32 %v934, 4294901760
        %1821 = vmatprep.subr.mxu0 %v1820
        %v1822 = vand.u32 %v933, 4294901760
        %1823 = vmatpush1.msra.mxu0 %v1822
        %v1824 = vand.u32 %v936, 4294901760
        %1825 = vmatprep.subr.mxu0 %v1824
        %v1826 = vand.u32 %v935, 4294901760
        %1827 = vmatpush1.msra.mxu0 %v1826
        %v1828 = vand.u32 %v938, 4294901760
        %1829 = vmatprep.subr.mxu0 %v1828
        %v1830 = vand.u32 %v937, 4294901760
        %1831 = vmatpush1.msra.mxu0 %v1830
        %v1832 = vand.u32 %v940, 4294901760
        %1833 = vmatprep.subr.mxu0 %v1832
        %v1834 = vand.u32 %v939, 4294901760
        %1835 = vmatpush1.msra.mxu0 %v1834
        %v1836 = vand.u32 %v942, 4294901760
        %1837 = vmatprep.subr.mxu0 %v1836
        %v1838 = vand.u32 %v941, 4294901760
        %1839 = vmatpush1.msra.mxu0 %v1838
        %v1840 = vand.u32 %v944, 4294901760
        %1841 = vmatprep.subr.mxu0 %v1840
        %v1842 = vand.u32 %v943, 4294901760
        %1843 = vmatpush1.msra.mxu0 %v1842
        %v1844 = vand.u32 %v946, 4294901760
        %1845 = vmatprep.subr.mxu0 %v1844
        %v1846 = vand.u32 %v945, 4294901760
        %1847 = vmatpush1.msra.mxu0 %v1846
        %v1848 = vand.u32 %v948, 4294901760
        %1849 = vmatprep.subr.mxu0 %v1848
        %v1850 = vand.u32 %v947, 4294901760
        %1851 = vmatpush1.msra.mxu0 %v1850
        %v1852 = vand.u32 %v876, 4294901760
        %v1853 = vsub.f32 %v876, %v1852
        %v1854 = vand.u32 %v1853, 4294901760
        %1855 = vmatprep.mubr.f32.mxu0 %v1854
        %v1856 = vand.u32 %v874, 4294901760
        %v1857 = vsub.f32 %v874, %v1856
        %v1858 = vand.u32 %v1857, 4294901760
        %1859 = vmatmul.mubr.f32.gmra.mrb[0].mxu0 %v1858
        %v1860 = vpop.f32.mrb[0].mxu0
        %v1861 = vadd.f32 %v1710, %v1860
        %v1862 = vpop.f32.mrb[0].mxu0
        %v1863 = vadd.f32 %v1712, %v1862
        %v1864 = vand.u32 %v883, 4294901760
        %v1865 = vsub.f32 %v883, %v1864
        %v1866 = vand.u32 %v1865, 4294901760
        %1867 = vmatprep.mubr.f32.mxu0 %v1866
        %v1868 = vand.u32 %v881, 4294901760
        %v1869 = vsub.f32 %v881, %v1868
        %v1870 = vand.u32 %v1869, 4294901760
        %1871 = vmatmul.mubr.f32.gmra.mrb[0].mxu0 %v1870
        %v1872 = vpop.f32.mrb[0].mxu0
        %v1873 = vadd.f32 %v1720, %v1872
        %v1874 = vpop.f32.mrb[0].mxu0
        %v1875 = vadd.f32 %v1722, %v1874
        %1876 = vdwg.mxu0
        %v1877 = vand.u32 %v886, 4294901760
        %v1878 = vsub.f32 %v886, %v1877
        %v1879 = vand.u32 %v1878, 4294901760
        %1880 = vmatprep.subr.mxu0 %v1879
        %v1881 = vand.u32 %v885, 4294901760
        %v1882 = vsub.f32 %v885, %v1881
        %v1883 = vand.u32 %v1882, 4294901760
        %1884 = vmatpush1.msra.mxu0 %v1883
        %v1885 = vand.u32 %v888, 4294901760
        %v1886 = vsub.f32 %v888, %v1885
        %v1887 = vand.u32 %v1886, 4294901760
        %1888 = vmatprep.subr.mxu0 %v1887
        %v1889 = vand.u32 %v887, 4294901760
        %v1890 = vsub.f32 %v887, %v1889
        %v1891 = vand.u32 %v1890, 4294901760
        %1892 = vmatpush1.msra.mxu0 %v1891
        %v1893 = vand.u32 %v890, 4294901760
        %v1894 = vsub.f32 %v890, %v1893
        %v1895 = vand.u32 %v1894, 4294901760
        %1896 = vmatprep.subr.mxu0 %v1895
        %v1897 = vand.u32 %v889, 4294901760
        %v1898 = vsub.f32 %v889, %v1897
        %v1899 = vand.u32 %v1898, 4294901760
        %1900 = vmatpush1.msra.mxu0 %v1899
        %v1901 = vand.u32 %v892, 4294901760
        %v1902 = vsub.f32 %v892, %v1901
        %v1903 = vand.u32 %v1902, 4294901760
        %1904 = vmatprep.subr.mxu0 %v1903
        %v1905 = vand.u32 %v891, 4294901760
        %v1906 = vsub.f32 %v891, %v1905
        %v1907 = vand.u32 %v1906, 4294901760
        %1908 = vmatpush1.msra.mxu0 %v1907
        %v1909 = vand.u32 %v894, 4294901760
        %v1910 = vsub.f32 %v894, %v1909
        %v1911 = vand.u32 %v1910, 4294901760
        %1912 = vmatprep.subr.mxu0 %v1911
        %v1913 = vand.u32 %v893, 4294901760
        %v1914 = vsub.f32 %v893, %v1913
        %v1915 = vand.u32 %v1914, 4294901760
        %1916 = vmatpush1.msra.mxu0 %v1915
        %v1917 = vand.u32 %v896, 4294901760
        %v1918 = vsub.f32 %v896, %v1917
        %v1919 = vand.u32 %v1918, 4294901760
        %1920 = vmatprep.subr.mxu0 %v1919
        %v1921 = vand.u32 %v895, 4294901760
        %v1922 = vsub.f32 %v895, %v1921
        %v1923 = vand.u32 %v1922, 4294901760
        %1924 = vmatpush1.msra.mxu0 %v1923
        %v1925 = vand.u32 %v898, 4294901760
        %v1926 = vsub.f32 %v898, %v1925
        %v1927 = vand.u32 %v1926, 4294901760
        %1928 = vmatprep.subr.mxu0 %v1927
        %v1929 = vand.u32 %v897, 4294901760
        %v1930 = vsub.f32 %v897, %v1929
        %v1931 = vand.u32 %v1930, 4294901760
        %1932 = vmatpush1.msra.mxu0 %v1931
        %v1933 = vand.u32 %v900, 4294901760
        %v1934 = vsub.f32 %v900, %v1933
        %v1935 = vand.u32 %v1934, 4294901760
        %1936 = vmatprep.subr.mxu0 %v1935
        %v1937 = vand.u32 %v899, 4294901760
        %v1938 = vsub.f32 %v899, %v1937
        %v1939 = vand.u32 %v1938, 4294901760
        %1940 = vmatpush1.msra.mxu0 %v1939
        %v1941 = vand.u32 %v902, 4294901760
        %v1942 = vsub.f32 %v902, %v1941
        %v1943 = vand.u32 %v1942, 4294901760
        %1944 = vmatprep.subr.mxu0 %v1943
        %v1945 = vand.u32 %v901, 4294901760
        %v1946 = vsub.f32 %v901, %v1945
        %v1947 = vand.u32 %v1946, 4294901760
        %1948 = vmatpush1.msra.mxu0 %v1947
        %v1949 = vand.u32 %v904, 4294901760
        %v1950 = vsub.f32 %v904, %v1949
        %v1951 = vand.u32 %v1950, 4294901760
        %1952 = vmatprep.subr.mxu0 %v1951
        %v1953 = vand.u32 %v903, 4294901760
        %v1954 = vsub.f32 %v903, %v1953
        %v1955 = vand.u32 %v1954, 4294901760
        %1956 = vmatpush1.msra.mxu0 %v1955
        %v1957 = vand.u32 %v906, 4294901760
        %v1958 = vsub.f32 %v906, %v1957
        %v1959 = vand.u32 %v1958, 4294901760
        %1960 = vmatprep.subr.mxu0 %v1959
        %v1961 = vand.u32 %v905, 4294901760
        %v1962 = vsub.f32 %v905, %v1961
        %v1963 = vand.u32 %v1962, 4294901760
        %1964 = vmatpush1.msra.mxu0 %v1963
        %v1965 = vand.u32 %v908, 4294901760
        %v1966 = vsub.f32 %v908, %v1965
        %v1967 = vand.u32 %v1966, 4294901760
        %1968 = vmatprep.subr.mxu0 %v1967
        %v1969 = vand.u32 %v907, 4294901760
        %v1970 = vsub.f32 %v907, %v1969
        %v1971 = vand.u32 %v1970, 4294901760
        %1972 = vmatpush1.msra.mxu0 %v1971
        %v1973 = vand.u32 %v910, 4294901760
        %v1974 = vsub.f32 %v910, %v1973
        %v1975 = vand.u32 %v1974, 4294901760
        %1976 = vmatprep.subr.mxu0 %v1975
        %v1977 = vand.u32 %v909, 4294901760
        %v1978 = vsub.f32 %v909, %v1977
        %v1979 = vand.u32 %v1978, 4294901760
        %1980 = vmatpush1.msra.mxu0 %v1979
        %v1981 = vand.u32 %v912, 4294901760
        %v1982 = vsub.f32 %v912, %v1981
        %v1983 = vand.u32 %v1982, 4294901760
        %1984 = vmatprep.subr.mxu0 %v1983
        %v1985 = vand.u32 %v911, 4294901760
        %v1986 = vsub.f32 %v911, %v1985
        %v1987 = vand.u32 %v1986, 4294901760
        %1988 = vmatpush1.msra.mxu0 %v1987
        %v1989 = vand.u32 %v914, 4294901760
        %v1990 = vsub.f32 %v914, %v1989
        %v1991 = vand.u32 %v1990, 4294901760
        %1992 = vmatprep.subr.mxu0 %v1991
        %v1993 = vand.u32 %v913, 4294901760
        %v1994 = vsub.f32 %v913, %v1993
        %v1995 = vand.u32 %v1994, 4294901760
        %1996 = vmatpush1.msra.mxu0 %v1995
        %v1997 = vand.u32 %v916, 4294901760
        %v1998 = vsub.f32 %v916, %v1997
        %v1999 = vand.u32 %v1998, 4294901760
        %2000 = vmatprep.subr.mxu0 %v1999
        %v2001 = vand.u32 %v915, 4294901760
        %v2002 = vsub.f32 %v915, %v2001
        %v2003 = vand.u32 %v2002, 4294901760
        %2004 = vmatpush1.msra.mxu0 %v2003
        %v2005 = vand.u32 %v918, 4294901760
        %v2006 = vsub.f32 %v918, %v2005
        %v2007 = vand.u32 %v2006, 4294901760
        %2008 = vmatprep.subr.mxu0 %v2007
        %v2009 = vand.u32 %v917, 4294901760
        %v2010 = vsub.f32 %v917, %v2009
        %v2011 = vand.u32 %v2010, 4294901760
        %2012 = vmatpush1.msra.mxu0 %v2011
        %v2013 = vand.u32 %v920, 4294901760
        %v2014 = vsub.f32 %v920, %v2013
        %v2015 = vand.u32 %v2014, 4294901760
        %2016 = vmatprep.subr.mxu0 %v2015
        %v2017 = vand.u32 %v919, 4294901760
        %v2018 = vsub.f32 %v919, %v2017
        %v2019 = vand.u32 %v2018, 4294901760
        %2020 = vmatpush1.msra.mxu0 %v2019
        %v2021 = vand.u32 %v922, 4294901760
        %v2022 = vsub.f32 %v922, %v2021
        %v2023 = vand.u32 %v2022, 4294901760
        %2024 = vmatprep.subr.mxu0 %v2023
        %v2025 = vand.u32 %v921, 4294901760
        %v2026 = vsub.f32 %v921, %v2025
        %v2027 = vand.u32 %v2026, 4294901760
        %2028 = vmatpush1.msra.mxu0 %v2027
        %v2029 = vand.u32 %v924, 4294901760
        %v2030 = vsub.f32 %v924, %v2029
        %v2031 = vand.u32 %v2030, 4294901760
        %2032 = vmatprep.subr.mxu0 %v2031
        %v2033 = vand.u32 %v923, 4294901760
        %v2034 = vsub.f32 %v923, %v2033
        %v2035 = vand.u32 %v2034, 4294901760
        %2036 = vmatpush1.msra.mxu0 %v2035
        %v2037 = vand.u32 %v926, 4294901760
        %v2038 = vsub.f32 %v926, %v2037
        %v2039 = vand.u32 %v2038, 4294901760
        %2040 = vmatprep.subr.mxu0 %v2039
        %v2041 = vand.u32 %v925, 4294901760
        %v2042 = vsub.f32 %v925, %v2041
        %v2043 = vand.u32 %v2042, 4294901760
        %2044 = vmatpush1.msra.mxu0 %v2043
        %v2045 = vand.u32 %v928, 4294901760
        %v2046 = vsub.f32 %v928, %v2045
        %v2047 = vand.u32 %v2046, 4294901760
        %2048 = vmatprep.subr.mxu0 %v2047
        %v2049 = vand.u32 %v927, 4294901760
        %v2050 = vsub.f32 %v927, %v2049
        %v2051 = vand.u32 %v2050, 4294901760
        %2052 = vmatpush1.msra.mxu0 %v2051
        %v2053 = vand.u32 %v930, 4294901760
        %v2054 = vsub.f32 %v930, %v2053
        %v2055 = vand.u32 %v2054, 4294901760
        %2056 = vmatprep.subr.mxu0 %v2055
        %v2057 = vand.u32 %v929, 4294901760
        %v2058 = vsub.f32 %v929, %v2057
        %v2059 = vand.u32 %v2058, 4294901760
        %2060 = vmatpush1.msra.mxu0 %v2059
        %v2061 = vand.u32 %v932, 4294901760
        %v2062 = vsub.f32 %v932, %v2061
        %v2063 = vand.u32 %v2062, 4294901760
        %2064 = vmatprep.subr.mxu0 %v2063
        %v2065 = vand.u32 %v931, 4294901760
        %v2066 = vsub.f32 %v931, %v2065
        %v2067 = vand.u32 %v2066, 4294901760
        %2068 = vmatpush1.msra.mxu0 %v2067
        %v2069 = vand.u32 %v934, 4294901760
        %v2070 = vsub.f32 %v934, %v2069
        %v2071 = vand.u32 %v2070, 4294901760
        %2072 = vmatprep.subr.mxu0 %v2071
        %v2073 = vand.u32 %v933, 4294901760
        %v2074 = vsub.f32 %v933, %v2073
        %v2075 = vand.u32 %v2074, 4294901760
        %2076 = vmatpush1.msra.mxu0 %v2075
        %v2077 = vand.u32 %v936, 4294901760
        %v2078 = vsub.f32 %v936, %v2077
        %v2079 = vand.u32 %v2078, 4294901760
        %2080 = vmatprep.subr.mxu0 %v2079
        %v2081 = vand.u32 %v935, 4294901760
        %v2082 = vsub.f32 %v935, %v2081
        %v2083 = vand.u32 %v2082, 4294901760
        %2084 = vmatpush1.msra.mxu0 %v2083
        %v2085 = vand.u32 %v938, 4294901760
        %v2086 = vsub.f32 %v938, %v2085
        %v2087 = vand.u32 %v2086, 4294901760
        %2088 = vmatprep.subr.mxu0 %v2087
        %v2089 = vand.u32 %v937, 4294901760
        %v2090 = vsub.f32 %v937, %v2089
        %v2091 = vand.u32 %v2090, 4294901760
        %2092 = vmatpush1.msra.mxu0 %v2091
        %v2093 = vand.u32 %v940, 4294901760
        %v2094 = vsub.f32 %v940, %v2093
        %v2095 = vand.u32 %v2094, 4294901760
        %2096 = vmatprep.subr.mxu0 %v2095
        %v2097 = vand.u32 %v939, 4294901760
        %v2098 = vsub.f32 %v939, %v2097
        %v2099 = vand.u32 %v2098, 4294901760
        %2100 = vmatpush1.msra.mxu0 %v2099
        %v2101 = vand.u32 %v942, 4294901760
        %v2102 = vsub.f32 %v942, %v2101
        %v2103 = vand.u32 %v2102, 4294901760
        %2104 = vmatprep.subr.mxu0 %v2103
        %v2105 = vand.u32 %v941, 4294901760
        %v2106 = vsub.f32 %v941, %v2105
        %v2107 = vand.u32 %v2106, 4294901760
        %2108 = vmatpush1.msra.mxu0 %v2107
        %v2109 = vand.u32 %v944, 4294901760
        %v2110 = vsub.f32 %v944, %v2109
        %v2111 = vand.u32 %v2110, 4294901760
        %2112 = vmatprep.subr.mxu0 %v2111
        %v2113 = vand.u32 %v943, 4294901760
        %v2114 = vsub.f32 %v943, %v2113
        %v2115 = vand.u32 %v2114, 4294901760
        %2116 = vmatpush1.msra.mxu0 %v2115
        %v2117 = vand.u32 %v946, 4294901760
        %v2118 = vsub.f32 %v946, %v2117
        %v2119 = vand.u32 %v2118, 4294901760
        %2120 = vmatprep.subr.mxu0 %v2119
        %v2121 = vand.u32 %v945, 4294901760
        %v2122 = vsub.f32 %v945, %v2121
        %v2123 = vand.u32 %v2122, 4294901760
        %2124 = vmatpush1.msra.mxu0 %v2123
        %v2125 = vand.u32 %v948, 4294901760
        %v2126 = vsub.f32 %v948, %v2125
        %v2127 = vand.u32 %v2126, 4294901760
        %2128 = vmatprep.subr.mxu0 %v2127
        %v2129 = vand.u32 %v947, 4294901760
        %v2130 = vsub.f32 %v947, %v2129
        %v2131 = vand.u32 %v2130, 4294901760
        %2132 = vmatpush1.msra.mxu0 %v2131
        %v2133 = vand.u32 %v876, 4294901760
        %2134 = vmatprep.mubr.f32.mxu0 %v2133
        %v2135 = vand.u32 %v874, 4294901760
        %2136 = vmatmul.mubr.f32.gmra.mrb[0].mxu0 %v2135
        %v2137 = vpop.f32.mrb[0].mxu0
        %v2138 = vadd.f32 %v1861, %v2137
        %v2139 = vpop.f32.mrb[0].mxu0
        %v2140 = vadd.f32 %v1863, %v2139
        %v2141 = vand.u32 %v883, 4294901760
        %2142 = vmatprep.mubr.f32.mxu0 %v2141
        %v2143 = vand.u32 %v881, 4294901760
        %2144 = vmatmul.mubr.f32.gmra.mrb[0].mxu0 %v2143
        %v2145 = vpop.f32.mrb[0].mxu0
        %v2146 = vadd.f32 %v1873, %v2145
        %v2147 = vpop.f32.mrb[0].mxu0
        %v2148 = vadd.f32 %v1875, %v2147
        %2149 = vdwg.mxu0
        %v2150 = vand.u32 %v886, 4294901760
        %2151 = vmatprep.subr.mxu0 %v2150
        %v2152 = vand.u32 %v885, 4294901760
        %2153 = vmatpush1.msra.mxu0 %v2152
        %v2154 = vand.u32 %v888, 4294901760
        %2155 = vmatprep.subr.mxu0 %v2154
        %v2156 = vand.u32 %v887, 4294901760
        %2157 = vmatpush1.msra.mxu0 %v2156
        %v2158 = vand.u32 %v890, 4294901760
        %2159 = vmatprep.subr.mxu0 %v2158
        %v2160 = vand.u32 %v889, 4294901760
        %2161 = vmatpush1.msra.mxu0 %v2160
        %v2162 = vand.u32 %v892, 4294901760
        %2163 = vmatprep.subr.mxu0 %v2162
        %v2164 = vand.u32 %v891, 4294901760
        %2165 = vmatpush1.msra.mxu0 %v2164
        %v2166 = vand.u32 %v894, 4294901760
        %2167 = vmatprep.subr.mxu0 %v2166
        %v2168 = vand.u32 %v893, 4294901760
        %2169 = vmatpush1.msra.mxu0 %v2168
        %v2170 = vand.u32 %v896, 4294901760
        %2171 = vmatprep.subr.mxu0 %v2170
        %v2172 = vand.u32 %v895, 4294901760
        %2173 = vmatpush1.msra.mxu0 %v2172
        %v2174 = vand.u32 %v898, 4294901760
        %2175 = vmatprep.subr.mxu0 %v2174
        %v2176 = vand.u32 %v897, 4294901760
        %2177 = vmatpush1.msra.mxu0 %v2176
        %v2178 = vand.u32 %v900, 4294901760
        %2179 = vmatprep.subr.mxu0 %v2178
        %v2180 = vand.u32 %v899, 4294901760
        %2181 = vmatpush1.msra.mxu0 %v2180
        %v2182 = vand.u32 %v902, 4294901760
        %2183 = vmatprep.subr.mxu0 %v2182
        %v2184 = vand.u32 %v901, 4294901760
        %2185 = vmatpush1.msra.mxu0 %v2184
        %v2186 = vand.u32 %v904, 4294901760
        %2187 = vmatprep.subr.mxu0 %v2186
        %v2188 = vand.u32 %v903, 4294901760
        %2189 = vmatpush1.msra.mxu0 %v2188
        %v2190 = vand.u32 %v906, 4294901760
        %2191 = vmatprep.subr.mxu0 %v2190
        %v2192 = vand.u32 %v905, 4294901760
        %2193 = vmatpush1.msra.mxu0 %v2192
        %v2194 = vand.u32 %v908, 4294901760
        %2195 = vmatprep.subr.mxu0 %v2194
        %v2196 = vand.u32 %v907, 4294901760
        %2197 = vmatpush1.msra.mxu0 %v2196
        %v2198 = vand.u32 %v910, 4294901760
        %2199 = vmatprep.subr.mxu0 %v2198
        %v2200 = vand.u32 %v909, 4294901760
        %2201 = vmatpush1.msra.mxu0 %v2200
        %v2202 = vand.u32 %v912, 4294901760
        %2203 = vmatprep.subr.mxu0 %v2202
        %v2204 = vand.u32 %v911, 4294901760
        %2205 = vmatpush1.msra.mxu0 %v2204
        %v2206 = vand.u32 %v914, 4294901760
        %2207 = vmatprep.subr.mxu0 %v2206
        %v2208 = vand.u32 %v913, 4294901760
        %2209 = vmatpush1.msra.mxu0 %v2208
        %v2210 = vand.u32 %v916, 4294901760
        %2211 = vmatprep.subr.mxu0 %v2210
        %v2212 = vand.u32 %v915, 4294901760
        %2213 = vmatpush1.msra.mxu0 %v2212
        %v2214 = vand.u32 %v918, 4294901760
        %2215 = vmatprep.subr.mxu0 %v2214
        %v2216 = vand.u32 %v917, 4294901760
        %2217 = vmatpush1.msra.mxu0 %v2216
        %v2218 = vand.u32 %v920, 4294901760
        %2219 = vmatprep.subr.mxu0 %v2218
        %v2220 = vand.u32 %v919, 4294901760
        %2221 = vmatpush1.msra.mxu0 %v2220
        %v2222 = vand.u32 %v922, 4294901760
        %2223 = vmatprep.subr.mxu0 %v2222
        %v2224 = vand.u32 %v921, 4294901760
        %2225 = vmatpush1.msra.mxu0 %v2224
        %v2226 = vand.u32 %v924, 4294901760
        %2227 = vmatprep.subr.mxu0 %v2226
        %v2228 = vand.u32 %v923, 4294901760
        %2229 = vmatpush1.msra.mxu0 %v2228
        %v2230 = vand.u32 %v926, 4294901760
        %2231 = vmatprep.subr.mxu0 %v2230
        %v2232 = vand.u32 %v925, 4294901760
        %2233 = vmatpush1.msra.mxu0 %v2232
        %v2234 = vand.u32 %v928, 4294901760
        %2235 = vmatprep.subr.mxu0 %v2234
        %v2236 = vand.u32 %v927, 4294901760
        %2237 = vmatpush1.msra.mxu0 %v2236
        %v2238 = vand.u32 %v930, 4294901760
        %2239 = vmatprep.subr.mxu0 %v2238
        %v2240 = vand.u32 %v929, 4294901760
        %2241 = vmatpush1.msra.mxu0 %v2240
        %v2242 = vand.u32 %v932, 4294901760
        %2243 = vmatprep.subr.mxu0 %v2242
        %v2244 = vand.u32 %v931, 4294901760
        %2245 = vmatpush1.msra.mxu0 %v2244
        %v2246 = vand.u32 %v934, 4294901760
        %2247 = vmatprep.subr.mxu0 %v2246
        %v2248 = vand.u32 %v933, 4294901760
        %2249 = vmatpush1.msra.mxu0 %v2248
        %v2250 = vand.u32 %v936, 4294901760
        %2251 = vmatprep.subr.mxu0 %v2250
        %v2252 = vand.u32 %v935, 4294901760
        %2253 = vmatpush1.msra.mxu0 %v2252
        %v2254 = vand.u32 %v938, 4294901760
        %2255 = vmatprep.subr.mxu0 %v2254
        %v2256 = vand.u32 %v937, 4294901760
        %2257 = vmatpush1.msra.mxu0 %v2256
        %v2258 = vand.u32 %v940, 4294901760
        %2259 = vmatprep.subr.mxu0 %v2258
        %v2260 = vand.u32 %v939, 4294901760
        %2261 = vmatpush1.msra.mxu0 %v2260
        %v2262 = vand.u32 %v942, 4294901760
        %2263 = vmatprep.subr.mxu0 %v2262
        %v2264 = vand.u32 %v941, 4294901760
        %2265 = vmatpush1.msra.mxu0 %v2264
        %v2266 = vand.u32 %v944, 4294901760
        %2267 = vmatprep.subr.mxu0 %v2266
        %v2268 = vand.u32 %v943, 4294901760
        %2269 = vmatpush1.msra.mxu0 %v2268
        %v2270 = vand.u32 %v946, 4294901760
        %2271 = vmatprep.subr.mxu0 %v2270
        %v2272 = vand.u32 %v945, 4294901760
        %2273 = vmatpush1.msra.mxu0 %v2272
        %v2274 = vand.u32 %v948, 4294901760
        %2275 = vmatprep.subr.mxu0 %v2274
        %v2276 = vand.u32 %v947, 4294901760
        %2277 = vmatpush1.msra.mxu0 %v2276
        %v2278 = vand.u32 %v876, 4294901760
        %2279 = vmatprep.mubr.f32.mxu0 %v2278
        %v2280 = vand.u32 %v874, 4294901760
        %2281 = vmatmul.mubr.f32.gmra.mrb[0].mxu0 %v2280
        %v2282 = vpop.f32.mrb[0].mxu0
        %v2283 = vadd.f32 %v2138, %v2282
        %v2284 = vpop.f32.mrb[0].mxu0
        %v2285 = vadd.f32 %v2140, %v2284
        %v2286 = vand.u32 %v883, 4294901760
        %2287 = vmatprep.mubr.f32.mxu0 %v2286
        %v2288 = vand.u32 %v881, 4294901760
        %2289 = vmatmul.mubr.f32.gmra.mrb[0].mxu0 %v2288
        %v2290 = vpop.f32.mrb[0].mxu0
        %v2291 = vadd.f32 %v2146, %v2290
        %v2292 = vpop.f32.mrb[0].mxu0
        %v2293 = vadd.f32 %v2148, %v2292
        %2294 = vdwg.mxu0
        %v2295 = vadd.f32 %v332, %v2283
        %v2296 = vadd.f32 %v333, %v2285
        %v2297 = vadd.f32 %v334, %v2291
        %v2298 = vadd.f32 %v335, %v2293
        %s2299 = scalar_lea.vmem [#allocation5], 16
        %v2300 = vld [vmem:[%s2299] sm:$0xff]
        %v2301 = vld [vmem:[%s2299 + $0x8] sm:$0xff]
        %v2303 = vsel %vm338, %v2300, 0
        %v2306 = vsel %vm338, %v2301, 0
        %v2308 = vand.u32 %v329, 4294901760
        %2309 = vmatprep.subr.mxu0 %v2308
        %v2310 = vand.u32 %v328, 4294901760
        %2311 = vmatpush1.msra.mxu0 %v2310
        %v2312 = vand.u32 %v331, 4294901760
        %2313 = vmatprep.subr.mxu0 %v2312
        %v2314 = vand.u32 %v330, 4294901760
        %2315 = vmatpush1.msra.mxu0 %v2314
        %2316 = vmatprep.subr.mxu0 0.0
        %2317 = vmatpush1.msra.mxu0 0.0
        %2318 = vmatprep.subr.mxu0 0.0
        %2319 = vmatpush1.msra.mxu0 0.0
        %2320 = vmatprep.subr.mxu0 0.0
        %2321 = vmatpush1.msra.mxu0 0.0
        %2322 = vmatprep.subr.mxu0 0.0
        %2323 = vmatpush1.msra.mxu0 0.0
        %2324 = vmatprep.subr.mxu0 0.0
        %2325 = vmatpush1.msra.mxu0 0.0
        %2326 = vmatprep.subr.mxu0 0.0
        %2327 = vmatpush1.msra.mxu0 0.0
        %2328 = vmatprep.subr.mxu0 0.0
        %2329 = vmatpush1.msra.mxu0 0.0
        %2330 = vmatprep.subr.mxu0 0.0
        %2331 = vmatpush1.msra.mxu0 0.0
        %2332 = vmatprep.subr.mxu0 0.0
        %2333 = vmatpush1.msra.mxu0 0.0
        %2334 = vmatprep.subr.mxu0 0.0
        %2335 = vmatpush1.msra.mxu0 0.0
        %2336 = vmatprep.subr.mxu0 0.0
        %2337 = vmatpush1.msra.mxu0 0.0
        %2338 = vmatprep.subr.mxu0 0.0
        %2339 = vmatpush1.msra.mxu0 0.0
        %2340 = vmatprep.subr.mxu0 0.0
        %2341 = vmatpush1.msra.mxu0 0.0
        %2342 = vmatprep.subr.mxu0 0.0
        %2343 = vmatpush1.msra.mxu0 0.0
        %2344 = vmatprep.subr.mxu0 0.0
        %2345 = vmatpush1.msra.mxu0 0.0
        %2346 = vmatprep.subr.mxu0 0.0
        %2347 = vmatpush1.msra.mxu0 0.0
        %2348 = vmatprep.subr.mxu0 0.0
        %2349 = vmatpush1.msra.mxu0 0.0
        %2350 = vmatprep.subr.mxu0 0.0
        %2351 = vmatpush1.msra.mxu0 0.0
        %2352 = vmatprep.subr.mxu0 0.0
        %2353 = vmatpush1.msra.mxu0 0.0
        %2354 = vmatprep.subr.mxu0 0.0
        %2355 = vmatpush1.msra.mxu0 0.0
        %2356 = vmatprep.subr.mxu0 0.0
        %2357 = vmatpush1.msra.mxu0 0.0
        %2358 = vmatprep.subr.mxu0 0.0
        %2359 = vmatpush1.msra.mxu0 0.0
        %2360 = vmatprep.subr.mxu0 0.0
        %2361 = vmatpush1.msra.mxu0 0.0
        %2362 = vmatprep.subr.mxu0 0.0
        %2363 = vmatpush1.msra.mxu0 0.0
        %2364 = vmatprep.subr.mxu0 0.0
        %2365 = vmatpush1.msra.mxu0 0.0
        %2366 = vmatprep.subr.mxu0 0.0
        %2367 = vmatpush1.msra.mxu0 0.0
        %2368 = vmatprep.subr.mxu0 0.0
        %2369 = vmatpush1.msra.mxu0 0.0
        %2370 = vmatprep.subr.mxu0 0.0
        %2371 = vmatpush1.msra.mxu0 0.0
        %2372 = vmatprep.subr.mxu0 0.0
        %2373 = vmatpush1.msra.mxu0 0.0
        %2374 = vmatprep.subr.mxu0 0.0
        %2375 = vmatpush1.msra.mxu0 0.0
        %2376 = vmatprep.mubr.f32.mxu0 0.0
        %v2377 = vand.u32 %v2303, 4294901760
        %v2378 = vsub.f32 %v2303, %v2377
        %v2379 = vand.u32 %v2378, 4294901760
        %v2380 = vsub.f32 %v2378, %v2379
        %v2381 = vand.u32 %v2380, 4294901760
        %2382 = vmatmul.mubr.f32.gmra.mrb[0].mxu0 %v2381
        %v2383 = vpop.f32.mrb[0].mxu0
        %v2384 = vadd.f32 0.0, %v2383
        %v2385 = vpop.f32.mrb[0].mxu0
        %v2386 = vadd.f32 0.0, %v2385
        %2387 = vmatprep.mubr.f32.mxu0 0.0
        %v2388 = vand.u32 %v2306, 4294901760
        %v2389 = vsub.f32 %v2306, %v2388
        %v2390 = vand.u32 %v2389, 4294901760
        %v2391 = vsub.f32 %v2389, %v2390
        %v2392 = vand.u32 %v2391, 4294901760
        %2393 = vmatmul.mubr.f32.gmra.mrb[0].mxu0 %v2392
        %v2394 = vpop.f32.mrb[0].mxu0
        %v2395 = vadd.f32 0.0, %v2394
        %v2396 = vpop.f32.mrb[0].mxu0
        %v2397 = vadd.f32 0.0, %v2396
        %2398 = vdwg.mxu0
        %v2399 = vand.u32 %v329, 4294901760
        %v2400 = vsub.f32 %v329, %v2399
        %v2401 = vand.u32 %v2400, 4294901760
        %v2402 = vsub.f32 %v2400, %v2401
        %v2403 = vand.u32 %v2402, 4294901760
        %2404 = vmatprep.subr.mxu0 %v2403
        %v2405 = vand.u32 %v328, 4294901760
        %v2406 = vsub.f32 %v328, %v2405
        %v2407 = vand.u32 %v2406, 4294901760
        %v2408 = vsub.f32 %v2406, %v2407
        %v2409 = vand.u32 %v2408, 4294901760
        %2410 = vmatpush1.msra.mxu0 %v2409
        %v2411 = vand.u32 %v331, 4294901760
        %v2412 = vsub.f32 %v331, %v2411
        %v2413 = vand.u32 %v2412, 4294901760
        %v2414 = vsub.f32 %v2412, %v2413
        %v2415 = vand.u32 %v2414, 4294901760
        %2416 = vmatprep.subr.mxu0 %v2415
        %v2417 = vand.u32 %v330, 4294901760
        %v2418 = vsub.f32 %v330, %v2417
        %v2419 = vand.u32 %v2418, 4294901760
        %v2420 = vsub.f32 %v2418, %v2419
        %v2421 = vand.u32 %v2420, 4294901760
        %2422 = vmatpush1.msra.mxu0 %v2421
        %2423 = vmatprep.subr.mxu0 0.0
        %2424 = vmatpush1.msra.mxu0 0.0
        %2425 = vmatprep.subr.mxu0 0.0
        %2426 = vmatpush1.msra.mxu0 0.0
        %2427 = vmatprep.subr.mxu0 0.0
        %2428 = vmatpush1.msra.mxu0 0.0
        %2429 = vmatprep.subr.mxu0 0.0
        %2430 = vmatpush1.msra.mxu0 0.0
        %2431 = vmatprep.subr.mxu0 0.0
        %2432 = vmatpush1.msra.mxu0 0.0
        %2433 = vmatprep.subr.mxu0 0.0
        %2434 = vmatpush1.msra.mxu0 0.0
        %2435 = vmatprep.subr.mxu0 0.0
        %2436 = vmatpush1.msra.mxu0 0.0
        %2437 = vmatprep.subr.mxu0 0.0
        %2438 = vmatpush1.msra.mxu0 0.0
        %2439 = vmatprep.subr.mxu0 0.0
        %2440 = vmatpush1.msra.mxu0 0.0
        %2441 = vmatprep.subr.mxu0 0.0
        %2442 = vmatpush1.msra.mxu0 0.0
        %2443 = vmatprep.subr.mxu0 0.0
        %2444 = vmatpush1.msra.mxu0 0.0
        %2445 = vmatprep.subr.mxu0 0.0
        %2446 = vmatpush1.msra.mxu0 0.0
        %2447 = vmatprep.subr.mxu0 0.0
        %2448 = vmatpush1.msra.mxu0 0.0
        %2449 = vmatprep.subr.mxu0 0.0
        %2450 = vmatpush1.msra.mxu0 0.0
        %2451 = vmatprep.subr.mxu0 0.0
        %2452 = vmatpush1.msra.mxu0 0.0
        %2453 = vmatprep.subr.mxu0 0.0
        %2454 = vmatpush1.msra.mxu0 0.0
        %2455 = vmatprep.subr.mxu0 0.0
        %2456 = vmatpush1.msra.mxu0 0.0
        %2457 = vmatprep.subr.mxu0 0.0
        %2458 = vmatpush1.msra.mxu0 0.0
        %2459 = vmatprep.subr.mxu0 0.0
        %2460 = vmatpush1.msra.mxu0 0.0
        %2461 = vmatprep.subr.mxu0 0.0
        %2462 = vmatpush1.msra.mxu0 0.0
        %2463 = vmatprep.subr.mxu0 0.0
        %2464 = vmatpush1.msra.mxu0 0.0
        %2465 = vmatprep.subr.mxu0 0.0
        %2466 = vmatpush1.msra.mxu0 0.0
        %2467 = vmatprep.subr.mxu0 0.0
        %2468 = vmatpush1.msra.mxu0 0.0
        %2469 = vmatprep.subr.mxu0 0.0
        %2470 = vmatpush1.msra.mxu0 0.0
        %2471 = vmatprep.subr.mxu0 0.0
        %2472 = vmatpush1.msra.mxu0 0.0
        %2473 = vmatprep.subr.mxu0 0.0
        %2474 = vmatpush1.msra.mxu0 0.0
        %2475 = vmatprep.subr.mxu0 0.0
        %2476 = vmatpush1.msra.mxu0 0.0
        %2477 = vmatprep.subr.mxu0 0.0
        %2478 = vmatpush1.msra.mxu0 0.0
        %2479 = vmatprep.subr.mxu0 0.0
        %2480 = vmatpush1.msra.mxu0 0.0
        %2481 = vmatprep.subr.mxu0 0.0
        %2482 = vmatpush1.msra.mxu0 0.0
        %2483 = vmatprep.mubr.f32.mxu0 0.0
        %v2484 = vand.u32 %v2303, 4294901760
        %2485 = vmatmul.mubr.f32.gmra.mrb[0].mxu0 %v2484
        %v2486 = vpop.f32.mrb[0].mxu0
        %v2487 = vadd.f32 %v2384, %v2486
        %v2488 = vpop.f32.mrb[0].mxu0
        %v2489 = vadd.f32 %v2386, %v2488
        %2490 = vmatprep.mubr.f32.mxu0 0.0
        %v2491 = vand.u32 %v2306, 4294901760
        %2492 = vmatmul.mubr.f32.gmra.mrb[0].mxu0 %v2491
        %v2493 = vpop.f32.mrb[0].mxu0
        %v2494 = vadd.f32 %v2395, %v2493
        %v2495 = vpop.f32.mrb[0].mxu0
        %v2496 = vadd.f32 %v2397, %v2495
        %2497 = vdwg.mxu0
        %v2498 = vand.u32 %v329, 4294901760
        %v2499 = vsub.f32 %v329, %v2498
        %2500 = vmatprep.subr.mxu0 %v2499
        %v2501 = vand.u32 %v328, 4294901760
        %v2502 = vsub.f32 %v328, %v2501
        %2503 = vmatpush1.msra.mxu0 %v2502
        %v2504 = vand.u32 %v331, 4294901760
        %v2505 = vsub.f32 %v331, %v2504
        %2506 = vmatprep.subr.mxu0 %v2505
        %v2507 = vand.u32 %v330, 4294901760
        %v2508 = vsub.f32 %v330, %v2507
        %2509 = vmatpush1.msra.mxu0 %v2508
        %2510 = vmatprep.subr.mxu0 0.0
        %2511 = vmatpush1.msra.mxu0 0.0
        %2512 = vmatprep.subr.mxu0 0.0
        %2513 = vmatpush1.msra.mxu0 0.0
        %2514 = vmatprep.subr.mxu0 0.0
        %2515 = vmatpush1.msra.mxu0 0.0
        %2516 = vmatprep.subr.mxu0 0.0
        %2517 = vmatpush1.msra.mxu0 0.0
        %2518 = vmatprep.subr.mxu0 0.0
        %2519 = vmatpush1.msra.mxu0 0.0
        %2520 = vmatprep.subr.mxu0 0.0
        %2521 = vmatpush1.msra.mxu0 0.0
        %2522 = vmatprep.subr.mxu0 0.0
        %2523 = vmatpush1.msra.mxu0 0.0
        %2524 = vmatprep.subr.mxu0 0.0
        %2525 = vmatpush1.msra.mxu0 0.0
        %2526 = vmatprep.subr.mxu0 0.0
        %2527 = vmatpush1.msra.mxu0 0.0
        %2528 = vmatprep.subr.mxu0 0.0
        %2529 = vmatpush1.msra.mxu0 0.0
        %2530 = vmatprep.subr.mxu0 0.0
        %2531 = vmatpush1.msra.mxu0 0.0
        %2532 = vmatprep.subr.mxu0 0.0
        %2533 = vmatpush1.msra.mxu0 0.0
        %2534 = vmatprep.subr.mxu0 0.0
        %2535 = vmatpush1.msra.mxu0 0.0
        %2536 = vmatprep.subr.mxu0 0.0
        %2537 = vmatpush1.msra.mxu0 0.0
        %2538 = vmatprep.subr.mxu0 0.0
        %2539 = vmatpush1.msra.mxu0 0.0
        %2540 = vmatprep.subr.mxu0 0.0
        %2541 = vmatpush1.msra.mxu0 0.0
        %2542 = vmatprep.subr.mxu0 0.0
        %2543 = vmatpush1.msra.mxu0 0.0
        %2544 = vmatprep.subr.mxu0 0.0
        %2545 = vmatpush1.msra.mxu0 0.0
        %2546 = vmatprep.subr.mxu0 0.0
        %2547 = vmatpush1.msra.mxu0 0.0
        %2548 = vmatprep.subr.mxu0 0.0
        %2549 = vmatpush1.msra.mxu0 0.0
        %2550 = vmatprep.subr.mxu0 0.0
        %2551 = vmatpush1.msra.mxu0 0.0
        %2552 = vmatprep.subr.mxu0 0.0
        %2553 = vmatpush1.msra.mxu0 0.0
        %2554 = vmatprep.subr.mxu0 0.0
        %2555 = vmatpush1.msra.mxu0 0.0
        %2556 = vmatprep.subr.mxu0 0.0
        %2557 = vmatpush1.msra.mxu0 0.0
        %2558 = vmatprep.subr.mxu0 0.0
        %2559 = vmatpush1.msra.mxu0 0.0
        %2560 = vmatprep.subr.mxu0 0.0
        %2561 = vmatpush1.msra.mxu0 0.0
        %2562 = vmatprep.subr.mxu0 0.0
        %2563 = vmatpush1.msra.mxu0 0.0
        %2564 = vmatprep.subr.mxu0 0.0
        %2565 = vmatpush1.msra.mxu0 0.0
        %2566 = vmatprep.subr.mxu0 0.0
        %2567 = vmatpush1.msra.mxu0 0.0
        %2568 = vmatprep.subr.mxu0 0.0
        %2569 = vmatpush1.msra.mxu0 0.0
        %2570 = vmatprep.mubr.f32.mxu0 0.0
        %v2571 = vand.u32 %v2303, 4294901760
        %v2572 = vsub.f32 %v2303, %v2571
        %2573 = vmatmul.mubr.f32.gmra.mrb[0].mxu0 %v2572
        %v2574 = vpop.f32.mrb[0].mxu0
        %v2575 = vadd.f32 %v2487, %v2574
        %v2576 = vpop.f32.mrb[0].mxu0
        %v2577 = vadd.f32 %v2489, %v2576
        %2578 = vmatprep.mubr.f32.mxu0 0.0
        %v2579 = vand.u32 %v2306, 4294901760
        %v2580 = vsub.f32 %v2306, %v2579
        %2581 = vmatmul.mubr.f32.gmra.mrb[0].mxu0 %v2580
        %v2582 = vpop.f32.mrb[0].mxu0
        %v2583 = vadd.f32 %v2494, %v2582
        %v2584 = vpop.f32.mrb[0].mxu0
        %v2585 = vadd.f32 %v2496, %v2584
        %2586 = vdwg.mxu0
        %v2587 = vand.u32 %v329, 4294901760
        %2588 = vmatprep.subr.mxu0 %v2587
        %v2589 = vand.u32 %v328, 4294901760
        %2590 = vmatpush1.msra.mxu0 %v2589
        %v2591 = vand.u32 %v331, 4294901760
        %2592 = vmatprep.subr.mxu0 %v2591
        %v2593 = vand.u32 %v330, 4294901760
        %2594 = vmatpush1.msra.mxu0 %v2593
        %2595 = vmatprep.subr.mxu0 0.0
        %2596 = vmatpush1.msra.mxu0 0.0
        %2597 = vmatprep.subr.mxu0 0.0
        %2598 = vmatpush1.msra.mxu0 0.0
        %2599 = vmatprep.subr.mxu0 0.0
        %2600 = vmatpush1.msra.mxu0 0.0
        %2601 = vmatprep.subr.mxu0 0.0
        %2602 = vmatpush1.msra.mxu0 0.0
        %2603 = vmatprep.subr.mxu0 0.0
        %2604 = vmatpush1.msra.mxu0 0.0
        %2605 = vmatprep.subr.mxu0 0.0
        %2606 = vmatpush1.msra.mxu0 0.0
        %2607 = vmatprep.subr.mxu0 0.0
        %2608 = vmatpush1.msra.mxu0 0.0
        %2609 = vmatprep.subr.mxu0 0.0
        %2610 = vmatpush1.msra.mxu0 0.0
        %2611 = vmatprep.subr.mxu0 0.0
        %2612 = vmatpush1.msra.mxu0 0.0
        %2613 = vmatprep.subr.mxu0 0.0
        %2614 = vmatpush1.msra.mxu0 0.0
        %2615 = vmatprep.subr.mxu0 0.0
        %2616 = vmatpush1.msra.mxu0 0.0
        %2617 = vmatprep.subr.mxu0 0.0
        %2618 = vmatpush1.msra.mxu0 0.0
        %2619 = vmatprep.subr.mxu0 0.0
        %2620 = vmatpush1.msra.mxu0 0.0
        %2621 = vmatprep.subr.mxu0 0.0
        %2622 = vmatpush1.msra.mxu0 0.0
        %2623 = vmatprep.subr.mxu0 0.0
        %2624 = vmatpush1.msra.mxu0 0.0
        %2625 = vmatprep.subr.mxu0 0.0
        %2626 = vmatpush1.msra.mxu0 0.0
        %2627 = vmatprep.subr.mxu0 0.0
        %2628 = vmatpush1.msra.mxu0 0.0
        %2629 = vmatprep.subr.mxu0 0.0
        %2630 = vmatpush1.msra.mxu0 0.0
        %2631 = vmatprep.subr.mxu0 0.0
        %2632 = vmatpush1.msra.mxu0 0.0
        %2633 = vmatprep.subr.mxu0 0.0
        %2634 = vmatpush1.msra.mxu0 0.0
        %2635 = vmatprep.subr.mxu0 0.0
        %2636 = vmatpush1.msra.mxu0 0.0
        %2637 = vmatprep.subr.mxu0 0.0
        %2638 = vmatpush1.msra.mxu0 0.0
        %2639 = vmatprep.subr.mxu0 0.0
        %2640 = vmatpush1.msra.mxu0 0.0
        %2641 = vmatprep.subr.mxu0 0.0
        %2642 = vmatpush1.msra.mxu0 0.0
        %2643 = vmatprep.subr.mxu0 0.0
        %2644 = vmatpush1.msra.mxu0 0.0
        %2645 = vmatprep.subr.mxu0 0.0
        %2646 = vmatpush1.msra.mxu0 0.0
        %2647 = vmatprep.subr.mxu0 0.0
        %2648 = vmatpush1.msra.mxu0 0.0
        %2649 = vmatprep.subr.mxu0 0.0
        %2650 = vmatpush1.msra.mxu0 0.0
        %2651 = vmatprep.subr.mxu0 0.0
        %2652 = vmatpush1.msra.mxu0 0.0
        %2653 = vmatprep.subr.mxu0 0.0
        %2654 = vmatpush1.msra.mxu0 0.0
        %2655 = vmatprep.mubr.f32.mxu0 0.0
        %v2656 = vand.u32 %v2303, 4294901760
        %v2657 = vsub.f32 %v2303, %v2656
        %v2658 = vand.u32 %v2657, 4294901760
        %2659 = vmatmul.mubr.f32.gmra.mrb[0].mxu0 %v2658
        %v2660 = vpop.f32.mrb[0].mxu0
        %v2661 = vadd.f32 %v2575, %v2660
        %v2662 = vpop.f32.mrb[0].mxu0
        %v2663 = vadd.f32 %v2577, %v2662
        %2664 = vmatprep.mubr.f32.mxu0 0.0
        %v2665 = vand.u32 %v2306, 4294901760
        %v2666 = vsub.f32 %v2306, %v2665
        %v2667 = vand.u32 %v2666, 4294901760
        %2668 = vmatmul.mubr.f32.gmra.mrb[0].mxu0 %v2667
        %v2669 = vpop.f32.mrb[0].mxu0
        %v2670 = vadd.f32 %v2583, %v2669
        %v2671 = vpop.f32.mrb[0].mxu0
        %v2672 = vadd.f32 %v2585, %v2671
        %2673 = vdwg.mxu0
        %v2674 = vand.u32 %v329, 4294901760
        %v2675 = vsub.f32 %v329, %v2674
        %v2676 = vand.u32 %v2675, 4294901760
        %2677 = vmatprep.subr.mxu0 %v2676
        %v2678 = vand.u32 %v328, 4294901760
        %v2679 = vsub.f32 %v328, %v2678
        %v2680 = vand.u32 %v2679, 4294901760
        %2681 = vmatpush1.msra.mxu0 %v2680
        %v2682 = vand.u32 %v331, 4294901760
        %v2683 = vsub.f32 %v331, %v2682
        %v2684 = vand.u32 %v2683, 4294901760
        %2685 = vmatprep.subr.mxu0 %v2684
        %v2686 = vand.u32 %v330, 4294901760
        %v2687 = vsub.f32 %v330, %v2686
        %v2688 = vand.u32 %v2687, 4294901760
        %2689 = vmatpush1.msra.mxu0 %v2688
        %2690 = vmatprep.subr.mxu0 0.0
        %2691 = vmatpush1.msra.mxu0 0.0
        %2692 = vmatprep.subr.mxu0 0.0
        %2693 = vmatpush1.msra.mxu0 0.0
        %2694 = vmatprep.subr.mxu0 0.0
        %2695 = vmatpush1.msra.mxu0 0.0
        %2696 = vmatprep.subr.mxu0 0.0
        %2697 = vmatpush1.msra.mxu0 0.0
        %2698 = vmatprep.subr.mxu0 0.0
        %2699 = vmatpush1.msra.mxu0 0.0
        %2700 = vmatprep.subr.mxu0 0.0
        %2701 = vmatpush1.msra.mxu0 0.0
        %2702 = vmatprep.subr.mxu0 0.0
        %2703 = vmatpush1.msra.mxu0 0.0
        %2704 = vmatprep.subr.mxu0 0.0
        %2705 = vmatpush1.msra.mxu0 0.0
        %2706 = vmatprep.subr.mxu0 0.0
        %2707 = vmatpush1.msra.mxu0 0.0
        %2708 = vmatprep.subr.mxu0 0.0
        %2709 = vmatpush1.msra.mxu0 0.0
        %2710 = vmatprep.subr.mxu0 0.0
        %2711 = vmatpush1.msra.mxu0 0.0
        %2712 = vmatprep.subr.mxu0 0.0
        %2713 = vmatpush1.msra.mxu0 0.0
        %2714 = vmatprep.subr.mxu0 0.0
        %2715 = vmatpush1.msra.mxu0 0.0
        %2716 = vmatprep.subr.mxu0 0.0
        %2717 = vmatpush1.msra.mxu0 0.0
        %2718 = vmatprep.subr.mxu0 0.0
        %2719 = vmatpush1.msra.mxu0 0.0
        %2720 = vmatprep.subr.mxu0 0.0
        %2721 = vmatpush1.msra.mxu0 0.0
        %2722 = vmatprep.subr.mxu0 0.0
        %2723 = vmatpush1.msra.mxu0 0.0
        %2724 = vmatprep.subr.mxu0 0.0
        %2725 = vmatpush1.msra.mxu0 0.0
        %2726 = vmatprep.subr.mxu0 0.0
        %2727 = vmatpush1.msra.mxu0 0.0
        %2728 = vmatprep.subr.mxu0 0.0
        %2729 = vmatpush1.msra.mxu0 0.0
        %2730 = vmatprep.subr.mxu0 0.0
        %2731 = vmatpush1.msra.mxu0 0.0
        %2732 = vmatprep.subr.mxu0 0.0
        %2733 = vmatpush1.msra.mxu0 0.0
        %2734 = vmatprep.subr.mxu0 0.0
        %2735 = vmatpush1.msra.mxu0 0.0
        %2736 = vmatprep.subr.mxu0 0.0
        %2737 = vmatpush1.msra.mxu0 0.0
        %2738 = vmatprep.subr.mxu0 0.0
        %2739 = vmatpush1.msra.mxu0 0.0
        %2740 = vmatprep.subr.mxu0 0.0
        %2741 = vmatpush1.msra.mxu0 0.0
        %2742 = vmatprep.subr.mxu0 0.0
        %2743 = vmatpush1.msra.mxu0 0.0
        %2744 = vmatprep.subr.mxu0 0.0
        %2745 = vmatpush1.msra.mxu0 0.0
        %2746 = vmatprep.subr.mxu0 0.0
        %2747 = vmatpush1.msra.mxu0 0.0
        %2748 = vmatprep.subr.mxu0 0.0
        %2749 = vmatpush1.msra.mxu0 0.0
        %2750 = vmatprep.mubr.f32.mxu0 0.0
        %v2751 = vand.u32 %v2303, 4294901760
        %2752 = vmatmul.mubr.f32.gmra.mrb[0].mxu0 %v2751
        %v2753 = vpop.f32.mrb[0].mxu0
        %v2754 = vadd.f32 %v2661, %v2753
        %v2755 = vpop.f32.mrb[0].mxu0
        %v2756 = vadd.f32 %v2663, %v2755
        %2757 = vmatprep.mubr.f32.mxu0 0.0
        %v2758 = vand.u32 %v2306, 4294901760
        %2759 = vmatmul.mubr.f32.gmra.mrb[0].mxu0 %v2758
        %v2760 = vpop.f32.mrb[0].mxu0
        %v2761 = vadd.f32 %v2670, %v2760
        %v2762 = vpop.f32.mrb[0].mxu0
        %v2763 = vadd.f32 %v2672, %v2762
        %2764 = vdwg.mxu0
        %v2765 = vand.u32 %v329, 4294901760
        %2766 = vmatprep.subr.mxu0 %v2765
        %v2767 = vand.u32 %v328, 4294901760
        %2768 = vmatpush1.msra.mxu0 %v2767
        %v2769 = vand.u32 %v331, 4294901760
        %2770 = vmatprep.subr.mxu0 %v2769
        %v2771 = vand.u32 %v330, 4294901760
        %2772 = vmatpush1.msra.mxu0 %v2771
        %2773 = vmatprep.subr.mxu0 0.0
        %2774 = vmatpush1.msra.mxu0 0.0
        %2775 = vmatprep.subr.mxu0 0.0
        %2776 = vmatpush1.msra.mxu0 0.0
        %2777 = vmatprep.subr.mxu0 0.0
        %2778 = vmatpush1.msra.mxu0 0.0
        %2779 = vmatprep.subr.mxu0 0.0
        %2780 = vmatpush1.msra.mxu0 0.0
        %2781 = vmatprep.subr.mxu0 0.0
        %2782 = vmatpush1.msra.mxu0 0.0
        %2783 = vmatprep.subr.mxu0 0.0
        %2784 = vmatpush1.msra.mxu0 0.0
        %2785 = vmatprep.subr.mxu0 0.0
        %2786 = vmatpush1.msra.mxu0 0.0
        %2787 = vmatprep.subr.mxu0 0.0
        %2788 = vmatpush1.msra.mxu0 0.0
        %2789 = vmatprep.subr.mxu0 0.0
        %2790 = vmatpush1.msra.mxu0 0.0
        %2791 = vmatprep.subr.mxu0 0.0
        %2792 = vmatpush1.msra.mxu0 0.0
        %2793 = vmatprep.subr.mxu0 0.0
        %2794 = vmatpush1.msra.mxu0 0.0
        %2795 = vmatprep.subr.mxu0 0.0
        %2796 = vmatpush1.msra.mxu0 0.0
        %2797 = vmatprep.subr.mxu0 0.0
        %2798 = vmatpush1.msra.mxu0 0.0
        %2799 = vmatprep.subr.mxu0 0.0
        %2800 = vmatpush1.msra.mxu0 0.0
        %2801 = vmatprep.subr.mxu0 0.0
        %2802 = vmatpush1.msra.mxu0 0.0
        %2803 = vmatprep.subr.mxu0 0.0
        %2804 = vmatpush1.msra.mxu0 0.0
        %2805 = vmatprep.subr.mxu0 0.0
        %2806 = vmatpush1.msra.mxu0 0.0
        %2807 = vmatprep.subr.mxu0 0.0
        %2808 = vmatpush1.msra.mxu0 0.0
        %2809 = vmatprep.subr.mxu0 0.0
        %2810 = vmatpush1.msra.mxu0 0.0
        %2811 = vmatprep.subr.mxu0 0.0
        %2812 = vmatpush1.msra.mxu0 0.0
        %2813 = vmatprep.subr.mxu0 0.0
        %2814 = vmatpush1.msra.mxu0 0.0
        %2815 = vmatprep.subr.mxu0 0.0
        %2816 = vmatpush1.msra.mxu0 0.0
        %2817 = vmatprep.subr.mxu0 0.0
        %2818 = vmatpush1.msra.mxu0 0.0
        %2819 = vmatprep.subr.mxu0 0.0
        %2820 = vmatpush1.msra.mxu0 0.0
        %2821 = vmatprep.subr.mxu0 0.0
        %2822 = vmatpush1.msra.mxu0 0.0
        %2823 = vmatprep.subr.mxu0 0.0
        %2824 = vmatpush1.msra.mxu0 0.0
        %2825 = vmatprep.subr.mxu0 0.0
        %2826 = vmatpush1.msra.mxu0 0.0
        %2827 = vmatprep.subr.mxu0 0.0
        %2828 = vmatpush1.msra.mxu0 0.0
        %2829 = vmatprep.subr.mxu0 0.0
        %2830 = vmatpush1.msra.mxu0 0.0
        %2831 = vmatprep.subr.mxu0 0.0
        %2832 = vmatpush1.msra.mxu0 0.0
        %2833 = vmatprep.mubr.f32.mxu0 0.0
        %v2834 = vand.u32 %v2303, 4294901760
        %2835 = vmatmul.mubr.f32.gmra.mrb[0].mxu0 %v2834
        %v2836 = vpop.f32.mrb[0].mxu0
        %v2837 = vadd.f32 %v2754, %v2836
        %v2838 = vpop.f32.mrb[0].mxu0
        %v2839 = vadd.f32 %v2756, %v2838
        %2840 = vmatprep.mubr.f32.mxu0 0.0
        %v2841 = vand.u32 %v2306, 4294901760
        %2842 = vmatmul.mubr.f32.gmra.mrb[0].mxu0 %v2841
        %v2843 = vpop.f32.mrb[0].mxu0
        %v2844 = vadd.f32 %v2761, %v2843
        %v2845 = vpop.f32.mrb[0].mxu0
        %v2846 = vadd.f32 %v2763, %v2845
        %2847 = vdwg.mxu0
        %s2848 = scalar_lea.vmem [#allocation7], 512
        %v2849 = vld [vmem:[%s2848] sm:$0xff]
        %v2850 = vld [vmem:[%s2848 + $0x8] sm:$0xff]
        %v2851 = vld [vmem:[%s2848 + $0x10] sm:$0xff]
        %v2852 = vld [vmem:[%s2848 + $0x18] sm:$0xff]
        %v2853 = vld [vmem:[%s2848 + $0x20] sm:$0xff]
        %v2854 = vld [vmem:[%s2848 + $0x28] sm:$0xff]
        %v2855 = vld [vmem:[%s2848 + $0x30] sm:$0xff]
        %v2856 = vld [vmem:[%s2848 + $0x38] sm:$0xff]
        %v2857 = vld [vmem:[%s2848 + $0x40] sm:$0xff]
        %v2858 = vld [vmem:[%s2848 + $0x48] sm:$0xff]
        %v2859 = vld [vmem:[%s2848 + $0x50] sm:$0xff]
        %v2860 = vld [vmem:[%s2848 + $0x58] sm:$0xff]
        %v2861 = vld [vmem:[%s2848 + $0x60] sm:$0xff]
        %v2862 = vld [vmem:[%s2848 + $0x68] sm:$0xff]
        %v2863 = vld [vmem:[%s2848 + $0x70] sm:$0xff]
        %v2864 = vld [vmem:[%s2848 + $0x78] sm:$0xff]
        %v2865 = vld [vmem:[%s2848 + $0x80] sm:$0xff]
        %v2866 = vld [vmem:[%s2848 + $0x88] sm:$0xff]
        %v2867 = vld [vmem:[%s2848 + $0x90] sm:$0xff]
        %v2868 = vld [vmem:[%s2848 + $0x98] sm:$0xff]
        %v2869 = vld [vmem:[%s2848 + $0xa0] sm:$0xff]
        %v2870 = vld [vmem:[%s2848 + $0xa8] sm:$0xff]
        %v2871 = vld [vmem:[%s2848 + $0xb0] sm:$0xff]
        %v2872 = vld [vmem:[%s2848 + $0xb8] sm:$0xff]
        %v2873 = vld [vmem:[%s2848 + $0xc0] sm:$0xff]
        %v2874 = vld [vmem:[%s2848 + $0xc8] sm:$0xff]
        %v2875 = vld [vmem:[%s2848 + $0xd0] sm:$0xff]
        %v2876 = vld [vmem:[%s2848 + $0xd8] sm:$0xff]
        %v2877 = vld [vmem:[%s2848 + $0xe0] sm:$0xff]
        %v2878 = vld [vmem:[%s2848 + $0xe8] sm:$0xff]
        %v2879 = vld [vmem:[%s2848 + $0xf0] sm:$0xff]
        %v2880 = vld [vmem:[%s2848 + $0xf8] sm:$0xff]
        %v2881 = vld [vmem:[%s2848 + $0x100] sm:$0xff]
        %v2882 = vld [vmem:[%s2848 + $0x108] sm:$0xff]
        %v2883 = vld [vmem:[%s2848 + $0x110] sm:$0xff]
        %v2884 = vld [vmem:[%s2848 + $0x118] sm:$0xff]
        %v2885 = vld [vmem:[%s2848 + $0x120] sm:$0xff]
        %v2886 = vld [vmem:[%s2848 + $0x128] sm:$0xff]
        %v2887 = vld [vmem:[%s2848 + $0x130] sm:$0xff]
        %v2888 = vld [vmem:[%s2848 + $0x138] sm:$0xff]
        %v2889 = vld [vmem:[%s2848 + $0x140] sm:$0xff]
        %v2890 = vld [vmem:[%s2848 + $0x148] sm:$0xff]
        %v2891 = vld [vmem:[%s2848 + $0x150] sm:$0xff]
        %v2892 = vld [vmem:[%s2848 + $0x158] sm:$0xff]
        %v2893 = vld [vmem:[%s2848 + $0x160] sm:$0xff]
        %v2894 = vld [vmem:[%s2848 + $0x168] sm:$0xff]
        %v2895 = vld [vmem:[%s2848 + $0x170] sm:$0xff]
        %v2896 = vld [vmem:[%s2848 + $0x178] sm:$0xff]
        %v2897 = vld [vmem:[%s2848 + $0x180] sm:$0xff]
        %v2898 = vld [vmem:[%s2848 + $0x188] sm:$0xff]
        %v2899 = vld [vmem:[%s2848 + $0x190] sm:$0xff]
        %v2900 = vld [vmem:[%s2848 + $0x198] sm:$0xff]
        %v2901 = vld [vmem:[%s2848 + $0x1a0] sm:$0xff]
        %v2902 = vld [vmem:[%s2848 + $0x1a8] sm:$0xff]
        %v2903 = vld [vmem:[%s2848 + $0x1b0] sm:$0xff]
        %v2904 = vld [vmem:[%s2848 + $0x1b8] sm:$0xff]
        %v2905 = vld [vmem:[%s2848 + $0x1c0] sm:$0xff]
        %v2906 = vld [vmem:[%s2848 + $0x1c8] sm:$0xff]
        %v2907 = vld [vmem:[%s2848 + $0x1d0] sm:$0xff]
        %v2908 = vld [vmem:[%s2848 + $0x1d8] sm:$0xff]
        %v2909 = vld [vmem:[%s2848 + $0x1e0] sm:$0xff]
        %v2910 = vld [vmem:[%s2848 + $0x1e8] sm:$0xff]
        %v2911 = vld [vmem:[%s2848 + $0x1f0] sm:$0xff]
        %v2912 = vld [vmem:[%s2848 + $0x1f8] sm:$0xff]
        %v2913 = vand.u32 %v2850, 4294901760
        %2914 = vmatprep.subr.mxu0 %v2913
        %v2915 = vand.u32 %v2849, 4294901760
        %2916 = vmatpush1.msra.mxu0 %v2915
        %v2917 = vand.u32 %v2852, 4294901760
        %2918 = vmatprep.subr.mxu0 %v2917
        %v2919 = vand.u32 %v2851, 4294901760
        %2920 = vmatpush1.msra.mxu0 %v2919
        %v2921 = vand.u32 %v2854, 4294901760
        %2922 = vmatprep.subr.mxu0 %v2921
        %v2923 = vand.u32 %v2853, 4294901760
        %2924 = vmatpush1.msra.mxu0 %v2923
        %v2925 = vand.u32 %v2856, 4294901760
        %2926 = vmatprep.subr.mxu0 %v2925
        %v2927 = vand.u32 %v2855, 4294901760
        %2928 = vmatpush1.msra.mxu0 %v2927
        %v2929 = vand.u32 %v2858, 4294901760
        %2930 = vmatprep.subr.mxu0 %v2929
        %v2931 = vand.u32 %v2857, 4294901760
        %2932 = vmatpush1.msra.mxu0 %v2931
        %v2933 = vand.u32 %v2860, 4294901760
        %2934 = vmatprep.subr.mxu0 %v2933
        %v2935 = vand.u32 %v2859, 4294901760
        %2936 = vmatpush1.msra.mxu0 %v2935
        %v2937 = vand.u32 %v2862, 4294901760
        %2938 = vmatprep.subr.mxu0 %v2937
        %v2939 = vand.u32 %v2861, 4294901760
        %2940 = vmatpush1.msra.mxu0 %v2939
        %v2941 = vand.u32 %v2864, 4294901760
        %2942 = vmatprep.subr.mxu0 %v2941
        %v2943 = vand.u32 %v2863, 4294901760
        %2944 = vmatpush1.msra.mxu0 %v2943
        %v2945 = vand.u32 %v2866, 4294901760
        %2946 = vmatprep.subr.mxu0 %v2945
        %v2947 = vand.u32 %v2865, 4294901760
        %2948 = vmatpush1.msra.mxu0 %v2947
        %v2949 = vand.u32 %v2868, 4294901760
        %2950 = vmatprep.subr.mxu0 %v2949
        %v2951 = vand.u32 %v2867, 4294901760
        %2952 = vmatpush1.msra.mxu0 %v2951
        %v2953 = vand.u32 %v2870, 4294901760
        %2954 = vmatprep.subr.mxu0 %v2953
        %v2955 = vand.u32 %v2869, 4294901760
        %2956 = vmatpush1.msra.mxu0 %v2955
        %v2957 = vand.u32 %v2872, 4294901760
        %2958 = vmatprep.subr.mxu0 %v2957
        %v2959 = vand.u32 %v2871, 4294901760
        %2960 = vmatpush1.msra.mxu0 %v2959
        %v2961 = vand.u32 %v2874, 4294901760
        %2962 = vmatprep.subr.mxu0 %v2961
        %v2963 = vand.u32 %v2873, 4294901760
        %2964 = vmatpush1.msra.mxu0 %v2963
        %v2965 = vand.u32 %v2876, 4294901760
        %2966 = vmatprep.subr.mxu0 %v2965
        %v2967 = vand.u32 %v2875, 4294901760
        %2968 = vmatpush1.msra.mxu0 %v2967
        %v2969 = vand.u32 %v2878, 4294901760
        %2970 = vmatprep.subr.mxu0 %v2969
        %v2971 = vand.u32 %v2877, 4294901760
        %2972 = vmatpush1.msra.mxu0 %v2971
        %v2973 = vand.u32 %v2880, 4294901760
        %2974 = vmatprep.subr.mxu0 %v2973
        %v2975 = vand.u32 %v2879, 4294901760
        %2976 = vmatpush1.msra.mxu0 %v2975
        %v2977 = vand.u32 %v2882, 4294901760
        %2978 = vmatprep.subr.mxu0 %v2977
        %v2979 = vand.u32 %v2881, 4294901760
        %2980 = vmatpush1.msra.mxu0 %v2979
        %v2981 = vand.u32 %v2884, 4294901760
        %2982 = vmatprep.subr.mxu0 %v2981
        %v2983 = vand.u32 %v2883, 4294901760
        %2984 = vmatpush1.msra.mxu0 %v2983
        %v2985 = vand.u32 %v2886, 4294901760
        %2986 = vmatprep.subr.mxu0 %v2985
        %v2987 = vand.u32 %v2885, 4294901760
        %2988 = vmatpush1.msra.mxu0 %v2987
        %v2989 = vand.u32 %v2888, 4294901760
        %2990 = vmatprep.subr.mxu0 %v2989
        %v2991 = vand.u32 %v2887, 4294901760
        %2992 = vmatpush1.msra.mxu0 %v2991
        %v2993 = vand.u32 %v2890, 4294901760
        %2994 = vmatprep.subr.mxu0 %v2993
        %v2995 = vand.u32 %v2889, 4294901760
        %2996 = vmatpush1.msra.mxu0 %v2995
        %v2997 = vand.u32 %v2892, 4294901760
        %2998 = vmatprep.subr.mxu0 %v2997
        %v2999 = vand.u32 %v2891, 4294901760
        %3000 = vmatpush1.msra.mxu0 %v2999
        %v3001 = vand.u32 %v2894, 4294901760
        %3002 = vmatprep.subr.mxu0 %v3001
        %v3003 = vand.u32 %v2893, 4294901760
        %3004 = vmatpush1.msra.mxu0 %v3003
        %v3005 = vand.u32 %v2896, 4294901760
        %3006 = vmatprep.subr.mxu0 %v3005
        %v3007 = vand.u32 %v2895, 4294901760
        %3008 = vmatpush1.msra.mxu0 %v3007
        %v3009 = vand.u32 %v2898, 4294901760
        %3010 = vmatprep.subr.mxu0 %v3009
        %v3011 = vand.u32 %v2897, 4294901760
        %3012 = vmatpush1.msra.mxu0 %v3011
        %v3013 = vand.u32 %v2900, 4294901760
        %3014 = vmatprep.subr.mxu0 %v3013
        %v3015 = vand.u32 %v2899, 4294901760
        %3016 = vmatpush1.msra.mxu0 %v3015
        %v3017 = vand.u32 %v2902, 4294901760
        %3018 = vmatprep.subr.mxu0 %v3017
        %v3019 = vand.u32 %v2901, 4294901760
        %3020 = vmatpush1.msra.mxu0 %v3019
        %v3021 = vand.u32 %v2904, 4294901760
        %3022 = vmatprep.subr.mxu0 %v3021
        %v3023 = vand.u32 %v2903, 4294901760
        %3024 = vmatpush1.msra.mxu0 %v3023
        %v3025 = vand.u32 %v2906, 4294901760
        %3026 = vmatprep.subr.mxu0 %v3025
        %v3027 = vand.u32 %v2905, 4294901760
        %3028 = vmatpush1.msra.mxu0 %v3027
        %v3029 = vand.u32 %v2908, 4294901760
        %3030 = vmatprep.subr.mxu0 %v3029
        %v3031 = vand.u32 %v2907, 4294901760
        %3032 = vmatpush1.msra.mxu0 %v3031
        %v3033 = vand.u32 %v2910, 4294901760
        %3034 = vmatprep.subr.mxu0 %v3033
        %v3035 = vand.u32 %v2909, 4294901760
        %3036 = vmatpush1.msra.mxu0 %v3035
        %v3037 = vand.u32 %v2912, 4294901760
        %3038 = vmatprep.subr.mxu0 %v3037
        %v3039 = vand.u32 %v2911, 4294901760
        %3040 = vmatpush1.msra.mxu0 %v3039
        %v3041 = vand.u32 %v2839, 4294901760
        %v3042 = vsub.f32 %v2839, %v3041
        %v3043 = vand.u32 %v3042, 4294901760
        %v3044 = vsub.f32 %v3042, %v3043
        %v3045 = vand.u32 %v3044, 4294901760
        %3046 = vmatprep.mubr.f32.mxu0 %v3045
        %v3047 = vand.u32 %v2837, 4294901760
        %v3048 = vsub.f32 %v2837, %v3047
        %v3049 = vand.u32 %v3048, 4294901760
        %v3050 = vsub.f32 %v3048, %v3049
        %v3051 = vand.u32 %v3050, 4294901760
        %3052 = vmatmul.mubr.f32.gmra.mrb[0].mxu0 %v3051
        %v3053 = vpop.f32.mrb[0].mxu0
        %v3054 = vadd.f32 0.0, %v3053
        %v3055 = vpop.f32.mrb[0].mxu0
        %v3056 = vadd.f32 0.0, %v3055
        %v3057 = vand.u32 %v2846, 4294901760
        %v3058 = vsub.f32 %v2846, %v3057
        %v3059 = vand.u32 %v3058, 4294901760
        %v3060 = vsub.f32 %v3058, %v3059
        %v3061 = vand.u32 %v3060, 4294901760
        %3062 = vmatprep.mubr.f32.mxu0 %v3061
        %v3063 = vand.u32 %v2844, 4294901760
        %v3064 = vsub.f32 %v2844, %v3063
        %v3065 = vand.u32 %v3064, 4294901760
        %v3066 = vsub.f32 %v3064, %v3065
        %v3067 = vand.u32 %v3066, 4294901760
        %3068 = vmatmul.mubr.f32.gmra.mrb[0].mxu0 %v3067
        %v3069 = vpop.f32.mrb[0].mxu0
        %v3070 = vadd.f32 0.0, %v3069
        %v3071 = vpop.f32.mrb[0].mxu0
        %v3072 = vadd.f32 0.0, %v3071
        %3073 = vdwg.mxu0
        %v3074 = vand.u32 %v2850, 4294901760
        %v3075 = vsub.f32 %v2850, %v3074
        %v3076 = vand.u32 %v3075, 4294901760
        %v3077 = vsub.f32 %v3075, %v3076
        %v3078 = vand.u32 %v3077, 4294901760
        %3079 = vmatprep.subr.mxu0 %v3078
        %v3080 = vand.u32 %v2849, 4294901760
        %v3081 = vsub.f32 %v2849, %v3080
        %v3082 = vand.u32 %v3081, 4294901760
        %v3083 = vsub.f32 %v3081, %v3082
        %v3084 = vand.u32 %v3083, 4294901760
        %3085 = vmatpush1.msra.mxu0 %v3084
        %v3086 = vand.u32 %v2852, 4294901760
        %v3087 = vsub.f32 %v2852, %v3086
        %v3088 = vand.u32 %v3087, 4294901760
        %v3089 = vsub.f32 %v3087, %v3088
        %v3090 = vand.u32 %v3089, 4294901760
        %3091 = vmatprep.subr.mxu0 %v3090
        %v3092 = vand.u32 %v2851, 4294901760
        %v3093 = vsub.f32 %v2851, %v3092
        %v3094 = vand.u32 %v3093, 4294901760
        %v3095 = vsub.f32 %v3093, %v3094
        %v3096 = vand.u32 %v3095, 4294901760
        %3097 = vmatpush1.msra.mxu0 %v3096
        %v3098 = vand.u32 %v2854, 4294901760
        %v3099 = vsub.f32 %v2854, %v3098
        %v3100 = vand.u32 %v3099, 4294901760
        %v3101 = vsub.f32 %v3099, %v3100
        %v3102 = vand.u32 %v3101, 4294901760
        %3103 = vmatprep.subr.mxu0 %v3102
        %v3104 = vand.u32 %v2853, 4294901760
        %v3105 = vsub.f32 %v2853, %v3104
        %v3106 = vand.u32 %v3105, 4294901760
        %v3107 = vsub.f32 %v3105, %v3106
        %v3108 = vand.u32 %v3107, 4294901760
        %3109 = vmatpush1.msra.mxu0 %v3108
        %v3110 = vand.u32 %v2856, 4294901760
        %v3111 = vsub.f32 %v2856, %v3110
        %v3112 = vand.u32 %v3111, 4294901760
        %v3113 = vsub.f32 %v3111, %v3112
        %v3114 = vand.u32 %v3113, 4294901760
        %3115 = vmatprep.subr.mxu0 %v3114
        %v3116 = vand.u32 %v2855, 4294901760
        %v3117 = vsub.f32 %v2855, %v3116
        %v3118 = vand.u32 %v3117, 4294901760
        %v3119 = vsub.f32 %v3117, %v3118
        %v3120 = vand.u32 %v3119, 4294901760
        %3121 = vmatpush1.msra.mxu0 %v3120
        %v3122 = vand.u32 %v2858, 4294901760
        %v3123 = vsub.f32 %v2858, %v3122
        %v3124 = vand.u32 %v3123, 4294901760
        %v3125 = vsub.f32 %v3123, %v3124
        %v3126 = vand.u32 %v3125, 4294901760
        %3127 = vmatprep.subr.mxu0 %v3126
        %v3128 = vand.u32 %v2857, 4294901760
        %v3129 = vsub.f32 %v2857, %v3128
        %v3130 = vand.u32 %v3129, 4294901760
        %v3131 = vsub.f32 %v3129, %v3130
        %v3132 = vand.u32 %v3131, 4294901760
        %3133 = vmatpush1.msra.mxu0 %v3132
        %v3134 = vand.u32 %v2860, 4294901760
        %v3135 = vsub.f32 %v2860, %v3134
        %v3136 = vand.u32 %v3135, 4294901760
        %v3137 = vsub.f32 %v3135, %v3136
        %v3138 = vand.u32 %v3137, 4294901760
        %3139 = vmatprep.subr.mxu0 %v3138
        %v3140 = vand.u32 %v2859, 4294901760
        %v3141 = vsub.f32 %v2859, %v3140
        %v3142 = vand.u32 %v3141, 4294901760
        %v3143 = vsub.f32 %v3141, %v3142
        %v3144 = vand.u32 %v3143, 4294901760
        %3145 = vmatpush1.msra.mxu0 %v3144
        %v3146 = vand.u32 %v2862, 4294901760
        %v3147 = vsub.f32 %v2862, %v3146
        %v3148 = vand.u32 %v3147, 4294901760
        %v3149 = vsub.f32 %v3147, %v3148
        %v3150 = vand.u32 %v3149, 4294901760
        %3151 = vmatprep.subr.mxu0 %v3150
        %v3152 = vand.u32 %v2861, 4294901760
        %v3153 = vsub.f32 %v2861, %v3152
        %v3154 = vand.u32 %v3153, 4294901760
        %v3155 = vsub.f32 %v3153, %v3154
        %v3156 = vand.u32 %v3155, 4294901760
        %3157 = vmatpush1.msra.mxu0 %v3156
        %v3158 = vand.u32 %v2864, 4294901760
        %v3159 = vsub.f32 %v2864, %v3158
        %v3160 = vand.u32 %v3159, 4294901760
        %v3161 = vsub.f32 %v3159, %v3160
        %v3162 = vand.u32 %v3161, 4294901760
        %3163 = vmatprep.subr.mxu0 %v3162
        %v3164 = vand.u32 %v2863, 4294901760
        %v3165 = vsub.f32 %v2863, %v3164
        %v3166 = vand.u32 %v3165, 4294901760
        %v3167 = vsub.f32 %v3165, %v3166
        %v3168 = vand.u32 %v3167, 4294901760
        %3169 = vmatpush1.msra.mxu0 %v3168
        %v3170 = vand.u32 %v2866, 4294901760
        %v3171 = vsub.f32 %v2866, %v3170
        %v3172 = vand.u32 %v3171, 4294901760
        %v3173 = vsub.f32 %v3171, %v3172
        %v3174 = vand.u32 %v3173, 4294901760
        %3175 = vmatprep.subr.mxu0 %v3174
        %v3176 = vand.u32 %v2865, 4294901760
        %v3177 = vsub.f32 %v2865, %v3176
        %v3178 = vand.u32 %v3177, 4294901760
        %v3179 = vsub.f32 %v3177, %v3178
        %v3180 = vand.u32 %v3179, 4294901760
        %3181 = vmatpush1.msra.mxu0 %v3180
        %v3182 = vand.u32 %v2868, 4294901760
        %v3183 = vsub.f32 %v2868, %v3182
        %v3184 = vand.u32 %v3183, 4294901760
        %v3185 = vsub.f32 %v3183, %v3184
        %v3186 = vand.u32 %v3185, 4294901760
        %3187 = vmatprep.subr.mxu0 %v3186
        %v3188 = vand.u32 %v2867, 4294901760
        %v3189 = vsub.f32 %v2867, %v3188
        %v3190 = vand.u32 %v3189, 4294901760
        %v3191 = vsub.f32 %v3189, %v3190
        %v3192 = vand.u32 %v3191, 4294901760
        %3193 = vmatpush1.msra.mxu0 %v3192
        %v3194 = vand.u32 %v2870, 4294901760
        %v3195 = vsub.f32 %v2870, %v3194
        %v3196 = vand.u32 %v3195, 4294901760
        %v3197 = vsub.f32 %v3195, %v3196
        %v3198 = vand.u32 %v3197, 4294901760
        %3199 = vmatprep.subr.mxu0 %v3198
        %v3200 = vand.u32 %v2869, 4294901760
        %v3201 = vsub.f32 %v2869, %v3200
        %v3202 = vand.u32 %v3201, 4294901760
        %v3203 = vsub.f32 %v3201, %v3202
        %v3204 = vand.u32 %v3203, 4294901760
        %3205 = vmatpush1.msra.mxu0 %v3204
        %v3206 = vand.u32 %v2872, 4294901760
        %v3207 = vsub.f32 %v2872, %v3206
        %v3208 = vand.u32 %v3207, 4294901760
        %v3209 = vsub.f32 %v3207, %v3208
        %v3210 = vand.u32 %v3209, 4294901760
        %3211 = vmatprep.subr.mxu0 %v3210
        %v3212 = vand.u32 %v2871, 4294901760
        %v3213 = vsub.f32 %v2871, %v3212
        %v3214 = vand.u32 %v3213, 4294901760
        %v3215 = vsub.f32 %v3213, %v3214
        %v3216 = vand.u32 %v3215, 4294901760
        %3217 = vmatpush1.msra.mxu0 %v3216
        %v3218 = vand.u32 %v2874, 4294901760
        %v3219 = vsub.f32 %v2874, %v3218
        %v3220 = vand.u32 %v3219, 4294901760
        %v3221 = vsub.f32 %v3219, %v3220
        %v3222 = vand.u32 %v3221, 4294901760
        %3223 = vmatprep.subr.mxu0 %v3222
        %v3224 = vand.u32 %v2873, 4294901760
        %v3225 = vsub.f32 %v2873, %v3224
        %v3226 = vand.u32 %v3225, 4294901760
        %v3227 = vsub.f32 %v3225, %v3226
        %v3228 = vand.u32 %v3227, 4294901760
        %3229 = vmatpush1.msra.mxu0 %v3228
        %v3230 = vand.u32 %v2876, 4294901760
        %v3231 = vsub.f32 %v2876, %v3230
        %v3232 = vand.u32 %v3231, 4294901760
        %v3233 = vsub.f32 %v3231, %v3232
        %v3234 = vand.u32 %v3233, 4294901760
        %3235 = vmatprep.subr.mxu0 %v3234
        %v3236 = vand.u32 %v2875, 4294901760
        %v3237 = vsub.f32 %v2875, %v3236
        %v3238 = vand.u32 %v3237, 4294901760
        %v3239 = vsub.f32 %v3237, %v3238
        %v3240 = vand.u32 %v3239, 4294901760
        %3241 = vmatpush1.msra.mxu0 %v3240
        %v3242 = vand.u32 %v2878, 4294901760
        %v3243 = vsub.f32 %v2878, %v3242
        %v3244 = vand.u32 %v3243, 4294901760
        %v3245 = vsub.f32 %v3243, %v3244
        %v3246 = vand.u32 %v3245, 4294901760
        %3247 = vmatprep.subr.mxu0 %v3246
        %v3248 = vand.u32 %v2877, 4294901760
        %v3249 = vsub.f32 %v2877, %v3248
        %v3250 = vand.u32 %v3249, 4294901760
        %v3251 = vsub.f32 %v3249, %v3250
        %v3252 = vand.u32 %v3251, 4294901760
        %3253 = vmatpush1.msra.mxu0 %v3252
        %v3254 = vand.u32 %v2880, 4294901760
        %v3255 = vsub.f32 %v2880, %v3254
        %v3256 = vand.u32 %v3255, 4294901760
        %v3257 = vsub.f32 %v3255, %v3256
        %v3258 = vand.u32 %v3257, 4294901760
        %3259 = vmatprep.subr.mxu0 %v3258
        %v3260 = vand.u32 %v2879, 4294901760
        %v3261 = vsub.f32 %v2879, %v3260
        %v3262 = vand.u32 %v3261, 4294901760
        %v3263 = vsub.f32 %v3261, %v3262
        %v3264 = vand.u32 %v3263, 4294901760
        %3265 = vmatpush1.msra.mxu0 %v3264
        %v3266 = vand.u32 %v2882, 4294901760
        %v3267 = vsub.f32 %v2882, %v3266
        %v3268 = vand.u32 %v3267, 4294901760
        %v3269 = vsub.f32 %v3267, %v3268
        %v3270 = vand.u32 %v3269, 4294901760
        %3271 = vmatprep.subr.mxu0 %v3270
        %v3272 = vand.u32 %v2881, 4294901760
        %v3273 = vsub.f32 %v2881, %v3272
        %v3274 = vand.u32 %v3273, 4294901760
        %v3275 = vsub.f32 %v3273, %v3274
        %v3276 = vand.u32 %v3275, 4294901760
        %3277 = vmatpush1.msra.mxu0 %v3276
        %v3278 = vand.u32 %v2884, 4294901760
        %v3279 = vsub.f32 %v2884, %v3278
        %v3280 = vand.u32 %v3279, 4294901760
        %v3281 = vsub.f32 %v3279, %v3280
        %v3282 = vand.u32 %v3281, 4294901760
        %3283 = vmatprep.subr.mxu0 %v3282
        %v3284 = vand.u32 %v2883, 4294901760
        %v3285 = vsub.f32 %v2883, %v3284
        %v3286 = vand.u32 %v3285, 4294901760
        %v3287 = vsub.f32 %v3285, %v3286
        %v3288 = vand.u32 %v3287, 4294901760
        %3289 = vmatpush1.msra.mxu0 %v3288
        %v3290 = vand.u32 %v2886, 4294901760
        %v3291 = vsub.f32 %v2886, %v3290
        %v3292 = vand.u32 %v3291, 4294901760
        %v3293 = vsub.f32 %v3291, %v3292
        %v3294 = vand.u32 %v3293, 4294901760
        %3295 = vmatprep.subr.mxu0 %v3294
        %v3296 = vand.u32 %v2885, 4294901760
        %v3297 = vsub.f32 %v2885, %v3296
        %v3298 = vand.u32 %v3297, 4294901760
        %v3299 = vsub.f32 %v3297, %v3298
        %v3300 = vand.u32 %v3299, 4294901760
        %3301 = vmatpush1.msra.mxu0 %v3300
        %v3302 = vand.u32 %v2888, 4294901760
        %v3303 = vsub.f32 %v2888, %v3302
        %v3304 = vand.u32 %v3303, 4294901760
        %v3305 = vsub.f32 %v3303, %v3304
        %v3306 = vand.u32 %v3305, 4294901760
        %3307 = vmatprep.subr.mxu0 %v3306
        %v3308 = vand.u32 %v2887, 4294901760
        %v3309 = vsub.f32 %v2887, %v3308
        %v3310 = vand.u32 %v3309, 4294901760
        %v3311 = vsub.f32 %v3309, %v3310
        %v3312 = vand.u32 %v3311, 4294901760
        %3313 = vmatpush1.msra.mxu0 %v3312
        %v3314 = vand.u32 %v2890, 4294901760
        %v3315 = vsub.f32 %v2890, %v3314
        %v3316 = vand.u32 %v3315, 4294901760
        %v3317 = vsub.f32 %v3315, %v3316
        %v3318 = vand.u32 %v3317, 4294901760
        %3319 = vmatprep.subr.mxu0 %v3318
        %v3320 = vand.u32 %v2889, 4294901760
        %v3321 = vsub.f32 %v2889, %v3320
        %v3322 = vand.u32 %v3321, 4294901760
        %v3323 = vsub.f32 %v3321, %v3322
        %v3324 = vand.u32 %v3323, 4294901760
        %3325 = vmatpush1.msra.mxu0 %v3324
        %v3326 = vand.u32 %v2892, 4294901760
        %v3327 = vsub.f32 %v2892, %v3326
        %v3328 = vand.u32 %v3327, 4294901760
        %v3329 = vsub.f32 %v3327, %v3328
        %v3330 = vand.u32 %v3329, 4294901760
        %3331 = vmatprep.subr.mxu0 %v3330
        %v3332 = vand.u32 %v2891, 4294901760
        %v3333 = vsub.f32 %v2891, %v3332
        %v3334 = vand.u32 %v3333, 4294901760
        %v3335 = vsub.f32 %v3333, %v3334
        %v3336 = vand.u32 %v3335, 4294901760
        %3337 = vmatpush1.msra.mxu0 %v3336
        %v3338 = vand.u32 %v2894, 4294901760
        %v3339 = vsub.f32 %v2894, %v3338
        %v3340 = vand.u32 %v3339, 4294901760
        %v3341 = vsub.f32 %v3339, %v3340
        %v3342 = vand.u32 %v3341, 4294901760
        %3343 = vmatprep.subr.mxu0 %v3342
        %v3344 = vand.u32 %v2893, 4294901760
        %v3345 = vsub.f32 %v2893, %v3344
        %v3346 = vand.u32 %v3345, 4294901760
        %v3347 = vsub.f32 %v3345, %v3346
        %v3348 = vand.u32 %v3347, 4294901760
        %3349 = vmatpush1.msra.mxu0 %v3348
        %v3350 = vand.u32 %v2896, 4294901760
        %v3351 = vsub.f32 %v2896, %v3350
        %v3352 = vand.u32 %v3351, 4294901760
        %v3353 = vsub.f32 %v3351, %v3352
        %v3354 = vand.u32 %v3353, 4294901760
        %3355 = vmatprep.subr.mxu0 %v3354
        %v3356 = vand.u32 %v2895, 4294901760
        %v3357 = vsub.f32 %v2895, %v3356
        %v3358 = vand.u32 %v3357, 4294901760
        %v3359 = vsub.f32 %v3357, %v3358
        %v3360 = vand.u32 %v3359, 4294901760
        %3361 = vmatpush1.msra.mxu0 %v3360
        %v3362 = vand.u32 %v2898, 4294901760
        %v3363 = vsub.f32 %v2898, %v3362
        %v3364 = vand.u32 %v3363, 4294901760
        %v3365 = vsub.f32 %v3363, %v3364
        %v3366 = vand.u32 %v3365, 4294901760
        %3367 = vmatprep.subr.mxu0 %v3366
        %v3368 = vand.u32 %v2897, 4294901760
        %v3369 = vsub.f32 %v2897, %v3368
        %v3370 = vand.u32 %v3369, 4294901760
        %v3371 = vsub.f32 %v3369, %v3370
        %v3372 = vand.u32 %v3371, 4294901760
        %3373 = vmatpush1.msra.mxu0 %v3372
        %v3374 = vand.u32 %v2900, 4294901760
        %v3375 = vsub.f32 %v2900, %v3374
        %v3376 = vand.u32 %v3375, 4294901760
        %v3377 = vsub.f32 %v3375, %v3376
        %v3378 = vand.u32 %v3377, 4294901760
        %3379 = vmatprep.subr.mxu0 %v3378
        %v3380 = vand.u32 %v2899, 4294901760
        %v3381 = vsub.f32 %v2899, %v3380
        %v3382 = vand.u32 %v3381, 4294901760
        %v3383 = vsub.f32 %v3381, %v3382
        %v3384 = vand.u32 %v3383, 4294901760
        %3385 = vmatpush1.msra.mxu0 %v3384
        %v3386 = vand.u32 %v2902, 4294901760
        %v3387 = vsub.f32 %v2902, %v3386
        %v3388 = vand.u32 %v3387, 4294901760
        %v3389 = vsub.f32 %v3387, %v3388
        %v3390 = vand.u32 %v3389, 4294901760
        %3391 = vmatprep.subr.mxu0 %v3390
        %v3392 = vand.u32 %v2901, 4294901760
        %v3393 = vsub.f32 %v2901, %v3392
        %v3394 = vand.u32 %v3393, 4294901760
        %v3395 = vsub.f32 %v3393, %v3394
        %v3396 = vand.u32 %v3395, 4294901760
        %3397 = vmatpush1.msra.mxu0 %v3396
        %v3398 = vand.u32 %v2904, 4294901760
        %v3399 = vsub.f32 %v2904, %v3398
        %v3400 = vand.u32 %v3399, 4294901760
        %v3401 = vsub.f32 %v3399, %v3400
        %v3402 = vand.u32 %v3401, 4294901760
        %3403 = vmatprep.subr.mxu0 %v3402
        %v3404 = vand.u32 %v2903, 4294901760
        %v3405 = vsub.f32 %v2903, %v3404
        %v3406 = vand.u32 %v3405, 4294901760
        %v3407 = vsub.f32 %v3405, %v3406
        %v3408 = vand.u32 %v3407, 4294901760
        %3409 = vmatpush1.msra.mxu0 %v3408
        %v3410 = vand.u32 %v2906, 4294901760
        %v3411 = vsub.f32 %v2906, %v3410
        %v3412 = vand.u32 %v3411, 4294901760
        %v3413 = vsub.f32 %v3411, %v3412
        %v3414 = vand.u32 %v3413, 4294901760
        %3415 = vmatprep.subr.mxu0 %v3414
        %v3416 = vand.u32 %v2905, 4294901760
        %v3417 = vsub.f32 %v2905, %v3416
        %v3418 = vand.u32 %v3417, 4294901760
        %v3419 = vsub.f32 %v3417, %v3418
        %v3420 = vand.u32 %v3419, 4294901760
        %3421 = vmatpush1.msra.mxu0 %v3420
        %v3422 = vand.u32 %v2908, 4294901760
        %v3423 = vsub.f32 %v2908, %v3422
        %v3424 = vand.u32 %v3423, 4294901760
        %v3425 = vsub.f32 %v3423, %v3424
        %v3426 = vand.u32 %v3425, 4294901760
        %3427 = vmatprep.subr.mxu0 %v3426
        %v3428 = vand.u32 %v2907, 4294901760
        %v3429 = vsub.f32 %v2907, %v3428
        %v3430 = vand.u32 %v3429, 4294901760
        %v3431 = vsub.f32 %v3429, %v3430
        %v3432 = vand.u32 %v3431, 4294901760
        %3433 = vmatpush1.msra.mxu0 %v3432
        %v3434 = vand.u32 %v2910, 4294901760
        %v3435 = vsub.f32 %v2910, %v3434
        %v3436 = vand.u32 %v3435, 4294901760
        %v3437 = vsub.f32 %v3435, %v3436
        %v3438 = vand.u32 %v3437, 4294901760
        %3439 = vmatprep.subr.mxu0 %v3438
        %v3440 = vand.u32 %v2909, 4294901760
        %v3441 = vsub.f32 %v2909, %v3440
        %v3442 = vand.u32 %v3441, 4294901760
        %v3443 = vsub.f32 %v3441, %v3442
        %v3444 = vand.u32 %v3443, 4294901760
        %3445 = vmatpush1.msra.mxu0 %v3444
        %v3446 = vand.u32 %v2912, 4294901760
        %v3447 = vsub.f32 %v2912, %v3446
        %v3448 = vand.u32 %v3447, 4294901760
        %v3449 = vsub.f32 %v3447, %v3448
        %v3450 = vand.u32 %v3449, 4294901760
        %3451 = vmatprep.subr.mxu0 %v3450
        %v3452 = vand.u32 %v2911, 4294901760
        %v3453 = vsub.f32 %v2911, %v3452
        %v3454 = vand.u32 %v3453, 4294901760
        %v3455 = vsub.f32 %v3453, %v3454
        %v3456 = vand.u32 %v3455, 4294901760
        %3457 = vmatpush1.msra.mxu0 %v3456
        %v3458 = vand.u32 %v2839, 4294901760
        %3459 = vmatprep.mubr.f32.mxu0 %v3458
        %v3460 = vand.u32 %v2837, 4294901760
        %3461 = vmatmul.mubr.f32.gmra.mrb[0].mxu0 %v3460
        %v3462 = vpop.f32.mrb[0].mxu0
        %v3463 = vadd.f32 %v3054, %v3462
        %v3464 = vpop.f32.mrb[0].mxu0
        %v3465 = vadd.f32 %v3056, %v3464
        %v3466 = vand.u32 %v2846, 4294901760
        %3467 = vmatprep.mubr.f32.mxu0 %v3466
        %v3468 = vand.u32 %v2844, 4294901760
        %3469 = vmatmul.mubr.f32.gmra.mrb[0].mxu0 %v3468
        %v3470 = vpop.f32.mrb[0].mxu0
        %v3471 = vadd.f32 %v3070, %v3470
        %v3472 = vpop.f32.mrb[0].mxu0
        %v3473 = vadd.f32 %v3072, %v3472
        %3474 = vdwg.mxu0
        %v3475 = vand.u32 %v2850, 4294901760
        %v3476 = vsub.f32 %v2850, %v3475
        %3477 = vmatprep.subr.mxu0 %v3476
        %v3478 = vand.u32 %v2849, 4294901760
        %v3479 = vsub.f32 %v2849, %v3478
        %3480 = vmatpush1.msra.mxu0 %v3479
        %v3481 = vand.u32 %v2852, 4294901760
        %v3482 = vsub.f32 %v2852, %v3481
        %3483 = vmatprep.subr.mxu0 %v3482
        %v3484 = vand.u32 %v2851, 4294901760
        %v3485 = vsub.f32 %v2851, %v3484
        %3486 = vmatpush1.msra.mxu0 %v3485
        %v3487 = vand.u32 %v2854, 4294901760
        %v3488 = vsub.f32 %v2854, %v3487
        %3489 = vmatprep.subr.mxu0 %v3488
        %v3490 = vand.u32 %v2853, 4294901760
        %v3491 = vsub.f32 %v2853, %v3490
        %3492 = vmatpush1.msra.mxu0 %v3491
        %v3493 = vand.u32 %v2856, 4294901760
        %v3494 = vsub.f32 %v2856, %v3493
        %3495 = vmatprep.subr.mxu0 %v3494
        %v3496 = vand.u32 %v2855, 4294901760
        %v3497 = vsub.f32 %v2855, %v3496
        %3498 = vmatpush1.msra.mxu0 %v3497
        %v3499 = vand.u32 %v2858, 4294901760
        %v3500 = vsub.f32 %v2858, %v3499
        %3501 = vmatprep.subr.mxu0 %v3500
        %v3502 = vand.u32 %v2857, 4294901760
        %v3503 = vsub.f32 %v2857, %v3502
        %3504 = vmatpush1.msra.mxu0 %v3503
        %v3505 = vand.u32 %v2860, 4294901760
        %v3506 = vsub.f32 %v2860, %v3505
        %3507 = vmatprep.subr.mxu0 %v3506
        %v3508 = vand.u32 %v2859, 4294901760
        %v3509 = vsub.f32 %v2859, %v3508
        %3510 = vmatpush1.msra.mxu0 %v3509
        %v3511 = vand.u32 %v2862, 4294901760
        %v3512 = vsub.f32 %v2862, %v3511
        %3513 = vmatprep.subr.mxu0 %v3512
        %v3514 = vand.u32 %v2861, 4294901760
        %v3515 = vsub.f32 %v2861, %v3514
        %3516 = vmatpush1.msra.mxu0 %v3515
        %v3517 = vand.u32 %v2864, 4294901760
        %v3518 = vsub.f32 %v2864, %v3517
        %3519 = vmatprep.subr.mxu0 %v3518
        %v3520 = vand.u32 %v2863, 4294901760
        %v3521 = vsub.f32 %v2863, %v3520
        %3522 = vmatpush1.msra.mxu0 %v3521
        %v3523 = vand.u32 %v2866, 4294901760
        %v3524 = vsub.f32 %v2866, %v3523
        %3525 = vmatprep.subr.mxu0 %v3524
        %v3526 = vand.u32 %v2865, 4294901760
        %v3527 = vsub.f32 %v2865, %v3526
        %3528 = vmatpush1.msra.mxu0 %v3527
        %v3529 = vand.u32 %v2868, 4294901760
        %v3530 = vsub.f32 %v2868, %v3529
        %3531 = vmatprep.subr.mxu0 %v3530
        %v3532 = vand.u32 %v2867, 4294901760
        %v3533 = vsub.f32 %v2867, %v3532
        %3534 = vmatpush1.msra.mxu0 %v3533
        %v3535 = vand.u32 %v2870, 4294901760
        %v3536 = vsub.f32 %v2870, %v3535
        %3537 = vmatprep.subr.mxu0 %v3536
        %v3538 = vand.u32 %v2869, 4294901760
        %v3539 = vsub.f32 %v2869, %v3538
        %3540 = vmatpush1.msra.mxu0 %v3539
        %v3541 = vand.u32 %v2872, 4294901760
        %v3542 = vsub.f32 %v2872, %v3541
        %3543 = vmatprep.subr.mxu0 %v3542
        %v3544 = vand.u32 %v2871, 4294901760
        %v3545 = vsub.f32 %v2871, %v3544
        %3546 = vmatpush1.msra.mxu0 %v3545
        %v3547 = vand.u32 %v2874, 4294901760
        %v3548 = vsub.f32 %v2874, %v3547
        %3549 = vmatprep.subr.mxu0 %v3548
        %v3550 = vand.u32 %v2873, 4294901760
        %v3551 = vsub.f32 %v2873, %v3550
        %3552 = vmatpush1.msra.mxu0 %v3551
        %v3553 = vand.u32 %v2876, 4294901760
        %v3554 = vsub.f32 %v2876, %v3553
        %3555 = vmatprep.subr.mxu0 %v3554
        %v3556 = vand.u32 %v2875, 4294901760
        %v3557 = vsub.f32 %v2875, %v3556
        %3558 = vmatpush1.msra.mxu0 %v3557
        %v3559 = vand.u32 %v2878, 4294901760
        %v3560 = vsub.f32 %v2878, %v3559
        %3561 = vmatprep.subr.mxu0 %v3560
        %v3562 = vand.u32 %v2877, 4294901760
        %v3563 = vsub.f32 %v2877, %v3562
        %3564 = vmatpush1.msra.mxu0 %v3563
        %v3565 = vand.u32 %v2880, 4294901760
        %v3566 = vsub.f32 %v2880, %v3565
        %3567 = vmatprep.subr.mxu0 %v3566
        %v3568 = vand.u32 %v2879, 4294901760
        %v3569 = vsub.f32 %v2879, %v3568
        %3570 = vmatpush1.msra.mxu0 %v3569
        %v3571 = vand.u32 %v2882, 4294901760
        %v3572 = vsub.f32 %v2882, %v3571
        %3573 = vmatprep.subr.mxu0 %v3572
        %v3574 = vand.u32 %v2881, 4294901760
        %v3575 = vsub.f32 %v2881, %v3574
        %3576 = vmatpush1.msra.mxu0 %v3575
        %v3577 = vand.u32 %v2884, 4294901760
        %v3578 = vsub.f32 %v2884, %v3577
        %3579 = vmatprep.subr.mxu0 %v3578
        %v3580 = vand.u32 %v2883, 4294901760
        %v3581 = vsub.f32 %v2883, %v3580
        %3582 = vmatpush1.msra.mxu0 %v3581
        %v3583 = vand.u32 %v2886, 4294901760
        %v3584 = vsub.f32 %v2886, %v3583
        %3585 = vmatprep.subr.mxu0 %v3584
        %v3586 = vand.u32 %v2885, 4294901760
        %v3587 = vsub.f32 %v2885, %v3586
        %3588 = vmatpush1.msra.mxu0 %v3587
        %v3589 = vand.u32 %v2888, 4294901760
        %v3590 = vsub.f32 %v2888, %v3589
        %3591 = vmatprep.subr.mxu0 %v3590
        %v3592 = vand.u32 %v2887, 4294901760
        %v3593 = vsub.f32 %v2887, %v3592
        %3594 = vmatpush1.msra.mxu0 %v3593
        %v3595 = vand.u32 %v2890, 4294901760
        %v3596 = vsub.f32 %v2890, %v3595
        %3597 = vmatprep.subr.mxu0 %v3596
        %v3598 = vand.u32 %v2889, 4294901760
        %v3599 = vsub.f32 %v2889, %v3598
        %3600 = vmatpush1.msra.mxu0 %v3599
        %v3601 = vand.u32 %v2892, 4294901760
        %v3602 = vsub.f32 %v2892, %v3601
        %3603 = vmatprep.subr.mxu0 %v3602
        %v3604 = vand.u32 %v2891, 4294901760
        %v3605 = vsub.f32 %v2891, %v3604
        %3606 = vmatpush1.msra.mxu0 %v3605
        %v3607 = vand.u32 %v2894, 4294901760
        %v3608 = vsub.f32 %v2894, %v3607
        %3609 = vmatprep.subr.mxu0 %v3608
        %v3610 = vand.u32 %v2893, 4294901760
        %v3611 = vsub.f32 %v2893, %v3610
        %3612 = vmatpush1.msra.mxu0 %v3611
        %v3613 = vand.u32 %v2896, 4294901760
        %v3614 = vsub.f32 %v2896, %v3613
        %3615 = vmatprep.subr.mxu0 %v3614
        %v3616 = vand.u32 %v2895, 4294901760
        %v3617 = vsub.f32 %v2895, %v3616
        %3618 = vmatpush1.msra.mxu0 %v3617
        %v3619 = vand.u32 %v2898, 4294901760
        %v3620 = vsub.f32 %v2898, %v3619
        %3621 = vmatprep.subr.mxu0 %v3620
        %v3622 = vand.u32 %v2897, 4294901760
        %v3623 = vsub.f32 %v2897, %v3622
        %3624 = vmatpush1.msra.mxu0 %v3623
        %v3625 = vand.u32 %v2900, 4294901760
        %v3626 = vsub.f32 %v2900, %v3625
        %3627 = vmatprep.subr.mxu0 %v3626
        %v3628 = vand.u32 %v2899, 4294901760
        %v3629 = vsub.f32 %v2899, %v3628
        %3630 = vmatpush1.msra.mxu0 %v3629
        %v3631 = vand.u32 %v2902, 4294901760
        %v3632 = vsub.f32 %v2902, %v3631
        %3633 = vmatprep.subr.mxu0 %v3632
        %v3634 = vand.u32 %v2901, 4294901760
        %v3635 = vsub.f32 %v2901, %v3634
        %3636 = vmatpush1.msra.mxu0 %v3635
        %v3637 = vand.u32 %v2904, 4294901760
        %v3638 = vsub.f32 %v2904, %v3637
        %3639 = vmatprep.subr.mxu0 %v3638
        %v3640 = vand.u32 %v2903, 4294901760
        %v3641 = vsub.f32 %v2903, %v3640
        %3642 = vmatpush1.msra.mxu0 %v3641
        %v3643 = vand.u32 %v2906, 4294901760
        %v3644 = vsub.f32 %v2906, %v3643
        %3645 = vmatprep.subr.mxu0 %v3644
        %v3646 = vand.u32 %v2905, 4294901760
        %v3647 = vsub.f32 %v2905, %v3646
        %3648 = vmatpush1.msra.mxu0 %v3647
        %v3649 = vand.u32 %v2908, 4294901760
        %v3650 = vsub.f32 %v2908, %v3649
        %3651 = vmatprep.subr.mxu0 %v3650
        %v3652 = vand.u32 %v2907, 4294901760
        %v3653 = vsub.f32 %v2907, %v3652
        %3654 = vmatpush1.msra.mxu0 %v3653
        %v3655 = vand.u32 %v2910, 4294901760
        %v3656 = vsub.f32 %v2910, %v3655
        %3657 = vmatprep.subr.mxu0 %v3656
        %v3658 = vand.u32 %v2909, 4294901760
        %v3659 = vsub.f32 %v2909, %v3658
        %3660 = vmatpush1.msra.mxu0 %v3659
        %v3661 = vand.u32 %v2912, 4294901760
        %v3662 = vsub.f32 %v2912, %v3661
        %3663 = vmatprep.subr.mxu0 %v3662
        %v3664 = vand.u32 %v2911, 4294901760
        %v3665 = vsub.f32 %v2911, %v3664
        %3666 = vmatpush1.msra.mxu0 %v3665
        %v3667 = vand.u32 %v2839, 4294901760
        %v3668 = vsub.f32 %v2839, %v3667
        %3669 = vmatprep.mubr.f32.mxu0 %v3668
        %v3670 = vand.u32 %v2837, 4294901760
        %v3671 = vsub.f32 %v2837, %v3670
        %3672 = vmatmul.mubr.f32.gmra.mrb[0].mxu0 %v3671
        %v3673 = vpop.f32.mrb[0].mxu0
        %v3674 = vadd.f32 %v3463, %v3673
        %v3675 = vpop.f32.mrb[0].mxu0
        %v3676 = vadd.f32 %v3465, %v3675
        %v3677 = vand.u32 %v2846, 4294901760
        %v3678 = vsub.f32 %v2846, %v3677
        %3679 = vmatprep.mubr.f32.mxu0 %v3678
        %v3680 = vand.u32 %v2844, 4294901760
        %v3681 = vsub.f32 %v2844, %v3680
        %3682 = vmatmul.mubr.f32.gmra.mrb[0].mxu0 %v3681
        %v3683 = vpop.f32.mrb[0].mxu0
        %v3684 = vadd.f32 %v3471, %v3683
        %v3685 = vpop.f32.mrb[0].mxu0
        %v3686 = vadd.f32 %v3473, %v3685
        %3687 = vdwg.mxu0
        %v3688 = vand.u32 %v2850, 4294901760
        %3689 = vmatprep.subr.mxu0 %v3688
        %v3690 = vand.u32 %v2849, 4294901760
        %3691 = vmatpush1.msra.mxu0 %v3690
        %v3692 = vand.u32 %v2852, 4294901760
        %3693 = vmatprep.subr.mxu0 %v3692
        %v3694 = vand.u32 %v2851, 4294901760
        %3695 = vmatpush1.msra.mxu0 %v3694
        %v3696 = vand.u32 %v2854, 4294901760
        %3697 = vmatprep.subr.mxu0 %v3696
        %v3698 = vand.u32 %v2853, 4294901760
        %3699 = vmatpush1.msra.mxu0 %v3698
        %v3700 = vand.u32 %v2856, 4294901760
        %3701 = vmatprep.subr.mxu0 %v3700
        %v3702 = vand.u32 %v2855, 4294901760
        %3703 = vmatpush1.msra.mxu0 %v3702
        %v3704 = vand.u32 %v2858, 4294901760
        %3705 = vmatprep.subr.mxu0 %v3704
        %v3706 = vand.u32 %v2857, 4294901760
        %3707 = vmatpush1.msra.mxu0 %v3706
        %v3708 = vand.u32 %v2860, 4294901760
        %3709 = vmatprep.subr.mxu0 %v3708
        %v3710 = vand.u32 %v2859, 4294901760
        %3711 = vmatpush1.msra.mxu0 %v3710
        %v3712 = vand.u32 %v2862, 4294901760
        %3713 = vmatprep.subr.mxu0 %v3712
        %v3714 = vand.u32 %v2861, 4294901760
        %3715 = vmatpush1.msra.mxu0 %v3714
        %v3716 = vand.u32 %v2864, 4294901760
        %3717 = vmatprep.subr.mxu0 %v3716
        %v3718 = vand.u32 %v2863, 4294901760
        %3719 = vmatpush1.msra.mxu0 %v3718
        %v3720 = vand.u32 %v2866, 4294901760
        %3721 = vmatprep.subr.mxu0 %v3720
        %v3722 = vand.u32 %v2865, 4294901760
        %3723 = vmatpush1.msra.mxu0 %v3722
        %v3724 = vand.u32 %v2868, 4294901760
        %3725 = vmatprep.subr.mxu0 %v3724
        %v3726 = vand.u32 %v2867, 4294901760
        %3727 = vmatpush1.msra.mxu0 %v3726
        %v3728 = vand.u32 %v2870, 4294901760
        %3729 = vmatprep.subr.mxu0 %v3728
        %v3730 = vand.u32 %v2869, 4294901760
        %3731 = vmatpush1.msra.mxu0 %v3730
        %v3732 = vand.u32 %v2872, 4294901760
        %3733 = vmatprep.subr.mxu0 %v3732
        %v3734 = vand.u32 %v2871, 4294901760
        %3735 = vmatpush1.msra.mxu0 %v3734
        %v3736 = vand.u32 %v2874, 4294901760
        %3737 = vmatprep.subr.mxu0 %v3736
        %v3738 = vand.u32 %v2873, 4294901760
        %3739 = vmatpush1.msra.mxu0 %v3738
        %v3740 = vand.u32 %v2876, 4294901760
        %3741 = vmatprep.subr.mxu0 %v3740
        %v3742 = vand.u32 %v2875, 4294901760
        %3743 = vmatpush1.msra.mxu0 %v3742
        %v3744 = vand.u32 %v2878, 4294901760
        %3745 = vmatprep.subr.mxu0 %v3744
        %v3746 = vand.u32 %v2877, 4294901760
        %3747 = vmatpush1.msra.mxu0 %v3746
        %v3748 = vand.u32 %v2880, 4294901760
        %3749 = vmatprep.subr.mxu0 %v3748
        %v3750 = vand.u32 %v2879, 4294901760
        %3751 = vmatpush1.msra.mxu0 %v3750
        %v3752 = vand.u32 %v2882, 4294901760
        %3753 = vmatprep.subr.mxu0 %v3752
        %v3754 = vand.u32 %v2881, 4294901760
        %3755 = vmatpush1.msra.mxu0 %v3754
        %v3756 = vand.u32 %v2884, 4294901760
        %3757 = vmatprep.subr.mxu0 %v3756
        %v3758 = vand.u32 %v2883, 4294901760
        %3759 = vmatpush1.msra.mxu0 %v3758
        %v3760 = vand.u32 %v2886, 4294901760
        %3761 = vmatprep.subr.mxu0 %v3760
        %v3762 = vand.u32 %v2885, 4294901760
        %3763 = vmatpush1.msra.mxu0 %v3762
        %v3764 = vand.u32 %v2888, 4294901760
        %3765 = vmatprep.subr.mxu0 %v3764
        %v3766 = vand.u32 %v2887, 4294901760
        %3767 = vmatpush1.msra.mxu0 %v3766
        %v3768 = vand.u32 %v2890, 4294901760
        %3769 = vmatprep.subr.mxu0 %v3768
        %v3770 = vand.u32 %v2889, 4294901760
        %3771 = vmatpush1.msra.mxu0 %v3770
        %v3772 = vand.u32 %v2892, 4294901760
        %3773 = vmatprep.subr.mxu0 %v3772
        %v3774 = vand.u32 %v2891, 4294901760
        %3775 = vmatpush1.msra.mxu0 %v3774
        %v3776 = vand.u32 %v2894, 4294901760
        %3777 = vmatprep.subr.mxu0 %v3776
        %v3778 = vand.u32 %v2893, 4294901760
        %3779 = vmatpush1.msra.mxu0 %v3778
        %v3780 = vand.u32 %v2896, 4294901760
        %3781 = vmatprep.subr.mxu0 %v3780
        %v3782 = vand.u32 %v2895, 4294901760
        %3783 = vmatpush1.msra.mxu0 %v3782
        %v3784 = vand.u32 %v2898, 4294901760
        %3785 = vmatprep.subr.mxu0 %v3784
        %v3786 = vand.u32 %v2897, 4294901760
        %3787 = vmatpush1.msra.mxu0 %v3786
        %v3788 = vand.u32 %v2900, 4294901760
        %3789 = vmatprep.subr.mxu0 %v3788
        %v3790 = vand.u32 %v2899, 4294901760
        %3791 = vmatpush1.msra.mxu0 %v3790
        %v3792 = vand.u32 %v2902, 4294901760
        %3793 = vmatprep.subr.mxu0 %v3792
        %v3794 = vand.u32 %v2901, 4294901760
        %3795 = vmatpush1.msra.mxu0 %v3794
        %v3796 = vand.u32 %v2904, 4294901760
        %3797 = vmatprep.subr.mxu0 %v3796
        %v3798 = vand.u32 %v2903, 4294901760
        %3799 = vmatpush1.msra.mxu0 %v3798
        %v3800 = vand.u32 %v2906, 4294901760
        %3801 = vmatprep.subr.mxu0 %v3800
        %v3802 = vand.u32 %v2905, 4294901760
        %3803 = vmatpush1.msra.mxu0 %v3802
        %v3804 = vand.u32 %v2908, 4294901760
        %3805 = vmatprep.subr.mxu0 %v3804
        %v3806 = vand.u32 %v2907, 4294901760
        %3807 = vmatpush1.msra.mxu0 %v3806
        %v3808 = vand.u32 %v2910, 4294901760
        %3809 = vmatprep.subr.mxu0 %v3808
        %v3810 = vand.u32 %v2909, 4294901760
        %3811 = vmatpush1.msra.mxu0 %v3810
        %v3812 = vand.u32 %v2912, 4294901760
        %3813 = vmatprep.subr.mxu0 %v3812
        %v3814 = vand.u32 %v2911, 4294901760
        %3815 = vmatpush1.msra.mxu0 %v3814
        %v3816 = vand.u32 %v2839, 4294901760
        %v3817 = vsub.f32 %v2839, %v3816
        %v3818 = vand.u32 %v3817, 4294901760
        %3819 = vmatprep.mubr.f32.mxu0 %v3818
        %v3820 = vand.u32 %v2837, 4294901760
        %v3821 = vsub.f32 %v2837, %v3820
        %v3822 = vand.u32 %v3821, 4294901760
        %3823 = vmatmul.mubr.f32.gmra.mrb[0].mxu0 %v3822
        %v3824 = vpop.f32.mrb[0].mxu0
        %v3825 = vadd.f32 %v3674, %v3824
        %v3826 = vpop.f32.mrb[0].mxu0
        %v3827 = vadd.f32 %v3676, %v3826
        %v3828 = vand.u32 %v2846, 4294901760
        %v3829 = vsub.f32 %v2846, %v3828
        %v3830 = vand.u32 %v3829, 4294901760
        %3831 = vmatprep.mubr.f32.mxu0 %v3830
        %v3832 = vand.u32 %v2844, 4294901760
        %v3833 = vsub.f32 %v2844, %v3832
        %v3834 = vand.u32 %v3833, 4294901760
        %3835 = vmatmul.mubr.f32.gmra.mrb[0].mxu0 %v3834
        %v3836 = vpop.f32.mrb[0].mxu0
        %v3837 = vadd.f32 %v3684, %v3836
        %v3838 = vpop.f32.mrb[0].mxu0
        %v3839 = vadd.f32 %v3686, %v3838
        %3840 = vdwg.mxu0
        %v3841 = vand.u32 %v2850, 4294901760
        %v3842 = vsub.f32 %v2850, %v3841
        %v3843 = vand.u32 %v3842, 4294901760
        %3844 = vmatprep.subr.mxu0 %v3843
        %v3845 = vand.u32 %v2849, 4294901760
        %v3846 = vsub.f32 %v2849, %v3845
        %v3847 = vand.u32 %v3846, 4294901760
        %3848 = vmatpush1.msra.mxu0 %v3847
        %v3849 = vand.u32 %v2852, 4294901760
        %v3850 = vsub.f32 %v2852, %v3849
        %v3851 = vand.u32 %v3850, 4294901760
        %3852 = vmatprep.subr.mxu0 %v3851
        %v3853 = vand.u32 %v2851, 4294901760
        %v3854 = vsub.f32 %v2851, %v3853
        %v3855 = vand.u32 %v3854, 4294901760
        %3856 = vmatpush1.msra.mxu0 %v3855
        %v3857 = vand.u32 %v2854, 4294901760
        %v3858 = vsub.f32 %v2854, %v3857
        %v3859 = vand.u32 %v3858, 4294901760
        %3860 = vmatprep.subr.mxu0 %v3859
        %v3861 = vand.u32 %v2853, 4294901760
        %v3862 = vsub.f32 %v2853, %v3861
        %v3863 = vand.u32 %v3862, 4294901760
        %3864 = vmatpush1.msra.mxu0 %v3863
        %v3865 = vand.u32 %v2856, 4294901760
        %v3866 = vsub.f32 %v2856, %v3865
        %v3867 = vand.u32 %v3866, 4294901760
        %3868 = vmatprep.subr.mxu0 %v3867
        %v3869 = vand.u32 %v2855, 4294901760
        %v3870 = vsub.f32 %v2855, %v3869
        %v3871 = vand.u32 %v3870, 4294901760
        %3872 = vmatpush1.msra.mxu0 %v3871
        %v3873 = vand.u32 %v2858, 4294901760
        %v3874 = vsub.f32 %v2858, %v3873
        %v3875 = vand.u32 %v3874, 4294901760
        %3876 = vmatprep.subr.mxu0 %v3875
        %v3877 = vand.u32 %v2857, 4294901760
        %v3878 = vsub.f32 %v2857, %v3877
        %v3879 = vand.u32 %v3878, 4294901760
        %3880 = vmatpush1.msra.mxu0 %v3879
        %v3881 = vand.u32 %v2860, 4294901760
        %v3882 = vsub.f32 %v2860, %v3881
        %v3883 = vand.u32 %v3882, 4294901760
        %3884 = vmatprep.subr.mxu0 %v3883
        %v3885 = vand.u32 %v2859, 4294901760
        %v3886 = vsub.f32 %v2859, %v3885
        %v3887 = vand.u32 %v3886, 4294901760
        %3888 = vmatpush1.msra.mxu0 %v3887
        %v3889 = vand.u32 %v2862, 4294901760
        %v3890 = vsub.f32 %v2862, %v3889
        %v3891 = vand.u32 %v3890, 4294901760
        %3892 = vmatprep.subr.mxu0 %v3891
        %v3893 = vand.u32 %v2861, 4294901760
        %v3894 = vsub.f32 %v2861, %v3893
        %v3895 = vand.u32 %v3894, 4294901760
        %3896 = vmatpush1.msra.mxu0 %v3895
        %v3897 = vand.u32 %v2864, 4294901760
        %v3898 = vsub.f32 %v2864, %v3897
        %v3899 = vand.u32 %v3898, 4294901760
        %3900 = vmatprep.subr.mxu0 %v3899
        %v3901 = vand.u32 %v2863, 4294901760
        %v3902 = vsub.f32 %v2863, %v3901
        %v3903 = vand.u32 %v3902, 4294901760
        %3904 = vmatpush1.msra.mxu0 %v3903
        %v3905 = vand.u32 %v2866, 4294901760
        %v3906 = vsub.f32 %v2866, %v3905
        %v3907 = vand.u32 %v3906, 4294901760
        %3908 = vmatprep.subr.mxu0 %v3907
        %v3909 = vand.u32 %v2865, 4294901760
        %v3910 = vsub.f32 %v2865, %v3909
        %v3911 = vand.u32 %v3910, 4294901760
        %3912 = vmatpush1.msra.mxu0 %v3911
        %v3913 = vand.u32 %v2868, 4294901760
        %v3914 = vsub.f32 %v2868, %v3913
        %v3915 = vand.u32 %v3914, 4294901760
        %3916 = vmatprep.subr.mxu0 %v3915
        %v3917 = vand.u32 %v2867, 4294901760
        %v3918 = vsub.f32 %v2867, %v3917
        %v3919 = vand.u32 %v3918, 4294901760
        %3920 = vmatpush1.msra.mxu0 %v3919
        %v3921 = vand.u32 %v2870, 4294901760
        %v3922 = vsub.f32 %v2870, %v3921
        %v3923 = vand.u32 %v3922, 4294901760
        %3924 = vmatprep.subr.mxu0 %v3923
        %v3925 = vand.u32 %v2869, 4294901760
        %v3926 = vsub.f32 %v2869, %v3925
        %v3927 = vand.u32 %v3926, 4294901760
        %3928 = vmatpush1.msra.mxu0 %v3927
        %v3929 = vand.u32 %v2872, 4294901760
        %v3930 = vsub.f32 %v2872, %v3929
        %v3931 = vand.u32 %v3930, 4294901760
        %3932 = vmatprep.subr.mxu0 %v3931
        %v3933 = vand.u32 %v2871, 4294901760
        %v3934 = vsub.f32 %v2871, %v3933
        %v3935 = vand.u32 %v3934, 4294901760
        %3936 = vmatpush1.msra.mxu0 %v3935
        %v3937 = vand.u32 %v2874, 4294901760
        %v3938 = vsub.f32 %v2874, %v3937
        %v3939 = vand.u32 %v3938, 4294901760
        %3940 = vmatprep.subr.mxu0 %v3939
        %v3941 = vand.u32 %v2873, 4294901760
        %v3942 = vsub.f32 %v2873, %v3941
        %v3943 = vand.u32 %v3942, 4294901760
        %3944 = vmatpush1.msra.mxu0 %v3943
        %v3945 = vand.u32 %v2876, 4294901760
        %v3946 = vsub.f32 %v2876, %v3945
        %v3947 = vand.u32 %v3946, 4294901760
        %3948 = vmatprep.subr.mxu0 %v3947
        %v3949 = vand.u32 %v2875, 4294901760
        %v3950 = vsub.f32 %v2875, %v3949
        %v3951 = vand.u32 %v3950, 4294901760
        %3952 = vmatpush1.msra.mxu0 %v3951
        %v3953 = vand.u32 %v2878, 4294901760
        %v3954 = vsub.f32 %v2878, %v3953
        %v3955 = vand.u32 %v3954, 4294901760
        %3956 = vmatprep.subr.mxu0 %v3955
        %v3957 = vand.u32 %v2877, 4294901760
        %v3958 = vsub.f32 %v2877, %v3957
        %v3959 = vand.u32 %v3958, 4294901760
        %3960 = vmatpush1.msra.mxu0 %v3959
        %v3961 = vand.u32 %v2880, 4294901760
        %v3962 = vsub.f32 %v2880, %v3961
        %v3963 = vand.u32 %v3962, 4294901760
        %3964 = vmatprep.subr.mxu0 %v3963
        %v3965 = vand.u32 %v2879, 4294901760
        %v3966 = vsub.f32 %v2879, %v3965
        %v3967 = vand.u32 %v3966, 4294901760
        %3968 = vmatpush1.msra.mxu0 %v3967
        %v3969 = vand.u32 %v2882, 4294901760
        %v3970 = vsub.f32 %v2882, %v3969
        %v3971 = vand.u32 %v3970, 4294901760
        %3972 = vmatprep.subr.mxu0 %v3971
        %v3973 = vand.u32 %v2881, 4294901760
        %v3974 = vsub.f32 %v2881, %v3973
        %v3975 = vand.u32 %v3974, 4294901760
        %3976 = vmatpush1.msra.mxu0 %v3975
        %v3977 = vand.u32 %v2884, 4294901760
        %v3978 = vsub.f32 %v2884, %v3977
        %v3979 = vand.u32 %v3978, 4294901760
        %3980 = vmatprep.subr.mxu0 %v3979
        %v3981 = vand.u32 %v2883, 4294901760
        %v3982 = vsub.f32 %v2883, %v3981
        %v3983 = vand.u32 %v3982, 4294901760
        %3984 = vmatpush1.msra.mxu0 %v3983
        %v3985 = vand.u32 %v2886, 4294901760
        %v3986 = vsub.f32 %v2886, %v3985
        %v3987 = vand.u32 %v3986, 4294901760
        %3988 = vmatprep.subr.mxu0 %v3987
        %v3989 = vand.u32 %v2885, 4294901760
        %v3990 = vsub.f32 %v2885, %v3989
        %v3991 = vand.u32 %v3990, 4294901760
        %3992 = vmatpush1.msra.mxu0 %v3991
        %v3993 = vand.u32 %v2888, 4294901760
        %v3994 = vsub.f32 %v2888, %v3993
        %v3995 = vand.u32 %v3994, 4294901760
        %3996 = vmatprep.subr.mxu0 %v3995
        %v3997 = vand.u32 %v2887, 4294901760
        %v3998 = vsub.f32 %v2887, %v3997
        %v3999 = vand.u32 %v3998, 4294901760
        %4000 = vmatpush1.msra.mxu0 %v3999
        %v4001 = vand.u32 %v2890, 4294901760
        %v4002 = vsub.f32 %v2890, %v4001
        %v4003 = vand.u32 %v4002, 4294901760
        %4004 = vmatprep.subr.mxu0 %v4003
        %v4005 = vand.u32 %v2889, 4294901760
        %v4006 = vsub.f32 %v2889, %v4005
        %v4007 = vand.u32 %v4006, 4294901760
        %4008 = vmatpush1.msra.mxu0 %v4007
        %v4009 = vand.u32 %v2892, 4294901760
        %v4010 = vsub.f32 %v2892, %v4009
        %v4011 = vand.u32 %v4010, 4294901760
        %4012 = vmatprep.subr.mxu0 %v4011
        %v4013 = vand.u32 %v2891, 4294901760
        %v4014 = vsub.f32 %v2891, %v4013
        %v4015 = vand.u32 %v4014, 4294901760
        %4016 = vmatpush1.msra.mxu0 %v4015
        %v4017 = vand.u32 %v2894, 4294901760
        %v4018 = vsub.f32 %v2894, %v4017
        %v4019 = vand.u32 %v4018, 4294901760
        %4020 = vmatprep.subr.mxu0 %v4019
        %v4021 = vand.u32 %v2893, 4294901760
        %v4022 = vsub.f32 %v2893, %v4021
        %v4023 = vand.u32 %v4022, 4294901760
        %4024 = vmatpush1.msra.mxu0 %v4023
        %v4025 = vand.u32 %v2896, 4294901760
        %v4026 = vsub.f32 %v2896, %v4025
        %v4027 = vand.u32 %v4026, 4294901760
        %4028 = vmatprep.subr.mxu0 %v4027
        %v4029 = vand.u32 %v2895, 4294901760
        %v4030 = vsub.f32 %v2895, %v4029
        %v4031 = vand.u32 %v4030, 4294901760
        %4032 = vmatpush1.msra.mxu0 %v4031
        %v4033 = vand.u32 %v2898, 4294901760
        %v4034 = vsub.f32 %v2898, %v4033
        %v4035 = vand.u32 %v4034, 4294901760
        %4036 = vmatprep.subr.mxu0 %v4035
        %v4037 = vand.u32 %v2897, 4294901760
        %v4038 = vsub.f32 %v2897, %v4037
        %v4039 = vand.u32 %v4038, 4294901760
        %4040 = vmatpush1.msra.mxu0 %v4039
        %v4041 = vand.u32 %v2900, 4294901760
        %v4042 = vsub.f32 %v2900, %v4041
        %v4043 = vand.u32 %v4042, 4294901760
        %4044 = vmatprep.subr.mxu0 %v4043
        %v4045 = vand.u32 %v2899, 4294901760
        %v4046 = vsub.f32 %v2899, %v4045
        %v4047 = vand.u32 %v4046, 4294901760
        %4048 = vmatpush1.msra.mxu0 %v4047
        %v4049 = vand.u32 %v2902, 4294901760
        %v4050 = vsub.f32 %v2902, %v4049
        %v4051 = vand.u32 %v4050, 4294901760
        %4052 = vmatprep.subr.mxu0 %v4051
        %v4053 = vand.u32 %v2901, 4294901760
        %v4054 = vsub.f32 %v2901, %v4053
        %v4055 = vand.u32 %v4054, 4294901760
        %4056 = vmatpush1.msra.mxu0 %v4055
        %v4057 = vand.u32 %v2904, 4294901760
        %v4058 = vsub.f32 %v2904, %v4057
        %v4059 = vand.u32 %v4058, 4294901760
        %4060 = vmatprep.subr.mxu0 %v4059
        %v4061 = vand.u32 %v2903, 4294901760
        %v4062 = vsub.f32 %v2903, %v4061
        %v4063 = vand.u32 %v4062, 4294901760
        %4064 = vmatpush1.msra.mxu0 %v4063
        %v4065 = vand.u32 %v2906, 4294901760
        %v4066 = vsub.f32 %v2906, %v4065
        %v4067 = vand.u32 %v4066, 4294901760
        %4068 = vmatprep.subr.mxu0 %v4067
        %v4069 = vand.u32 %v2905, 4294901760
        %v4070 = vsub.f32 %v2905, %v4069
        %v4071 = vand.u32 %v4070, 4294901760
        %4072 = vmatpush1.msra.mxu0 %v4071
        %v4073 = vand.u32 %v2908, 4294901760
        %v4074 = vsub.f32 %v2908, %v4073
        %v4075 = vand.u32 %v4074, 4294901760
        %4076 = vmatprep.subr.mxu0 %v4075
        %v4077 = vand.u32 %v2907, 4294901760
        %v4078 = vsub.f32 %v2907, %v4077
        %v4079 = vand.u32 %v4078, 4294901760
        %4080 = vmatpush1.msra.mxu0 %v4079
        %v4081 = vand.u32 %v2910, 4294901760
        %v4082 = vsub.f32 %v2910, %v4081
        %v4083 = vand.u32 %v4082, 4294901760
        %4084 = vmatprep.subr.mxu0 %v4083
        %v4085 = vand.u32 %v2909, 4294901760
        %v4086 = vsub.f32 %v2909, %v4085
        %v4087 = vand.u32 %v4086, 4294901760
        %4088 = vmatpush1.msra.mxu0 %v4087
        %v4089 = vand.u32 %v2912, 4294901760
        %v4090 = vsub.f32 %v2912, %v4089
        %v4091 = vand.u32 %v4090, 4294901760
        %4092 = vmatprep.subr.mxu0 %v4091
        %v4093 = vand.u32 %v2911, 4294901760
        %v4094 = vsub.f32 %v2911, %v4093
        %v4095 = vand.u32 %v4094, 4294901760
        %4096 = vmatpush1.msra.mxu0 %v4095
        %v4097 = vand.u32 %v2839, 4294901760
        %4098 = vmatprep.mubr.f32.mxu0 %v4097
        %v4099 = vand.u32 %v2837, 4294901760
        %4100 = vmatmul.mubr.f32.gmra.mrb[0].mxu0 %v4099
        %v4101 = vpop.f32.mrb[0].mxu0
        %v4102 = vadd.f32 %v3825, %v4101
        %v4103 = vpop.f32.mrb[0].mxu0
        %v4104 = vadd.f32 %v3827, %v4103
        %v4105 = vand.u32 %v2846, 4294901760
        %4106 = vmatprep.mubr.f32.mxu0 %v4105
        %v4107 = vand.u32 %v2844, 4294901760
        %4108 = vmatmul.mubr.f32.gmra.mrb[0].mxu0 %v4107
        %v4109 = vpop.f32.mrb[0].mxu0
        %v4110 = vadd.f32 %v3837, %v4109
        %v4111 = vpop.f32.mrb[0].mxu0
        %v4112 = vadd.f32 %v3839, %v4111
        %4113 = vdwg.mxu0
        %v4114 = vand.u32 %v2850, 4294901760
        %4115 = vmatprep.subr.mxu0 %v4114
        %v4116 = vand.u32 %v2849, 4294901760
        %4117 = vmatpush1.msra.mxu0 %v4116
        %v4118 = vand.u32 %v2852, 4294901760
        %4119 = vmatprep.subr.mxu0 %v4118
        %v4120 = vand.u32 %v2851, 4294901760
        %4121 = vmatpush1.msra.mxu0 %v4120
        %v4122 = vand.u32 %v2854, 4294901760
        %4123 = vmatprep.subr.mxu0 %v4122
        %v4124 = vand.u32 %v2853, 4294901760
        %4125 = vmatpush1.msra.mxu0 %v4124
        %v4126 = vand.u32 %v2856, 4294901760
        %4127 = vmatprep.subr.mxu0 %v4126
        %v4128 = vand.u32 %v2855, 4294901760
        %4129 = vmatpush1.msra.mxu0 %v4128
        %v4130 = vand.u32 %v2858, 4294901760
        %4131 = vmatprep.subr.mxu0 %v4130
        %v4132 = vand.u32 %v2857, 4294901760
        %4133 = vmatpush1.msra.mxu0 %v4132
        %v4134 = vand.u32 %v2860, 4294901760
        %4135 = vmatprep.subr.mxu0 %v4134
        %v4136 = vand.u32 %v2859, 4294901760
        %4137 = vmatpush1.msra.mxu0 %v4136
        %v4138 = vand.u32 %v2862, 4294901760
        %4139 = vmatprep.subr.mxu0 %v4138
        %v4140 = vand.u32 %v2861, 4294901760
        %4141 = vmatpush1.msra.mxu0 %v4140
        %v4142 = vand.u32 %v2864, 4294901760
        %4143 = vmatprep.subr.mxu0 %v4142
        %v4144 = vand.u32 %v2863, 4294901760
        %4145 = vmatpush1.msra.mxu0 %v4144
        %v4146 = vand.u32 %v2866, 4294901760
        %4147 = vmatprep.subr.mxu0 %v4146
        %v4148 = vand.u32 %v2865, 4294901760
        %4149 = vmatpush1.msra.mxu0 %v4148
        %v4150 = vand.u32 %v2868, 4294901760
        %4151 = vmatprep.subr.mxu0 %v4150
        %v4152 = vand.u32 %v2867, 4294901760
        %4153 = vmatpush1.msra.mxu0 %v4152
        %v4154 = vand.u32 %v2870, 4294901760
        %4155 = vmatprep.subr.mxu0 %v4154
        %v4156 = vand.u32 %v2869, 4294901760
        %4157 = vmatpush1.msra.mxu0 %v4156
        %v4158 = vand.u32 %v2872, 4294901760
        %4159 = vmatprep.subr.mxu0 %v4158
        %v4160 = vand.u32 %v2871, 4294901760
        %4161 = vmatpush1.msra.mxu0 %v4160
        %v4162 = vand.u32 %v2874, 4294901760
        %4163 = vmatprep.subr.mxu0 %v4162
        %v4164 = vand.u32 %v2873, 4294901760
        %4165 = vmatpush1.msra.mxu0 %v4164
        %v4166 = vand.u32 %v2876, 4294901760
        %4167 = vmatprep.subr.mxu0 %v4166
        %v4168 = vand.u32 %v2875, 4294901760
        %4169 = vmatpush1.msra.mxu0 %v4168
        %v4170 = vand.u32 %v2878, 4294901760
        %4171 = vmatprep.subr.mxu0 %v4170
        %v4172 = vand.u32 %v2877, 4294901760
        %4173 = vmatpush1.msra.mxu0 %v4172
        %v4174 = vand.u32 %v2880, 4294901760
        %4175 = vmatprep.subr.mxu0 %v4174
        %v4176 = vand.u32 %v2879, 4294901760
        %4177 = vmatpush1.msra.mxu0 %v4176
        %v4178 = vand.u32 %v2882, 4294901760
        %4179 = vmatprep.subr.mxu0 %v4178
        %v4180 = vand.u32 %v2881, 4294901760
        %4181 = vmatpush1.msra.mxu0 %v4180
        %v4182 = vand.u32 %v2884, 4294901760
        %4183 = vmatprep.subr.mxu0 %v4182
        %v4184 = vand.u32 %v2883, 4294901760
        %4185 = vmatpush1.msra.mxu0 %v4184
        %v4186 = vand.u32 %v2886, 4294901760
        %4187 = vmatprep.subr.mxu0 %v4186
        %v4188 = vand.u32 %v2885, 4294901760
        %4189 = vmatpush1.msra.mxu0 %v4188
        %v4190 = vand.u32 %v2888, 4294901760
        %4191 = vmatprep.subr.mxu0 %v4190
        %v4192 = vand.u32 %v2887, 4294901760
        %4193 = vmatpush1.msra.mxu0 %v4192
        %v4194 = vand.u32 %v2890, 4294901760
        %4195 = vmatprep.subr.mxu0 %v4194
        %v4196 = vand.u32 %v2889, 4294901760
        %4197 = vmatpush1.msra.mxu0 %v4196
        %v4198 = vand.u32 %v2892, 4294901760
        %4199 = vmatprep.subr.mxu0 %v4198
        %v4200 = vand.u32 %v2891, 4294901760
        %4201 = vmatpush1.msra.mxu0 %v4200
        %v4202 = vand.u32 %v2894, 4294901760
        %4203 = vmatprep.subr.mxu0 %v4202
        %v4204 = vand.u32 %v2893, 4294901760
        %4205 = vmatpush1.msra.mxu0 %v4204
        %v4206 = vand.u32 %v2896, 4294901760
        %4207 = vmatprep.subr.mxu0 %v4206
        %v4208 = vand.u32 %v2895, 4294901760
        %4209 = vmatpush1.msra.mxu0 %v4208
        %v4210 = vand.u32 %v2898, 4294901760
        %4211 = vmatprep.subr.mxu0 %v4210
        %v4212 = vand.u32 %v2897, 4294901760
        %4213 = vmatpush1.msra.mxu0 %v4212
        %v4214 = vand.u32 %v2900, 4294901760
        %4215 = vmatprep.subr.mxu0 %v4214
        %v4216 = vand.u32 %v2899, 4294901760
        %4217 = vmatpush1.msra.mxu0 %v4216
        %v4218 = vand.u32 %v2902, 4294901760
        %4219 = vmatprep.subr.mxu0 %v4218
        %v4220 = vand.u32 %v2901, 4294901760
        %4221 = vmatpush1.msra.mxu0 %v4220
        %v4222 = vand.u32 %v2904, 4294901760
        %4223 = vmatprep.subr.mxu0 %v4222
        %v4224 = vand.u32 %v2903, 4294901760
        %4225 = vmatpush1.msra.mxu0 %v4224
        %v4226 = vand.u32 %v2906, 4294901760
        %4227 = vmatprep.subr.mxu0 %v4226
        %v4228 = vand.u32 %v2905, 4294901760
        %4229 = vmatpush1.msra.mxu0 %v4228
        %v4230 = vand.u32 %v2908, 4294901760
        %4231 = vmatprep.subr.mxu0 %v4230
        %v4232 = vand.u32 %v2907, 4294901760
        %4233 = vmatpush1.msra.mxu0 %v4232
        %v4234 = vand.u32 %v2910, 4294901760
        %4235 = vmatprep.subr.mxu0 %v4234
        %v4236 = vand.u32 %v2909, 4294901760
        %4237 = vmatpush1.msra.mxu0 %v4236
        %v4238 = vand.u32 %v2912, 4294901760
        %4239 = vmatprep.subr.mxu0 %v4238
        %v4240 = vand.u32 %v2911, 4294901760
        %4241 = vmatpush1.msra.mxu0 %v4240
        %v4242 = vand.u32 %v2839, 4294901760
        %4243 = vmatprep.mubr.f32.mxu0 %v4242
        %v4244 = vand.u32 %v2837, 4294901760
        %4245 = vmatmul.mubr.f32.gmra.mrb[0].mxu0 %v4244
        %v4246 = vpop.f32.mrb[0].mxu0
        %v4247 = vadd.f32 %v4102, %v4246
        %v4248 = vpop.f32.mrb[0].mxu0
        %v4249 = vadd.f32 %v4104, %v4248
        %v4250 = vand.u32 %v2846, 4294901760
        %4251 = vmatprep.mubr.f32.mxu0 %v4250
        %v4252 = vand.u32 %v2844, 4294901760
        %4253 = vmatmul.mubr.f32.gmra.mrb[0].mxu0 %v4252
        %v4254 = vpop.f32.mrb[0].mxu0
        %v4255 = vadd.f32 %v4110, %v4254
        %v4256 = vpop.f32.mrb[0].mxu0
        %v4257 = vadd.f32 %v4112, %v4256
        %4258 = vdwg.mxu0
        %v4259 = vadd.f32 %v2295, %v4247
        %v4260 = vadd.f32 %v2296, %v4249
        %v4261 = vadd.f32 %v2297, %v4255
        %v4262 = vadd.f32 %v2298, %v4257
        %s4263 = scalar_lea.vmem [#allocation5], 32
        %v4264 = vld [vmem:[%s4263] sm:$0xff]
        %v4265 = vld [vmem:[%s4263 + $0x8] sm:$0xff]
        %v4267 = vsel %vm338, %v4264, 0
        %v4270 = vsel %vm338, %v4265, 0
        %v4272 = vand.u32 %v329, 4294901760
        %4273 = vmatprep.subr.mxu0 %v4272
        %v4274 = vand.u32 %v328, 4294901760
        %4275 = vmatpush1.msra.mxu0 %v4274
        %v4276 = vand.u32 %v331, 4294901760
        %4277 = vmatprep.subr.mxu0 %v4276
        %v4278 = vand.u32 %v330, 4294901760
        %4279 = vmatpush1.msra.mxu0 %v4278
        %4280 = vmatprep.subr.mxu0 0.0
        %4281 = vmatpush1.msra.mxu0 0.0
        %4282 = vmatprep.subr.mxu0 0.0
        %4283 = vmatpush1.msra.mxu0 0.0
        %4284 = vmatprep.subr.mxu0 0.0
        %4285 = vmatpush1.msra.mxu0 0.0
        %4286 = vmatprep.subr.mxu0 0.0
        %4287 = vmatpush1.msra.mxu0 0.0
        %4288 = vmatprep.subr.mxu0 0.0
        %4289 = vmatpush1.msra.mxu0 0.0
        %4290 = vmatprep.subr.mxu0 0.0
        %4291 = vmatpush1.msra.mxu0 0.0
        %4292 = vmatprep.subr.mxu0 0.0
        %4293 = vmatpush1.msra.mxu0 0.0
        %4294 = vmatprep.subr.mxu0 0.0
        %4295 = vmatpush1.msra.mxu0 0.0
        %4296 = vmatprep.subr.mxu0 0.0
        %4297 = vmatpush1.msra.mxu0 0.0
        %4298 = vmatprep.subr.mxu0 0.0
        %4299 = vmatpush1.msra.mxu0 0.0
        %4300 = vmatprep.subr.mxu0 0.0
        %4301 = vmatpush1.msra.mxu0 0.0
        %4302 = vmatprep.subr.mxu0 0.0
        %4303 = vmatpush1.msra.mxu0 0.0
        %4304 = vmatprep.subr.mxu0 0.0
        %4305 = vmatpush1.msra.mxu0 0.0
        %4306 = vmatprep.subr.mxu0 0.0
        %4307 = vmatpush1.msra.mxu0 0.0
        %4308 = vmatprep.subr.mxu0 0.0
        %4309 = vmatpush1.msra.mxu0 0.0
        %4310 = vmatprep.subr.mxu0 0.0
        %4311 = vmatpush1.msra.mxu0 0.0
        %4312 = vmatprep.subr.mxu0 0.0
        %4313 = vmatpush1.msra.mxu0 0.0
        %4314 = vmatprep.subr.mxu0 0.0
        %4315 = vmatpush1.msra.mxu0 0.0
        %4316 = vmatprep.subr.mxu0 0.0
        %4317 = vmatpush1.msra.mxu0 0.0
        %4318 = vmatprep.subr.mxu0 0.0
        %4319 = vmatpush1.msra.mxu0 0.0
        %4320 = vmatprep.subr.mxu0 0.0
        %4321 = vmatpush1.msra.mxu0 0.0
        %4322 = vmatprep.subr.mxu0 0.0
        %4323 = vmatpush1.msra.mxu0 0.0
        %4324 = vmatprep.subr.mxu0 0.0
        %4325 = vmatpush1.msra.mxu0 0.0
        %4326 = vmatprep.subr.mxu0 0.0
        %4327 = vmatpush1.msra.mxu0 0.0
        %4328 = vmatprep.subr.mxu0 0.0
        %4329 = vmatpush1.msra.mxu0 0.0
        %4330 = vmatprep.subr.mxu0 0.0
        %4331 = vmatpush1.msra.mxu0 0.0
        %4332 = vmatprep.subr.mxu0 0.0
        %4333 = vmatpush1.msra.mxu0 0.0
        %4334 = vmatprep.subr.mxu0 0.0
        %4335 = vmatpush1.msra.mxu0 0.0
        %4336 = vmatprep.subr.mxu0 0.0
        %4337 = vmatpush1.msra.mxu0 0.0
        %4338 = vmatprep.subr.mxu0 0.0
        %4339 = vmatpush1.msra.mxu0 0.0
        %4340 = vmatprep.mubr.f32.mxu0 0.0
        %v4341 = vand.u32 %v4267, 4294901760
        %v4342 = vsub.f32 %v4267, %v4341
        %v4343 = vand.u32 %v4342, 4294901760
        %v4344 = vsub.f32 %v4342, %v4343
        %v4345 = vand.u32 %v4344, 4294901760
        %4346 = vmatmul.mubr.f32.gmra.mrb[0].mxu0 %v4345
        %v4347 = vpop.f32.mrb[0].mxu0
        %v4348 = vadd.f32 0.0, %v4347
        %v4349 = vpop.f32.mrb[0].mxu0
        %v4350 = vadd.f32 0.0, %v4349
        %4351 = vmatprep.mubr.f32.mxu0 0.0
        %v4352 = vand.u32 %v4270, 4294901760
        %v4353 = vsub.f32 %v4270, %v4352
        %v4354 = vand.u32 %v4353, 4294901760
        %v4355 = vsub.f32 %v4353, %v4354
        %v4356 = vand.u32 %v4355, 4294901760
        %4357 = vmatmul.mubr.f32.gmra.mrb[0].mxu0 %v4356
        %v4358 = vpop.f32.mrb[0].mxu0
        %v4359 = vadd.f32 0.0, %v4358
        %v4360 = vpop.f32.mrb[0].mxu0
        %v4361 = vadd.f32 0.0, %v4360
        %4362 = vdwg.mxu0
        %v4363 = vand.u32 %v329, 4294901760
        %v4364 = vsub.f32 %v329, %v4363
        %v4365 = vand.u32 %v4364, 4294901760
        %v4366 = vsub.f32 %v4364, %v4365
        %v4367 = vand.u32 %v4366, 4294901760
        %4368 = vmatprep.subr.mxu0 %v4367
        %v4369 = vand.u32 %v328, 4294901760
        %v4370 = vsub.f32 %v328, %v4369
        %v4371 = vand.u32 %v4370, 4294901760
        %v4372 = vsub.f32 %v4370, %v4371
        %v4373 = vand.u32 %v4372, 4294901760
        %4374 = vmatpush1.msra.mxu0 %v4373
        %v4375 = vand.u32 %v331, 4294901760
        %v4376 = vsub.f32 %v331, %v4375
        %v4377 = vand.u32 %v4376, 4294901760
        %v4378 = vsub.f32 %v4376, %v4377
        %v4379 = vand.u32 %v4378, 4294901760
        %4380 = vmatprep.subr.mxu0 %v4379
        %v4381 = vand.u32 %v330, 4294901760
        %v4382 = vsub.f32 %v330, %v4381
        %v4383 = vand.u32 %v4382, 4294901760
        %v4384 = vsub.f32 %v4382, %v4383
        %v4385 = vand.u32 %v4384, 4294901760
        %4386 = vmatpush1.msra.mxu0 %v4385
        %4387 = vmatprep.subr.mxu0 0.0
        %4388 = vmatpush1.msra.mxu0 0.0
        %4389 = vmatprep.subr.mxu0 0.0
        %4390 = vmatpush1.msra.mxu0 0.0
        %4391 = vmatprep.subr.mxu0 0.0
        %4392 = vmatpush1.msra.mxu0 0.0
        %4393 = vmatprep.subr.mxu0 0.0
        %4394 = vmatpush1.msra.mxu0 0.0
        %4395 = vmatprep.subr.mxu0 0.0
        %4396 = vmatpush1.msra.mxu0 0.0
        %4397 = vmatprep.subr.mxu0 0.0
        %4398 = vmatpush1.msra.mxu0 0.0
        %4399 = vmatprep.subr.mxu0 0.0
        %4400 = vmatpush1.msra.mxu0 0.0
        %4401 = vmatprep.subr.mxu0 0.0
        %4402 = vmatpush1.msra.mxu0 0.0
        %4403 = vmatprep.subr.mxu0 0.0
        %4404 = vmatpush1.msra.mxu0 0.0
        %4405 = vmatprep.subr.mxu0 0.0
        %4406 = vmatpush1.msra.mxu0 0.0
        %4407 = vmatprep.subr.mxu0 0.0
        %4408 = vmatpush1.msra.mxu0 0.0
        %4409 = vmatprep.subr.mxu0 0.0
        %4410 = vmatpush1.msra.mxu0 0.0
        %4411 = vmatprep.subr.mxu0 0.0
        %4412 = vmatpush1.msra.mxu0 0.0
        %4413 = vmatprep.subr.mxu0 0.0
        %4414 = vmatpush1.msra.mxu0 0.0
        %4415 = vmatprep.subr.mxu0 0.0
        %4416 = vmatpush1.msra.mxu0 0.0
        %4417 = vmatprep.subr.mxu0 0.0
        %4418 = vmatpush1.msra.mxu0 0.0
        %4419 = vmatprep.subr.mxu0 0.0
        %4420 = vmatpush1.msra.mxu0 0.0
        %4421 = vmatprep.subr.mxu0 0.0
        %4422 = vmatpush1.msra.mxu0 0.0
        %4423 = vmatprep.subr.mxu0 0.0
        %4424 = vmatpush1.msra.mxu0 0.0
        %4425 = vmatprep.subr.mxu0 0.0
        %4426 = vmatpush1.msra.mxu0 0.0
        %4427 = vmatprep.subr.mxu0 0.0
        %4428 = vmatpush1.msra.mxu0 0.0
        %4429 = vmatprep.subr.mxu0 0.0
        %4430 = vmatpush1.msra.mxu0 0.0
        %4431 = vmatprep.subr.mxu0 0.0
        %4432 = vmatpush1.msra.mxu0 0.0
        %4433 = vmatprep.subr.mxu0 0.0
        %4434 = vmatpush1.msra.mxu0 0.0
        %4435 = vmatprep.subr.mxu0 0.0
        %4436 = vmatpush1.msra.mxu0 0.0
        %4437 = vmatprep.subr.mxu0 0.0
        %4438 = vmatpush1.msra.mxu0 0.0
        %4439 = vmatprep.subr.mxu0 0.0
        %4440 = vmatpush1.msra.mxu0 0.0
        %4441 = vmatprep.subr.mxu0 0.0
        %4442 = vmatpush1.msra.mxu0 0.0
        %4443 = vmatprep.subr.mxu0 0.0
        %4444 = vmatpush1.msra.mxu0 0.0
        %4445 = vmatprep.subr.mxu0 0.0
        %4446 = vmatpush1.msra.mxu0 0.0
        %4447 = vmatprep.mubr.f32.mxu0 0.0
        %v4448 = vand.u32 %v4267, 4294901760
        %4449 = vmatmul.mubr.f32.gmra.mrb[0].mxu0 %v4448
        %v4450 = vpop.f32.mrb[0].mxu0
        %v4451 = vadd.f32 %v4348, %v4450
        %v4452 = vpop.f32.mrb[0].mxu0
        %v4453 = vadd.f32 %v4350, %v4452
        %4454 = vmatprep.mubr.f32.mxu0 0.0
        %v4455 = vand.u32 %v4270, 4294901760
        %4456 = vmatmul.mubr.f32.gmra.mrb[0].mxu0 %v4455
        %v4457 = vpop.f32.mrb[0].mxu0
        %v4458 = vadd.f32 %v4359, %v4457
        %v4459 = vpop.f32.mrb[0].mxu0
        %v4460 = vadd.f32 %v4361, %v4459
        %4461 = vdwg.mxu0
        %v4462 = vand.u32 %v329, 4294901760
        %v4463 = vsub.f32 %v329, %v4462
        %4464 = vmatprep.subr.mxu0 %v4463
        %v4465 = vand.u32 %v328, 4294901760
        %v4466 = vsub.f32 %v328, %v4465
        %4467 = vmatpush1.msra.mxu0 %v4466
        %v4468 = vand.u32 %v331, 4294901760
        %v4469 = vsub.f32 %v331, %v4468
        %4470 = vmatprep.subr.mxu0 %v4469
        %v4471 = vand.u32 %v330, 4294901760
        %v4472 = vsub.f32 %v330, %v4471
        %4473 = vmatpush1.msra.mxu0 %v4472
        %4474 = vmatprep.subr.mxu0 0.0
        %4475 = vmatpush1.msra.mxu0 0.0
        %4476 = vmatprep.subr.mxu0 0.0
        %4477 = vmatpush1.msra.mxu0 0.0
        %4478 = vmatprep.subr.mxu0 0.0
        %4479 = vmatpush1.msra.mxu0 0.0
        %4480 = vmatprep.subr.mxu0 0.0
        %4481 = vmatpush1.msra.mxu0 0.0
        %4482 = vmatprep.subr.mxu0 0.0
        %4483 = vmatpush1.msra.mxu0 0.0
        %4484 = vmatprep.subr.mxu0 0.0
        %4485 = vmatpush1.msra.mxu0 0.0
        %4486 = vmatprep.subr.mxu0 0.0
        %4487 = vmatpush1.msra.mxu0 0.0
        %4488 = vmatprep.subr.mxu0 0.0
        %4489 = vmatpush1.msra.mxu0 0.0
        %4490 = vmatprep.subr.mxu0 0.0
        %4491 = vmatpush1.msra.mxu0 0.0
        %4492 = vmatprep.subr.mxu0 0.0
        %4493 = vmatpush1.msra.mxu0 0.0
        %4494 = vmatprep.subr.mxu0 0.0
        %4495 = vmatpush1.msra.mxu0 0.0
        %4496 = vmatprep.subr.mxu0 0.0
        %4497 = vmatpush1.msra.mxu0 0.0
        %4498 = vmatprep.subr.mxu0 0.0
        %4499 = vmatpush1.msra.mxu0 0.0
        %4500 = vmatprep.subr.mxu0 0.0
        %4501 = vmatpush1.msra.mxu0 0.0
        %4502 = vmatprep.subr.mxu0 0.0
        %4503 = vmatpush1.msra.mxu0 0.0
        %4504 = vmatprep.subr.mxu0 0.0
        %4505 = vmatpush1.msra.mxu0 0.0
        %4506 = vmatprep.subr.mxu0 0.0
        %4507 = vmatpush1.msra.mxu0 0.0
        %4508 = vmatprep.subr.mxu0 0.0
        %4509 = vmatpush1.msra.mxu0 0.0
        %4510 = vmatprep.subr.mxu0 0.0
        %4511 = vmatpush1.msra.mxu0 0.0
        %4512 = vmatprep.subr.mxu0 0.0
        %4513 = vmatpush1.msra.mxu0 0.0
        %4514 = vmatprep.subr.mxu0 0.0
        %4515 = vmatpush1.msra.mxu0 0.0
        %4516 = vmatprep.subr.mxu0 0.0
        %4517 = vmatpush1.msra.mxu0 0.0
        %4518 = vmatprep.subr.mxu0 0.0
        %4519 = vmatpush1.msra.mxu0 0.0
        %4520 = vmatprep.subr.mxu0 0.0
        %4521 = vmatpush1.msra.mxu0 0.0
        %4522 = vmatprep.subr.mxu0 0.0
        %4523 = vmatpush1.msra.mxu0 0.0
        %4524 = vmatprep.subr.mxu0 0.0
        %4525 = vmatpush1.msra.mxu0 0.0
        %4526 = vmatprep.subr.mxu0 0.0
        %4527 = vmatpush1.msra.mxu0 0.0
        %4528 = vmatprep.subr.mxu0 0.0
        %4529 = vmatpush1.msra.mxu0 0.0
        %4530 = vmatprep.subr.mxu0 0.0
        %4531 = vmatpush1.msra.mxu0 0.0
        %4532 = vmatprep.subr.mxu0 0.0
        %4533 = vmatpush1.msra.mxu0 0.0
        %4534 = vmatprep.mubr.f32.mxu0 0.0
        %v4535 = vand.u32 %v4267, 4294901760
        %v4536 = vsub.f32 %v4267, %v4535
        %4537 = vmatmul.mubr.f32.gmra.mrb[0].mxu0 %v4536
        %v4538 = vpop.f32.mrb[0].mxu0
        %v4539 = vadd.f32 %v4451, %v4538
        %v4540 = vpop.f32.mrb[0].mxu0
        %v4541 = vadd.f32 %v4453, %v4540
        %4542 = vmatprep.mubr.f32.mxu0 0.0
        %v4543 = vand.u32 %v4270, 4294901760
        %v4544 = vsub.f32 %v4270, %v4543
        %4545 = vmatmul.mubr.f32.gmra.mrb[0].mxu0 %v4544
        %v4546 = vpop.f32.mrb[0].mxu0
        %v4547 = vadd.f32 %v4458, %v4546
        %v4548 = vpop.f32.mrb[0].mxu0
        %v4549 = vadd.f32 %v4460, %v4548
        %4550 = vdwg.mxu0
        %v4551 = vand.u32 %v329, 4294901760
        %4552 = vmatprep.subr.mxu0 %v4551
        %v4553 = vand.u32 %v328, 4294901760
        %4554 = vmatpush1.msra.mxu0 %v4553
        %v4555 = vand.u32 %v331, 4294901760
        %4556 = vmatprep.subr.mxu0 %v4555
        %v4557 = vand.u32 %v330, 4294901760
        %4558 = vmatpush1.msra.mxu0 %v4557
        %4559 = vmatprep.subr.mxu0 0.0
        %4560 = vmatpush1.msra.mxu0 0.0
        %4561 = vmatprep.subr.mxu0 0.0
        %4562 = vmatpush1.msra.mxu0 0.0
        %4563 = vmatprep.subr.mxu0 0.0
        %4564 = vmatpush1.msra.mxu0 0.0
        %4565 = vmatprep.subr.mxu0 0.0
        %4566 = vmatpush1.msra.mxu0 0.0
        %4567 = vmatprep.subr.mxu0 0.0
        %4568 = vmatpush1.msra.mxu0 0.0
        %4569 = vmatprep.subr.mxu0 0.0
        %4570 = vmatpush1.msra.mxu0 0.0
        %4571 = vmatprep.subr.mxu0 0.0
        %4572 = vmatpush1.msra.mxu0 0.0
        %4573 = vmatprep.subr.mxu0 0.0
        %4574 = vmatpush1.msra.mxu0 0.0
        %4575 = vmatprep.subr.mxu0 0.0
        %4576 = vmatpush1.msra.mxu0 0.0
        %4577 = vmatprep.subr.mxu0 0.0
        %4578 = vmatpush1.msra.mxu0 0.0
        %4579 = vmatprep.subr.mxu0 0.0
        %4580 = vmatpush1.msra.mxu0 0.0
        %4581 = vmatprep.subr.mxu0 0.0
        %4582 = vmatpush1.msra.mxu0 0.0
        %4583 = vmatprep.subr.mxu0 0.0
        %4584 = vmatpush1.msra.mxu0 0.0
        %4585 = vmatprep.subr.mxu0 0.0
        %4586 = vmatpush1.msra.mxu0 0.0
        %4587 = vmatprep.subr.mxu0 0.0
        %4588 = vmatpush1.msra.mxu0 0.0
        %4589 = vmatprep.subr.mxu0 0.0
        %4590 = vmatpush1.msra.mxu0 0.0
        %4591 = vmatprep.subr.mxu0 0.0
        %4592 = vmatpush1.msra.mxu0 0.0
        %4593 = vmatprep.subr.mxu0 0.0
        %4594 = vmatpush1.msra.mxu0 0.0
        %4595 = vmatprep.subr.mxu0 0.0
        %4596 = vmatpush1.msra.mxu0 0.0
        %4597 = vmatprep.subr.mxu0 0.0
        %4598 = vmatpush1.msra.mxu0 0.0
        %4599 = vmatprep.subr.mxu0 0.0
        %4600 = vmatpush1.msra.mxu0 0.0
        %4601 = vmatprep.subr.mxu0 0.0
        %4602 = vmatpush1.msra.mxu0 0.0
        %4603 = vmatprep.subr.mxu0 0.0
        %4604 = vmatpush1.msra.mxu0 0.0
        %4605 = vmatprep.subr.mxu0 0.0
        %4606 = vmatpush1.msra.mxu0 0.0
        %4607 = vmatprep.subr.mxu0 0.0
        %4608 = vmatpush1.msra.mxu0 0.0
        %4609 = vmatprep.subr.mxu0 0.0
        %4610 = vmatpush1.msra.mxu0 0.0
        %4611 = vmatprep.subr.mxu0 0.0
        %4612 = vmatpush1.msra.mxu0 0.0
        %4613 = vmatprep.subr.mxu0 0.0
        %4614 = vmatpush1.msra.mxu0 0.0
        %4615 = vmatprep.subr.mxu0 0.0
        %4616 = vmatpush1.msra.mxu0 0.0
        %4617 = vmatprep.subr.mxu0 0.0
        %4618 = vmatpush1.msra.mxu0 0.0
        %4619 = vmatprep.mubr.f32.mxu0 0.0
        %v4620 = vand.u32 %v4267, 4294901760
        %v4621 = vsub.f32 %v4267, %v4620
        %v4622 = vand.u32 %v4621, 4294901760
        %4623 = vmatmul.mubr.f32.gmra.mrb[0].mxu0 %v4622
        %v4624 = vpop.f32.mrb[0].mxu0
        %v4625 = vadd.f32 %v4539, %v4624
        %v4626 = vpop.f32.mrb[0].mxu0
        %v4627 = vadd.f32 %v4541, %v4626
        %4628 = vmatprep.mubr.f32.mxu0 0.0
        %v4629 = vand.u32 %v4270, 4294901760
        %v4630 = vsub.f32 %v4270, %v4629
        %v4631 = vand.u32 %v4630, 4294901760
        %4632 = vmatmul.mubr.f32.gmra.mrb[0].mxu0 %v4631
        %v4633 = vpop.f32.mrb[0].mxu0
        %v4634 = vadd.f32 %v4547, %v4633
        %v4635 = vpop.f32.mrb[0].mxu0
        %v4636 = vadd.f32 %v4549, %v4635
        %4637 = vdwg.mxu0
        %v4638 = vand.u32 %v329, 4294901760
        %v4639 = vsub.f32 %v329, %v4638
        %v4640 = vand.u32 %v4639, 4294901760
        %4641 = vmatprep.subr.mxu0 %v4640
        %v4642 = vand.u32 %v328, 4294901760
        %v4643 = vsub.f32 %v328, %v4642
        %v4644 = vand.u32 %v4643, 4294901760
        %4645 = vmatpush1.msra.mxu0 %v4644
        %v4646 = vand.u32 %v331, 4294901760
        %v4647 = vsub.f32 %v331, %v4646
        %v4648 = vand.u32 %v4647, 4294901760
        %4649 = vmatprep.subr.mxu0 %v4648
        %v4650 = vand.u32 %v330, 4294901760
        %v4651 = vsub.f32 %v330, %v4650
        %v4652 = vand.u32 %v4651, 4294901760
        %4653 = vmatpush1.msra.mxu0 %v4652
        %4654 = vmatprep.subr.mxu0 0.0
        %4655 = vmatpush1.msra.mxu0 0.0
        %4656 = vmatprep.subr.mxu0 0.0
        %4657 = vmatpush1.msra.mxu0 0.0
        %4658 = vmatprep.subr.mxu0 0.0
        %4659 = vmatpush1.msra.mxu0 0.0
        %4660 = vmatprep.subr.mxu0 0.0
        %4661 = vmatpush1.msra.mxu0 0.0
        %4662 = vmatprep.subr.mxu0 0.0
        %4663 = vmatpush1.msra.mxu0 0.0
        %4664 = vmatprep.subr.mxu0 0.0
        %4665 = vmatpush1.msra.mxu0 0.0
        %4666 = vmatprep.subr.mxu0 0.0
        %4667 = vmatpush1.msra.mxu0 0.0
        %4668 = vmatprep.subr.mxu0 0.0
        %4669 = vmatpush1.msra.mxu0 0.0
        %4670 = vmatprep.subr.mxu0 0.0
        %4671 = vmatpush1.msra.mxu0 0.0
        %4672 = vmatprep.subr.mxu0 0.0
        %4673 = vmatpush1.msra.mxu0 0.0
        %4674 = vmatprep.subr.mxu0 0.0
        %4675 = vmatpush1.msra.mxu0 0.0
        %4676 = vmatprep.subr.mxu0 0.0
        %4677 = vmatpush1.msra.mxu0 0.0
        %4678 = vmatprep.subr.mxu0 0.0
        %4679 = vmatpush1.msra.mxu0 0.0
        %4680 = vmatprep.subr.mxu0 0.0
        %4681 = vmatpush1.msra.mxu0 0.0
        %4682 = vmatprep.subr.mxu0 0.0
        %4683 = vmatpush1.msra.mxu0 0.0
        %4684 = vmatprep.subr.mxu0 0.0
        %4685 = vmatpush1.msra.mxu0 0.0
        %4686 = vmatprep.subr.mxu0 0.0
        %4687 = vmatpush1.msra.mxu0 0.0
        %4688 = vmatprep.subr.mxu0 0.0
        %4689 = vmatpush1.msra.mxu0 0.0
        %4690 = vmatprep.subr.mxu0 0.0
        %4691 = vmatpush1.msra.mxu0 0.0
        %4692 = vmatprep.subr.mxu0 0.0
        %4693 = vmatpush1.msra.mxu0 0.0
        %4694 = vmatprep.subr.mxu0 0.0
        %4695 = vmatpush1.msra.mxu0 0.0
        %4696 = vmatprep.subr.mxu0 0.0
        %4697 = vmatpush1.msra.mxu0 0.0
        %4698 = vmatprep.subr.mxu0 0.0
        %4699 = vmatpush1.msra.mxu0 0.0
        %4700 = vmatprep.subr.mxu0 0.0
        %4701 = vmatpush1.msra.mxu0 0.0
        %4702 = vmatprep.subr.mxu0 0.0
        %4703 = vmatpush1.msra.mxu0 0.0
        %4704 = vmatprep.subr.mxu0 0.0
        %4705 = vmatpush1.msra.mxu0 0.0
        %4706 = vmatprep.subr.mxu0 0.0
        %4707 = vmatpush1.msra.mxu0 0.0
        %4708 = vmatprep.subr.mxu0 0.0
        %4709 = vmatpush1.msra.mxu0 0.0
        %4710 = vmatprep.subr.mxu0 0.0
        %4711 = vmatpush1.msra.mxu0 0.0
        %4712 = vmatprep.subr.mxu0 0.0
        %4713 = vmatpush1.msra.mxu0 0.0
        %4714 = vmatprep.mubr.f32.mxu0 0.0
        %v4715 = vand.u32 %v4267, 4294901760
        %4716 = vmatmul.mubr.f32.gmra.mrb[0].mxu0 %v4715
        %v4717 = vpop.f32.mrb[0].mxu0
        %v4718 = vadd.f32 %v4625, %v4717
        %v4719 = vpop.f32.mrb[0].mxu0
        %v4720 = vadd.f32 %v4627, %v4719
        %4721 = vmatprep.mubr.f32.mxu0 0.0
        %v4722 = vand.u32 %v4270, 4294901760
        %4723 = vmatmul.mubr.f32.gmra.mrb[0].mxu0 %v4722
        %v4724 = vpop.f32.mrb[0].mxu0
        %v4725 = vadd.f32 %v4634, %v4724
        %v4726 = vpop.f32.mrb[0].mxu0
        %v4727 = vadd.f32 %v4636, %v4726
        %4728 = vdwg.mxu0
        %v4729 = vand.u32 %v329, 4294901760
        %4730 = vmatprep.subr.mxu0 %v4729
        %v4731 = vand.u32 %v328, 4294901760
        %4732 = vmatpush1.msra.mxu0 %v4731
        %v4733 = vand.u32 %v331, 4294901760
        %4734 = vmatprep.subr.mxu0 %v4733
        %v4735 = vand.u32 %v330, 4294901760
        %4736 = vmatpush1.msra.mxu0 %v4735
        %4737 = vmatprep.subr.mxu0 0.0
        %4738 = vmatpush1.msra.mxu0 0.0
        %4739 = vmatprep.subr.mxu0 0.0
        %4740 = vmatpush1.msra.mxu0 0.0
        %4741 = vmatprep.subr.mxu0 0.0
        %4742 = vmatpush1.msra.mxu0 0.0
        %4743 = vmatprep.subr.mxu0 0.0
        %4744 = vmatpush1.msra.mxu0 0.0
        %4745 = vmatprep.subr.mxu0 0.0
        %4746 = vmatpush1.msra.mxu0 0.0
        %4747 = vmatprep.subr.mxu0 0.0
        %4748 = vmatpush1.msra.mxu0 0.0
        %4749 = vmatprep.subr.mxu0 0.0
        %4750 = vmatpush1.msra.mxu0 0.0
        %4751 = vmatprep.subr.mxu0 0.0
        %4752 = vmatpush1.msra.mxu0 0.0
        %4753 = vmatprep.subr.mxu0 0.0
        %4754 = vmatpush1.msra.mxu0 0.0
        %4755 = vmatprep.subr.mxu0 0.0
        %4756 = vmatpush1.msra.mxu0 0.0
        %4757 = vmatprep.subr.mxu0 0.0
        %4758 = vmatpush1.msra.mxu0 0.0
        %4759 = vmatprep.subr.mxu0 0.0
        %4760 = vmatpush1.msra.mxu0 0.0
        %4761 = vmatprep.subr.mxu0 0.0
        %4762 = vmatpush1.msra.mxu0 0.0
        %4763 = vmatprep.subr.mxu0 0.0
        %4764 = vmatpush1.msra.mxu0 0.0
        %4765 = vmatprep.subr.mxu0 0.0
        %4766 = vmatpush1.msra.mxu0 0.0
        %4767 = vmatprep.subr.mxu0 0.0
        %4768 = vmatpush1.msra.mxu0 0.0
        %4769 = vmatprep.subr.mxu0 0.0
        %4770 = vmatpush1.msra.mxu0 0.0
        %4771 = vmatprep.subr.mxu0 0.0
        %4772 = vmatpush1.msra.mxu0 0.0
        %4773 = vmatprep.subr.mxu0 0.0
        %4774 = vmatpush1.msra.mxu0 0.0
        %4775 = vmatprep.subr.mxu0 0.0
        %4776 = vmatpush1.msra.mxu0 0.0
        %4777 = vmatprep.subr.mxu0 0.0
        %4778 = vmatpush1.msra.mxu0 0.0
        %4779 = vmatprep.subr.mxu0 0.0
        %4780 = vmatpush1.msra.mxu0 0.0
        %4781 = vmatprep.subr.mxu0 0.0
        %4782 = vmatpush1.msra.mxu0 0.0
        %4783 = vmatprep.subr.mxu0 0.0
        %4784 = vmatpush1.msra.mxu0 0.0
        %4785 = vmatprep.subr.mxu0 0.0
        %4786 = vmatpush1.msra.mxu0 0.0
        %4787 = vmatprep.subr.mxu0 0.0
        %4788 = vmatpush1.msra.mxu0 0.0
        %4789 = vmatprep.subr.mxu0 0.0
        %4790 = vmatpush1.msra.mxu0 0.0
        %4791 = vmatprep.subr.mxu0 0.0
        %4792 = vmatpush1.msra.mxu0 0.0
        %4793 = vmatprep.subr.mxu0 0.0
        %4794 = vmatpush1.msra.mxu0 0.0
        %4795 = vmatprep.subr.mxu0 0.0
        %4796 = vmatpush1.msra.mxu0 0.0
        %4797 = vmatprep.mubr.f32.mxu0 0.0
        %v4798 = vand.u32 %v4267, 4294901760
        %4799 = vmatmul.mubr.f32.gmra.mrb[0].mxu0 %v4798
        %v4800 = vpop.f32.mrb[0].mxu0
        %v4801 = vadd.f32 %v4718, %v4800
        %v4802 = vpop.f32.mrb[0].mxu0
        %v4803 = vadd.f32 %v4720, %v4802
        %4804 = vmatprep.mubr.f32.mxu0 0.0
        %v4805 = vand.u32 %v4270, 4294901760
        %4806 = vmatmul.mubr.f32.gmra.mrb[0].mxu0 %v4805
        %v4807 = vpop.f32.mrb[0].mxu0
        %v4808 = vadd.f32 %v4725, %v4807
        %v4809 = vpop.f32.mrb[0].mxu0
        %v4810 = vadd.f32 %v4727, %v4809
        %4811 = vdwg.mxu0
        %s4812 = scalar_lea.vmem [#allocation7], 1024
        %v4813 = vld [vmem:[%s4812] sm:$0xff]
        %v4814 = vld [vmem:[%s4812 + $0x8] sm:$0xff]
        %v4815 = vld [vmem:[%s4812 + $0x10] sm:$0xff]
        %v4816 = vld [vmem:[%s4812 + $0x18] sm:$0xff]
        %v4817 = vld [vmem:[%s4812 + $0x20] sm:$0xff]
        %v4818 = vld [vmem:[%s4812 + $0x28] sm:$0xff]
        %v4819 = vld [vmem:[%s4812 + $0x30] sm:$0xff]
        %v4820 = vld [vmem:[%s4812 + $0x38] sm:$0xff]
        %v4821 = vld [vmem:[%s4812 + $0x40] sm:$0xff]
        %v4822 = vld [vmem:[%s4812 + $0x48] sm:$0xff]
        %v4823 = vld [vmem:[%s4812 + $0x50] sm:$0xff]
        %v4824 = vld [vmem:[%s4812 + $0x58] sm:$0xff]
        %v4825 = vld [vmem:[%s4812 + $0x60] sm:$0xff]
        %v4826 = vld [vmem:[%s4812 + $0x68] sm:$0xff]
        %v4827 = vld [vmem:[%s4812 + $0x70] sm:$0xff]
        %v4828 = vld [vmem:[%s4812 + $0x78] sm:$0xff]
        %v4829 = vld [vmem:[%s4812 + $0x80] sm:$0xff]
        %v4830 = vld [vmem:[%s4812 + $0x88] sm:$0xff]
        %v4831 = vld [vmem:[%s4812 + $0x90] sm:$0xff]
        %v4832 = vld [vmem:[%s4812 + $0x98] sm:$0xff]
        %v4833 = vld [vmem:[%s4812 + $0xa0] sm:$0xff]
        %v4834 = vld [vmem:[%s4812 + $0xa8] sm:$0xff]
        %v4835 = vld [vmem:[%s4812 + $0xb0] sm:$0xff]
        %v4836 = vld [vmem:[%s4812 + $0xb8] sm:$0xff]
        %v4837 = vld [vmem:[%s4812 + $0xc0] sm:$0xff]
        %v4838 = vld [vmem:[%s4812 + $0xc8] sm:$0xff]
        %v4839 = vld [vmem:[%s4812 + $0xd0] sm:$0xff]
        %v4840 = vld [vmem:[%s4812 + $0xd8] sm:$0xff]
        %v4841 = vld [vmem:[%s4812 + $0xe0] sm:$0xff]
        %v4842 = vld [vmem:[%s4812 + $0xe8] sm:$0xff]
        %v4843 = vld [vmem:[%s4812 + $0xf0] sm:$0xff]
        %v4844 = vld [vmem:[%s4812 + $0xf8] sm:$0xff]
        %v4845 = vld [vmem:[%s4812 + $0x100] sm:$0xff]
        %v4846 = vld [vmem:[%s4812 + $0x108] sm:$0xff]
        %v4847 = vld [vmem:[%s4812 + $0x110] sm:$0xff]
        %v4848 = vld [vmem:[%s4812 + $0x118] sm:$0xff]
        %v4849 = vld [vmem:[%s4812 + $0x120] sm:$0xff]
        %v4850 = vld [vmem:[%s4812 + $0x128] sm:$0xff]
        %v4851 = vld [vmem:[%s4812 + $0x130] sm:$0xff]
        %v4852 = vld [vmem:[%s4812 + $0x138] sm:$0xff]
        %v4853 = vld [vmem:[%s4812 + $0x140] sm:$0xff]
        %v4854 = vld [vmem:[%s4812 + $0x148] sm:$0xff]
        %v4855 = vld [vmem:[%s4812 + $0x150] sm:$0xff]
        %v4856 = vld [vmem:[%s4812 + $0x158] sm:$0xff]
        %v4857 = vld [vmem:[%s4812 + $0x160] sm:$0xff]
        %v4858 = vld [vmem:[%s4812 + $0x168] sm:$0xff]
        %v4859 = vld [vmem:[%s4812 + $0x170] sm:$0xff]
        %v4860 = vld [vmem:[%s4812 + $0x178] sm:$0xff]
        %v4861 = vld [vmem:[%s4812 + $0x180] sm:$0xff]
        %v4862 = vld [vmem:[%s4812 + $0x188] sm:$0xff]
        %v4863 = vld [vmem:[%s4812 + $0x190] sm:$0xff]
        %v4864 = vld [vmem:[%s4812 + $0x198] sm:$0xff]
        %v4865 = vld [vmem:[%s4812 + $0x1a0] sm:$0xff]
        %v4866 = vld [vmem:[%s4812 + $0x1a8] sm:$0xff]
        %v4867 = vld [vmem:[%s4812 + $0x1b0] sm:$0xff]
        %v4868 = vld [vmem:[%s4812 + $0x1b8] sm:$0xff]
        %v4869 = vld [vmem:[%s4812 + $0x1c0] sm:$0xff]
        %v4870 = vld [vmem:[%s4812 + $0x1c8] sm:$0xff]
        %v4871 = vld [vmem:[%s4812 + $0x1d0] sm:$0xff]
        %v4872 = vld [vmem:[%s4812 + $0x1d8] sm:$0xff]
        %v4873 = vld [vmem:[%s4812 + $0x1e0] sm:$0xff]
        %v4874 = vld [vmem:[%s4812 + $0x1e8] sm:$0xff]
        %v4875 = vld [vmem:[%s4812 + $0x1f0] sm:$0xff]
        %v4876 = vld [vmem:[%s4812 + $0x1f8] sm:$0xff]
        %v4877 = vand.u32 %v4814, 4294901760
        %4878 = vmatprep.subr.mxu0 %v4877
        %v4879 = vand.u32 %v4813, 4294901760
        %4880 = vmatpush1.msra.mxu0 %v4879
        %v4881 = vand.u32 %v4816, 4294901760
        %4882 = vmatprep.subr.mxu0 %v4881
        %v4883 = vand.u32 %v4815, 4294901760
        %4884 = vmatpush1.msra.mxu0 %v4883
        %v4885 = vand.u32 %v4818, 4294901760
        %4886 = vmatprep.subr.mxu0 %v4885
        %v4887 = vand.u32 %v4817, 4294901760
        %4888 = vmatpush1.msra.mxu0 %v4887
        %v4889 = vand.u32 %v4820, 4294901760
        %4890 = vmatprep.subr.mxu0 %v4889
        %v4891 = vand.u32 %v4819, 4294901760
        %4892 = vmatpush1.msra.mxu0 %v4891
        %v4893 = vand.u32 %v4822, 4294901760
        %4894 = vmatprep.subr.mxu0 %v4893
        %v4895 = vand.u32 %v4821, 4294901760
        %4896 = vmatpush1.msra.mxu0 %v4895
        %v4897 = vand.u32 %v4824, 4294901760
        %4898 = vmatprep.subr.mxu0 %v4897
        %v4899 = vand.u32 %v4823, 4294901760
        %4900 = vmatpush1.msra.mxu0 %v4899
        %v4901 = vand.u32 %v4826, 4294901760
        %4902 = vmatprep.subr.mxu0 %v4901
        %v4903 = vand.u32 %v4825, 4294901760
        %4904 = vmatpush1.msra.mxu0 %v4903
        %v4905 = vand.u32 %v4828, 4294901760
        %4906 = vmatprep.subr.mxu0 %v4905
        %v4907 = vand.u32 %v4827, 4294901760
        %4908 = vmatpush1.msra.mxu0 %v4907
        %v4909 = vand.u32 %v4830, 4294901760
        %4910 = vmatprep.subr.mxu0 %v4909
        %v4911 = vand.u32 %v4829, 4294901760
        %4912 = vmatpush1.msra.mxu0 %v4911
        %v4913 = vand.u32 %v4832, 4294901760
        %4914 = vmatprep.subr.mxu0 %v4913
        %v4915 = vand.u32 %v4831, 4294901760
        %4916 = vmatpush1.msra.mxu0 %v4915
        %v4917 = vand.u32 %v4834, 4294901760
        %4918 = vmatprep.subr.mxu0 %v4917
        %v4919 = vand.u32 %v4833, 4294901760
        %4920 = vmatpush1.msra.mxu0 %v4919
        %v4921 = vand.u32 %v4836, 4294901760
        %4922 = vmatprep.subr.mxu0 %v4921
        %v4923 = vand.u32 %v4835, 4294901760
        %4924 = vmatpush1.msra.mxu0 %v4923
        %v4925 = vand.u32 %v4838, 4294901760
        %4926 = vmatprep.subr.mxu0 %v4925
        %v4927 = vand.u32 %v4837, 4294901760
        %4928 = vmatpush1.msra.mxu0 %v4927
        %v4929 = vand.u32 %v4840, 4294901760
        %4930 = vmatprep.subr.mxu0 %v4929
        %v4931 = vand.u32 %v4839, 4294901760
        %4932 = vmatpush1.msra.mxu0 %v4931
        %v4933 = vand.u32 %v4842, 4294901760
        %4934 = vmatprep.subr.mxu0 %v4933
        %v4935 = vand.u32 %v4841, 4294901760
        %4936 = vmatpush1.msra.mxu0 %v4935
        %v4937 = vand.u32 %v4844, 4294901760
        %4938 = vmatprep.subr.mxu0 %v4937
        %v4939 = vand.u32 %v4843, 4294901760
        %4940 = vmatpush1.msra.mxu0 %v4939
        %v4941 = vand.u32 %v4846, 4294901760
        %4942 = vmatprep.subr.mxu0 %v4941
        %v4943 = vand.u32 %v4845, 4294901760
        %4944 = vmatpush1.msra.mxu0 %v4943
        %v4945 = vand.u32 %v4848, 4294901760
        %4946 = vmatprep.subr.mxu0 %v4945
        %v4947 = vand.u32 %v4847, 4294901760
        %4948 = vmatpush1.msra.mxu0 %v4947
        %v4949 = vand.u32 %v4850, 4294901760
        %4950 = vmatprep.subr.mxu0 %v4949
        %v4951 = vand.u32 %v4849, 4294901760
        %4952 = vmatpush1.msra.mxu0 %v4951
        %v4953 = vand.u32 %v4852, 4294901760
        %4954 = vmatprep.subr.mxu0 %v4953
        %v4955 = vand.u32 %v4851, 4294901760
        %4956 = vmatpush1.msra.mxu0 %v4955
        %v4957 = vand.u32 %v4854, 4294901760
        %4958 = vmatprep.subr.mxu0 %v4957
        %v4959 = vand.u32 %v4853, 4294901760
        %4960 = vmatpush1.msra.mxu0 %v4959
        %v4961 = vand.u32 %v4856, 4294901760
        %4962 = vmatprep.subr.mxu0 %v4961
        %v4963 = vand.u32 %v4855, 4294901760
        %4964 = vmatpush1.msra.mxu0 %v4963
        %v4965 = vand.u32 %v4858, 4294901760
        %4966 = vmatprep.subr.mxu0 %v4965
        %v4967 = vand.u32 %v4857, 4294901760
        %4968 = vmatpush1.msra.mxu0 %v4967
        %v4969 = vand.u32 %v4860, 4294901760
        %4970 = vmatprep.subr.mxu0 %v4969
        %v4971 = vand.u32 %v4859, 4294901760
        %4972 = vmatpush1.msra.mxu0 %v4971
        %v4973 = vand.u32 %v4862, 4294901760
        %4974 = vmatprep.subr.mxu0 %v4973
        %v4975 = vand.u32 %v4861, 4294901760
        %4976 = vmatpush1.msra.mxu0 %v4975
        %v4977 = vand.u32 %v4864, 4294901760
        %4978 = vmatprep.subr.mxu0 %v4977
        %v4979 = vand.u32 %v4863, 4294901760
        %4980 = vmatpush1.msra.mxu0 %v4979
        %v4981 = vand.u32 %v4866, 4294901760
        %4982 = vmatprep.subr.mxu0 %v4981
        %v4983 = vand.u32 %v4865, 4294901760
        %4984 = vmatpush1.msra.mxu0 %v4983
        %v4985 = vand.u32 %v4868, 4294901760
        %4986 = vmatprep.subr.mxu0 %v4985
        %v4987 = vand.u32 %v4867, 4294901760
        %4988 = vmatpush1.msra.mxu0 %v4987
        %v4989 = vand.u32 %v4870, 4294901760
        %4990 = vmatprep.subr.mxu0 %v4989
        %v4991 = vand.u32 %v4869, 4294901760
        %4992 = vmatpush1.msra.mxu0 %v4991
        %v4993 = vand.u32 %v4872, 4294901760
        %4994 = vmatprep.subr.mxu0 %v4993
        %v4995 = vand.u32 %v4871, 4294901760
        %4996 = vmatpush1.msra.mxu0 %v4995
        %v4997 = vand.u32 %v4874, 4294901760
        %4998 = vmatprep.subr.mxu0 %v4997
        %v4999 = vand.u32 %v4873, 4294901760
        %5000 = vmatpush1.msra.mxu0 %v4999
        %v5001 = vand.u32 %v4876, 4294901760
        %5002 = vmatprep.subr.mxu0 %v5001
        %v5003 = vand.u32 %v4875, 4294901760
        %5004 = vmatpush1.msra.mxu0 %v5003
        %v5005 = vand.u32 %v4803, 4294901760
        %v5006 = vsub.f32 %v4803, %v5005
        %v5007 = vand.u32 %v5006, 4294901760
        %v5008 = vsub.f32 %v5006, %v5007
        %v5009 = vand.u32 %v5008, 4294901760
        %5010 = vmatprep.mubr.f32.mxu0 %v5009
        %v5011 = vand.u32 %v4801, 4294901760
        %v5012 = vsub.f32 %v4801, %v5011
        %v5013 = vand.u32 %v5012, 4294901760
        %v5014 = vsub.f32 %v5012, %v5013
        %v5015 = vand.u32 %v5014, 4294901760
        %5016 = vmatmul.mubr.f32.gmra.mrb[0].mxu0 %v5015
        %v5017 = vpop.f32.mrb[0].mxu0
        %v5018 = vadd.f32 0.0, %v5017
        %v5019 = vpop.f32.mrb[0].mxu0
        %v5020 = vadd.f32 0.0, %v5019
        %v5021 = vand.u32 %v4810, 4294901760
        %v5022 = vsub.f32 %v4810, %v5021
        %v5023 = vand.u32 %v5022, 4294901760
        %v5024 = vsub.f32 %v5022, %v5023
        %v5025 = vand.u32 %v5024, 4294901760
        %5026 = vmatprep.mubr.f32.mxu0 %v5025
        %v5027 = vand.u32 %v4808, 4294901760
        %v5028 = vsub.f32 %v4808, %v5027
        %v5029 = vand.u32 %v5028, 4294901760
        %v5030 = vsub.f32 %v5028, %v5029
        %v5031 = vand.u32 %v5030, 4294901760
        %5032 = vmatmul.mubr.f32.gmra.mrb[0].mxu0 %v5031
        %v5033 = vpop.f32.mrb[0].mxu0
        %v5034 = vadd.f32 0.0, %v5033
        %v5035 = vpop.f32.mrb[0].mxu0
        %v5036 = vadd.f32 0.0, %v5035
        %5037 = vdwg.mxu0
        %v5038 = vand.u32 %v4814, 4294901760
        %v5039 = vsub.f32 %v4814, %v5038
        %v5040 = vand.u32 %v5039, 4294901760
        %v5041 = vsub.f32 %v5039, %v5040
        %v5042 = vand.u32 %v5041, 4294901760
        %5043 = vmatprep.subr.mxu0 %v5042
        %v5044 = vand.u32 %v4813, 4294901760
        %v5045 = vsub.f32 %v4813, %v5044
        %v5046 = vand.u32 %v5045, 4294901760
        %v5047 = vsub.f32 %v5045, %v5046
        %v5048 = vand.u32 %v5047, 4294901760
        %5049 = vmatpush1.msra.mxu0 %v5048
        %v5050 = vand.u32 %v4816, 4294901760
        %v5051 = vsub.f32 %v4816, %v5050
        %v5052 = vand.u32 %v5051, 4294901760
        %v5053 = vsub.f32 %v5051, %v5052
        %v5054 = vand.u32 %v5053, 4294901760
        %5055 = vmatprep.subr.mxu0 %v5054
        %v5056 = vand.u32 %v4815, 4294901760
        %v5057 = vsub.f32 %v4815, %v5056
        %v5058 = vand.u32 %v5057, 4294901760
        %v5059 = vsub.f32 %v5057, %v5058
        %v5060 = vand.u32 %v5059, 4294901760
        %5061 = vmatpush1.msra.mxu0 %v5060
        %v5062 = vand.u32 %v4818, 4294901760
        %v5063 = vsub.f32 %v4818, %v5062
        %v5064 = vand.u32 %v5063, 4294901760
        %v5065 = vsub.f32 %v5063, %v5064
        %v5066 = vand.u32 %v5065, 4294901760
        %5067 = vmatprep.subr.mxu0 %v5066
        %v5068 = vand.u32 %v4817, 4294901760
        %v5069 = vsub.f32 %v4817, %v5068
        %v5070 = vand.u32 %v5069, 4294901760
        %v5071 = vsub.f32 %v5069, %v5070
        %v5072 = vand.u32 %v5071, 4294901760
        %5073 = vmatpush1.msra.mxu0 %v5072
        %v5074 = vand.u32 %v4820, 4294901760
        %v5075 = vsub.f32 %v4820, %v5074
        %v5076 = vand.u32 %v5075, 4294901760
        %v5077 = vsub.f32 %v5075, %v5076
        %v5078 = vand.u32 %v5077, 4294901760
        %5079 = vmatprep.subr.mxu0 %v5078
        %v5080 = vand.u32 %v4819, 4294901760
        %v5081 = vsub.f32 %v4819, %v5080
        %v5082 = vand.u32 %v5081, 4294901760
        %v5083 = vsub.f32 %v5081, %v5082
        %v5084 = vand.u32 %v5083, 4294901760
        %5085 = vmatpush1.msra.mxu0 %v5084
        %v5086 = vand.u32 %v4822, 4294901760
        %v5087 = vsub.f32 %v4822, %v5086
        %v5088 = vand.u32 %v5087, 4294901760
        %v5089 = vsub.f32 %v5087, %v5088
        %v5090 = vand.u32 %v5089, 4294901760
        %5091 = vmatprep.subr.mxu0 %v5090
        %v5092 = vand.u32 %v4821, 4294901760
        %v5093 = vsub.f32 %v4821, %v5092
        %v5094 = vand.u32 %v5093, 4294901760
        %v5095 = vsub.f32 %v5093, %v5094
        %v5096 = vand.u32 %v5095, 4294901760
        %5097 = vmatpush1.msra.mxu0 %v5096
        %v5098 = vand.u32 %v4824, 4294901760
        %v5099 = vsub.f32 %v4824, %v5098
        %v5100 = vand.u32 %v5099, 4294901760
        %v5101 = vsub.f32 %v5099, %v5100
        %v5102 = vand.u32 %v5101, 4294901760
        %5103 = vmatprep.subr.mxu0 %v5102
        %v5104 = vand.u32 %v4823, 4294901760
        %v5105 = vsub.f32 %v4823, %v5104
        %v5106 = vand.u32 %v5105, 4294901760
        %v5107 = vsub.f32 %v5105, %v5106
        %v5108 = vand.u32 %v5107, 4294901760
        %5109 = vmatpush1.msra.mxu0 %v5108
        %v5110 = vand.u32 %v4826, 4294901760
        %v5111 = vsub.f32 %v4826, %v5110
        %v5112 = vand.u32 %v5111, 4294901760
        %v5113 = vsub.f32 %v5111, %v5112
        %v5114 = vand.u32 %v5113, 4294901760
        %5115 = vmatprep.subr.mxu0 %v5114
        %v5116 = vand.u32 %v4825, 4294901760
        %v5117 = vsub.f32 %v4825, %v5116
        %v5118 = vand.u32 %v5117, 4294901760
        %v5119 = vsub.f32 %v5117, %v5118
        %v5120 = vand.u32 %v5119, 4294901760
        %5121 = vmatpush1.msra.mxu0 %v5120
        %v5122 = vand.u32 %v4828, 4294901760
        %v5123 = vsub.f32 %v4828, %v5122
        %v5124 = vand.u32 %v5123, 4294901760
        %v5125 = vsub.f32 %v5123, %v5124
        %v5126 = vand.u32 %v5125, 4294901760
        %5127 = vmatprep.subr.mxu0 %v5126
        %v5128 = vand.u32 %v4827, 4294901760
        %v5129 = vsub.f32 %v4827, %v5128
        %v5130 = vand.u32 %v5129, 4294901760
        %v5131 = vsub.f32 %v5129, %v5130
        %v5132 = vand.u32 %v5131, 4294901760
        %5133 = vmatpush1.msra.mxu0 %v5132
        %v5134 = vand.u32 %v4830, 4294901760
        %v5135 = vsub.f32 %v4830, %v5134
        %v5136 = vand.u32 %v5135, 4294901760
        %v5137 = vsub.f32 %v5135, %v5136
        %v5138 = vand.u32 %v5137, 4294901760
        %5139 = vmatprep.subr.mxu0 %v5138
        %v5140 = vand.u32 %v4829, 4294901760
        %v5141 = vsub.f32 %v4829, %v5140
        %v5142 = vand.u32 %v5141, 4294901760
        %v5143 = vsub.f32 %v5141, %v5142
        %v5144 = vand.u32 %v5143, 4294901760
        %5145 = vmatpush1.msra.mxu0 %v5144
        %v5146 = vand.u32 %v4832, 4294901760
        %v5147 = vsub.f32 %v4832, %v5146
        %v5148 = vand.u32 %v5147, 4294901760
        %v5149 = vsub.f32 %v5147, %v5148
        %v5150 = vand.u32 %v5149, 4294901760
        %5151 = vmatprep.subr.mxu0 %v5150
        %v5152 = vand.u32 %v4831, 4294901760
        %v5153 = vsub.f32 %v4831, %v5152
        %v5154 = vand.u32 %v5153, 4294901760
        %v5155 = vsub.f32 %v5153, %v5154
        %v5156 = vand.u32 %v5155, 4294901760
        %5157 = vmatpush1.msra.mxu0 %v5156
        %v5158 = vand.u32 %v4834, 4294901760
        %v5159 = vsub.f32 %v4834, %v5158
        %v5160 = vand.u32 %v5159, 4294901760
        %v5161 = vsub.f32 %v5159, %v5160
        %v5162 = vand.u32 %v5161, 4294901760
        %5163 = vmatprep.subr.mxu0 %v5162
        %v5164 = vand.u32 %v4833, 4294901760
        %v5165 = vsub.f32 %v4833, %v5164
        %v5166 = vand.u32 %v5165, 4294901760
        %v5167 = vsub.f32 %v5165, %v5166
        %v5168 = vand.u32 %v5167, 4294901760
        %5169 = vmatpush1.msra.mxu0 %v5168
        %v5170 = vand.u32 %v4836, 4294901760
        %v5171 = vsub.f32 %v4836, %v5170
        %v5172 = vand.u32 %v5171, 4294901760
        %v5173 = vsub.f32 %v5171, %v5172
        %v5174 = vand.u32 %v5173, 4294901760
        %5175 = vmatprep.subr.mxu0 %v5174
        %v5176 = vand.u32 %v4835, 4294901760
        %v5177 = vsub.f32 %v4835, %v5176
        %v5178 = vand.u32 %v5177, 4294901760
        %v5179 = vsub.f32 %v5177, %v5178
        %v5180 = vand.u32 %v5179, 4294901760
        %5181 = vmatpush1.msra.mxu0 %v5180
        %v5182 = vand.u32 %v4838, 4294901760
        %v5183 = vsub.f32 %v4838, %v5182
        %v5184 = vand.u32 %v5183, 4294901760
        %v5185 = vsub.f32 %v5183, %v5184
        %v5186 = vand.u32 %v5185, 4294901760
        %5187 = vmatprep.subr.mxu0 %v5186
        %v5188 = vand.u32 %v4837, 4294901760
        %v5189 = vsub.f32 %v4837, %v5188
        %v5190 = vand.u32 %v5189, 4294901760
        %v5191 = vsub.f32 %v5189, %v5190
        %v5192 = vand.u32 %v5191, 4294901760
        %5193 = vmatpush1.msra.mxu0 %v5192
        %v5194 = vand.u32 %v4840, 4294901760
        %v5195 = vsub.f32 %v4840, %v5194
        %v5196 = vand.u32 %v5195, 4294901760
        %v5197 = vsub.f32 %v5195, %v5196
        %v5198 = vand.u32 %v5197, 4294901760
        %5199 = vmatprep.subr.mxu0 %v5198
        %v5200 = vand.u32 %v4839, 4294901760
        %v5201 = vsub.f32 %v4839, %v5200
        %v5202 = vand.u32 %v5201, 4294901760
        %v5203 = vsub.f32 %v5201, %v5202
        %v5204 = vand.u32 %v5203, 4294901760
        %5205 = vmatpush1.msra.mxu0 %v5204
        %v5206 = vand.u32 %v4842, 4294901760
        %v5207 = vsub.f32 %v4842, %v5206
        %v5208 = vand.u32 %v5207, 4294901760
        %v5209 = vsub.f32 %v5207, %v5208
        %v5210 = vand.u32 %v5209, 4294901760
        %5211 = vmatprep.subr.mxu0 %v5210
        %v5212 = vand.u32 %v4841, 4294901760
        %v5213 = vsub.f32 %v4841, %v5212
        %v5214 = vand.u32 %v5213, 4294901760
        %v5215 = vsub.f32 %v5213, %v5214
        %v5216 = vand.u32 %v5215, 4294901760
        %5217 = vmatpush1.msra.mxu0 %v5216
        %v5218 = vand.u32 %v4844, 4294901760
        %v5219 = vsub.f32 %v4844, %v5218
        %v5220 = vand.u32 %v5219, 4294901760
        %v5221 = vsub.f32 %v5219, %v5220
        %v5222 = vand.u32 %v5221, 4294901760
        %5223 = vmatprep.subr.mxu0 %v5222
        %v5224 = vand.u32 %v4843, 4294901760
        %v5225 = vsub.f32 %v4843, %v5224
        %v5226 = vand.u32 %v5225, 4294901760
        %v5227 = vsub.f32 %v5225, %v5226
        %v5228 = vand.u32 %v5227, 4294901760
        %5229 = vmatpush1.msra.mxu0 %v5228
        %v5230 = vand.u32 %v4846, 4294901760
        %v5231 = vsub.f32 %v4846, %v5230
        %v5232 = vand.u32 %v5231, 4294901760
        %v5233 = vsub.f32 %v5231, %v5232
        %v5234 = vand.u32 %v5233, 4294901760
        %5235 = vmatprep.subr.mxu0 %v5234
        %v5236 = vand.u32 %v4845, 4294901760
        %v5237 = vsub.f32 %v4845, %v5236
        %v5238 = vand.u32 %v5237, 4294901760
        %v5239 = vsub.f32 %v5237, %v5238
        %v5240 = vand.u32 %v5239, 4294901760
        %5241 = vmatpush1.msra.mxu0 %v5240
        %v5242 = vand.u32 %v4848, 4294901760
        %v5243 = vsub.f32 %v4848, %v5242
        %v5244 = vand.u32 %v5243, 4294901760
        %v5245 = vsub.f32 %v5243, %v5244
        %v5246 = vand.u32 %v5245, 4294901760
        %5247 = vmatprep.subr.mxu0 %v5246
        %v5248 = vand.u32 %v4847, 4294901760
        %v5249 = vsub.f32 %v4847, %v5248
        %v5250 = vand.u32 %v5249, 4294901760
        %v5251 = vsub.f32 %v5249, %v5250
        %v5252 = vand.u32 %v5251, 4294901760
        %5253 = vmatpush1.msra.mxu0 %v5252
        %v5254 = vand.u32 %v4850, 4294901760
        %v5255 = vsub.f32 %v4850, %v5254
        %v5256 = vand.u32 %v5255, 4294901760
        %v5257 = vsub.f32 %v5255, %v5256
        %v5258 = vand.u32 %v5257, 4294901760
        %5259 = vmatprep.subr.mxu0 %v5258
        %v5260 = vand.u32 %v4849, 4294901760
        %v5261 = vsub.f32 %v4849, %v5260
        %v5262 = vand.u32 %v5261, 4294901760
        %v5263 = vsub.f32 %v5261, %v5262
        %v5264 = vand.u32 %v5263, 4294901760
        %5265 = vmatpush1.msra.mxu0 %v5264
        %v5266 = vand.u32 %v4852, 4294901760
        %v5267 = vsub.f32 %v4852, %v5266
        %v5268 = vand.u32 %v5267, 4294901760
        %v5269 = vsub.f32 %v5267, %v5268
        %v5270 = vand.u32 %v5269, 4294901760
        %5271 = vmatprep.subr.mxu0 %v5270
        %v5272 = vand.u32 %v4851, 4294901760
        %v5273 = vsub.f32 %v4851, %v5272
        %v5274 = vand.u32 %v5273, 4294901760
        %v5275 = vsub.f32 %v5273, %v5274
        %v5276 = vand.u32 %v5275, 4294901760
        %5277 = vmatpush1.msra.mxu0 %v5276
        %v5278 = vand.u32 %v4854, 4294901760
        %v5279 = vsub.f32 %v4854, %v5278
        %v5280 = vand.u32 %v5279, 4294901760
        %v5281 = vsub.f32 %v5279, %v5280
        %v5282 = vand.u32 %v5281, 4294901760
        %5283 = vmatprep.subr.mxu0 %v5282
        %v5284 = vand.u32 %v4853, 4294901760
        %v5285 = vsub.f32 %v4853, %v5284
        %v5286 = vand.u32 %v5285, 4294901760
        %v5287 = vsub.f32 %v5285, %v5286
        %v5288 = vand.u32 %v5287, 4294901760
        %5289 = vmatpush1.msra.mxu0 %v5288
        %v5290 = vand.u32 %v4856, 4294901760
        %v5291 = vsub.f32 %v4856, %v5290
        %v5292 = vand.u32 %v5291, 4294901760
        %v5293 = vsub.f32 %v5291, %v5292
        %v5294 = vand.u32 %v5293, 4294901760
        %5295 = vmatprep.subr.mxu0 %v5294
        %v5296 = vand.u32 %v4855, 4294901760
        %v5297 = vsub.f32 %v4855, %v5296
        %v5298 = vand.u32 %v5297, 4294901760
        %v5299 = vsub.f32 %v5297, %v5298
        %v5300 = vand.u32 %v5299, 4294901760
        %5301 = vmatpush1.msra.mxu0 %v5300
        %v5302 = vand.u32 %v4858, 4294901760
        %v5303 = vsub.f32 %v4858, %v5302
        %v5304 = vand.u32 %v5303, 4294901760
        %v5305 = vsub.f32 %v5303, %v5304
        %v5306 = vand.u32 %v5305, 4294901760
        %5307 = vmatprep.subr.mxu0 %v5306
        %v5308 = vand.u32 %v4857, 4294901760
        %v5309 = vsub.f32 %v4857, %v5308
        %v5310 = vand.u32 %v5309, 4294901760
        %v5311 = vsub.f32 %v5309, %v5310
        %v5312 = vand.u32 %v5311, 4294901760
        %5313 = vmatpush1.msra.mxu0 %v5312
        %v5314 = vand.u32 %v4860, 4294901760
        %v5315 = vsub.f32 %v4860, %v5314
        %v5316 = vand.u32 %v5315, 4294901760
        %v5317 = vsub.f32 %v5315, %v5316
        %v5318 = vand.u32 %v5317, 4294901760
        %5319 = vmatprep.subr.mxu0 %v5318
        %v5320 = vand.u32 %v4859, 4294901760
        %v5321 = vsub.f32 %v4859, %v5320
        %v5322 = vand.u32 %v5321, 4294901760
        %v5323 = vsub.f32 %v5321, %v5322
        %v5324 = vand.u32 %v5323, 4294901760
        %5325 = vmatpush1.msra.mxu0 %v5324
        %v5326 = vand.u32 %v4862, 4294901760
        %v5327 = vsub.f32 %v4862, %v5326
        %v5328 = vand.u32 %v5327, 4294901760
        %v5329 = vsub.f32 %v5327, %v5328
        %v5330 = vand.u32 %v5329, 4294901760
        %5331 = vmatprep.subr.mxu0 %v5330
        %v5332 = vand.u32 %v4861, 4294901760
        %v5333 = vsub.f32 %v4861, %v5332
        %v5334 = vand.u32 %v5333, 4294901760
        %v5335 = vsub.f32 %v5333, %v5334
        %v5336 = vand.u32 %v5335, 4294901760
        %5337 = vmatpush1.msra.mxu0 %v5336
        %v5338 = vand.u32 %v4864, 4294901760
        %v5339 = vsub.f32 %v4864, %v5338
        %v5340 = vand.u32 %v5339, 4294901760
        %v5341 = vsub.f32 %v5339, %v5340
        %v5342 = vand.u32 %v5341, 4294901760
        %5343 = vmatprep.subr.mxu0 %v5342
        %v5344 = vand.u32 %v4863, 4294901760
        %v5345 = vsub.f32 %v4863, %v5344
        %v5346 = vand.u32 %v5345, 4294901760
        %v5347 = vsub.f32 %v5345, %v5346
        %v5348 = vand.u32 %v5347, 4294901760
        %5349 = vmatpush1.msra.mxu0 %v5348
        %v5350 = vand.u32 %v4866, 4294901760
        %v5351 = vsub.f32 %v4866, %v5350
        %v5352 = vand.u32 %v5351, 4294901760
        %v5353 = vsub.f32 %v5351, %v5352
        %v5354 = vand.u32 %v5353, 4294901760
        %5355 = vmatprep.subr.mxu0 %v5354
        %v5356 = vand.u32 %v4865, 4294901760
        %v5357 = vsub.f32 %v4865, %v5356
        %v5358 = vand.u32 %v5357, 4294901760
        %v5359 = vsub.f32 %v5357, %v5358
        %v5360 = vand.u32 %v5359, 4294901760
        %5361 = vmatpush1.msra.mxu0 %v5360
        %v5362 = vand.u32 %v4868, 4294901760
        %v5363 = vsub.f32 %v4868, %v5362
        %v5364 = vand.u32 %v5363, 4294901760
        %v5365 = vsub.f32 %v5363, %v5364
        %v5366 = vand.u32 %v5365, 4294901760
        %5367 = vmatprep.subr.mxu0 %v5366
        %v5368 = vand.u32 %v4867, 4294901760
        %v5369 = vsub.f32 %v4867, %v5368
        %v5370 = vand.u32 %v5369, 4294901760
        %v5371 = vsub.f32 %v5369, %v5370
        %v5372 = vand.u32 %v5371, 4294901760
        %5373 = vmatpush1.msra.mxu0 %v5372
        %v5374 = vand.u32 %v4870, 4294901760
        %v5375 = vsub.f32 %v4870, %v5374
        %v5376 = vand.u32 %v5375, 4294901760
        %v5377 = vsub.f32 %v5375, %v5376
        %v5378 = vand.u32 %v5377, 4294901760
        %5379 = vmatprep.subr.mxu0 %v5378
        %v5380 = vand.u32 %v4869, 4294901760
        %v5381 = vsub.f32 %v4869, %v5380
        %v5382 = vand.u32 %v5381, 4294901760
        %v5383 = vsub.f32 %v5381, %v5382
        %v5384 = vand.u32 %v5383, 4294901760
        %5385 = vmatpush1.msra.mxu0 %v5384
        %v5386 = vand.u32 %v4872, 4294901760
        %v5387 = vsub.f32 %v4872, %v5386
        %v5388 = vand.u32 %v5387, 4294901760
        %v5389 = vsub.f32 %v5387, %v5388
        %v5390 = vand.u32 %v5389, 4294901760
        %5391 = vmatprep.subr.mxu0 %v5390
        %v5392 = vand.u32 %v4871, 4294901760
        %v5393 = vsub.f32 %v4871, %v5392
        %v5394 = vand.u32 %v5393, 4294901760
        %v5395 = vsub.f32 %v5393, %v5394
        %v5396 = vand.u32 %v5395, 4294901760
        %5397 = vmatpush1.msra.mxu0 %v5396
        %v5398 = vand.u32 %v4874, 4294901760
        %v5399 = vsub.f32 %v4874, %v5398
        %v5400 = vand.u32 %v5399, 4294901760
        %v5401 = vsub.f32 %v5399, %v5400
        %v5402 = vand.u32 %v5401, 4294901760
        %5403 = vmatprep.subr.mxu0 %v5402
        %v5404 = vand.u32 %v4873, 4294901760
        %v5405 = vsub.f32 %v4873, %v5404
        %v5406 = vand.u32 %v5405, 4294901760
        %v5407 = vsub.f32 %v5405, %v5406
        %v5408 = vand.u32 %v5407, 4294901760
        %5409 = vmatpush1.msra.mxu0 %v5408
        %v5410 = vand.u32 %v4876, 4294901760
        %v5411 = vsub.f32 %v4876, %v5410
        %v5412 = vand.u32 %v5411, 4294901760
        %v5413 = vsub.f32 %v5411, %v5412
        %v5414 = vand.u32 %v5413, 4294901760
        %5415 = vmatprep.subr.mxu0 %v5414
        %v5416 = vand.u32 %v4875, 4294901760
        %v5417 = vsub.f32 %v4875, %v5416
        %v5418 = vand.u32 %v5417, 4294901760
        %v5419 = vsub.f32 %v5417, %v5418
        %v5420 = vand.u32 %v5419, 4294901760
        %5421 = vmatpush1.msra.mxu0 %v5420
        %v5422 = vand.u32 %v4803, 4294901760
        %5423 = vmatprep.mubr.f32.mxu0 %v5422
        %v5424 = vand.u32 %v4801, 4294901760
        %5425 = vmatmul.mubr.f32.gmra.mrb[0].mxu0 %v5424
        %v5426 = vpop.f32.mrb[0].mxu0
        %v5427 = vadd.f32 %v5018, %v5426
        %v5428 = vpop.f32.mrb[0].mxu0
        %v5429 = vadd.f32 %v5020, %v5428
        %v5430 = vand.u32 %v4810, 4294901760
        %5431 = vmatprep.mubr.f32.mxu0 %v5430
        %v5432 = vand.u32 %v4808, 4294901760
        %5433 = vmatmul.mubr.f32.gmra.mrb[0].mxu0 %v5432
        %v5434 = vpop.f32.mrb[0].mxu0
        %v5435 = vadd.f32 %v5034, %v5434
        %v5436 = vpop.f32.mrb[0].mxu0
        %v5437 = vadd.f32 %v5036, %v5436
        %5438 = vdwg.mxu0
        %v5439 = vand.u32 %v4814, 4294901760
        %v5440 = vsub.f32 %v4814, %v5439
        %5441 = vmatprep.subr.mxu0 %v5440
        %v5442 = vand.u32 %v4813, 4294901760
        %v5443 = vsub.f32 %v4813, %v5442
        %5444 = vmatpush1.msra.mxu0 %v5443
        %v5445 = vand.u32 %v4816, 4294901760
        %v5446 = vsub.f32 %v4816, %v5445
        %5447 = vmatprep.subr.mxu0 %v5446
        %v5448 = vand.u32 %v4815, 4294901760
        %v5449 = vsub.f32 %v4815, %v5448
        %5450 = vmatpush1.msra.mxu0 %v5449
        %v5451 = vand.u32 %v4818, 4294901760
        %v5452 = vsub.f32 %v4818, %v5451
        %5453 = vmatprep.subr.mxu0 %v5452
        %v5454 = vand.u32 %v4817, 4294901760
        %v5455 = vsub.f32 %v4817, %v5454
        %5456 = vmatpush1.msra.mxu0 %v5455
        %v5457 = vand.u32 %v4820, 4294901760
        %v5458 = vsub.f32 %v4820, %v5457
        %5459 = vmatprep.subr.mxu0 %v5458
        %v5460 = vand.u32 %v4819, 4294901760
        %v5461 = vsub.f32 %v4819, %v5460
        %5462 = vmatpush1.msra.mxu0 %v5461
        %v5463 = vand.u32 %v4822, 4294901760
        %v5464 = vsub.f32 %v4822, %v5463
        %5465 = vmatprep.subr.mxu0 %v5464
        %v5466 = vand.u32 %v4821, 4294901760
        %v5467 = vsub.f32 %v4821, %v5466
        %5468 = vmatpush1.msra.mxu0 %v5467
        %v5469 = vand.u32 %v4824, 4294901760
        %v5470 = vsub.f32 %v4824, %v5469
        %5471 = vmatprep.subr.mxu0 %v5470
        %v5472 = vand.u32 %v4823, 4294901760
        %v5473 = vsub.f32 %v4823, %v5472
        %5474 = vmatpush1.msra.mxu0 %v5473
        %v5475 = vand.u32 %v4826, 4294901760
        %v5476 = vsub.f32 %v4826, %v5475
        %5477 = vmatprep.subr.mxu0 %v5476
        %v5478 = vand.u32 %v4825, 4294901760
        %v5479 = vsub.f32 %v4825, %v5478
        %5480 = vmatpush1.msra.mxu0 %v5479
        %v5481 = vand.u32 %v4828, 4294901760
        %v5482 = vsub.f32 %v4828, %v5481
        %5483 = vmatprep.subr.mxu0 %v5482
        %v5484 = vand.u32 %v4827, 4294901760
        %v5485 = vsub.f32 %v4827, %v5484
        %5486 = vmatpush1.msra.mxu0 %v5485
        %v5487 = vand.u32 %v4830, 4294901760
        %v5488 = vsub.f32 %v4830, %v5487
        %5489 = vmatprep.subr.mxu0 %v5488
        %v5490 = vand.u32 %v4829, 4294901760
        %v5491 = vsub.f32 %v4829, %v5490
        %5492 = vmatpush1.msra.mxu0 %v5491
        %v5493 = vand.u32 %v4832, 4294901760
        %v5494 = vsub.f32 %v4832, %v5493
        %5495 = vmatprep.subr.mxu0 %v5494
        %v5496 = vand.u32 %v4831, 4294901760
        %v5497 = vsub.f32 %v4831, %v5496
        %5498 = vmatpush1.msra.mxu0 %v5497
        %v5499 = vand.u32 %v4834, 4294901760
        %v5500 = vsub.f32 %v4834, %v5499
        %5501 = vmatprep.subr.mxu0 %v5500
        %v5502 = vand.u32 %v4833, 4294901760
        %v5503 = vsub.f32 %v4833, %v5502
        %5504 = vmatpush1.msra.mxu0 %v5503
        %v5505 = vand.u32 %v4836, 4294901760
        %v5506 = vsub.f32 %v4836, %v5505
        %5507 = vmatprep.subr.mxu0 %v5506
        %v5508 = vand.u32 %v4835, 4294901760
        %v5509 = vsub.f32 %v4835, %v5508
        %5510 = vmatpush1.msra.mxu0 %v5509
        %v5511 = vand.u32 %v4838, 4294901760
        %v5512 = vsub.f32 %v4838, %v5511
        %5513 = vmatprep.subr.mxu0 %v5512
        %v5514 = vand.u32 %v4837, 4294901760
        %v5515 = vsub.f32 %v4837, %v5514
        %5516 = vmatpush1.msra.mxu0 %v5515
        %v5517 = vand.u32 %v4840, 4294901760
        %v5518 = vsub.f32 %v4840, %v5517
        %5519 = vmatprep.subr.mxu0 %v5518
        %v5520 = vand.u32 %v4839, 4294901760
        %v5521 = vsub.f32 %v4839, %v5520
        %5522 = vmatpush1.msra.mxu0 %v5521
        %v5523 = vand.u32 %v4842, 4294901760
        %v5524 = vsub.f32 %v4842, %v5523
        %5525 = vmatprep.subr.mxu0 %v5524
        %v5526 = vand.u32 %v4841, 4294901760
        %v5527 = vsub.f32 %v4841, %v5526
        %5528 = vmatpush1.msra.mxu0 %v5527
        %v5529 = vand.u32 %v4844, 4294901760
        %v5530 = vsub.f32 %v4844, %v5529
        %5531 = vmatprep.subr.mxu0 %v5530
        %v5532 = vand.u32 %v4843, 4294901760
        %v5533 = vsub.f32 %v4843, %v5532
        %5534 = vmatpush1.msra.mxu0 %v5533
        %v5535 = vand.u32 %v4846, 4294901760
        %v5536 = vsub.f32 %v4846, %v5535
        %5537 = vmatprep.subr.mxu0 %v5536
        %v5538 = vand.u32 %v4845, 4294901760
        %v5539 = vsub.f32 %v4845, %v5538
        %5540 = vmatpush1.msra.mxu0 %v5539
        %v5541 = vand.u32 %v4848, 4294901760
        %v5542 = vsub.f32 %v4848, %v5541
        %5543 = vmatprep.subr.mxu0 %v5542
        %v5544 = vand.u32 %v4847, 4294901760
        %v5545 = vsub.f32 %v4847, %v5544
        %5546 = vmatpush1.msra.mxu0 %v5545
        %v5547 = vand.u32 %v4850, 4294901760
        %v5548 = vsub.f32 %v4850, %v5547
        %5549 = vmatprep.subr.mxu0 %v5548
        %v5550 = vand.u32 %v4849, 4294901760
        %v5551 = vsub.f32 %v4849, %v5550
        %5552 = vmatpush1.msra.mxu0 %v5551
        %v5553 = vand.u32 %v4852, 4294901760
        %v5554 = vsub.f32 %v4852, %v5553
        %5555 = vmatprep.subr.mxu0 %v5554
        %v5556 = vand.u32 %v4851, 4294901760
        %v5557 = vsub.f32 %v4851, %v5556
        %5558 = vmatpush1.msra.mxu0 %v5557
        %v5559 = vand.u32 %v4854, 4294901760
        %v5560 = vsub.f32 %v4854, %v5559
        %5561 = vmatprep.subr.mxu0 %v5560
        %v5562 = vand.u32 %v4853, 4294901760
        %v5563 = vsub.f32 %v4853, %v5562
        %5564 = vmatpush1.msra.mxu0 %v5563
        %v5565 = vand.u32 %v4856, 4294901760
        %v5566 = vsub.f32 %v4856, %v5565
        %5567 = vmatprep.subr.mxu0 %v5566
        %v5568 = vand.u32 %v4855, 4294901760
        %v5569 = vsub.f32 %v4855, %v5568
        %5570 = vmatpush1.msra.mxu0 %v5569
        %v5571 = vand.u32 %v4858, 4294901760
        %v5572 = vsub.f32 %v4858, %v5571
        %5573 = vmatprep.subr.mxu0 %v5572
        %v5574 = vand.u32 %v4857, 4294901760
        %v5575 = vsub.f32 %v4857, %v5574
        %5576 = vmatpush1.msra.mxu0 %v5575
        %v5577 = vand.u32 %v4860, 4294901760
        %v5578 = vsub.f32 %v4860, %v5577
        %5579 = vmatprep.subr.mxu0 %v5578
        %v5580 = vand.u32 %v4859, 4294901760
        %v5581 = vsub.f32 %v4859, %v5580
        %5582 = vmatpush1.msra.mxu0 %v5581
        %v5583 = vand.u32 %v4862, 4294901760
        %v5584 = vsub.f32 %v4862, %v5583
        %5585 = vmatprep.subr.mxu0 %v5584
        %v5586 = vand.u32 %v4861, 4294901760
        %v5587 = vsub.f32 %v4861, %v5586
        %5588 = vmatpush1.msra.mxu0 %v5587
        %v5589 = vand.u32 %v4864, 4294901760
        %v5590 = vsub.f32 %v4864, %v5589
        %5591 = vmatprep.subr.mxu0 %v5590
        %v5592 = vand.u32 %v4863, 4294901760
        %v5593 = vsub.f32 %v4863, %v5592
        %5594 = vmatpush1.msra.mxu0 %v5593
        %v5595 = vand.u32 %v4866, 4294901760
        %v5596 = vsub.f32 %v4866, %v5595
        %5597 = vmatprep.subr.mxu0 %v5596
        %v5598 = vand.u32 %v4865, 4294901760
        %v5599 = vsub.f32 %v4865, %v5598
        %5600 = vmatpush1.msra.mxu0 %v5599
        %v5601 = vand.u32 %v4868, 4294901760
        %v5602 = vsub.f32 %v4868, %v5601
        %5603 = vmatprep.subr.mxu0 %v5602
        %v5604 = vand.u32 %v4867, 4294901760
        %v5605 = vsub.f32 %v4867, %v5604
        %5606 = vmatpush1.msra.mxu0 %v5605
        %v5607 = vand.u32 %v4870, 4294901760
        %v5608 = vsub.f32 %v4870, %v5607
        %5609 = vmatprep.subr.mxu0 %v5608
        %v5610 = vand.u32 %v4869, 4294901760
        %v5611 = vsub.f32 %v4869, %v5610
        %5612 = vmatpush1.msra.mxu0 %v5611
        %v5613 = vand.u32 %v4872, 4294901760
        %v5614 = vsub.f32 %v4872, %v5613
        %5615 = vmatprep.subr.mxu0 %v5614
        %v5616 = vand.u32 %v4871, 4294901760
        %v5617 = vsub.f32 %v4871, %v5616
        %5618 = vmatpush1.msra.mxu0 %v5617
        %v5619 = vand.u32 %v4874, 4294901760
        %v5620 = vsub.f32 %v4874, %v5619
        %5621 = vmatprep.subr.mxu0 %v5620
        %v5622 = vand.u32 %v4873, 4294901760
        %v5623 = vsub.f32 %v4873, %v5622
        %5624 = vmatpush1.msra.mxu0 %v5623
        %v5625 = vand.u32 %v4876, 4294901760
        %v5626 = vsub.f32 %v4876, %v5625
        %5627 = vmatprep.subr.mxu0 %v5626
        %v5628 = vand.u32 %v4875, 4294901760
        %v5629 = vsub.f32 %v4875, %v5628
        %5630 = vmatpush1.msra.mxu0 %v5629
        %v5631 = vand.u32 %v4803, 4294901760
        %v5632 = vsub.f32 %v4803, %v5631
        %5633 = vmatprep.mubr.f32.mxu0 %v5632
        %v5634 = vand.u32 %v4801, 4294901760
        %v5635 = vsub.f32 %v4801, %v5634
        %5636 = vmatmul.mubr.f32.gmra.mrb[0].mxu0 %v5635
        %v5637 = vpop.f32.mrb[0].mxu0
        %v5638 = vadd.f32 %v5427, %v5637
        %v5639 = vpop.f32.mrb[0].mxu0
        %v5640 = vadd.f32 %v5429, %v5639
        %v5641 = vand.u32 %v4810, 4294901760
        %v5642 = vsub.f32 %v4810, %v5641
        %5643 = vmatprep.mubr.f32.mxu0 %v5642
        %v5644 = vand.u32 %v4808, 4294901760
        %v5645 = vsub.f32 %v4808, %v5644
        %5646 = vmatmul.mubr.f32.gmra.mrb[0].mxu0 %v5645
        %v5647 = vpop.f32.mrb[0].mxu0
        %v5648 = vadd.f32 %v5435, %v5647
        %v5649 = vpop.f32.mrb[0].mxu0
        %v5650 = vadd.f32 %v5437, %v5649
        %5651 = vdwg.mxu0
        %v5652 = vand.u32 %v4814, 4294901760
        %5653 = vmatprep.subr.mxu0 %v5652
        %v5654 = vand.u32 %v4813, 4294901760
        %5655 = vmatpush1.msra.mxu0 %v5654
        %v5656 = vand.u32 %v4816, 4294901760
        %5657 = vmatprep.subr.mxu0 %v5656
        %v5658 = vand.u32 %v4815, 4294901760
        %5659 = vmatpush1.msra.mxu0 %v5658
        %v5660 = vand.u32 %v4818, 4294901760
        %5661 = vmatprep.subr.mxu0 %v5660
        %v5662 = vand.u32 %v4817, 4294901760
        %5663 = vmatpush1.msra.mxu0 %v5662
        %v5664 = vand.u32 %v4820, 4294901760
        %5665 = vmatprep.subr.mxu0 %v5664
        %v5666 = vand.u32 %v4819, 4294901760
        %5667 = vmatpush1.msra.mxu0 %v5666
        %v5668 = vand.u32 %v4822, 4294901760
        %5669 = vmatprep.subr.mxu0 %v5668
        %v5670 = vand.u32 %v4821, 4294901760
        %5671 = vmatpush1.msra.mxu0 %v5670
        %v5672 = vand.u32 %v4824, 4294901760
        %5673 = vmatprep.subr.mxu0 %v5672
        %v5674 = vand.u32 %v4823, 4294901760
        %5675 = vmatpush1.msra.mxu0 %v5674
        %v5676 = vand.u32 %v4826, 4294901760
        %5677 = vmatprep.subr.mxu0 %v5676
        %v5678 = vand.u32 %v4825, 4294901760
        %5679 = vmatpush1.msra.mxu0 %v5678
        %v5680 = vand.u32 %v4828, 4294901760
        %5681 = vmatprep.subr.mxu0 %v5680
        %v5682 = vand.u32 %v4827, 4294901760
        %5683 = vmatpush1.msra.mxu0 %v5682
        %v5684 = vand.u32 %v4830, 4294901760
        %5685 = vmatprep.subr.mxu0 %v5684
        %v5686 = vand.u32 %v4829, 4294901760
        %5687 = vmatpush1.msra.mxu0 %v5686
        %v5688 = vand.u32 %v4832, 4294901760
        %5689 = vmatprep.subr.mxu0 %v5688
        %v5690 = vand.u32 %v4831, 4294901760
        %5691 = vmatpush1.msra.mxu0 %v5690
        %v5692 = vand.u32 %v4834, 4294901760
        %5693 = vmatprep.subr.mxu0 %v5692
        %v5694 = vand.u32 %v4833, 4294901760
        %5695 = vmatpush1.msra.mxu0 %v5694
        %v5696 = vand.u32 %v4836, 4294901760
        %5697 = vmatprep.subr.mxu0 %v5696
        %v5698 = vand.u32 %v4835, 4294901760
        %5699 = vmatpush1.msra.mxu0 %v5698
        %v5700 = vand.u32 %v4838, 4294901760
        %5701 = vmatprep.subr.mxu0 %v5700
        %v5702 = vand.u32 %v4837, 4294901760
        %5703 = vmatpush1.msra.mxu0 %v5702
        %v5704 = vand.u32 %v4840, 4294901760
        %5705 = vmatprep.subr.mxu0 %v5704
        %v5706 = vand.u32 %v4839, 4294901760
        %5707 = vmatpush1.msra.mxu0 %v5706
        %v5708 = vand.u32 %v4842, 4294901760
        %5709 = vmatprep.subr.mxu0 %v5708
        %v5710 = vand.u32 %v4841, 4294901760
        %5711 = vmatpush1.msra.mxu0 %v5710
        %v5712 = vand.u32 %v4844, 4294901760
        %5713 = vmatprep.subr.mxu0 %v5712
        %v5714 = vand.u32 %v4843, 4294901760
        %5715 = vmatpush1.msra.mxu0 %v5714
        %v5716 = vand.u32 %v4846, 4294901760
        %5717 = vmatprep.subr.mxu0 %v5716
        %v5718 = vand.u32 %v4845, 4294901760
        %5719 = vmatpush1.msra.mxu0 %v5718
        %v5720 = vand.u32 %v4848, 4294901760
        %5721 = vmatprep.subr.mxu0 %v5720
        %v5722 = vand.u32 %v4847, 4294901760
        %5723 = vmatpush1.msra.mxu0 %v5722
        %v5724 = vand.u32 %v4850, 4294901760
        %5725 = vmatprep.subr.mxu0 %v5724
        %v5726 = vand.u32 %v4849, 4294901760
        %5727 = vmatpush1.msra.mxu0 %v5726
        %v5728 = vand.u32 %v4852, 4294901760
        %5729 = vmatprep.subr.mxu0 %v5728
        %v5730 = vand.u32 %v4851, 4294901760
        %5731 = vmatpush1.msra.mxu0 %v5730
        %v5732 = vand.u32 %v4854, 4294901760
        %5733 = vmatprep.subr.mxu0 %v5732
        %v5734 = vand.u32 %v4853, 4294901760
        %5735 = vmatpush1.msra.mxu0 %v5734
        %v5736 = vand.u32 %v4856, 4294901760
        %5737 = vmatprep.subr.mxu0 %v5736
        %v5738 = vand.u32 %v4855, 4294901760
        %5739 = vmatpush1.msra.mxu0 %v5738
        %v5740 = vand.u32 %v4858, 4294901760
        %5741 = vmatprep.subr.mxu0 %v5740
        %v5742 = vand.u32 %v4857, 4294901760
        %5743 = vmatpush1.msra.mxu0 %v5742
        %v5744 = vand.u32 %v4860, 4294901760
        %5745 = vmatprep.subr.mxu0 %v5744
        %v5746 = vand.u32 %v4859, 4294901760
        %5747 = vmatpush1.msra.mxu0 %v5746
        %v5748 = vand.u32 %v4862, 4294901760
        %5749 = vmatprep.subr.mxu0 %v5748
        %v5750 = vand.u32 %v4861, 4294901760
        %5751 = vmatpush1.msra.mxu0 %v5750
        %v5752 = vand.u32 %v4864, 4294901760
        %5753 = vmatprep.subr.mxu0 %v5752
        %v5754 = vand.u32 %v4863, 4294901760
        %5755 = vmatpush1.msra.mxu0 %v5754
        %v5756 = vand.u32 %v4866, 4294901760
        %5757 = vmatprep.subr.mxu0 %v5756
        %v5758 = vand.u32 %v4865, 4294901760
        %5759 = vmatpush1.msra.mxu0 %v5758
        %v5760 = vand.u32 %v4868, 4294901760
        %5761 = vmatprep.subr.mxu0 %v5760
        %v5762 = vand.u32 %v4867, 4294901760
        %5763 = vmatpush1.msra.mxu0 %v5762
        %v5764 = vand.u32 %v4870, 4294901760
        %5765 = vmatprep.subr.mxu0 %v5764
        %v5766 = vand.u32 %v4869, 4294901760
        %5767 = vmatpush1.msra.mxu0 %v5766
        %v5768 = vand.u32 %v4872, 4294901760
        %5769 = vmatprep.subr.mxu0 %v5768
        %v5770 = vand.u32 %v4871, 4294901760
        %5771 = vmatpush1.msra.mxu0 %v5770
        %v5772 = vand.u32 %v4874, 4294901760
        %5773 = vmatprep.subr.mxu0 %v5772
        %v5774 = vand.u32 %v4873, 4294901760
        %5775 = vmatpush1.msra.mxu0 %v5774
        %v5776 = vand.u32 %v4876, 4294901760
        %5777 = vmatprep.subr.mxu0 %v5776
        %v5778 = vand.u32 %v4875, 4294901760
        %5779 = vmatpush1.msra.mxu0 %v5778
        %v5780 = vand.u32 %v4803, 4294901760
        %v5781 = vsub.f32 %v4803, %v5780
        %v5782 = vand.u32 %v5781, 4294901760
        %5783 = vmatprep.mubr.f32.mxu0 %v5782
        %v5784 = vand.u32 %v4801, 4294901760
        %v5785 = vsub.f32 %v4801, %v5784
        %v5786 = vand.u32 %v5785, 4294901760
        %5787 = vmatmul.mubr.f32.gmra.mrb[0].mxu0 %v5786
        %v5788 = vpop.f32.mrb[0].mxu0
        %v5789 = vadd.f32 %v5638, %v5788
        %v5790 = vpop.f32.mrb[0].mxu0
        %v5791 = vadd.f32 %v5640, %v5790
        %v5792 = vand.u32 %v4810, 4294901760
        %v5793 = vsub.f32 %v4810, %v5792
        %v5794 = vand.u32 %v5793, 4294901760
        %5795 = vmatprep.mubr.f32.mxu0 %v5794
        %v5796 = vand.u32 %v4808, 4294901760
        %v5797 = vsub.f32 %v4808, %v5796
        %v5798 = vand.u32 %v5797, 4294901760
        %5799 = vmatmul.mubr.f32.gmra.mrb[0].mxu0 %v5798
        %v5800 = vpop.f32.mrb[0].mxu0
        %v5801 = vadd.f32 %v5648, %v5800
        %v5802 = vpop.f32.mrb[0].mxu0
        %v5803 = vadd.f32 %v5650, %v5802
        %5804 = vdwg.mxu0
        %v5805 = vand.u32 %v4814, 4294901760
        %v5806 = vsub.f32 %v4814, %v5805
        %v5807 = vand.u32 %v5806, 4294901760
        %5808 = vmatprep.subr.mxu0 %v5807
        %v5809 = vand.u32 %v4813, 4294901760
        %v5810 = vsub.f32 %v4813, %v5809
        %v5811 = vand.u32 %v5810, 4294901760
        %5812 = vmatpush1.msra.mxu0 %v5811
        %v5813 = vand.u32 %v4816, 4294901760
        %v5814 = vsub.f32 %v4816, %v5813
        %v5815 = vand.u32 %v5814, 4294901760
        %5816 = vmatprep.subr.mxu0 %v5815
        %v5817 = vand.u32 %v4815, 4294901760
        %v5818 = vsub.f32 %v4815, %v5817
        %v5819 = vand.u32 %v5818, 4294901760
        %5820 = vmatpush1.msra.mxu0 %v5819
        %v5821 = vand.u32 %v4818, 4294901760
        %v5822 = vsub.f32 %v4818, %v5821
        %v5823 = vand.u32 %v5822, 4294901760
        %5824 = vmatprep.subr.mxu0 %v5823
        %v5825 = vand.u32 %v4817, 4294901760
        %v5826 = vsub.f32 %v4817, %v5825
        %v5827 = vand.u32 %v5826, 4294901760
        %5828 = vmatpush1.msra.mxu0 %v5827
        %v5829 = vand.u32 %v4820, 4294901760
        %v5830 = vsub.f32 %v4820, %v5829
        %v5831 = vand.u32 %v5830, 4294901760
        %5832 = vmatprep.subr.mxu0 %v5831
        %v5833 = vand.u32 %v4819, 4294901760
        %v5834 = vsub.f32 %v4819, %v5833
        %v5835 = vand.u32 %v5834, 4294901760
        %5836 = vmatpush1.msra.mxu0 %v5835
        %v5837 = vand.u32 %v4822, 4294901760
        %v5838 = vsub.f32 %v4822, %v5837
        %v5839 = vand.u32 %v5838, 4294901760
        %5840 = vmatprep.subr.mxu0 %v5839
        %v5841 = vand.u32 %v4821, 4294901760
        %v5842 = vsub.f32 %v4821, %v5841
        %v5843 = vand.u32 %v5842, 4294901760
        %5844 = vmatpush1.msra.mxu0 %v5843
        %v5845 = vand.u32 %v4824, 4294901760
        %v5846 = vsub.f32 %v4824, %v5845
        %v5847 = vand.u32 %v5846, 4294901760
        %5848 = vmatprep.subr.mxu0 %v5847
        %v5849 = vand.u32 %v4823, 4294901760
        %v5850 = vsub.f32 %v4823, %v5849
        %v5851 = vand.u32 %v5850, 4294901760
        %5852 = vmatpush1.msra.mxu0 %v5851
        %v5853 = vand.u32 %v4826, 4294901760
        %v5854 = vsub.f32 %v4826, %v5853
        %v5855 = vand.u32 %v5854, 4294901760
        %5856 = vmatprep.subr.mxu0 %v5855
        %v5857 = vand.u32 %v4825, 4294901760
        %v5858 = vsub.f32 %v4825, %v5857
        %v5859 = vand.u32 %v5858, 4294901760
        %5860 = vmatpush1.msra.mxu0 %v5859
        %v5861 = vand.u32 %v4828, 4294901760
        %v5862 = vsub.f32 %v4828, %v5861
        %v5863 = vand.u32 %v5862, 4294901760
        %5864 = vmatprep.subr.mxu0 %v5863
        %v5865 = vand.u32 %v4827, 4294901760
        %v5866 = vsub.f32 %v4827, %v5865
        %v5867 = vand.u32 %v5866, 4294901760
        %5868 = vmatpush1.msra.mxu0 %v5867
        %v5869 = vand.u32 %v4830, 4294901760
        %v5870 = vsub.f32 %v4830, %v5869
        %v5871 = vand.u32 %v5870, 4294901760
        %5872 = vmatprep.subr.mxu0 %v5871
        %v5873 = vand.u32 %v4829, 4294901760
        %v5874 = vsub.f32 %v4829, %v5873
        %v5875 = vand.u32 %v5874, 4294901760
        %5876 = vmatpush1.msra.mxu0 %v5875
        %v5877 = vand.u32 %v4832, 4294901760
        %v5878 = vsub.f32 %v4832, %v5877
        %v5879 = vand.u32 %v5878, 4294901760
        %5880 = vmatprep.subr.mxu0 %v5879
        %v5881 = vand.u32 %v4831, 4294901760
        %v5882 = vsub.f32 %v4831, %v5881
        %v5883 = vand.u32 %v5882, 4294901760
        %5884 = vmatpush1.msra.mxu0 %v5883
        %v5885 = vand.u32 %v4834, 4294901760
        %v5886 = vsub.f32 %v4834, %v5885
        %v5887 = vand.u32 %v5886, 4294901760
        %5888 = vmatprep.subr.mxu0 %v5887
        %v5889 = vand.u32 %v4833, 4294901760
        %v5890 = vsub.f32 %v4833, %v5889
        %v5891 = vand.u32 %v5890, 4294901760
        %5892 = vmatpush1.msra.mxu0 %v5891
        %v5893 = vand.u32 %v4836, 4294901760
        %v5894 = vsub.f32 %v4836, %v5893
        %v5895 = vand.u32 %v5894, 4294901760
        %5896 = vmatprep.subr.mxu0 %v5895
        %v5897 = vand.u32 %v4835, 4294901760
        %v5898 = vsub.f32 %v4835, %v5897
        %v5899 = vand.u32 %v5898, 4294901760
        %5900 = vmatpush1.msra.mxu0 %v5899
        %v5901 = vand.u32 %v4838, 4294901760
        %v5902 = vsub.f32 %v4838, %v5901
        %v5903 = vand.u32 %v5902, 4294901760
        %5904 = vmatprep.subr.mxu0 %v5903
        %v5905 = vand.u32 %v4837, 4294901760
        %v5906 = vsub.f32 %v4837, %v5905
        %v5907 = vand.u32 %v5906, 4294901760
        %5908 = vmatpush1.msra.mxu0 %v5907
        %v5909 = vand.u32 %v4840, 4294901760
        %v5910 = vsub.f32 %v4840, %v5909
        %v5911 = vand.u32 %v5910, 4294901760
        %5912 = vmatprep.subr.mxu0 %v5911
        %v5913 = vand.u32 %v4839, 4294901760
        %v5914 = vsub.f32 %v4839, %v5913
        %v5915 = vand.u32 %v5914, 4294901760
        %5916 = vmatpush1.msra.mxu0 %v5915
        %v5917 = vand.u32 %v4842, 4294901760
        %v5918 = vsub.f32 %v4842, %v5917
        %v5919 = vand.u32 %v5918, 4294901760
        %5920 = vmatprep.subr.mxu0 %v5919
        %v5921 = vand.u32 %v4841, 4294901760
        %v5922 = vsub.f32 %v4841, %v5921
        %v5923 = vand.u32 %v5922, 4294901760
        %5924 = vmatpush1.msra.mxu0 %v5923
        %v5925 = vand.u32 %v4844, 4294901760
        %v5926 = vsub.f32 %v4844, %v5925
        %v5927 = vand.u32 %v5926, 4294901760
        %5928 = vmatprep.subr.mxu0 %v5927
        %v5929 = vand.u32 %v4843, 4294901760
        %v5930 = vsub.f32 %v4843, %v5929
        %v5931 = vand.u32 %v5930, 4294901760
        %5932 = vmatpush1.msra.mxu0 %v5931
        %v5933 = vand.u32 %v4846, 4294901760
        %v5934 = vsub.f32 %v4846, %v5933
        %v5935 = vand.u32 %v5934, 4294901760
        %5936 = vmatprep.subr.mxu0 %v5935
        %v5937 = vand.u32 %v4845, 4294901760
        %v5938 = vsub.f32 %v4845, %v5937
        %v5939 = vand.u32 %v5938, 4294901760
        %5940 = vmatpush1.msra.mxu0 %v5939
        %v5941 = vand.u32 %v4848, 4294901760
        %v5942 = vsub.f32 %v4848, %v5941
        %v5943 = vand.u32 %v5942, 4294901760
        %5944 = vmatprep.subr.mxu0 %v5943
        %v5945 = vand.u32 %v4847, 4294901760
        %v5946 = vsub.f32 %v4847, %v5945
        %v5947 = vand.u32 %v5946, 4294901760
        %5948 = vmatpush1.msra.mxu0 %v5947
        %v5949 = vand.u32 %v4850, 4294901760
        %v5950 = vsub.f32 %v4850, %v5949
        %v5951 = vand.u32 %v5950, 4294901760
        %5952 = vmatprep.subr.mxu0 %v5951
        %v5953 = vand.u32 %v4849, 4294901760
        %v5954 = vsub.f32 %v4849, %v5953
        %v5955 = vand.u32 %v5954, 4294901760
        %5956 = vmatpush1.msra.mxu0 %v5955
        %v5957 = vand.u32 %v4852, 4294901760
        %v5958 = vsub.f32 %v4852, %v5957
        %v5959 = vand.u32 %v5958, 4294901760
        %5960 = vmatprep.subr.mxu0 %v5959
        %v5961 = vand.u32 %v4851, 4294901760
        %v5962 = vsub.f32 %v4851, %v5961
        %v5963 = vand.u32 %v5962, 4294901760
        %5964 = vmatpush1.msra.mxu0 %v5963
        %v5965 = vand.u32 %v4854, 4294901760
        %v5966 = vsub.f32 %v4854, %v5965
        %v5967 = vand.u32 %v5966, 4294901760
        %5968 = vmatprep.subr.mxu0 %v5967
        %v5969 = vand.u32 %v4853, 4294901760
        %v5970 = vsub.f32 %v4853, %v5969
        %v5971 = vand.u32 %v5970, 4294901760
        %5972 = vmatpush1.msra.mxu0 %v5971
        %v5973 = vand.u32 %v4856, 4294901760
        %v5974 = vsub.f32 %v4856, %v5973
        %v5975 = vand.u32 %v5974, 4294901760
        %5976 = vmatprep.subr.mxu0 %v5975
        %v5977 = vand.u32 %v4855, 4294901760
        %v5978 = vsub.f32 %v4855, %v5977
        %v5979 = vand.u32 %v5978, 4294901760
        %5980 = vmatpush1.msra.mxu0 %v5979
        %v5981 = vand.u32 %v4858, 4294901760
        %v5982 = vsub.f32 %v4858, %v5981
        %v5983 = vand.u32 %v5982, 4294901760
        %5984 = vmatprep.subr.mxu0 %v5983
        %v5985 = vand.u32 %v4857, 4294901760
        %v5986 = vsub.f32 %v4857, %v5985
        %v5987 = vand.u32 %v5986, 4294901760
        %5988 = vmatpush1.msra.mxu0 %v5987
        %v5989 = vand.u32 %v4860, 4294901760
        %v5990 = vsub.f32 %v4860, %v5989
        %v5991 = vand.u32 %v5990, 4294901760
        %5992 = vmatprep.subr.mxu0 %v5991
        %v5993 = vand.u32 %v4859, 4294901760
        %v5994 = vsub.f32 %v4859, %v5993
        %v5995 = vand.u32 %v5994, 4294901760
        %5996 = vmatpush1.msra.mxu0 %v5995
        %v5997 = vand.u32 %v4862, 4294901760
        %v5998 = vsub.f32 %v4862, %v5997
        %v5999 = vand.u32 %v5998, 4294901760
        %6000 = vmatprep.subr.mxu0 %v5999
        %v6001 = vand.u32 %v4861, 4294901760
        %v6002 = vsub.f32 %v4861, %v6001
        %v6003 = vand.u32 %v6002, 4294901760
        %6004 = vmatpush1.msra.mxu0 %v6003
        %v6005 = vand.u32 %v4864, 4294901760
        %v6006 = vsub.f32 %v4864, %v6005
        %v6007 = vand.u32 %v6006, 4294901760
        %6008 = vmatprep.subr.mxu0 %v6007
        %v6009 = vand.u32 %v4863, 4294901760
        %v6010 = vsub.f32 %v4863, %v6009
        %v6011 = vand.u32 %v6010, 4294901760
        %6012 = vmatpush1.msra.mxu0 %v6011
        %v6013 = vand.u32 %v4866, 4294901760
        %v6014 = vsub.f32 %v4866, %v6013
        %v6015 = vand.u32 %v6014, 4294901760
        %6016 = vmatprep.subr.mxu0 %v6015
        %v6017 = vand.u32 %v4865, 4294901760
        %v6018 = vsub.f32 %v4865, %v6017
        %v6019 = vand.u32 %v6018, 4294901760
        %6020 = vmatpush1.msra.mxu0 %v6019
        %v6021 = vand.u32 %v4868, 4294901760
        %v6022 = vsub.f32 %v4868, %v6021
        %v6023 = vand.u32 %v6022, 4294901760
        %6024 = vmatprep.subr.mxu0 %v6023
        %v6025 = vand.u32 %v4867, 4294901760
        %v6026 = vsub.f32 %v4867, %v6025
        %v6027 = vand.u32 %v6026, 4294901760
        %6028 = vmatpush1.msra.mxu0 %v6027
        %v6029 = vand.u32 %v4870, 4294901760
        %v6030 = vsub.f32 %v4870, %v6029
        %v6031 = vand.u32 %v6030, 4294901760
        %6032 = vmatprep.subr.mxu0 %v6031
        %v6033 = vand.u32 %v4869, 4294901760
        %v6034 = vsub.f32 %v4869, %v6033
        %v6035 = vand.u32 %v6034, 4294901760
        %6036 = vmatpush1.msra.mxu0 %v6035
        %v6037 = vand.u32 %v4872, 4294901760
        %v6038 = vsub.f32 %v4872, %v6037
        %v6039 = vand.u32 %v6038, 4294901760
        %6040 = vmatprep.subr.mxu0 %v6039
        %v6041 = vand.u32 %v4871, 4294901760
        %v6042 = vsub.f32 %v4871, %v6041
        %v6043 = vand.u32 %v6042, 4294901760
        %6044 = vmatpush1.msra.mxu0 %v6043
        %v6045 = vand.u32 %v4874, 4294901760
        %v6046 = vsub.f32 %v4874, %v6045
        %v6047 = vand.u32 %v6046, 4294901760
        %6048 = vmatprep.subr.mxu0 %v6047
        %v6049 = vand.u32 %v4873, 4294901760
        %v6050 = vsub.f32 %v4873, %v6049
        %v6051 = vand.u32 %v6050, 4294901760
        %6052 = vmatpush1.msra.mxu0 %v6051
        %v6053 = vand.u32 %v4876, 4294901760
        %v6054 = vsub.f32 %v4876, %v6053
        %v6055 = vand.u32 %v6054, 4294901760
        %6056 = vmatprep.subr.mxu0 %v6055
        %v6057 = vand.u32 %v4875, 4294901760
        %v6058 = vsub.f32 %v4875, %v6057
        %v6059 = vand.u32 %v6058, 4294901760
        %6060 = vmatpush1.msra.mxu0 %v6059
        %v6061 = vand.u32 %v4803, 4294901760
        %6062 = vmatprep.mubr.f32.mxu0 %v6061
        %v6063 = vand.u32 %v4801, 4294901760
        %6064 = vmatmul.mubr.f32.gmra.mrb[0].mxu0 %v6063
        %v6065 = vpop.f32.mrb[0].mxu0
        %v6066 = vadd.f32 %v5789, %v6065
        %v6067 = vpop.f32.mrb[0].mxu0
        %v6068 = vadd.f32 %v5791, %v6067
        %v6069 = vand.u32 %v4810, 4294901760
        %6070 = vmatprep.mubr.f32.mxu0 %v6069
        %v6071 = vand.u32 %v4808, 4294901760
        %6072 = vmatmul.mubr.f32.gmra.mrb[0].mxu0 %v6071
        %v6073 = vpop.f32.mrb[0].mxu0
        %v6074 = vadd.f32 %v5801, %v6073
        %v6075 = vpop.f32.mrb[0].mxu0
        %v6076 = vadd.f32 %v5803, %v6075
        %6077 = vdwg.mxu0
        %v6078 = vand.u32 %v4814, 4294901760
        %6079 = vmatprep.subr.mxu0 %v6078
        %v6080 = vand.u32 %v4813, 4294901760
        %6081 = vmatpush1.msra.mxu0 %v6080
        %v6082 = vand.u32 %v4816, 4294901760
        %6083 = vmatprep.subr.mxu0 %v6082
        %v6084 = vand.u32 %v4815, 4294901760
        %6085 = vmatpush1.msra.mxu0 %v6084
        %v6086 = vand.u32 %v4818, 4294901760
        %6087 = vmatprep.subr.mxu0 %v6086
        %v6088 = vand.u32 %v4817, 4294901760
        %6089 = vmatpush1.msra.mxu0 %v6088
        %v6090 = vand.u32 %v4820, 4294901760
        %6091 = vmatprep.subr.mxu0 %v6090
        %v6092 = vand.u32 %v4819, 4294901760
        %6093 = vmatpush1.msra.mxu0 %v6092
        %v6094 = vand.u32 %v4822, 4294901760
        %6095 = vmatprep.subr.mxu0 %v6094
        %v6096 = vand.u32 %v4821, 4294901760
        %6097 = vmatpush1.msra.mxu0 %v6096
        %v6098 = vand.u32 %v4824, 4294901760
        %6099 = vmatprep.subr.mxu0 %v6098
        %v6100 = vand.u32 %v4823, 4294901760
        %6101 = vmatpush1.msra.mxu0 %v6100
        %v6102 = vand.u32 %v4826, 4294901760
        %6103 = vmatprep.subr.mxu0 %v6102
        %v6104 = vand.u32 %v4825, 4294901760
        %6105 = vmatpush1.msra.mxu0 %v6104
        %v6106 = vand.u32 %v4828, 4294901760
        %6107 = vmatprep.subr.mxu0 %v6106
        %v6108 = vand.u32 %v4827, 4294901760
        %6109 = vmatpush1.msra.mxu0 %v6108
        %v6110 = vand.u32 %v4830, 4294901760
        %6111 = vmatprep.subr.mxu0 %v6110
        %v6112 = vand.u32 %v4829, 4294901760
        %6113 = vmatpush1.msra.mxu0 %v6112
        %v6114 = vand.u32 %v4832, 4294901760
        %6115 = vmatprep.subr.mxu0 %v6114
        %v6116 = vand.u32 %v4831, 4294901760
        %6117 = vmatpush1.msra.mxu0 %v6116
        %v6118 = vand.u32 %v4834, 4294901760
        %6119 = vmatprep.subr.mxu0 %v6118
        %v6120 = vand.u32 %v4833, 4294901760
        %6121 = vmatpush1.msra.mxu0 %v6120
        %v6122 = vand.u32 %v4836, 4294901760
        %6123 = vmatprep.subr.mxu0 %v6122
        %v6124 = vand.u32 %v4835, 4294901760
        %6125 = vmatpush1.msra.mxu0 %v6124
        %v6126 = vand.u32 %v4838, 4294901760
        %6127 = vmatprep.subr.mxu0 %v6126
        %v6128 = vand.u32 %v4837, 4294901760
        %6129 = vmatpush1.msra.mxu0 %v6128
        %v6130 = vand.u32 %v4840, 4294901760
        %6131 = vmatprep.subr.mxu0 %v6130
        %v6132 = vand.u32 %v4839, 4294901760
        %6133 = vmatpush1.msra.mxu0 %v6132
        %v6134 = vand.u32 %v4842, 4294901760
        %6135 = vmatprep.subr.mxu0 %v6134
        %v6136 = vand.u32 %v4841, 4294901760
        %6137 = vmatpush1.msra.mxu0 %v6136
        %v6138 = vand.u32 %v4844, 4294901760
        %6139 = vmatprep.subr.mxu0 %v6138
        %v6140 = vand.u32 %v4843, 4294901760
        %6141 = vmatpush1.msra.mxu0 %v6140
        %v6142 = vand.u32 %v4846, 4294901760
        %6143 = vmatprep.subr.mxu0 %v6142
        %v6144 = vand.u32 %v4845, 4294901760
        %6145 = vmatpush1.msra.mxu0 %v6144
        %v6146 = vand.u32 %v4848, 4294901760
        %6147 = vmatprep.subr.mxu0 %v6146
        %v6148 = vand.u32 %v4847, 4294901760
        %6149 = vmatpush1.msra.mxu0 %v6148
        %v6150 = vand.u32 %v4850, 4294901760
        %6151 = vmatprep.subr.mxu0 %v6150
        %v6152 = vand.u32 %v4849, 4294901760
        %6153 = vmatpush1.msra.mxu0 %v6152
        %v6154 = vand.u32 %v4852, 4294901760
        %6155 = vmatprep.subr.mxu0 %v6154
        %v6156 = vand.u32 %v4851, 4294901760
        %6157 = vmatpush1.msra.mxu0 %v6156
        %v6158 = vand.u32 %v4854, 4294901760
        %6159 = vmatprep.subr.mxu0 %v6158
        %v6160 = vand.u32 %v4853, 4294901760
        %6161 = vmatpush1.msra.mxu0 %v6160
        %v6162 = vand.u32 %v4856, 4294901760
        %6163 = vmatprep.subr.mxu0 %v6162
        %v6164 = vand.u32 %v4855, 4294901760
        %6165 = vmatpush1.msra.mxu0 %v6164
        %v6166 = vand.u32 %v4858, 4294901760
        %6167 = vmatprep.subr.mxu0 %v6166
        %v6168 = vand.u32 %v4857, 4294901760
        %6169 = vmatpush1.msra.mxu0 %v6168
        %v6170 = vand.u32 %v4860, 4294901760
        %6171 = vmatprep.subr.mxu0 %v6170
        %v6172 = vand.u32 %v4859, 4294901760
        %6173 = vmatpush1.msra.mxu0 %v6172
        %v6174 = vand.u32 %v4862, 4294901760
        %6175 = vmatprep.subr.mxu0 %v6174
        %v6176 = vand.u32 %v4861, 4294901760
        %6177 = vmatpush1.msra.mxu0 %v6176
        %v6178 = vand.u32 %v4864, 4294901760
        %6179 = vmatprep.subr.mxu0 %v6178
        %v6180 = vand.u32 %v4863, 4294901760
        %6181 = vmatpush1.msra.mxu0 %v6180
        %v6182 = vand.u32 %v4866, 4294901760
        %6183 = vmatprep.subr.mxu0 %v6182
        %v6184 = vand.u32 %v4865, 4294901760
        %6185 = vmatpush1.msra.mxu0 %v6184
        %v6186 = vand.u32 %v4868, 4294901760
        %6187 = vmatprep.subr.mxu0 %v6186
        %v6188 = vand.u32 %v4867, 4294901760
        %6189 = vmatpush1.msra.mxu0 %v6188
        %v6190 = vand.u32 %v4870, 4294901760
        %6191 = vmatprep.subr.mxu0 %v6190
        %v6192 = vand.u32 %v4869, 4294901760
        %6193 = vmatpush1.msra.mxu0 %v6192
        %v6194 = vand.u32 %v4872, 4294901760
        %6195 = vmatprep.subr.mxu0 %v6194
        %v6196 = vand.u32 %v4871, 4294901760
        %6197 = vmatpush1.msra.mxu0 %v6196
        %v6198 = vand.u32 %v4874, 4294901760
        %6199 = vmatprep.subr.mxu0 %v6198
        %v6200 = vand.u32 %v4873, 4294901760
        %6201 = vmatpush1.msra.mxu0 %v6200
        %v6202 = vand.u32 %v4876, 4294901760
        %6203 = vmatprep.subr.mxu0 %v6202
        %v6204 = vand.u32 %v4875, 4294901760
        %6205 = vmatpush1.msra.mxu0 %v6204
        %v6206 = vand.u32 %v4803, 4294901760
        %6207 = vmatprep.mubr.f32.mxu0 %v6206
        %v6208 = vand.u32 %v4801, 4294901760
        %6209 = vmatmul.mubr.f32.gmra.mrb[0].mxu0 %v6208
        %v6210 = vpop.f32.mrb[0].mxu0
        %v6211 = vadd.f32 %v6066, %v6210
        %v6212 = vpop.f32.mrb[0].mxu0
        %v6213 = vadd.f32 %v6068, %v6212
        %v6214 = vand.u32 %v4810, 4294901760
        %6215 = vmatprep.mubr.f32.mxu0 %v6214
        %v6216 = vand.u32 %v4808, 4294901760
        %6217 = vmatmul.mubr.f32.gmra.mrb[0].mxu0 %v6216
        %v6218 = vpop.f32.mrb[0].mxu0
        %v6219 = vadd.f32 %v6074, %v6218
        %v6220 = vpop.f32.mrb[0].mxu0
        %v6221 = vadd.f32 %v6076, %v6220
        %6222 = vdwg.mxu0
        %v6223 = vadd.f32 %v4259, %v6211
        %v6224 = vadd.f32 %v4260, %v6213
        %v6225 = vadd.f32 %v4261, %v6219
        %v6226 = vadd.f32 %v4262, %v6221
        %v6227 = vmax.f32 %v6223, 0.0
        %v6228 = vmax.f32 %v6224, 0.0
        %v6229 = vmax.f32 %v6225, 0.0
        %v6230 = vmax.f32 %v6226, 0.0
        %v6231 = vld [vmem:[#allocation10] sm:$0xff]
        %v6232 = vld [vmem:[#allocation10 + $0x8] sm:$0xff]
        %v6233 = vld [vmem:[#allocation10 + $0x10] sm:$0xff]
        %v6234 = vld [vmem:[#allocation10 + $0x18] sm:$0xff]
        %v6235 = vld [vmem:[#allocation10 + $0x20] sm:$0xff]
        %v6236 = vld [vmem:[#allocation10 + $0x28] sm:$0xff]
        %v6237 = vld [vmem:[#allocation10 + $0x30] sm:$0xff]
        %v6238 = vld [vmem:[#allocation10 + $0x38] sm:$0xff]
        %v6239 = vld [vmem:[#allocation10 + $0x40] sm:$0xff]
        %v6240 = vld [vmem:[#allocation10 + $0x48] sm:$0xff]
        %v6241 = vld [vmem:[#allocation10 + $0x50] sm:$0xff]
        %v6242 = vld [vmem:[#allocation10 + $0x58] sm:$0xff]
        %v6243 = vld [vmem:[#allocation10 + $0x60] sm:$0xff]
        %v6244 = vld [vmem:[#allocation10 + $0x68] sm:$0xff]
        %v6245 = vld [vmem:[#allocation10 + $0x70] sm:$0xff]
        %v6246 = vld [vmem:[#allocation10 + $0x78] sm:$0xff]
        %v6247 = vld [vmem:[#allocation10 + $0x80] sm:$0xff]
        %v6248 = vld [vmem:[#allocation10 + $0x88] sm:$0xff]
        %v6249 = vld [vmem:[#allocation10 + $0x90] sm:$0xff]
        %v6250 = vld [vmem:[#allocation10 + $0x98] sm:$0xff]
        %v6251 = vld [vmem:[#allocation10 + $0xa0] sm:$0xff]
        %v6252 = vld [vmem:[#allocation10 + $0xa8] sm:$0xff]
        %v6253 = vld [vmem:[#allocation10 + $0xb0] sm:$0xff]
        %v6254 = vld [vmem:[#allocation10 + $0xb8] sm:$0xff]
        %v6255 = vld [vmem:[#allocation10 + $0xc0] sm:$0xff]
        %v6256 = vld [vmem:[#allocation10 + $0xc8] sm:$0xff]
        %v6257 = vld [vmem:[#allocation10 + $0xd0] sm:$0xff]
        %v6258 = vld [vmem:[#allocation10 + $0xd8] sm:$0xff]
        %v6259 = vld [vmem:[#allocation10 + $0xe0] sm:$0xff]
        %v6260 = vld [vmem:[#allocation10 + $0xe8] sm:$0xff]
        %v6261 = vld [vmem:[#allocation10 + $0xf0] sm:$0xff]
        %v6262 = vld [vmem:[#allocation10 + $0xf8] sm:$0xff]
        %v6263 = vld [vmem:[#allocation10 + $0x100] sm:$0xff]
        %v6264 = vld [vmem:[#allocation10 + $0x108] sm:$0xff]
        %v6265 = vld [vmem:[#allocation10 + $0x110] sm:$0xff]
        %v6266 = vld [vmem:[#allocation10 + $0x118] sm:$0xff]
        %v6267 = vld [vmem:[#allocation10 + $0x120] sm:$0xff]
        %v6268 = vld [vmem:[#allocation10 + $0x128] sm:$0xff]
        %v6269 = vld [vmem:[#allocation10 + $0x130] sm:$0xff]
        %v6270 = vld [vmem:[#allocation10 + $0x138] sm:$0xff]
        %v6271 = vld [vmem:[#allocation10 + $0x140] sm:$0xff]
        %v6272 = vld [vmem:[#allocation10 + $0x148] sm:$0xff]
        %v6273 = vld [vmem:[#allocation10 + $0x150] sm:$0xff]
        %v6274 = vld [vmem:[#allocation10 + $0x158] sm:$0xff]
        %v6275 = vld [vmem:[#allocation10 + $0x160] sm:$0xff]
        %v6276 = vld [vmem:[#allocation10 + $0x168] sm:$0xff]
        %v6277 = vld [vmem:[#allocation10 + $0x170] sm:$0xff]
        %v6278 = vld [vmem:[#allocation10 + $0x178] sm:$0xff]
        %v6279 = vld [vmem:[#allocation10 + $0x180] sm:$0xff]
        %v6280 = vld [vmem:[#allocation10 + $0x188] sm:$0xff]
        %v6281 = vld [vmem:[#allocation10 + $0x190] sm:$0xff]
        %v6282 = vld [vmem:[#allocation10 + $0x198] sm:$0xff]
        %v6283 = vld [vmem:[#allocation10 + $0x1a0] sm:$0xff]
        %v6284 = vld [vmem:[#allocation10 + $0x1a8] sm:$0xff]
        %v6285 = vld [vmem:[#allocation10 + $0x1b0] sm:$0xff]
        %v6286 = vld [vmem:[#allocation10 + $0x1b8] sm:$0xff]
        %v6287 = vld [vmem:[#allocation10 + $0x1c0] sm:$0xff]
        %v6288 = vld [vmem:[#allocation10 + $0x1c8] sm:$0xff]
        %v6289 = vld [vmem:[#allocation10 + $0x1d0] sm:$0xff]
        %v6290 = vld [vmem:[#allocation10 + $0x1d8] sm:$0xff]
        %v6291 = vld [vmem:[#allocation10 + $0x1e0] sm:$0xff]
        %v6292 = vld [vmem:[#allocation10 + $0x1e8] sm:$0xff]
        %v6293 = vld [vmem:[#allocation10 + $0x1f0] sm:$0xff]
        %v6294 = vld [vmem:[#allocation10 + $0x1f8] sm:$0xff]
        %v6295 = vld [vmem:[%s5] sm:$0x3]
        %v6297 = vlaneseq
        %v6298 = vshrl.u32 %v6297, 7
        %v6299 = vsub.s32 0, %v6298
        %v6300 = vrot.slane %v6295, %v6299
        %v6301 = vlaneseq
        %v6302 = vshrl.u32 %v6301, 7
        %v6303 = vsub.s32 1, %v6302
        %v6304 = vrot.slane %v6295, %v6303
        %v6307 = vand.u32 %v6232, 4294901760
        %6308 = vmatprep.subr.mxu0 %v6307
        %v6309 = vand.u32 %v6231, 4294901760
        %6310 = vmatpush1.msra.mxu0 %v6309
        %v6311 = vand.u32 %v6234, 4294901760
        %6312 = vmatprep.subr.mxu0 %v6311
        %v6313 = vand.u32 %v6233, 4294901760
        %6314 = vmatpush1.msra.mxu0 %v6313
        %v6315 = vand.u32 %v6236, 4294901760
        %6316 = vmatprep.subr.mxu0 %v6315
        %v6317 = vand.u32 %v6235, 4294901760
        %6318 = vmatpush1.msra.mxu0 %v6317
        %v6319 = vand.u32 %v6238, 4294901760
        %6320 = vmatprep.subr.mxu0 %v6319
        %v6321 = vand.u32 %v6237, 4294901760
        %6322 = vmatpush1.msra.mxu0 %v6321
        %v6323 = vand.u32 %v6240, 4294901760
        %6324 = vmatprep.subr.mxu0 %v6323
        %v6325 = vand.u32 %v6239, 4294901760
        %6326 = vmatpush1.msra.mxu0 %v6325
        %v6327 = vand.u32 %v6242, 4294901760
        %6328 = vmatprep.subr.mxu0 %v6327
        %v6329 = vand.u32 %v6241, 4294901760
        %6330 = vmatpush1.msra.mxu0 %v6329
        %v6331 = vand.u32 %v6244, 4294901760
        %6332 = vmatprep.subr.mxu0 %v6331
        %v6333 = vand.u32 %v6243, 4294901760
        %6334 = vmatpush1.msra.mxu0 %v6333
        %v6335 = vand.u32 %v6246, 4294901760
        %6336 = vmatprep.subr.mxu0 %v6335
        %v6337 = vand.u32 %v6245, 4294901760
        %6338 = vmatpush1.msra.mxu0 %v6337
        %v6339 = vand.u32 %v6248, 4294901760
        %6340 = vmatprep.subr.mxu0 %v6339
        %v6341 = vand.u32 %v6247, 4294901760
        %6342 = vmatpush1.msra.mxu0 %v6341
        %v6343 = vand.u32 %v6250, 4294901760
        %6344 = vmatprep.subr.mxu0 %v6343
        %v6345 = vand.u32 %v6249, 4294901760
        %6346 = vmatpush1.msra.mxu0 %v6345
        %v6347 = vand.u32 %v6252, 4294901760
        %6348 = vmatprep.subr.mxu0 %v6347
        %v6349 = vand.u32 %v6251, 4294901760
        %6350 = vmatpush1.msra.mxu0 %v6349
        %v6351 = vand.u32 %v6254, 4294901760
        %6352 = vmatprep.subr.mxu0 %v6351
        %v6353 = vand.u32 %v6253, 4294901760
        %6354 = vmatpush1.msra.mxu0 %v6353
        %v6355 = vand.u32 %v6256, 4294901760
        %6356 = vmatprep.subr.mxu0 %v6355
        %v6357 = vand.u32 %v6255, 4294901760
        %6358 = vmatpush1.msra.mxu0 %v6357
        %v6359 = vand.u32 %v6258, 4294901760
        %6360 = vmatprep.subr.mxu0 %v6359
        %v6361 = vand.u32 %v6257, 4294901760
        %6362 = vmatpush1.msra.mxu0 %v6361
        %v6363 = vand.u32 %v6260, 4294901760
        %6364 = vmatprep.subr.mxu0 %v6363
        %v6365 = vand.u32 %v6259, 4294901760
        %6366 = vmatpush1.msra.mxu0 %v6365
        %v6367 = vand.u32 %v6262, 4294901760
        %6368 = vmatprep.subr.mxu0 %v6367
        %v6369 = vand.u32 %v6261, 4294901760
        %6370 = vmatpush1.msra.mxu0 %v6369
        %v6371 = vand.u32 %v6264, 4294901760
        %6372 = vmatprep.subr.mxu0 %v6371
        %v6373 = vand.u32 %v6263, 4294901760
        %6374 = vmatpush1.msra.mxu0 %v6373
        %v6375 = vand.u32 %v6266, 4294901760
        %6376 = vmatprep.subr.mxu0 %v6375
        %v6377 = vand.u32 %v6265, 4294901760
        %6378 = vmatpush1.msra.mxu0 %v6377
        %v6379 = vand.u32 %v6268, 4294901760
        %6380 = vmatprep.subr.mxu0 %v6379
        %v6381 = vand.u32 %v6267, 4294901760
        %6382 = vmatpush1.msra.mxu0 %v6381
        %v6383 = vand.u32 %v6270, 4294901760
        %6384 = vmatprep.subr.mxu0 %v6383
        %v6385 = vand.u32 %v6269, 4294901760
        %6386 = vmatpush1.msra.mxu0 %v6385
        %v6387 = vand.u32 %v6272, 4294901760
        %6388 = vmatprep.subr.mxu0 %v6387
        %v6389 = vand.u32 %v6271, 4294901760
        %6390 = vmatpush1.msra.mxu0 %v6389
        %v6391 = vand.u32 %v6274, 4294901760
        %6392 = vmatprep.subr.mxu0 %v6391
        %v6393 = vand.u32 %v6273, 4294901760
        %6394 = vmatpush1.msra.mxu0 %v6393
        %v6395 = vand.u32 %v6276, 4294901760
        %6396 = vmatprep.subr.mxu0 %v6395
        %v6397 = vand.u32 %v6275, 4294901760
        %6398 = vmatpush1.msra.mxu0 %v6397
        %v6399 = vand.u32 %v6278, 4294901760
        %6400 = vmatprep.subr.mxu0 %v6399
        %v6401 = vand.u32 %v6277, 4294901760
        %6402 = vmatpush1.msra.mxu0 %v6401
        %v6403 = vand.u32 %v6280, 4294901760
        %6404 = vmatprep.subr.mxu0 %v6403
        %v6405 = vand.u32 %v6279, 4294901760
        %6406 = vmatpush1.msra.mxu0 %v6405
        %v6407 = vand.u32 %v6282, 4294901760
        %6408 = vmatprep.subr.mxu0 %v6407
        %v6409 = vand.u32 %v6281, 4294901760
        %6410 = vmatpush1.msra.mxu0 %v6409
        %v6411 = vand.u32 %v6284, 4294901760
        %6412 = vmatprep.subr.mxu0 %v6411
        %v6413 = vand.u32 %v6283, 4294901760
        %6414 = vmatpush1.msra.mxu0 %v6413
        %v6415 = vand.u32 %v6286, 4294901760
        %6416 = vmatprep.subr.mxu0 %v6415
        %v6417 = vand.u32 %v6285, 4294901760
        %6418 = vmatpush1.msra.mxu0 %v6417
        %v6419 = vand.u32 %v6288, 4294901760
        %6420 = vmatprep.subr.mxu0 %v6419
        %v6421 = vand.u32 %v6287, 4294901760
        %6422 = vmatpush1.msra.mxu0 %v6421
        %v6423 = vand.u32 %v6290, 4294901760
        %6424 = vmatprep.subr.mxu0 %v6423
        %v6425 = vand.u32 %v6289, 4294901760
        %6426 = vmatpush1.msra.mxu0 %v6425
        %v6427 = vand.u32 %v6292, 4294901760
        %6428 = vmatprep.subr.mxu0 %v6427
        %v6429 = vand.u32 %v6291, 4294901760
        %6430 = vmatpush1.msra.mxu0 %v6429
        %v6431 = vand.u32 %v6294, 4294901760
        %6432 = vmatprep.subr.mxu0 %v6431
        %v6433 = vand.u32 %v6293, 4294901760
        %6434 = vmatpush1.msra.mxu0 %v6433
        %v6435 = vand.u32 %v6228, 4294901760
        %v6436 = vsub.f32 %v6228, %v6435
        %v6437 = vand.u32 %v6436, 4294901760
        %v6438 = vsub.f32 %v6436, %v6437
        %v6439 = vand.u32 %v6438, 4294901760
        %6440 = vmatprep.mubr.f32.mxu0 %v6439
        %v6441 = vand.u32 %v6227, 4294901760
        %v6442 = vsub.f32 %v6227, %v6441
        %v6443 = vand.u32 %v6442, 4294901760
        %v6444 = vsub.f32 %v6442, %v6443
        %v6445 = vand.u32 %v6444, 4294901760
        %6446 = vmatmul.mubr.f32.gmra.mrb[0].mxu0 %v6445
        %v6447 = vpop.f32.mrb[0].mxu0
        %v6448 = vadd.f32 %v6300, %v6447
        %v6449 = vpop.f32.mrb[0].mxu0
        %v6450 = vadd.f32 %v6304, %v6449
        %v6451 = vand.u32 %v6230, 4294901760
        %v6452 = vsub.f32 %v6230, %v6451
        %v6453 = vand.u32 %v6452, 4294901760
        %v6454 = vsub.f32 %v6452, %v6453
        %v6455 = vand.u32 %v6454, 4294901760
        %6456 = vmatprep.mubr.f32.mxu0 %v6455
        %v6457 = vand.u32 %v6229, 4294901760
        %v6458 = vsub.f32 %v6229, %v6457
        %v6459 = vand.u32 %v6458, 4294901760
        %v6460 = vsub.f32 %v6458, %v6459
        %v6461 = vand.u32 %v6460, 4294901760
        %6462 = vmatmul.mubr.f32.gmra.mrb[0].mxu0 %v6461
        %v6463 = vpop.f32.mrb[0].mxu0
        %v6464 = vadd.f32 %v6300, %v6463
        %v6465 = vpop.f32.mrb[0].mxu0
        %v6466 = vadd.f32 %v6304, %v6465
        %6467 = vdwg.mxu0
        %v6468 = vand.u32 %v6232, 4294901760
        %v6469 = vsub.f32 %v6232, %v6468
        %v6470 = vand.u32 %v6469, 4294901760
        %v6471 = vsub.f32 %v6469, %v6470
        %v6472 = vand.u32 %v6471, 4294901760
        %6473 = vmatprep.subr.mxu0 %v6472
        %v6474 = vand.u32 %v6231, 4294901760
        %v6475 = vsub.f32 %v6231, %v6474
        %v6476 = vand.u32 %v6475, 4294901760
        %v6477 = vsub.f32 %v6475, %v6476
        %v6478 = vand.u32 %v6477, 4294901760
        %6479 = vmatpush1.msra.mxu0 %v6478
        %v6480 = vand.u32 %v6234, 4294901760
        %v6481 = vsub.f32 %v6234, %v6480
        %v6482 = vand.u32 %v6481, 4294901760
        %v6483 = vsub.f32 %v6481, %v6482
        %v6484 = vand.u32 %v6483, 4294901760
        %6485 = vmatprep.subr.mxu0 %v6484
        %v6486 = vand.u32 %v6233, 4294901760
        %v6487 = vsub.f32 %v6233, %v6486
        %v6488 = vand.u32 %v6487, 4294901760
        %v6489 = vsub.f32 %v6487, %v6488
        %v6490 = vand.u32 %v6489, 4294901760
        %6491 = vmatpush1.msra.mxu0 %v6490
        %v6492 = vand.u32 %v6236, 4294901760
        %v6493 = vsub.f32 %v6236, %v6492
        %v6494 = vand.u32 %v6493, 4294901760
        %v6495 = vsub.f32 %v6493, %v6494
        %v6496 = vand.u32 %v6495, 4294901760
        %6497 = vmatprep.subr.mxu0 %v6496
        %v6498 = vand.u32 %v6235, 4294901760
        %v6499 = vsub.f32 %v6235, %v6498
        %v6500 = vand.u32 %v6499, 4294901760
        %v6501 = vsub.f32 %v6499, %v6500
        %v6502 = vand.u32 %v6501, 4294901760
        %6503 = vmatpush1.msra.mxu0 %v6502
        %v6504 = vand.u32 %v6238, 4294901760
        %v6505 = vsub.f32 %v6238, %v6504
        %v6506 = vand.u32 %v6505, 4294901760
        %v6507 = vsub.f32 %v6505, %v6506
        %v6508 = vand.u32 %v6507, 4294901760
        %6509 = vmatprep.subr.mxu0 %v6508
        %v6510 = vand.u32 %v6237, 4294901760
        %v6511 = vsub.f32 %v6237, %v6510
        %v6512 = vand.u32 %v6511, 4294901760
        %v6513 = vsub.f32 %v6511, %v6512
        %v6514 = vand.u32 %v6513, 4294901760
        %6515 = vmatpush1.msra.mxu0 %v6514
        %v6516 = vand.u32 %v6240, 4294901760
        %v6517 = vsub.f32 %v6240, %v6516
        %v6518 = vand.u32 %v6517, 4294901760
        %v6519 = vsub.f32 %v6517, %v6518
        %v6520 = vand.u32 %v6519, 4294901760
        %6521 = vmatprep.subr.mxu0 %v6520
        %v6522 = vand.u32 %v6239, 4294901760
        %v6523 = vsub.f32 %v6239, %v6522
        %v6524 = vand.u32 %v6523, 4294901760
        %v6525 = vsub.f32 %v6523, %v6524
        %v6526 = vand.u32 %v6525, 4294901760
        %6527 = vmatpush1.msra.mxu0 %v6526
        %v6528 = vand.u32 %v6242, 4294901760
        %v6529 = vsub.f32 %v6242, %v6528
        %v6530 = vand.u32 %v6529, 4294901760
        %v6531 = vsub.f32 %v6529, %v6530
        %v6532 = vand.u32 %v6531, 4294901760
        %6533 = vmatprep.subr.mxu0 %v6532
        %v6534 = vand.u32 %v6241, 4294901760
        %v6535 = vsub.f32 %v6241, %v6534
        %v6536 = vand.u32 %v6535, 4294901760
        %v6537 = vsub.f32 %v6535, %v6536
        %v6538 = vand.u32 %v6537, 4294901760
        %6539 = vmatpush1.msra.mxu0 %v6538
        %v6540 = vand.u32 %v6244, 4294901760
        %v6541 = vsub.f32 %v6244, %v6540
        %v6542 = vand.u32 %v6541, 4294901760
        %v6543 = vsub.f32 %v6541, %v6542
        %v6544 = vand.u32 %v6543, 4294901760
        %6545 = vmatprep.subr.mxu0 %v6544
        %v6546 = vand.u32 %v6243, 4294901760
        %v6547 = vsub.f32 %v6243, %v6546
        %v6548 = vand.u32 %v6547, 4294901760
        %v6549 = vsub.f32 %v6547, %v6548
        %v6550 = vand.u32 %v6549, 4294901760
        %6551 = vmatpush1.msra.mxu0 %v6550
        %v6552 = vand.u32 %v6246, 4294901760
        %v6553 = vsub.f32 %v6246, %v6552
        %v6554 = vand.u32 %v6553, 4294901760
        %v6555 = vsub.f32 %v6553, %v6554
        %v6556 = vand.u32 %v6555, 4294901760
        %6557 = vmatprep.subr.mxu0 %v6556
        %v6558 = vand.u32 %v6245, 4294901760
        %v6559 = vsub.f32 %v6245, %v6558
        %v6560 = vand.u32 %v6559, 4294901760
        %v6561 = vsub.f32 %v6559, %v6560
        %v6562 = vand.u32 %v6561, 4294901760
        %6563 = vmatpush1.msra.mxu0 %v6562
        %v6564 = vand.u32 %v6248, 4294901760
        %v6565 = vsub.f32 %v6248, %v6564
        %v6566 = vand.u32 %v6565, 4294901760
        %v6567 = vsub.f32 %v6565, %v6566
        %v6568 = vand.u32 %v6567, 4294901760
        %6569 = vmatprep.subr.mxu0 %v6568
        %v6570 = vand.u32 %v6247, 4294901760
        %v6571 = vsub.f32 %v6247, %v6570
        %v6572 = vand.u32 %v6571, 4294901760
        %v6573 = vsub.f32 %v6571, %v6572
        %v6574 = vand.u32 %v6573, 4294901760
        %6575 = vmatpush1.msra.mxu0 %v6574
        %v6576 = vand.u32 %v6250, 4294901760
        %v6577 = vsub.f32 %v6250, %v6576
        %v6578 = vand.u32 %v6577, 4294901760
        %v6579 = vsub.f32 %v6577, %v6578
        %v6580 = vand.u32 %v6579, 4294901760
        %6581 = vmatprep.subr.mxu0 %v6580
        %v6582 = vand.u32 %v6249, 4294901760
        %v6583 = vsub.f32 %v6249, %v6582
        %v6584 = vand.u32 %v6583, 4294901760
        %v6585 = vsub.f32 %v6583, %v6584
        %v6586 = vand.u32 %v6585, 4294901760
        %6587 = vmatpush1.msra.mxu0 %v6586
        %v6588 = vand.u32 %v6252, 4294901760
        %v6589 = vsub.f32 %v6252, %v6588
        %v6590 = vand.u32 %v6589, 4294901760
        %v6591 = vsub.f32 %v6589, %v6590
        %v6592 = vand.u32 %v6591, 4294901760
        %6593 = vmatprep.subr.mxu0 %v6592
        %v6594 = vand.u32 %v6251, 4294901760
        %v6595 = vsub.f32 %v6251, %v6594
        %v6596 = vand.u32 %v6595, 4294901760
        %v6597 = vsub.f32 %v6595, %v6596
        %v6598 = vand.u32 %v6597, 4294901760
        %6599 = vmatpush1.msra.mxu0 %v6598
        %v6600 = vand.u32 %v6254, 4294901760
        %v6601 = vsub.f32 %v6254, %v6600
        %v6602 = vand.u32 %v6601, 4294901760
        %v6603 = vsub.f32 %v6601, %v6602
        %v6604 = vand.u32 %v6603, 4294901760
        %6605 = vmatprep.subr.mxu0 %v6604
        %v6606 = vand.u32 %v6253, 4294901760
        %v6607 = vsub.f32 %v6253, %v6606
        %v6608 = vand.u32 %v6607, 4294901760
        %v6609 = vsub.f32 %v6607, %v6608
        %v6610 = vand.u32 %v6609, 4294901760
        %6611 = vmatpush1.msra.mxu0 %v6610
        %v6612 = vand.u32 %v6256, 4294901760
        %v6613 = vsub.f32 %v6256, %v6612
        %v6614 = vand.u32 %v6613, 4294901760
        %v6615 = vsub.f32 %v6613, %v6614
        %v6616 = vand.u32 %v6615, 4294901760
        %6617 = vmatprep.subr.mxu0 %v6616
        %v6618 = vand.u32 %v6255, 4294901760
        %v6619 = vsub.f32 %v6255, %v6618
        %v6620 = vand.u32 %v6619, 4294901760
        %v6621 = vsub.f32 %v6619, %v6620
        %v6622 = vand.u32 %v6621, 4294901760
        %6623 = vmatpush1.msra.mxu0 %v6622
        %v6624 = vand.u32 %v6258, 4294901760
        %v6625 = vsub.f32 %v6258, %v6624
        %v6626 = vand.u32 %v6625, 4294901760
        %v6627 = vsub.f32 %v6625, %v6626
        %v6628 = vand.u32 %v6627, 4294901760
        %6629 = vmatprep.subr.mxu0 %v6628
        %v6630 = vand.u32 %v6257, 4294901760
        %v6631 = vsub.f32 %v6257, %v6630
        %v6632 = vand.u32 %v6631, 4294901760
        %v6633 = vsub.f32 %v6631, %v6632
        %v6634 = vand.u32 %v6633, 4294901760
        %6635 = vmatpush1.msra.mxu0 %v6634
        %v6636 = vand.u32 %v6260, 4294901760
        %v6637 = vsub.f32 %v6260, %v6636
        %v6638 = vand.u32 %v6637, 4294901760
        %v6639 = vsub.f32 %v6637, %v6638
        %v6640 = vand.u32 %v6639, 4294901760
        %6641 = vmatprep.subr.mxu0 %v6640
        %v6642 = vand.u32 %v6259, 4294901760
        %v6643 = vsub.f32 %v6259, %v6642
        %v6644 = vand.u32 %v6643, 4294901760
        %v6645 = vsub.f32 %v6643, %v6644
        %v6646 = vand.u32 %v6645, 4294901760
        %6647 = vmatpush1.msra.mxu0 %v6646
        %v6648 = vand.u32 %v6262, 4294901760
        %v6649 = vsub.f32 %v6262, %v6648
        %v6650 = vand.u32 %v6649, 4294901760
        %v6651 = vsub.f32 %v6649, %v6650
        %v6652 = vand.u32 %v6651, 4294901760
        %6653 = vmatprep.subr.mxu0 %v6652
        %v6654 = vand.u32 %v6261, 4294901760
        %v6655 = vsub.f32 %v6261, %v6654
        %v6656 = vand.u32 %v6655, 4294901760
        %v6657 = vsub.f32 %v6655, %v6656
        %v6658 = vand.u32 %v6657, 4294901760
        %6659 = vmatpush1.msra.mxu0 %v6658
        %v6660 = vand.u32 %v6264, 4294901760
        %v6661 = vsub.f32 %v6264, %v6660
        %v6662 = vand.u32 %v6661, 4294901760
        %v6663 = vsub.f32 %v6661, %v6662
        %v6664 = vand.u32 %v6663, 4294901760
        %6665 = vmatprep.subr.mxu0 %v6664
        %v6666 = vand.u32 %v6263, 4294901760
        %v6667 = vsub.f32 %v6263, %v6666
        %v6668 = vand.u32 %v6667, 4294901760
        %v6669 = vsub.f32 %v6667, %v6668
        %v6670 = vand.u32 %v6669, 4294901760
        %6671 = vmatpush1.msra.mxu0 %v6670
        %v6672 = vand.u32 %v6266, 4294901760
        %v6673 = vsub.f32 %v6266, %v6672
        %v6674 = vand.u32 %v6673, 4294901760
        %v6675 = vsub.f32 %v6673, %v6674
        %v6676 = vand.u32 %v6675, 4294901760
        %6677 = vmatprep.subr.mxu0 %v6676
        %v6678 = vand.u32 %v6265, 4294901760
        %v6679 = vsub.f32 %v6265, %v6678
        %v6680 = vand.u32 %v6679, 4294901760
        %v6681 = vsub.f32 %v6679, %v6680
        %v6682 = vand.u32 %v6681, 4294901760
        %6683 = vmatpush1.msra.mxu0 %v6682
        %v6684 = vand.u32 %v6268, 4294901760
        %v6685 = vsub.f32 %v6268, %v6684
        %v6686 = vand.u32 %v6685, 4294901760
        %v6687 = vsub.f32 %v6685, %v6686
        %v6688 = vand.u32 %v6687, 4294901760
        %6689 = vmatprep.subr.mxu0 %v6688
        %v6690 = vand.u32 %v6267, 4294901760
        %v6691 = vsub.f32 %v6267, %v6690
        %v6692 = vand.u32 %v6691, 4294901760
        %v6693 = vsub.f32 %v6691, %v6692
        %v6694 = vand.u32 %v6693, 4294901760
        %6695 = vmatpush1.msra.mxu0 %v6694
        %v6696 = vand.u32 %v6270, 4294901760
        %v6697 = vsub.f32 %v6270, %v6696
        %v6698 = vand.u32 %v6697, 4294901760
        %v6699 = vsub.f32 %v6697, %v6698
        %v6700 = vand.u32 %v6699, 4294901760
        %6701 = vmatprep.subr.mxu0 %v6700
        %v6702 = vand.u32 %v6269, 4294901760
        %v6703 = vsub.f32 %v6269, %v6702
        %v6704 = vand.u32 %v6703, 4294901760
        %v6705 = vsub.f32 %v6703, %v6704
        %v6706 = vand.u32 %v6705, 4294901760
        %6707 = vmatpush1.msra.mxu0 %v6706
        %v6708 = vand.u32 %v6272, 4294901760
        %v6709 = vsub.f32 %v6272, %v6708
        %v6710 = vand.u32 %v6709, 4294901760
        %v6711 = vsub.f32 %v6709, %v6710
        %v6712 = vand.u32 %v6711, 4294901760
        %6713 = vmatprep.subr.mxu0 %v6712
        %v6714 = vand.u32 %v6271, 4294901760
        %v6715 = vsub.f32 %v6271, %v6714
        %v6716 = vand.u32 %v6715, 4294901760
        %v6717 = vsub.f32 %v6715, %v6716
        %v6718 = vand.u32 %v6717, 4294901760
        %6719 = vmatpush1.msra.mxu0 %v6718
        %v6720 = vand.u32 %v6274, 4294901760
        %v6721 = vsub.f32 %v6274, %v6720
        %v6722 = vand.u32 %v6721, 4294901760
        %v6723 = vsub.f32 %v6721, %v6722
        %v6724 = vand.u32 %v6723, 4294901760
        %6725 = vmatprep.subr.mxu0 %v6724
        %v6726 = vand.u32 %v6273, 4294901760
        %v6727 = vsub.f32 %v6273, %v6726
        %v6728 = vand.u32 %v6727, 4294901760
        %v6729 = vsub.f32 %v6727, %v6728
        %v6730 = vand.u32 %v6729, 4294901760
        %6731 = vmatpush1.msra.mxu0 %v6730
        %v6732 = vand.u32 %v6276, 4294901760
        %v6733 = vsub.f32 %v6276, %v6732
        %v6734 = vand.u32 %v6733, 4294901760
        %v6735 = vsub.f32 %v6733, %v6734
        %v6736 = vand.u32 %v6735, 4294901760
        %6737 = vmatprep.subr.mxu0 %v6736
        %v6738 = vand.u32 %v6275, 4294901760
        %v6739 = vsub.f32 %v6275, %v6738
        %v6740 = vand.u32 %v6739, 4294901760
        %v6741 = vsub.f32 %v6739, %v6740
        %v6742 = vand.u32 %v6741, 4294901760
        %6743 = vmatpush1.msra.mxu0 %v6742
        %v6744 = vand.u32 %v6278, 4294901760
        %v6745 = vsub.f32 %v6278, %v6744
        %v6746 = vand.u32 %v6745, 4294901760
        %v6747 = vsub.f32 %v6745, %v6746
        %v6748 = vand.u32 %v6747, 4294901760
        %6749 = vmatprep.subr.mxu0 %v6748
        %v6750 = vand.u32 %v6277, 4294901760
        %v6751 = vsub.f32 %v6277, %v6750
        %v6752 = vand.u32 %v6751, 4294901760
        %v6753 = vsub.f32 %v6751, %v6752
        %v6754 = vand.u32 %v6753, 4294901760
        %6755 = vmatpush1.msra.mxu0 %v6754
        %v6756 = vand.u32 %v6280, 4294901760
        %v6757 = vsub.f32 %v6280, %v6756
        %v6758 = vand.u32 %v6757, 4294901760
        %v6759 = vsub.f32 %v6757, %v6758
        %v6760 = vand.u32 %v6759, 4294901760
        %6761 = vmatprep.subr.mxu0 %v6760
        %v6762 = vand.u32 %v6279, 4294901760
        %v6763 = vsub.f32 %v6279, %v6762
        %v6764 = vand.u32 %v6763, 4294901760
        %v6765 = vsub.f32 %v6763, %v6764
        %v6766 = vand.u32 %v6765, 4294901760
        %6767 = vmatpush1.msra.mxu0 %v6766
        %v6768 = vand.u32 %v6282, 4294901760
        %v6769 = vsub.f32 %v6282, %v6768
        %v6770 = vand.u32 %v6769, 4294901760
        %v6771 = vsub.f32 %v6769, %v6770
        %v6772 = vand.u32 %v6771, 4294901760
        %6773 = vmatprep.subr.mxu0 %v6772
        %v6774 = vand.u32 %v6281, 4294901760
        %v6775 = vsub.f32 %v6281, %v6774
        %v6776 = vand.u32 %v6775, 4294901760
        %v6777 = vsub.f32 %v6775, %v6776
        %v6778 = vand.u32 %v6777, 4294901760
        %6779 = vmatpush1.msra.mxu0 %v6778
        %v6780 = vand.u32 %v6284, 4294901760
        %v6781 = vsub.f32 %v6284, %v6780
        %v6782 = vand.u32 %v6781, 4294901760
        %v6783 = vsub.f32 %v6781, %v6782
        %v6784 = vand.u32 %v6783, 4294901760
        %6785 = vmatprep.subr.mxu0 %v6784
        %v6786 = vand.u32 %v6283, 4294901760
        %v6787 = vsub.f32 %v6283, %v6786
        %v6788 = vand.u32 %v6787, 4294901760
        %v6789 = vsub.f32 %v6787, %v6788
        %v6790 = vand.u32 %v6789, 4294901760
        %6791 = vmatpush1.msra.mxu0 %v6790
        %v6792 = vand.u32 %v6286, 4294901760
        %v6793 = vsub.f32 %v6286, %v6792
        %v6794 = vand.u32 %v6793, 4294901760
        %v6795 = vsub.f32 %v6793, %v6794
        %v6796 = vand.u32 %v6795, 4294901760
        %6797 = vmatprep.subr.mxu0 %v6796
        %v6798 = vand.u32 %v6285, 4294901760
        %v6799 = vsub.f32 %v6285, %v6798
        %v6800 = vand.u32 %v6799, 4294901760
        %v6801 = vsub.f32 %v6799, %v6800
        %v6802 = vand.u32 %v6801, 4294901760
        %6803 = vmatpush1.msra.mxu0 %v6802
        %v6804 = vand.u32 %v6288, 4294901760
        %v6805 = vsub.f32 %v6288, %v6804
        %v6806 = vand.u32 %v6805, 4294901760
        %v6807 = vsub.f32 %v6805, %v6806
        %v6808 = vand.u32 %v6807, 4294901760
        %6809 = vmatprep.subr.mxu0 %v6808
        %v6810 = vand.u32 %v6287, 4294901760
        %v6811 = vsub.f32 %v6287, %v6810
        %v6812 = vand.u32 %v6811, 4294901760
        %v6813 = vsub.f32 %v6811, %v6812
        %v6814 = vand.u32 %v6813, 4294901760
        %6815 = vmatpush1.msra.mxu0 %v6814
        %v6816 = vand.u32 %v6290, 4294901760
        %v6817 = vsub.f32 %v6290, %v6816
        %v6818 = vand.u32 %v6817, 4294901760
        %v6819 = vsub.f32 %v6817, %v6818
        %v6820 = vand.u32 %v6819, 4294901760
        %6821 = vmatprep.subr.mxu0 %v6820
        %v6822 = vand.u32 %v6289, 4294901760
        %v6823 = vsub.f32 %v6289, %v6822
        %v6824 = vand.u32 %v6823, 4294901760
        %v6825 = vsub.f32 %v6823, %v6824
        %v6826 = vand.u32 %v6825, 4294901760
        %6827 = vmatpush1.msra.mxu0 %v6826
        %v6828 = vand.u32 %v6292, 4294901760
        %v6829 = vsub.f32 %v6292, %v6828
        %v6830 = vand.u32 %v6829, 4294901760
        %v6831 = vsub.f32 %v6829, %v6830
        %v6832 = vand.u32 %v6831, 4294901760
        %6833 = vmatprep.subr.mxu0 %v6832
        %v6834 = vand.u32 %v6291, 4294901760
        %v6835 = vsub.f32 %v6291, %v6834
        %v6836 = vand.u32 %v6835, 4294901760
        %v6837 = vsub.f32 %v6835, %v6836
        %v6838 = vand.u32 %v6837, 4294901760
        %6839 = vmatpush1.msra.mxu0 %v6838
        %v6840 = vand.u32 %v6294, 4294901760
        %v6841 = vsub.f32 %v6294, %v6840
        %v6842 = vand.u32 %v6841, 4294901760
        %v6843 = vsub.f32 %v6841, %v6842
        %v6844 = vand.u32 %v6843, 4294901760
        %6845 = vmatprep.subr.mxu0 %v6844
        %v6846 = vand.u32 %v6293, 4294901760
        %v6847 = vsub.f32 %v6293, %v6846
        %v6848 = vand.u32 %v6847, 4294901760
        %v6849 = vsub.f32 %v6847, %v6848
        %v6850 = vand.u32 %v6849, 4294901760
        %6851 = vmatpush1.msra.mxu0 %v6850
        %v6852 = vand.u32 %v6228, 4294901760
        %6853 = vmatprep.mubr.f32.mxu0 %v6852
        %v6854 = vand.u32 %v6227, 4294901760
        %6855 = vmatmul.mubr.f32.gmra.mrb[0].mxu0 %v6854
        %v6856 = vpop.f32.mrb[0].mxu0
        %v6857 = vadd.f32 %v6448, %v6856
        %v6858 = vpop.f32.mrb[0].mxu0
        %v6859 = vadd.f32 %v6450, %v6858
        %v6860 = vand.u32 %v6230, 4294901760
        %6861 = vmatprep.mubr.f32.mxu0 %v6860
        %v6862 = vand.u32 %v6229, 4294901760
        %6863 = vmatmul.mubr.f32.gmra.mrb[0].mxu0 %v6862
        %v6864 = vpop.f32.mrb[0].mxu0
        %v6865 = vadd.f32 %v6464, %v6864
        %v6866 = vpop.f32.mrb[0].mxu0
        %v6867 = vadd.f32 %v6466, %v6866
        %6868 = vdwg.mxu0
        %v6869 = vand.u32 %v6232, 4294901760
        %v6870 = vsub.f32 %v6232, %v6869
        %6871 = vmatprep.subr.mxu0 %v6870
        %v6872 = vand.u32 %v6231, 4294901760
        %v6873 = vsub.f32 %v6231, %v6872
        %6874 = vmatpush1.msra.mxu0 %v6873
        %v6875 = vand.u32 %v6234, 4294901760
        %v6876 = vsub.f32 %v6234, %v6875
        %6877 = vmatprep.subr.mxu0 %v6876
        %v6878 = vand.u32 %v6233, 4294901760
        %v6879 = vsub.f32 %v6233, %v6878
        %6880 = vmatpush1.msra.mxu0 %v6879
        %v6881 = vand.u32 %v6236, 4294901760
        %v6882 = vsub.f32 %v6236, %v6881
        %6883 = vmatprep.subr.mxu0 %v6882
        %v6884 = vand.u32 %v6235, 4294901760
        %v6885 = vsub.f32 %v6235, %v6884
        %6886 = vmatpush1.msra.mxu0 %v6885
        %v6887 = vand.u32 %v6238, 4294901760
        %v6888 = vsub.f32 %v6238, %v6887
        %6889 = vmatprep.subr.mxu0 %v6888
        %v6890 = vand.u32 %v6237, 4294901760
        %v6891 = vsub.f32 %v6237, %v6890
        %6892 = vmatpush1.msra.mxu0 %v6891
        %v6893 = vand.u32 %v6240, 4294901760
        %v6894 = vsub.f32 %v6240, %v6893
        %6895 = vmatprep.subr.mxu0 %v6894
        %v6896 = vand.u32 %v6239, 4294901760
        %v6897 = vsub.f32 %v6239, %v6896
        %6898 = vmatpush1.msra.mxu0 %v6897
        %v6899 = vand.u32 %v6242, 4294901760
        %v6900 = vsub.f32 %v6242, %v6899
        %6901 = vmatprep.subr.mxu0 %v6900
        %v6902 = vand.u32 %v6241, 4294901760
        %v6903 = vsub.f32 %v6241, %v6902
        %6904 = vmatpush1.msra.mxu0 %v6903
        %v6905 = vand.u32 %v6244, 4294901760
        %v6906 = vsub.f32 %v6244, %v6905
        %6907 = vmatprep.subr.mxu0 %v6906
        %v6908 = vand.u32 %v6243, 4294901760
        %v6909 = vsub.f32 %v6243, %v6908
        %6910 = vmatpush1.msra.mxu0 %v6909
        %v6911 = vand.u32 %v6246, 4294901760
        %v6912 = vsub.f32 %v6246, %v6911
        %6913 = vmatprep.subr.mxu0 %v6912
        %v6914 = vand.u32 %v6245, 4294901760
        %v6915 = vsub.f32 %v6245, %v6914
        %6916 = vmatpush1.msra.mxu0 %v6915
        %v6917 = vand.u32 %v6248, 4294901760
        %v6918 = vsub.f32 %v6248, %v6917
        %6919 = vmatprep.subr.mxu0 %v6918
        %v6920 = vand.u32 %v6247, 4294901760
        %v6921 = vsub.f32 %v6247, %v6920
        %6922 = vmatpush1.msra.mxu0 %v6921
        %v6923 = vand.u32 %v6250, 4294901760
        %v6924 = vsub.f32 %v6250, %v6923
        %6925 = vmatprep.subr.mxu0 %v6924
        %v6926 = vand.u32 %v6249, 4294901760
        %v6927 = vsub.f32 %v6249, %v6926
        %6928 = vmatpush1.msra.mxu0 %v6927
        %v6929 = vand.u32 %v6252, 4294901760
        %v6930 = vsub.f32 %v6252, %v6929
        %6931 = vmatprep.subr.mxu0 %v6930
        %v6932 = vand.u32 %v6251, 4294901760
        %v6933 = vsub.f32 %v6251, %v6932
        %6934 = vmatpush1.msra.mxu0 %v6933
        %v6935 = vand.u32 %v6254, 4294901760
        %v6936 = vsub.f32 %v6254, %v6935
        %6937 = vmatprep.subr.mxu0 %v6936
        %v6938 = vand.u32 %v6253, 4294901760
        %v6939 = vsub.f32 %v6253, %v6938
        %6940 = vmatpush1.msra.mxu0 %v6939
        %v6941 = vand.u32 %v6256, 4294901760
        %v6942 = vsub.f32 %v6256, %v6941
        %6943 = vmatprep.subr.mxu0 %v6942
        %v6944 = vand.u32 %v6255, 4294901760
        %v6945 = vsub.f32 %v6255, %v6944
        %6946 = vmatpush1.msra.mxu0 %v6945
        %v6947 = vand.u32 %v6258, 4294901760
        %v6948 = vsub.f32 %v6258, %v6947
        %6949 = vmatprep.subr.mxu0 %v6948
        %v6950 = vand.u32 %v6257, 4294901760
        %v6951 = vsub.f32 %v6257, %v6950
        %6952 = vmatpush1.msra.mxu0 %v6951
        %v6953 = vand.u32 %v6260, 4294901760
        %v6954 = vsub.f32 %v6260, %v6953
        %6955 = vmatprep.subr.mxu0 %v6954
        %v6956 = vand.u32 %v6259, 4294901760
        %v6957 = vsub.f32 %v6259, %v6956
        %6958 = vmatpush1.msra.mxu0 %v6957
        %v6959 = vand.u32 %v6262, 4294901760
        %v6960 = vsub.f32 %v6262, %v6959
        %6961 = vmatprep.subr.mxu0 %v6960
        %v6962 = vand.u32 %v6261, 4294901760
        %v6963 = vsub.f32 %v6261, %v6962
        %6964 = vmatpush1.msra.mxu0 %v6963
        %v6965 = vand.u32 %v6264, 4294901760
        %v6966 = vsub.f32 %v6264, %v6965
        %6967 = vmatprep.subr.mxu0 %v6966
        %v6968 = vand.u32 %v6263, 4294901760
        %v6969 = vsub.f32 %v6263, %v6968
        %6970 = vmatpush1.msra.mxu0 %v6969
        %v6971 = vand.u32 %v6266, 4294901760
        %v6972 = vsub.f32 %v6266, %v6971
        %6973 = vmatprep.subr.mxu0 %v6972
        %v6974 = vand.u32 %v6265, 4294901760
        %v6975 = vsub.f32 %v6265, %v6974
        %6976 = vmatpush1.msra.mxu0 %v6975
        %v6977 = vand.u32 %v6268, 4294901760
        %v6978 = vsub.f32 %v6268, %v6977
        %6979 = vmatprep.subr.mxu0 %v6978
        %v6980 = vand.u32 %v6267, 4294901760
        %v6981 = vsub.f32 %v6267, %v6980
        %6982 = vmatpush1.msra.mxu0 %v6981
        %v6983 = vand.u32 %v6270, 4294901760
        %v6984 = vsub.f32 %v6270, %v6983
        %6985 = vmatprep.subr.mxu0 %v6984
        %v6986 = vand.u32 %v6269, 4294901760
        %v6987 = vsub.f32 %v6269, %v6986
        %6988 = vmatpush1.msra.mxu0 %v6987
        %v6989 = vand.u32 %v6272, 4294901760
        %v6990 = vsub.f32 %v6272, %v6989
        %6991 = vmatprep.subr.mxu0 %v6990
        %v6992 = vand.u32 %v6271, 4294901760
        %v6993 = vsub.f32 %v6271, %v6992
        %6994 = vmatpush1.msra.mxu0 %v6993
        %v6995 = vand.u32 %v6274, 4294901760
        %v6996 = vsub.f32 %v6274, %v6995
        %6997 = vmatprep.subr.mxu0 %v6996
        %v6998 = vand.u32 %v6273, 4294901760
        %v6999 = vsub.f32 %v6273, %v6998
        %7000 = vmatpush1.msra.mxu0 %v6999
        %v7001 = vand.u32 %v6276, 4294901760
        %v7002 = vsub.f32 %v6276, %v7001
        %7003 = vmatprep.subr.mxu0 %v7002
        %v7004 = vand.u32 %v6275, 4294901760
        %v7005 = vsub.f32 %v6275, %v7004
        %7006 = vmatpush1.msra.mxu0 %v7005
        %v7007 = vand.u32 %v6278, 4294901760
        %v7008 = vsub.f32 %v6278, %v7007
        %7009 = vmatprep.subr.mxu0 %v7008
        %v7010 = vand.u32 %v6277, 4294901760
        %v7011 = vsub.f32 %v6277, %v7010
        %7012 = vmatpush1.msra.mxu0 %v7011
        %v7013 = vand.u32 %v6280, 4294901760
        %v7014 = vsub.f32 %v6280, %v7013
        %7015 = vmatprep.subr.mxu0 %v7014
        %v7016 = vand.u32 %v6279, 4294901760
        %v7017 = vsub.f32 %v6279, %v7016
        %7018 = vmatpush1.msra.mxu0 %v7017
        %v7019 = vand.u32 %v6282, 4294901760
        %v7020 = vsub.f32 %v6282, %v7019
        %7021 = vmatprep.subr.mxu0 %v7020
        %v7022 = vand.u32 %v6281, 4294901760
        %v7023 = vsub.f32 %v6281, %v7022
        %7024 = vmatpush1.msra.mxu0 %v7023
        %v7025 = vand.u32 %v6284, 4294901760
        %v7026 = vsub.f32 %v6284, %v7025
        %7027 = vmatprep.subr.mxu0 %v7026
        %v7028 = vand.u32 %v6283, 4294901760
        %v7029 = vsub.f32 %v6283, %v7028
        %7030 = vmatpush1.msra.mxu0 %v7029
        %v7031 = vand.u32 %v6286, 4294901760
        %v7032 = vsub.f32 %v6286, %v7031
        %7033 = vmatprep.subr.mxu0 %v7032
        %v7034 = vand.u32 %v6285, 4294901760
        %v7035 = vsub.f32 %v6285, %v7034
        %7036 = vmatpush1.msra.mxu0 %v7035
        %v7037 = vand.u32 %v6288, 4294901760
        %v7038 = vsub.f32 %v6288, %v7037
        %7039 = vmatprep.subr.mxu0 %v7038
        %v7040 = vand.u32 %v6287, 4294901760
        %v7041 = vsub.f32 %v6287, %v7040
        %7042 = vmatpush1.msra.mxu0 %v7041
        %v7043 = vand.u32 %v6290, 4294901760
        %v7044 = vsub.f32 %v6290, %v7043
        %7045 = vmatprep.subr.mxu0 %v7044
        %v7046 = vand.u32 %v6289, 4294901760
        %v7047 = vsub.f32 %v6289, %v7046
        %7048 = vmatpush1.msra.mxu0 %v7047
        %v7049 = vand.u32 %v6292, 4294901760
        %v7050 = vsub.f32 %v6292, %v7049
        %7051 = vmatprep.subr.mxu0 %v7050
        %v7052 = vand.u32 %v6291, 4294901760
        %v7053 = vsub.f32 %v6291, %v7052
        %7054 = vmatpush1.msra.mxu0 %v7053
        %v7055 = vand.u32 %v6294, 4294901760
        %v7056 = vsub.f32 %v6294, %v7055
        %7057 = vmatprep.subr.mxu0 %v7056
        %v7058 = vand.u32 %v6293, 4294901760
        %v7059 = vsub.f32 %v6293, %v7058
        %7060 = vmatpush1.msra.mxu0 %v7059
        %v7061 = vand.u32 %v6228, 4294901760
        %v7062 = vsub.f32 %v6228, %v7061
        %7063 = vmatprep.mubr.f32.mxu0 %v7062
        %v7064 = vand.u32 %v6227, 4294901760
        %v7065 = vsub.f32 %v6227, %v7064
        %7066 = vmatmul.mubr.f32.gmra.mrb[0].mxu0 %v7065
        %v7067 = vpop.f32.mrb[0].mxu0
        %v7068 = vadd.f32 %v6857, %v7067
        %v7069 = vpop.f32.mrb[0].mxu0
        %v7070 = vadd.f32 %v6859, %v7069
        %v7071 = vand.u32 %v6230, 4294901760
        %v7072 = vsub.f32 %v6230, %v7071
        %7073 = vmatprep.mubr.f32.mxu0 %v7072
        %v7074 = vand.u32 %v6229, 4294901760
        %v7075 = vsub.f32 %v6229, %v7074
        %7076 = vmatmul.mubr.f32.gmra.mrb[0].mxu0 %v7075
        %v7077 = vpop.f32.mrb[0].mxu0
        %v7078 = vadd.f32 %v6865, %v7077
        %v7079 = vpop.f32.mrb[0].mxu0
        %v7080 = vadd.f32 %v6867, %v7079
        %7081 = vdwg.mxu0
        %v7082 = vand.u32 %v6232, 4294901760
        %7083 = vmatprep.subr.mxu0 %v7082
        %v7084 = vand.u32 %v6231, 4294901760
        %7085 = vmatpush1.msra.mxu0 %v7084
        %v7086 = vand.u32 %v6234, 4294901760
        %7087 = vmatprep.subr.mxu0 %v7086
        %v7088 = vand.u32 %v6233, 4294901760
        %7089 = vmatpush1.msra.mxu0 %v7088
        %v7090 = vand.u32 %v6236, 4294901760
        %7091 = vmatprep.subr.mxu0 %v7090
        %v7092 = vand.u32 %v6235, 4294901760
        %7093 = vmatpush1.msra.mxu0 %v7092
        %v7094 = vand.u32 %v6238, 4294901760
        %7095 = vmatprep.subr.mxu0 %v7094
        %v7096 = vand.u32 %v6237, 4294901760
        %7097 = vmatpush1.msra.mxu0 %v7096
        %v7098 = vand.u32 %v6240, 4294901760
        %7099 = vmatprep.subr.mxu0 %v7098
        %v7100 = vand.u32 %v6239, 4294901760
        %7101 = vmatpush1.msra.mxu0 %v7100
        %v7102 = vand.u32 %v6242, 4294901760
        %7103 = vmatprep.subr.mxu0 %v7102
        %v7104 = vand.u32 %v6241, 4294901760
        %7105 = vmatpush1.msra.mxu0 %v7104
        %v7106 = vand.u32 %v6244, 4294901760
        %7107 = vmatprep.subr.mxu0 %v7106
        %v7108 = vand.u32 %v6243, 4294901760
        %7109 = vmatpush1.msra.mxu0 %v7108
        %v7110 = vand.u32 %v6246, 4294901760
        %7111 = vmatprep.subr.mxu0 %v7110
        %v7112 = vand.u32 %v6245, 4294901760
        %7113 = vmatpush1.msra.mxu0 %v7112
        %v7114 = vand.u32 %v6248, 4294901760
        %7115 = vmatprep.subr.mxu0 %v7114
        %v7116 = vand.u32 %v6247, 4294901760
        %7117 = vmatpush1.msra.mxu0 %v7116
        %v7118 = vand.u32 %v6250, 4294901760
        %7119 = vmatprep.subr.mxu0 %v7118
        %v7120 = vand.u32 %v6249, 4294901760
        %7121 = vmatpush1.msra.mxu0 %v7120
        %v7122 = vand.u32 %v6252, 4294901760
        %7123 = vmatprep.subr.mxu0 %v7122
        %v7124 = vand.u32 %v6251, 4294901760
        %7125 = vmatpush1.msra.mxu0 %v7124
        %v7126 = vand.u32 %v6254, 4294901760
        %7127 = vmatprep.subr.mxu0 %v7126
        %v7128 = vand.u32 %v6253, 4294901760
        %7129 = vmatpush1.msra.mxu0 %v7128
        %v7130 = vand.u32 %v6256, 4294901760
        %7131 = vmatprep.subr.mxu0 %v7130
        %v7132 = vand.u32 %v6255, 4294901760
        %7133 = vmatpush1.msra.mxu0 %v7132
        %v7134 = vand.u32 %v6258, 4294901760
        %7135 = vmatprep.subr.mxu0 %v7134
        %v7136 = vand.u32 %v6257, 4294901760
        %7137 = vmatpush1.msra.mxu0 %v7136
        %v7138 = vand.u32 %v6260, 4294901760
        %7139 = vmatprep.subr.mxu0 %v7138
        %v7140 = vand.u32 %v6259, 4294901760
        %7141 = vmatpush1.msra.mxu0 %v7140
        %v7142 = vand.u32 %v6262, 4294901760
        %7143 = vmatprep.subr.mxu0 %v7142
        %v7144 = vand.u32 %v6261, 4294901760
        %7145 = vmatpush1.msra.mxu0 %v7144
        %v7146 = vand.u32 %v6264, 4294901760
        %7147 = vmatprep.subr.mxu0 %v7146
        %v7148 = vand.u32 %v6263, 4294901760
        %7149 = vmatpush1.msra.mxu0 %v7148
        %v7150 = vand.u32 %v6266, 4294901760
        %7151 = vmatprep.subr.mxu0 %v7150
        %v7152 = vand.u32 %v6265, 4294901760
        %7153 = vmatpush1.msra.mxu0 %v7152
        %v7154 = vand.u32 %v6268, 4294901760
        %7155 = vmatprep.subr.mxu0 %v7154
        %v7156 = vand.u32 %v6267, 4294901760
        %7157 = vmatpush1.msra.mxu0 %v7156
        %v7158 = vand.u32 %v6270, 4294901760
        %7159 = vmatprep.subr.mxu0 %v7158
        %v7160 = vand.u32 %v6269, 4294901760
        %7161 = vmatpush1.msra.mxu0 %v7160
        %v7162 = vand.u32 %v6272, 4294901760
        %7163 = vmatprep.subr.mxu0 %v7162
        %v7164 = vand.u32 %v6271, 4294901760
        %7165 = vmatpush1.msra.mxu0 %v7164
        %v7166 = vand.u32 %v6274, 4294901760
        %7167 = vmatprep.subr.mxu0 %v7166
        %v7168 = vand.u32 %v6273, 4294901760
        %7169 = vmatpush1.msra.mxu0 %v7168
        %v7170 = vand.u32 %v6276, 4294901760
        %7171 = vmatprep.subr.mxu0 %v7170
        %v7172 = vand.u32 %v6275, 4294901760
        %7173 = vmatpush1.msra.mxu0 %v7172
        %v7174 = vand.u32 %v6278, 4294901760
        %7175 = vmatprep.subr.mxu0 %v7174
        %v7176 = vand.u32 %v6277, 4294901760
        %7177 = vmatpush1.msra.mxu0 %v7176
        %v7178 = vand.u32 %v6280, 4294901760
        %7179 = vmatprep.subr.mxu0 %v7178
        %v7180 = vand.u32 %v6279, 4294901760
        %7181 = vmatpush1.msra.mxu0 %v7180
        %v7182 = vand.u32 %v6282, 4294901760
        %7183 = vmatprep.subr.mxu0 %v7182
        %v7184 = vand.u32 %v6281, 4294901760
        %7185 = vmatpush1.msra.mxu0 %v7184
        %v7186 = vand.u32 %v6284, 4294901760
        %7187 = vmatprep.subr.mxu0 %v7186
        %v7188 = vand.u32 %v6283, 4294901760
        %7189 = vmatpush1.msra.mxu0 %v7188
        %v7190 = vand.u32 %v6286, 4294901760
        %7191 = vmatprep.subr.mxu0 %v7190
        %v7192 = vand.u32 %v6285, 4294901760
        %7193 = vmatpush1.msra.mxu0 %v7192
        %v7194 = vand.u32 %v6288, 4294901760
        %7195 = vmatprep.subr.mxu0 %v7194
        %v7196 = vand.u32 %v6287, 4294901760
        %7197 = vmatpush1.msra.mxu0 %v7196
        %v7198 = vand.u32 %v6290, 4294901760
        %7199 = vmatprep.subr.mxu0 %v7198
        %v7200 = vand.u32 %v6289, 4294901760
        %7201 = vmatpush1.msra.mxu0 %v7200
        %v7202 = vand.u32 %v6292, 4294901760
        %7203 = vmatprep.subr.mxu0 %v7202
        %v7204 = vand.u32 %v6291, 4294901760
        %7205 = vmatpush1.msra.mxu0 %v7204
        %v7206 = vand.u32 %v6294, 4294901760
        %7207 = vmatprep.subr.mxu0 %v7206
        %v7208 = vand.u32 %v6293, 4294901760
        %7209 = vmatpush1.msra.mxu0 %v7208
        %v7210 = vand.u32 %v6228, 4294901760
        %v7211 = vsub.f32 %v6228, %v7210
        %v7212 = vand.u32 %v7211, 4294901760
        %7213 = vmatprep.mubr.f32.mxu0 %v7212
        %v7214 = vand.u32 %v6227, 4294901760
        %v7215 = vsub.f32 %v6227, %v7214
        %v7216 = vand.u32 %v7215, 4294901760
        %7217 = vmatmul.mubr.f32.gmra.mrb[0].mxu0 %v7216
        %v7218 = vpop.f32.mrb[0].mxu0
        %v7219 = vadd.f32 %v7068, %v7218
        %v7220 = vpop.f32.mrb[0].mxu0
        %v7221 = vadd.f32 %v7070, %v7220
        %v7222 = vand.u32 %v6230, 4294901760
        %v7223 = vsub.f32 %v6230, %v7222
        %v7224 = vand.u32 %v7223, 4294901760
        %7225 = vmatprep.mubr.f32.mxu0 %v7224
        %v7226 = vand.u32 %v6229, 4294901760
        %v7227 = vsub.f32 %v6229, %v7226
        %v7228 = vand.u32 %v7227, 4294901760
        %7229 = vmatmul.mubr.f32.gmra.mrb[0].mxu0 %v7228
        %v7230 = vpop.f32.mrb[0].mxu0
        %v7231 = vadd.f32 %v7078, %v7230
        %v7232 = vpop.f32.mrb[0].mxu0
        %v7233 = vadd.f32 %v7080, %v7232
        %7234 = vdwg.mxu0
        %v7235 = vand.u32 %v6232, 4294901760
        %v7236 = vsub.f32 %v6232, %v7235
        %v7237 = vand.u32 %v7236, 4294901760
        %7238 = vmatprep.subr.mxu0 %v7237
        %v7239 = vand.u32 %v6231, 4294901760
        %v7240 = vsub.f32 %v6231, %v7239
        %v7241 = vand.u32 %v7240, 4294901760
        %7242 = vmatpush1.msra.mxu0 %v7241
        %v7243 = vand.u32 %v6234, 4294901760
        %v7244 = vsub.f32 %v6234, %v7243
        %v7245 = vand.u32 %v7244, 4294901760
        %7246 = vmatprep.subr.mxu0 %v7245
        %v7247 = vand.u32 %v6233, 4294901760
        %v7248 = vsub.f32 %v6233, %v7247
        %v7249 = vand.u32 %v7248, 4294901760
        %7250 = vmatpush1.msra.mxu0 %v7249
        %v7251 = vand.u32 %v6236, 4294901760
        %v7252 = vsub.f32 %v6236, %v7251
        %v7253 = vand.u32 %v7252, 4294901760
        %7254 = vmatprep.subr.mxu0 %v7253
        %v7255 = vand.u32 %v6235, 4294901760
        %v7256 = vsub.f32 %v6235, %v7255
        %v7257 = vand.u32 %v7256, 4294901760
        %7258 = vmatpush1.msra.mxu0 %v7257
        %v7259 = vand.u32 %v6238, 4294901760
        %v7260 = vsub.f32 %v6238, %v7259
        %v7261 = vand.u32 %v7260, 4294901760
        %7262 = vmatprep.subr.mxu0 %v7261
        %v7263 = vand.u32 %v6237, 4294901760
        %v7264 = vsub.f32 %v6237, %v7263
        %v7265 = vand.u32 %v7264, 4294901760
        %7266 = vmatpush1.msra.mxu0 %v7265
        %v7267 = vand.u32 %v6240, 4294901760
        %v7268 = vsub.f32 %v6240, %v7267
        %v7269 = vand.u32 %v7268, 4294901760
        %7270 = vmatprep.subr.mxu0 %v7269
        %v7271 = vand.u32 %v6239, 4294901760
        %v7272 = vsub.f32 %v6239, %v7271
        %v7273 = vand.u32 %v7272, 4294901760
        %7274 = vmatpush1.msra.mxu0 %v7273
        %v7275 = vand.u32 %v6242, 4294901760
        %v7276 = vsub.f32 %v6242, %v7275
        %v7277 = vand.u32 %v7276, 4294901760
        %7278 = vmatprep.subr.mxu0 %v7277
        %v7279 = vand.u32 %v6241, 4294901760
        %v7280 = vsub.f32 %v6241, %v7279
        %v7281 = vand.u32 %v7280, 4294901760
        %7282 = vmatpush1.msra.mxu0 %v7281
        %v7283 = vand.u32 %v6244, 4294901760
        %v7284 = vsub.f32 %v6244, %v7283
        %v7285 = vand.u32 %v7284, 4294901760
        %7286 = vmatprep.subr.mxu0 %v7285
        %v7287 = vand.u32 %v6243, 4294901760
        %v7288 = vsub.f32 %v6243, %v7287
        %v7289 = vand.u32 %v7288, 4294901760
        %7290 = vmatpush1.msra.mxu0 %v7289
        %v7291 = vand.u32 %v6246, 4294901760
        %v7292 = vsub.f32 %v6246, %v7291
        %v7293 = vand.u32 %v7292, 4294901760
        %7294 = vmatprep.subr.mxu0 %v7293
        %v7295 = vand.u32 %v6245, 4294901760
        %v7296 = vsub.f32 %v6245, %v7295
        %v7297 = vand.u32 %v7296, 4294901760
        %7298 = vmatpush1.msra.mxu0 %v7297
        %v7299 = vand.u32 %v6248, 4294901760
        %v7300 = vsub.f32 %v6248, %v7299
        %v7301 = vand.u32 %v7300, 4294901760
        %7302 = vmatprep.subr.mxu0 %v7301
        %v7303 = vand.u32 %v6247, 4294901760
        %v7304 = vsub.f32 %v6247, %v7303
        %v7305 = vand.u32 %v7304, 4294901760
        %7306 = vmatpush1.msra.mxu0 %v7305
        %v7307 = vand.u32 %v6250, 4294901760
        %v7308 = vsub.f32 %v6250, %v7307
        %v7309 = vand.u32 %v7308, 4294901760
        %7310 = vmatprep.subr.mxu0 %v7309
        %v7311 = vand.u32 %v6249, 4294901760
        %v7312 = vsub.f32 %v6249, %v7311
        %v7313 = vand.u32 %v7312, 4294901760
        %7314 = vmatpush1.msra.mxu0 %v7313
        %v7315 = vand.u32 %v6252, 4294901760
        %v7316 = vsub.f32 %v6252, %v7315
        %v7317 = vand.u32 %v7316, 4294901760
        %7318 = vmatprep.subr.mxu0 %v7317
        %v7319 = vand.u32 %v6251, 4294901760
        %v7320 = vsub.f32 %v6251, %v7319
        %v7321 = vand.u32 %v7320, 4294901760
        %7322 = vmatpush1.msra.mxu0 %v7321
        %v7323 = vand.u32 %v6254, 4294901760
        %v7324 = vsub.f32 %v6254, %v7323
        %v7325 = vand.u32 %v7324, 4294901760
        %7326 = vmatprep.subr.mxu0 %v7325
        %v7327 = vand.u32 %v6253, 4294901760
        %v7328 = vsub.f32 %v6253, %v7327
        %v7329 = vand.u32 %v7328, 4294901760
        %7330 = vmatpush1.msra.mxu0 %v7329
        %v7331 = vand.u32 %v6256, 4294901760
        %v7332 = vsub.f32 %v6256, %v7331
        %v7333 = vand.u32 %v7332, 4294901760
        %7334 = vmatprep.subr.mxu0 %v7333
        %v7335 = vand.u32 %v6255, 4294901760
        %v7336 = vsub.f32 %v6255, %v7335
        %v7337 = vand.u32 %v7336, 4294901760
        %7338 = vmatpush1.msra.mxu0 %v7337
        %v7339 = vand.u32 %v6258, 4294901760
        %v7340 = vsub.f32 %v6258, %v7339
        %v7341 = vand.u32 %v7340, 4294901760
        %7342 = vmatprep.subr.mxu0 %v7341
        %v7343 = vand.u32 %v6257, 4294901760
        %v7344 = vsub.f32 %v6257, %v7343
        %v7345 = vand.u32 %v7344, 4294901760
        %7346 = vmatpush1.msra.mxu0 %v7345
        %v7347 = vand.u32 %v6260, 4294901760
        %v7348 = vsub.f32 %v6260, %v7347
        %v7349 = vand.u32 %v7348, 4294901760
        %7350 = vmatprep.subr.mxu0 %v7349
        %v7351 = vand.u32 %v6259, 4294901760
        %v7352 = vsub.f32 %v6259, %v7351
        %v7353 = vand.u32 %v7352, 4294901760
        %7354 = vmatpush1.msra.mxu0 %v7353
        %v7355 = vand.u32 %v6262, 4294901760
        %v7356 = vsub.f32 %v6262, %v7355
        %v7357 = vand.u32 %v7356, 4294901760
        %7358 = vmatprep.subr.mxu0 %v7357
        %v7359 = vand.u32 %v6261, 4294901760
        %v7360 = vsub.f32 %v6261, %v7359
        %v7361 = vand.u32 %v7360, 4294901760
        %7362 = vmatpush1.msra.mxu0 %v7361
        %v7363 = vand.u32 %v6264, 4294901760
        %v7364 = vsub.f32 %v6264, %v7363
        %v7365 = vand.u32 %v7364, 4294901760
        %7366 = vmatprep.subr.mxu0 %v7365
        %v7367 = vand.u32 %v6263, 4294901760
        %v7368 = vsub.f32 %v6263, %v7367
        %v7369 = vand.u32 %v7368, 4294901760
        %7370 = vmatpush1.msra.mxu0 %v7369
        %v7371 = vand.u32 %v6266, 4294901760
        %v7372 = vsub.f32 %v6266, %v7371
        %v7373 = vand.u32 %v7372, 4294901760
        %7374 = vmatprep.subr.mxu0 %v7373
        %v7375 = vand.u32 %v6265, 4294901760
        %v7376 = vsub.f32 %v6265, %v7375
        %v7377 = vand.u32 %v7376, 4294901760
        %7378 = vmatpush1.msra.mxu0 %v7377
        %v7379 = vand.u32 %v6268, 4294901760
        %v7380 = vsub.f32 %v6268, %v7379
        %v7381 = vand.u32 %v7380, 4294901760
        %7382 = vmatprep.subr.mxu0 %v7381
        %v7383 = vand.u32 %v6267, 4294901760
        %v7384 = vsub.f32 %v6267, %v7383
        %v7385 = vand.u32 %v7384, 4294901760
        %7386 = vmatpush1.msra.mxu0 %v7385
        %v7387 = vand.u32 %v6270, 4294901760
        %v7388 = vsub.f32 %v6270, %v7387
        %v7389 = vand.u32 %v7388, 4294901760
        %7390 = vmatprep.subr.mxu0 %v7389
        %v7391 = vand.u32 %v6269, 4294901760
        %v7392 = vsub.f32 %v6269, %v7391
        %v7393 = vand.u32 %v7392, 4294901760
        %7394 = vmatpush1.msra.mxu0 %v7393
        %v7395 = vand.u32 %v6272, 4294901760
        %v7396 = vsub.f32 %v6272, %v7395
        %v7397 = vand.u32 %v7396, 4294901760
        %7398 = vmatprep.subr.mxu0 %v7397
        %v7399 = vand.u32 %v6271, 4294901760
        %v7400 = vsub.f32 %v6271, %v7399
        %v7401 = vand.u32 %v7400, 4294901760
        %7402 = vmatpush1.msra.mxu0 %v7401
        %v7403 = vand.u32 %v6274, 4294901760
        %v7404 = vsub.f32 %v6274, %v7403
        %v7405 = vand.u32 %v7404, 4294901760
        %7406 = vmatprep.subr.mxu0 %v7405
        %v7407 = vand.u32 %v6273, 4294901760
        %v7408 = vsub.f32 %v6273, %v7407
        %v7409 = vand.u32 %v7408, 4294901760
        %7410 = vmatpush1.msra.mxu0 %v7409
        %v7411 = vand.u32 %v6276, 4294901760
        %v7412 = vsub.f32 %v6276, %v7411
        %v7413 = vand.u32 %v7412, 4294901760
        %7414 = vmatprep.subr.mxu0 %v7413
        %v7415 = vand.u32 %v6275, 4294901760
        %v7416 = vsub.f32 %v6275, %v7415
        %v7417 = vand.u32 %v7416, 4294901760
        %7418 = vmatpush1.msra.mxu0 %v7417
        %v7419 = vand.u32 %v6278, 4294901760
        %v7420 = vsub.f32 %v6278, %v7419
        %v7421 = vand.u32 %v7420, 4294901760
        %7422 = vmatprep.subr.mxu0 %v7421
        %v7423 = vand.u32 %v6277, 4294901760
        %v7424 = vsub.f32 %v6277, %v7423
        %v7425 = vand.u32 %v7424, 4294901760
        %7426 = vmatpush1.msra.mxu0 %v7425
        %v7427 = vand.u32 %v6280, 4294901760
        %v7428 = vsub.f32 %v6280, %v7427
        %v7429 = vand.u32 %v7428, 4294901760
        %7430 = vmatprep.subr.mxu0 %v7429
        %v7431 = vand.u32 %v6279, 4294901760
        %v7432 = vsub.f32 %v6279, %v7431
        %v7433 = vand.u32 %v7432, 4294901760
        %7434 = vmatpush1.msra.mxu0 %v7433
        %v7435 = vand.u32 %v6282, 4294901760
        %v7436 = vsub.f32 %v6282, %v7435
        %v7437 = vand.u32 %v7436, 4294901760
        %7438 = vmatprep.subr.mxu0 %v7437
        %v7439 = vand.u32 %v6281, 4294901760
        %v7440 = vsub.f32 %v6281, %v7439
        %v7441 = vand.u32 %v7440, 4294901760
        %7442 = vmatpush1.msra.mxu0 %v7441
        %v7443 = vand.u32 %v6284, 4294901760
        %v7444 = vsub.f32 %v6284, %v7443
        %v7445 = vand.u32 %v7444, 4294901760
        %7446 = vmatprep.subr.mxu0 %v7445
        %v7447 = vand.u32 %v6283, 4294901760
        %v7448 = vsub.f32 %v6283, %v7447
        %v7449 = vand.u32 %v7448, 4294901760
        %7450 = vmatpush1.msra.mxu0 %v7449
        %v7451 = vand.u32 %v6286, 4294901760
        %v7452 = vsub.f32 %v6286, %v7451
        %v7453 = vand.u32 %v7452, 4294901760
        %7454 = vmatprep.subr.mxu0 %v7453
        %v7455 = vand.u32 %v6285, 4294901760
        %v7456 = vsub.f32 %v6285, %v7455
        %v7457 = vand.u32 %v7456, 4294901760
        %7458 = vmatpush1.msra.mxu0 %v7457
        %v7459 = vand.u32 %v6288, 4294901760
        %v7460 = vsub.f32 %v6288, %v7459
        %v7461 = vand.u32 %v7460, 4294901760
        %7462 = vmatprep.subr.mxu0 %v7461
        %v7463 = vand.u32 %v6287, 4294901760
        %v7464 = vsub.f32 %v6287, %v7463
        %v7465 = vand.u32 %v7464, 4294901760
        %7466 = vmatpush1.msra.mxu0 %v7465
        %v7467 = vand.u32 %v6290, 4294901760
        %v7468 = vsub.f32 %v6290, %v7467
        %v7469 = vand.u32 %v7468, 4294901760
        %7470 = vmatprep.subr.mxu0 %v7469
        %v7471 = vand.u32 %v6289, 4294901760
        %v7472 = vsub.f32 %v6289, %v7471
        %v7473 = vand.u32 %v7472, 4294901760
        %7474 = vmatpush1.msra.mxu0 %v7473
        %v7475 = vand.u32 %v6292, 4294901760
        %v7476 = vsub.f32 %v6292, %v7475
        %v7477 = vand.u32 %v7476, 4294901760
        %7478 = vmatprep.subr.mxu0 %v7477
        %v7479 = vand.u32 %v6291, 4294901760
        %v7480 = vsub.f32 %v6291, %v7479
        %v7481 = vand.u32 %v7480, 4294901760
        %7482 = vmatpush1.msra.mxu0 %v7481
        %v7483 = vand.u32 %v6294, 4294901760
        %v7484 = vsub.f32 %v6294, %v7483
        %v7485 = vand.u32 %v7484, 4294901760
        %7486 = vmatprep.subr.mxu0 %v7485
        %v7487 = vand.u32 %v6293, 4294901760
        %v7488 = vsub.f32 %v6293, %v7487
        %v7489 = vand.u32 %v7488, 4294901760
        %7490 = vmatpush1.msra.mxu0 %v7489
        %v7491 = vand.u32 %v6228, 4294901760
        %7492 = vmatprep.mubr.f32.mxu0 %v7491
        %v7493 = vand.u32 %v6227, 4294901760
        %7494 = vmatmul.mubr.f32.gmra.mrb[0].mxu0 %v7493
        %v7495 = vpop.f32.mrb[0].mxu0
        %v7496 = vadd.f32 %v7219, %v7495
        %v7497 = vpop.f32.mrb[0].mxu0
        %v7498 = vadd.f32 %v7221, %v7497
        %v7499 = vand.u32 %v6230, 4294901760
        %7500 = vmatprep.mubr.f32.mxu0 %v7499
        %v7501 = vand.u32 %v6229, 4294901760
        %7502 = vmatmul.mubr.f32.gmra.mrb[0].mxu0 %v7501
        %v7503 = vpop.f32.mrb[0].mxu0
        %v7504 = vadd.f32 %v7231, %v7503
        %v7505 = vpop.f32.mrb[0].mxu0
        %v7506 = vadd.f32 %v7233, %v7505
        %7507 = vdwg.mxu0
        %v7508 = vand.u32 %v6232, 4294901760
        %7509 = vmatprep.subr.mxu0 %v7508
        %v7510 = vand.u32 %v6231, 4294901760
        %7511 = vmatpush1.msra.mxu0 %v7510
        %v7512 = vand.u32 %v6234, 4294901760
        %7513 = vmatprep.subr.mxu0 %v7512
        %v7514 = vand.u32 %v6233, 4294901760
        %7515 = vmatpush1.msra.mxu0 %v7514
        %v7516 = vand.u32 %v6236, 4294901760
        %7517 = vmatprep.subr.mxu0 %v7516
        %v7518 = vand.u32 %v6235, 4294901760
        %7519 = vmatpush1.msra.mxu0 %v7518
        %v7520 = vand.u32 %v6238, 4294901760
        %7521 = vmatprep.subr.mxu0 %v7520
        %v7522 = vand.u32 %v6237, 4294901760
        %7523 = vmatpush1.msra.mxu0 %v7522
        %v7524 = vand.u32 %v6240, 4294901760
        %7525 = vmatprep.subr.mxu0 %v7524
        %v7526 = vand.u32 %v6239, 4294901760
        %7527 = vmatpush1.msra.mxu0 %v7526
        %v7528 = vand.u32 %v6242, 4294901760
        %7529 = vmatprep.subr.mxu0 %v7528
        %v7530 = vand.u32 %v6241, 4294901760
        %7531 = vmatpush1.msra.mxu0 %v7530
        %v7532 = vand.u32 %v6244, 4294901760
        %7533 = vmatprep.subr.mxu0 %v7532
        %v7534 = vand.u32 %v6243, 4294901760
        %7535 = vmatpush1.msra.mxu0 %v7534
        %v7536 = vand.u32 %v6246, 4294901760
        %7537 = vmatprep.subr.mxu0 %v7536
        %v7538 = vand.u32 %v6245, 4294901760
        %7539 = vmatpush1.msra.mxu0 %v7538
        %v7540 = vand.u32 %v6248, 4294901760
        %7541 = vmatprep.subr.mxu0 %v7540
        %v7542 = vand.u32 %v6247, 4294901760
        %7543 = vmatpush1.msra.mxu0 %v7542
        %v7544 = vand.u32 %v6250, 4294901760
        %7545 = vmatprep.subr.mxu0 %v7544
        %v7546 = vand.u32 %v6249, 4294901760
        %7547 = vmatpush1.msra.mxu0 %v7546
        %v7548 = vand.u32 %v6252, 4294901760
        %7549 = vmatprep.subr.mxu0 %v7548
        %v7550 = vand.u32 %v6251, 4294901760
        %7551 = vmatpush1.msra.mxu0 %v7550
        %v7552 = vand.u32 %v6254, 4294901760
        %7553 = vmatprep.subr.mxu0 %v7552
        %v7554 = vand.u32 %v6253, 4294901760
        %7555 = vmatpush1.msra.mxu0 %v7554
        %v7556 = vand.u32 %v6256, 4294901760
        %7557 = vmatprep.subr.mxu0 %v7556
        %v7558 = vand.u32 %v6255, 4294901760
        %7559 = vmatpush1.msra.mxu0 %v7558
        %v7560 = vand.u32 %v6258, 4294901760
        %7561 = vmatprep.subr.mxu0 %v7560
        %v7562 = vand.u32 %v6257, 4294901760
        %7563 = vmatpush1.msra.mxu0 %v7562
        %v7564 = vand.u32 %v6260, 4294901760
        %7565 = vmatprep.subr.mxu0 %v7564
        %v7566 = vand.u32 %v6259, 4294901760
        %7567 = vmatpush1.msra.mxu0 %v7566
        %v7568 = vand.u32 %v6262, 4294901760
        %7569 = vmatprep.subr.mxu0 %v7568
        %v7570 = vand.u32 %v6261, 4294901760
        %7571 = vmatpush1.msra.mxu0 %v7570
        %v7572 = vand.u32 %v6264, 4294901760
        %7573 = vmatprep.subr.mxu0 %v7572
        %v7574 = vand.u32 %v6263, 4294901760
        %7575 = vmatpush1.msra.mxu0 %v7574
        %v7576 = vand.u32 %v6266, 4294901760
        %7577 = vmatprep.subr.mxu0 %v7576
        %v7578 = vand.u32 %v6265, 4294901760
        %7579 = vmatpush1.msra.mxu0 %v7578
        %v7580 = vand.u32 %v6268, 4294901760
        %7581 = vmatprep.subr.mxu0 %v7580
        %v7582 = vand.u32 %v6267, 4294901760
        %7583 = vmatpush1.msra.mxu0 %v7582
        %v7584 = vand.u32 %v6270, 4294901760
        %7585 = vmatprep.subr.mxu0 %v7584
        %v7586 = vand.u32 %v6269, 4294901760
        %7587 = vmatpush1.msra.mxu0 %v7586
        %v7588 = vand.u32 %v6272, 4294901760
        %7589 = vmatprep.subr.mxu0 %v7588
        %v7590 = vand.u32 %v6271, 4294901760
        %7591 = vmatpush1.msra.mxu0 %v7590
        %v7592 = vand.u32 %v6274, 4294901760
        %7593 = vmatprep.subr.mxu0 %v7592
        %v7594 = vand.u32 %v6273, 4294901760
        %7595 = vmatpush1.msra.mxu0 %v7594
        %v7596 = vand.u32 %v6276, 4294901760
        %7597 = vmatprep.subr.mxu0 %v7596
        %v7598 = vand.u32 %v6275, 4294901760
        %7599 = vmatpush1.msra.mxu0 %v7598
        %v7600 = vand.u32 %v6278, 4294901760
        %7601 = vmatprep.subr.mxu0 %v7600
        %v7602 = vand.u32 %v6277, 4294901760
        %7603 = vmatpush1.msra.mxu0 %v7602
        %v7604 = vand.u32 %v6280, 4294901760
        %7605 = vmatprep.subr.mxu0 %v7604
        %v7606 = vand.u32 %v6279, 4294901760
        %7607 = vmatpush1.msra.mxu0 %v7606
        %v7608 = vand.u32 %v6282, 4294901760
        %7609 = vmatprep.subr.mxu0 %v7608
        %v7610 = vand.u32 %v6281, 4294901760
        %7611 = vmatpush1.msra.mxu0 %v7610
        %v7612 = vand.u32 %v6284, 4294901760
        %7613 = vmatprep.subr.mxu0 %v7612
        %v7614 = vand.u32 %v6283, 4294901760
        %7615 = vmatpush1.msra.mxu0 %v7614
        %v7616 = vand.u32 %v6286, 4294901760
        %7617 = vmatprep.subr.mxu0 %v7616
        %v7618 = vand.u32 %v6285, 4294901760
        %7619 = vmatpush1.msra.mxu0 %v7618
        %v7620 = vand.u32 %v6288, 4294901760
        %7621 = vmatprep.subr.mxu0 %v7620
        %v7622 = vand.u32 %v6287, 4294901760
        %7623 = vmatpush1.msra.mxu0 %v7622
        %v7624 = vand.u32 %v6290, 4294901760
        %7625 = vmatprep.subr.mxu0 %v7624
        %v7626 = vand.u32 %v6289, 4294901760
        %7627 = vmatpush1.msra.mxu0 %v7626
        %v7628 = vand.u32 %v6292, 4294901760
        %7629 = vmatprep.subr.mxu0 %v7628
        %v7630 = vand.u32 %v6291, 4294901760
        %7631 = vmatpush1.msra.mxu0 %v7630
        %v7632 = vand.u32 %v6294, 4294901760
        %7633 = vmatprep.subr.mxu0 %v7632
        %v7634 = vand.u32 %v6293, 4294901760
        %7635 = vmatpush1.msra.mxu0 %v7634
        %v7636 = vand.u32 %v6228, 4294901760
        %7637 = vmatprep.mubr.f32.mxu0 %v7636
        %v7638 = vand.u32 %v6227, 4294901760
        %7639 = vmatmul.mubr.f32.gmra.mrb[0].mxu0 %v7638
        %v7640 = vpop.f32.mrb[0].mxu0
        %v7641 = vadd.f32 %v7496, %v7640
        %v7642 = vpop.f32.mrb[0].mxu0
        %v7643 = vadd.f32 %v7498, %v7642
        %v7644 = vand.u32 %v6230, 4294901760
        %7645 = vmatprep.mubr.f32.mxu0 %v7644
        %v7646 = vand.u32 %v6229, 4294901760
        %7647 = vmatmul.mubr.f32.gmra.mrb[0].mxu0 %v7646
        %v7648 = vpop.f32.mrb[0].mxu0
        %v7649 = vadd.f32 %v7504, %v7648
        %v7650 = vpop.f32.mrb[0].mxu0
        %v7651 = vadd.f32 %v7506, %v7650
        %7652 = vdwg.mxu0
        %v7653 = vadd.f32 %v7641, %v328
        %v7654 = vadd.f32 %v7643, %v329
        %v7655 = vadd.f32 %v7649, %v330
        %v7656 = vadd.f32 %v7651, %v331
        %v7657 = vmax.f32 %v7653, 0.0
        %v7658 = vmax.f32 %v7654, 0.0
        %v7659 = vmax.f32 %v7655, 0.0
        %v7660 = vmax.f32 %v7656, 0.0
        %7661 = vst [vmem:[%s327] sm:$0xff] %v7657
        %7662 = vst [vmem:[%s327 + $0x8] sm:$0xff] %v7658
        %7663 = vst [vmem:[%s327 + $0x10] sm:$0xff] %v7659
        %7664 = vst [vmem:[%s327 + $0x18] sm:$0xff] %v7660
        %s7665 = sand.u32 %s164, 1
        %s7666 = scalar_lea.sflag [#allocation4], %s7665
        %s7667 = sand.u32 %s164, 1
        %s7668 = smul.addr %s7667, 32
        %s7669 = scalar_lea.vmem [#allocation11], %s7668
        // Predicated region
        $region65: #{tpu_custom_call.1} parent=43 // pred_check
          %p7670 = pneg %p174
        $region66: #{tpu_custom_call.1} parent=43 // pred_check_branch
          %7672 = sbr.rel (%p7670) target = $region68
        $region67: #{tpu_custom_call.1} parent=43 // pred_region
          %s7674 = ssub.s32 512, 512
          %7675 = vsyncadd %s7666, %s7674
          %s7676 = smul.addr %s25, 4
          %s7677 = smul.addr %s7676, 128
          %s7678 = scalar_lea.hbm %s6, %s7677
          %s7679 = sshll.u32 %s7669, 4
          %s7680 = int_to_ptr.vmem [resolvable:$true] %s7679
          %7685 = dma.vmem_to_hbm [thread:$0]  %s7680, 512, %s7678, %s7666, 256, 256, 16
        $region68: #{tpu_custom_call.1} parent=43 // pred_fallthru
          _
      $region44: #{tpu_custom_call.1} parent=5 // pred_fallthru
        _
      %p7686 = scmp.le.s32.totalorder 2, %s20
      // Predicated region
      $region69: #{tpu_custom_call.1} parent=5 // pred_check
        %p7687 = pneg %p7686
      $region70: #{tpu_custom_call.1} parent=5 // pred_check_branch
        %7689 = sbr.rel (%p7687) target = $region72
      $region71: #{tpu_custom_call.1} parent=5 // pred_region
        %s7690 = ssub.s32 %s20, 2
        // Predicated region
        $region73: #{tpu_custom_call.1} parent=71 // pred_check
          %p7691 = pneg %p180
        $region74: #{tpu_custom_call.1} parent=71 // pred_check_branch
          %7693 = sbr.rel (%p7691) target = $region76
        $region75: #{tpu_custom_call.1} parent=71 // pred_region
          %s7694 = sand.u32 %s165, 1
          %s7695 = scalar_lea.sflag [#allocation4], %s7694
          %s7696 = sand.u32 %s165, 1
          %s7697 = smul.addr %s7696, 32
          %s7698 = scalar_lea.vmem [#allocation11], %s7697
          %7699 = dma.done %s7695, 512
        $region76: #{tpu_custom_call.1} parent=71 // pred_fallthru
          _
      $region72: #{tpu_custom_call.1} parent=5 // pred_fallthru
        _
    $region6: #{tpu_custom_call.1} parent=1 // loop_footer
      %s24 = sadd.s32 1, %s20
    $region7: #{tpu_custom_call.1} parent=1 // loop_footer_branch
      %19 = sbr.rel target = $region3
    $region8: #{tpu_custom_call.1} parent=1 // loop_exit
      _
    %7700 = vsyncpa [#allocation3], 1
    %s7701 = scalar_lea.sflag [#allocation3], 1
    %7702 = vsyncpa %s7701, 1
    %7703 = vsyncpa [#allocation6], 1
    %7704 = vsyncpa [#allocation9], 1
    %7705 = vsyncpa [#allocation4], 1
    %s7706 = scalar_lea.sflag [#allocation4], 1
    %7707 = vsyncpa %s7706, 1

</llo_original>
